<compile_context>
chip_gen: v6e
topology: v6e:2x2x1
jax: 0.10.0
libtpu: 0.0.40
codegen_flags: <defaults>
</compile_context>

<pallas_src>
import functools

import numpy as np

import jax
import jax.numpy as jnp
from jax import lax
from jax.experimental import pallas as pl
from jax.experimental.pallas import tpu as pltpu

EPS = 1e-3    # BatchNorm2d eps from the PyTorch module
# Pool padding sentinel.  Safe only because the pooled tensor is a SiLU output,
# which is bounded below by ~-0.2785, so a padded -1e30 cell can never win a max.
NEG = -1e30


def _sppcspc_kernel(H, W, Cin, c, Cout,
                    x_ref, w01_ref, b01_ref, w2_ref, w3_ref, w8_ref,
                    w9_ref, w11_ref, bc_ref, b11_ref,
                    o_ref,
                    pad3_ref, padm_ref, col_ref, cat4_ref, c2_ref):
    M = H * W

    def silu(v):
        return v * jax.nn.sigmoid(v)

    def conv3x3(inp, w_ref, brow):
        # im2col: zero-padded scratch -> (M, 9c) patch matrix -> one K=9c matmul.
        pad3_ref[1:H + 1, 1:W + 1, :] = inp.reshape(H, W, c)
        for dy in range(3):
            for dx in range(3):
                j = dy * 3 + dx
                col_ref[:, j * c:(j + 1) * c] = (
                    pad3_ref[dy:dy + H, dx:dx + W, :].reshape(M, c))
        y = jnp.dot(col_ref[...], w_ref[...], preferred_element_type=jnp.float32)
        return silu(y + bc_ref[brow:brow + 1, :])

    def pool5(inp):
        # 5x5 stride-1 "same" max pool: separable maxima on a NEG-padded scratch.
        padm_ref[2:2 + H, 2:2 + W, :] = inp.reshape(H, W, c)
        cw = padm_ref[:, 0:W, :]
        for dx in range(1, 5):
            cw = jnp.maximum(cw, padm_ref[:, dx:dx + W, :])
        out = cw[0:H]
        for dy in range(1, 5):
            out = jnp.maximum(out, cw[dy:dy + H])
        return out.reshape(M, c)

    # Fill pad scratches once per grid step (interiors are fully overwritten on
    # every use, so only the borders matter afterwards).  Done per step so the
    # kernel stays correct when the batch axis is split across TensorCores.
    pad3_ref[...] = jnp.zeros(pad3_ref.shape, jnp.float32)
    padm_ref[...] = jnp.full(padm_ref.shape, NEG, jnp.float32)

    x = x_ref[...].reshape(M, Cin)

    # cbs0 + cbs1 share the input: one fused (Cin, 2c) matmul, staged to VMEM.
    y01 = jnp.dot(x, w01_ref[...], preferred_element_type=jnp.float32)
    c2_ref[...] = silu(y01 + b01_ref[...])          # columns [x0 | x1]
    x1 = c2_ref[:, c:2 * c]

    x1 = conv3x3(x1, w2_ref, 0)                                            # cbs2
    x1 = silu(jnp.dot(x1, w3_ref[...], preferred_element_type=jnp.float32)
              + bc_ref[1:2, :])                                            # cbs3
    cat4_ref[:, 0:c] = x1

    # Cascaded SPP pools (SPPF): pool9 = pool5∘pool5, pool13 = pool5∘pool5∘pool5.
    m5 = pool5(x1)
    cat4_ref[:, c:2 * c] = m5
    m9 = pool5(m5)
    cat4_ref[:, 2 * c:3 * c] = m9
    m13 = pool5(m9)
    cat4_ref[:, 3 * c:4 * c] = m13

    # cbs8: 1x1 over concat([x1, m5, m9, m13]) -> one K=4c matmul.
    x8 = silu(jnp.dot(cat4_ref[...], w8_ref[...],
                      preferred_element_type=jnp.float32) + bc_ref[2:3, :])

    x9 = conv3x3(x8, w9_ref, 3)                                            # cbs9
    c2_ref[:, c:2 * c] = x9                         # c2 now holds [x0 | x9]

    # cbs11: 1x1 over concat([x9, x0]) -> one K=2c matmul (weight rows were
    # permuted in the wrapper to match the [x0 | x9] column order of c2).
    out = silu(jnp.dot(c2_ref[...], w11_ref[...],
                       preferred_element_type=jnp.float32) + b11_ref[...])

    o_ref[...] = out.reshape(H, W, Cout).astype(o_ref.dtype)


def _fold_bn(p):
    """Fold eval-mode BatchNorm into the (bias-free) conv weights."""
    scale = p["gamma"] / jnp.sqrt(p["var"] + EPS)
    w = p["W"] * scale                     # (kh, kw, cin, cout) * (cout,)
    b = p["beta"] - p["mean"] * scale
    return w, b


def sppcspc_pallas(x_nchw, P):
    """x_nchw: (B, in_, H, W) float32 -> (B, out_, H, W) float32."""
    x = jnp.transpose(x_nchw, (0, 2, 3, 1)).astype(jnp.float32)   # NHWC
    B, H, W, Cin = x.shape
    c = P["cbs0"]["W"].shape[-1]
    Cout = P["cbs11"]["W"].shape[-1]

    def w1x1(name):
        w, b = _fold_bn(P[name])
        return w.reshape(w.shape[2], w.shape[3]), b

    def w3x3(name):
        # (3,3,cin,cout) -> (9*cin, cout); row order matches im2col (dy,dx,cin).
        w, b = _fold_bn(P[name])
        return w.reshape(9 * w.shape[2], w.shape[3]), b

    w0, b0 = w1x1("cbs0")
    w1, b1 = w1x1("cbs1")
    w2, b2 = w3x3("cbs2")
    w3, b3 = w1x1("cbs3")
    w8, b8 = w1x1("cbs8")
    w9, b9 = w3x3("cbs9")
    w11, b11 = w1x1("cbs11")

    # Fused / packed weights (see kernel):
    w01 = jnp.concatenate([w0, w1], axis=1)                    # (Cin, 2c)
    b01 = jnp.concatenate([b0, b1])[None, :]                   # (1, 2c)
    # cbs11 conv expects input order [x9, x0]; our c2 buffer is [x0, x9].
    w11p = jnp.concatenate([w11[c:2 * c], w11[0:c]], axis=0)   # (2c, Cout)
    b11 = b11[None, :]                                         # (1, Cout)
    bc = jnp.stack([b2, b3, b8, b9])                           # (4, c)

    args = (x, w01, b01, w2, w3, w8, w9, w11p, bc, b11)

    def rep_spec(a):
        return pl.BlockSpec(a.shape, lambda b, nd=a.ndim: (0,) * nd)

    in_specs = ([pl.BlockSpec((None, H, W, Cin), lambda b: (b, 0, 0, 0))]
                + [rep_spec(a) for a in args[1:]])
    out_specs = pl.BlockSpec((None, H, W, Cout), lambda b: (b, 0, 0, 0))

    grid_spec = pltpu.PrefetchScalarGridSpec(
        num_scalar_prefetch=0,
        grid=(B,),
        in_specs=in_specs,
        out_specs=out_specs,
        scratch_shapes=[
            pltpu.VMEM((H + 2, W + 2, c), jnp.float32),   # 3x3 conv zero pad
            pltpu.VMEM((H + 4, W + 4, c), jnp.float32),   # pool5 NEG pad
            pltpu.VMEM((H * W, 9 * c), jnp.float32),      # im2col patch matrix
            pltpu.VMEM((H * W, 4 * c), jnp.float32),      # [x1 | m5 | m9 | m13]
            pltpu.VMEM((H * W, 2 * c), jnp.float32),      # [x0 | x1] -> [x0 | x9]
        ],
    )

    y = pl.pallas_call(
        functools.partial(_sppcspc_kernel, H, W, Cin, c, Cout),
        out_shape=jax.ShapeDtypeStruct((B, H, W, Cout), jnp.float32),
        grid_spec=grid_spec,
        compiler_params=pltpu.CompilerParams(
            dimension_semantics=("parallel",),
            vmem_limit_bytes=32 * 1024 * 1024),
    )(*args)
    return jnp.transpose(y, (0, 3, 1, 2))


# ----------------------- pure-JAX reference (mirrors the PyTorch forward) ----

def _cbs_ref(x, p):
    k = p["W"].shape[0]
    pad = (k - 1) // 2
    y = lax.conv_general_dilated(
        x, p["W"], window_strides=(1, 1),
        padding=[(pad, pad), (pad, pad)],
        dimension_numbers=("NHWC", "HWIO", "NHWC"))
    y = (y - p["mean"]) * (p["gamma"] / jnp.sqrt(p["var"] + EPS)) + p["beta"]
    return y * jax.nn.sigmoid(y)


def _maxpool_ref(x, k):
    p = (k - 1) // 2
    return lax.reduce_window(x, -jnp.inf, lax.max, (1, k, k, 1), (1, 1, 1, 1),
                             [(0, 0), (p, p), (p, p), (0, 0)])


def sppcspc_reference(x_nchw, P):
    x = jnp.transpose(x_nchw, (0, 2, 3, 1)).astype(jnp.float32)
    x0 = _cbs_ref(x, P["cbs0"])
    x1 = _cbs_ref(x, P["cbs1"])
    x1 = _cbs_ref(x1, P["cbs2"])
    x1 = _cbs_ref(x1, P["cbs3"])
    x4 = _maxpool_ref(x1, 5)
    x5 = _maxpool_ref(x1, 9)
    x6 = _maxpool_ref(x1, 13)
    xc = jnp.concatenate([x1, x4, x5, x6], axis=-1)
    xc = _cbs_ref(xc, P["cbs8"])
    xc = _cbs_ref(xc, P["cbs9"])
    xc = jnp.concatenate([xc, x0], axis=-1)
    y = _cbs_ref(xc, P["cbs11"])
    return jnp.transpose(y, (0, 3, 1, 2))


def _init_cbs(key, cin, cout, k):
    kw, kg, kb, km, kv = jax.random.split(key, 5)
    return dict(
        W=jax.random.normal(kw, (k, k, cin, cout), jnp.float32) / np.sqrt(k * k * cin),
        gamma=jax.random.uniform(kg, (cout,), jnp.float32, 0.5, 1.5),
        beta=jax.random.normal(kb, (cout,), jnp.float32) * 0.1,
        mean=jax.random.normal(km, (cout,), jnp.float32) * 0.1,
        var=jax.random.uniform(kv, (cout,), jnp.float32, 0.5, 1.5),
    )


if __name__ == "__main__":
    # Small shapes consistent with the module: batch=2, in_=32 (-> c=16),
    # out_=32, spatial 16x16.  Input layout matches PyTorch NCHW.
    B, in_, out_, H, W = 2, 32, 32, 16, 16
    c = in_ // 2

    key = jax.random.PRNGKey(0)
    key, kx = jax.random.split(key)
    x = jax.random.normal(kx, (B, in_, H, W), jnp.float32)

    layer_defs = {
        "cbs0": (in_, c, 1), "cbs1": (in_, c, 1), "cbs2": (c, c, 3),
        "cbs3": (c, c, 1), "cbs8": (4 * c, c, 1), "cbs9": (c, c, 3),
        "cbs11": (2 * c, out_, 1),
    }
    P = {}
    for name, (ci, co, k) in layer_defs.items():
        key, sub = jax.random.split(key)
        P[name] = _init_cbs(sub, ci, co, k)

    run = jax.jit(sppcspc_pallas)
    got = jax.block_until_ready(run(x, P))
    want = jax.block_until_ready(sppcspc_reference(x, P))

    np.testing.assert_allclose(np.asarray(got), np.asarray(want),
                               rtol=2e-3, atol=2e-3)
    print("KERNEL_OK")
</pallas_src>

<mosaic_0001>
module attributes {stable_mosaic.version = 11 : i64} {
  func.func @_sppcspc_kernel(%arg0: i32, %arg1: memref<1x16x16x32xf32, #tpu.memory_space<vmem>>, %arg2: memref<32x32xf32, #tpu.memory_space<vmem>>, %arg3: memref<1x32xf32, #tpu.memory_space<vmem>>, %arg4: memref<144x16xf32, #tpu.memory_space<vmem>>, %arg5: memref<16x16xf32, #tpu.memory_space<vmem>>, %arg6: memref<64x16xf32, #tpu.memory_space<vmem>>, %arg7: memref<144x16xf32, #tpu.memory_space<vmem>>, %arg8: memref<32x32xf32, #tpu.memory_space<vmem>>, %arg9: memref<4x16xf32, #tpu.memory_space<vmem>>, %arg10: memref<1x32xf32, #tpu.memory_space<vmem>>, %arg11: memref<1x16x16x32xf32, #tpu.memory_space<vmem>>, %arg12: memref<18x18x16xf32, #tpu.memory_space<vmem>>, %arg13: memref<20x20x16xf32, #tpu.memory_space<vmem>>, %arg14: memref<256x144xf32, #tpu.memory_space<vmem>>, %arg15: memref<256x64xf32, #tpu.memory_space<vmem>>, %arg16: memref<256x32xf32, #tpu.memory_space<vmem>>) attributes {dimension_semantics = [#tpu.dimension_semantics<parallel>], iteration_bounds = array<i64: 2>, scalar_prefetch = 0 : i64, scratch_operands = 5 : i64, tpu.core_type = #tpu.core_type<tc>, window_params = [{transform_indices = @transform_0, window_bounds = array<i64: 1, 16, 16, 32>}, {pipeline_mode = #tpu.pipeline_mode<synchronous>, transform_indices = @transform_1, window_bounds = array<i64: 32, 32>}, {pipeline_mode = #tpu.pipeline_mode<synchronous>, transform_indices = @transform_2, window_bounds = array<i64: 1, 32>}, {pipeline_mode = #tpu.pipeline_mode<synchronous>, transform_indices = @transform_3, window_bounds = array<i64: 144, 16>}, {pipeline_mode = #tpu.pipeline_mode<synchronous>, transform_indices = @transform_4, window_bounds = array<i64: 16, 16>}, {pipeline_mode = #tpu.pipeline_mode<synchronous>, transform_indices = @transform_5, window_bounds = array<i64: 64, 16>}, {pipeline_mode = #tpu.pipeline_mode<synchronous>, transform_indices = @transform_6, window_bounds = array<i64: 144, 16>}, {pipeline_mode = #tpu.pipeline_mode<synchronous>, transform_indices = @transform_7, window_bounds = array<i64: 32, 32>}, {pipeline_mode = #tpu.pipeline_mode<synchronous>, transform_indices = @transform_8, window_bounds = array<i64: 4, 16>}, {pipeline_mode = #tpu.pipeline_mode<synchronous>, transform_indices = @transform_9, window_bounds = array<i64: 1, 32>}, {transform_indices = @transform_10, window_bounds = array<i64: 1, 16, 16, 32>}]} {
    %cst = arith.constant 0.000000e+00 : f32
    %0 = vector.broadcast %cst : f32 to vector<18x18x16xf32>
    %c0 = arith.constant 0 : index
    %c0_0 = arith.constant 0 : index
    %c0_1 = arith.constant 0 : index
    %1 = vector.load %arg12[%c0, %c0_0, %c0_1] : memref<18x18x16xf32, #tpu.memory_space<vmem>>, vector<18x18x16xf32>
    tpu.vector_store %arg12[%c0, %c0_0, %c0_1], %0 {strides = array<i32>} : memref<18x18x16xf32, #tpu.memory_space<vmem>>, vector<18x18x16xf32>,
    %cst_2 = arith.constant -1.000000e+30 : f32
    %2 = vector.broadcast %cst_2 : f32 to vector<20x20x16xf32>
    %c0_3 = arith.constant 0 : index
    %c0_4 = arith.constant 0 : index
    %c0_5 = arith.constant 0 : index
    %3 = vector.load %arg13[%c0_3, %c0_4, %c0_5] : memref<20x20x16xf32, #tpu.memory_space<vmem>>, vector<20x20x16xf32>
    tpu.vector_store %arg13[%c0_3, %c0_4, %c0_5], %2 {strides = array<i32>} : memref<20x20x16xf32, #tpu.memory_space<vmem>>, vector<20x20x16xf32>,
    %c0_6 = arith.constant 0 : index
    %c0_7 = arith.constant 0 : index
    %c0_8 = arith.constant 0 : index
    %c0_9 = arith.constant 0 : index
    %4 = vector.load %arg1[%c0_6, %c0_7, %c0_8, %c0_9] : memref<1x16x16x32xf32, #tpu.memory_space<vmem>>, vector<1x16x16x32xf32>
    %5 = vector.shape_cast %4 : vector<1x16x16x32xf32> to vector<16x16x32xf32>
    %6 = vector.shape_cast %5 : vector<16x16x32xf32> to vector<256x32xf32>
    %c0_10 = arith.constant 0 : index
    %c0_11 = arith.constant 0 : index
    %7 = vector.load %arg2[%c0_10, %c0_11] : memref<32x32xf32, #tpu.memory_space<vmem>>, vector<32x32xf32>
    %cst_12 = arith.constant dense<0.000000e+00> : vector<256x32xf32>
    %8 = tpu.matmul %6, %7, %cst_12 {dimension_numbers = #tpu.dot_dimension_numbers<[1], [0], [0], [1], [0, 0, 1, 1], [], []>} : vector<256x32xf32>, vector<32x32xf32>, vector<256x32xf32> -> vector<256x32xf32>
    %c0_13 = arith.constant 0 : index
    %c0_14 = arith.constant 0 : index
    %9 = vector.load %arg3[%c0_13, %c0_14] : memref<1x32xf32, #tpu.memory_space<vmem>>, vector<1x32xf32>
    %10 = vector.broadcast %9 : vector<1x32xf32> to vector<256x32xf32>
    %11 = arith.addf %8, %10 : vector<256x32xf32>
    %12 = arith.negf %11 : vector<256x32xf32>
    %13 = math.exp %12 : vector<256x32xf32>
    %cst_15 = arith.constant 1.000000e+00 : f32
    %14 = vector.broadcast %cst_15 : f32 to vector<256x32xf32>
    %15 = arith.addf %14, %13 : vector<256x32xf32>
    %16 = arith.divf %14, %15 : vector<256x32xf32>
    %17 = arith.mulf %11, %16 : vector<256x32xf32>
    %c0_16 = arith.constant 0 : index
    %c0_17 = arith.constant 0 : index
    %18 = vector.load %arg16[%c0_16, %c0_17] : memref<256x32xf32, #tpu.memory_space<vmem>>, vector<256x32xf32>
    tpu.vector_store %arg16[%c0_16, %c0_17], %17 {strides = array<i32>} : memref<256x32xf32, #tpu.memory_space<vmem>>, vector<256x32xf32>,
    %c0_18 = arith.constant 0 : index
    %c16 = arith.constant 16 : index
    %19 = vector.load %arg16[%c0_18, %c16] : memref<256x32xf32, #tpu.memory_space<vmem>>, vector<256x16xf32>
    %20 = vector.shape_cast %19 : vector<256x16xf32> to vector<16x16x16xf32>
    %c1 = arith.constant 1 : index
    %c1_19 = arith.constant 1 : index
    %c0_20 = arith.constant 0 : index
    %21 = vector.load %arg12[%c1, %c1_19, %c0_20] : memref<18x18x16xf32, #tpu.memory_space<vmem>>, vector<16x16x16xf32>
    tpu.vector_store %arg12[%c1, %c1_19, %c0_20], %20 {strides = array<i32>} : memref<18x18x16xf32, #tpu.memory_space<vmem>>, vector<16x16x16xf32>,
    %c0_21 = arith.constant 0 : index
    %c0_22 = arith.constant 0 : index
    %c0_23 = arith.constant 0 : index
    %22 = vector.load %arg12[%c0_21, %c0_22, %c0_23] : memref<18x18x16xf32, #tpu.memory_space<vmem>>, vector<16x16x16xf32>
    %23 = vector.shape_cast %22 : vector<16x16x16xf32> to vector<256x16xf32>
    %c0_24 = arith.constant 0 : index
    %c0_25 = arith.constant 0 : index
    %24 = vector.load %arg14[%c0_24, %c0_25] : memref<256x144xf32, #tpu.memory_space<vmem>>, vector<256x16xf32>
    tpu.vector_store %arg14[%c0_24, %c0_25], %23 {strides = array<i32>} : memref<256x144xf32, #tpu.memory_space<vmem>>, vector<256x16xf32>,
    %c0_26 = arith.constant 0 : index
    %c1_27 = arith.constant 1 : index
    %c0_28 = arith.constant 0 : index
    %25 = vector.load %arg12[%c0_26, %c1_27, %c0_28] : memref<18x18x16xf32, #tpu.memory_space<vmem>>, vector<16x16x16xf32>
    %26 = vector.shape_cast %25 : vector<16x16x16xf32> to vector<256x16xf32>
    %c0_29 = arith.constant 0 : index
    %c16_30 = arith.constant 16 : index
    %27 = vector.load %arg14[%c0_29, %c16_30] : memref<256x144xf32, #tpu.memory_space<vmem>>, vector<256x16xf32>
    tpu.vector_store %arg14[%c0_29, %c16_30], %26 {strides = array<i32>} : memref<256x144xf32, #tpu.memory_space<vmem>>, vector<256x16xf32>,
    %c0_31 = arith.constant 0 : index
    %c2 = arith.constant 2 : index
    %c0_32 = arith.constant 0 : index
    %28 = vector.load %arg12[%c0_31, %c2, %c0_32] : memref<18x18x16xf32, #tpu.memory_space<vmem>>, vector<16x16x16xf32>
    %29 = vector.shape_cast %28 : vector<16x16x16xf32> to vector<256x16xf32>
    %c0_33 = arith.constant 0 : index
    %c32 = arith.constant 32 : index
    %30 = vector.load %arg14[%c0_33, %c32] : memref<256x144xf32, #tpu.memory_space<vmem>>, vector<256x16xf32>
    tpu.vector_store %arg14[%c0_33, %c32], %29 {strides = array<i32>} : memref<256x144xf32, #tpu.memory_space<vmem>>, vector<256x16xf32>,
    %c1_34 = arith.constant 1 : index
    %c0_35 = arith.constant 0 : index
    %c0_36 = arith.constant 0 : index
    %31 = vector.load %arg12[%c1_34, %c0_35, %c0_36] : memref<18x18x16xf32, #tpu.memory_space<vmem>>, vector<16x16x16xf32>
    %32 = vector.shape_cast %31 : vector<16x16x16xf32> to vector<256x16xf32>
    %c0_37 = arith.constant 0 : index
    %c48 = arith.constant 48 : index
    %33 = vector.load %arg14[%c0_37, %c48] : memref<256x144xf32, #tpu.memory_space<vmem>>, vector<256x16xf32>
    tpu.vector_store %arg14[%c0_37, %c48], %32 {strides = array<i32>} : memref<256x144xf32, #tpu.memory_space<vmem>>, vector<256x16xf32>,
    %c1_38 = arith.constant 1 : index
    %c1_39 = arith.constant 1 : index
    %c0_40 = arith.constant 0 : index
    %34 = vector.load %arg12[%c1_38, %c1_39, %c0_40] : memref<18x18x16xf32, #tpu.memory_space<vmem>>, vector<16x16x16xf32>
    %35 = vector.shape_cast %34 : vector<16x16x16xf32> to vector<256x16xf32>
    %c0_41 = arith.constant 0 : index
    %c64 = arith.constant 64 : index
    %36 = vector.load %arg14[%c0_41, %c64] : memref<256x144xf32, #tpu.memory_space<vmem>>, vector<256x16xf32>
    tpu.vector_store %arg14[%c0_41, %c64], %35 {strides = array<i32>} : memref<256x144xf32, #tpu.memory_space<vmem>>, vector<256x16xf32>,
    %c1_42 = arith.constant 1 : index
    %c2_43 = arith.constant 2 : index
    %c0_44 = arith.constant 0 : index
    %37 = vector.load %arg12[%c1_42, %c2_43, %c0_44] : memref<18x18x16xf32, #tpu.memory_space<vmem>>, vector<16x16x16xf32>
    %38 = vector.shape_cast %37 : vector<16x16x16xf32> to vector<256x16xf32>
    %c0_45 = arith.constant 0 : index
    %c80 = arith.constant 80 : index
    %39 = vector.load %arg14[%c0_45, %c80] : memref<256x144xf32, #tpu.memory_space<vmem>>, vector<256x16xf32>
    tpu.vector_store %arg14[%c0_45, %c80], %38 {strides = array<i32>} : memref<256x144xf32, #tpu.memory_space<vmem>>, vector<256x16xf32>,
    %c2_46 = arith.constant 2 : index
    %c0_47 = arith.constant 0 : index
    %c0_48 = arith.constant 0 : index
    %40 = vector.load %arg12[%c2_46, %c0_47, %c0_48] : memref<18x18x16xf32, #tpu.memory_space<vmem>>, vector<16x16x16xf32>
    %41 = vector.shape_cast %40 : vector<16x16x16xf32> to vector<256x16xf32>
    %c0_49 = arith.constant 0 : index
    %c96 = arith.constant 96 : index
    %42 = vector.load %arg14[%c0_49, %c96] : memref<256x144xf32, #tpu.memory_space<vmem>>, vector<256x16xf32>
    tpu.vector_store %arg14[%c0_49, %c96], %41 {strides = array<i32>} : memref<256x144xf32, #tpu.memory_space<vmem>>, vector<256x16xf32>,
    %c2_50 = arith.constant 2 : index
    %c1_51 = arith.constant 1 : index
    %c0_52 = arith.constant 0 : index
    %43 = vector.load %arg12[%c2_50, %c1_51, %c0_52] : memref<18x18x16xf32, #tpu.memory_space<vmem>>, vector<16x16x16xf32>
    %44 = vector.shape_cast %43 : vector<16x16x16xf32> to vector<256x16xf32>
    %c0_53 = arith.constant 0 : index
    %c112 = arith.constant 112 : index
    %45 = vector.load %arg14[%c0_53, %c112] : memref<256x144xf32, #tpu.memory_space<vmem>>, vector<256x16xf32>
    tpu.vector_store %arg14[%c0_53, %c112], %44 {strides = array<i32>} : memref<256x144xf32, #tpu.memory_space<vmem>>, vector<256x16xf32>,
    %c2_54 = arith.constant 2 : index
    %c2_55 = arith.constant 2 : index
    %c0_56 = arith.constant 0 : index
    %46 = vector.load %arg12[%c2_54, %c2_55, %c0_56] : memref<18x18x16xf32, #tpu.memory_space<vmem>>, vector<16x16x16xf32>
    %47 = vector.shape_cast %46 : vector<16x16x16xf32> to vector<256x16xf32>
    %c0_57 = arith.constant 0 : index
    %c128 = arith.constant 128 : index
    %48 = vector.load %arg14[%c0_57, %c128] : memref<256x144xf32, #tpu.memory_space<vmem>>, vector<256x16xf32>
    tpu.vector_store %arg14[%c0_57, %c128], %47 {strides = array<i32>} : memref<256x144xf32, #tpu.memory_space<vmem>>, vector<256x16xf32>,
    %c0_58 = arith.constant 0 : index
    %c0_59 = arith.constant 0 : index
    %49 = vector.load %arg14[%c0_58, %c0_59] : memref<256x144xf32, #tpu.memory_space<vmem>>, vector<256x144xf32>
    %c0_60 = arith.constant 0 : index
    %c0_61 = arith.constant 0 : index
    %50 = vector.load %arg4[%c0_60, %c0_61] : memref<144x16xf32, #tpu.memory_space<vmem>>, vector<144x16xf32>
    %cst_62 = arith.constant dense<0.000000e+00> : vector<256x16xf32>
    %51 = tpu.matmul %49, %50, %cst_62 {dimension_numbers = #tpu.dot_dimension_numbers<[1], [0], [0], [1], [0, 0, 1, 1], [], []>} : vector<256x144xf32>, vector<144x16xf32>, vector<256x16xf32> -> vector<256x16xf32>
    %c0_63 = arith.constant 0 : index
    %c0_64 = arith.constant 0 : index
    %52 = vector.load %arg9[%c0_63, %c0_64] : memref<4x16xf32, #tpu.memory_space<vmem>>, vector<1x16xf32>
    %53 = vector.broadcast %52 : vector<1x16xf32> to vector<256x16xf32>
    %54 = arith.addf %51, %53 : vector<256x16xf32>
    %55 = arith.negf %54 : vector<256x16xf32>
    %56 = math.exp %55 : vector<256x16xf32>
    %cst_65 = arith.constant 1.000000e+00 : f32
    %57 = vector.broadcast %cst_65 : f32 to vector<256x16xf32>
    %58 = arith.addf %57, %56 : vector<256x16xf32>
    %59 = arith.divf %57, %58 : vector<256x16xf32>
    %60 = arith.mulf %54, %59 : vector<256x16xf32>
    %c0_66 = arith.constant 0 : index
    %c0_67 = arith.constant 0 : index
    %61 = vector.load %arg5[%c0_66, %c0_67] : memref<16x16xf32, #tpu.memory_space<vmem>>, vector<16x16xf32>
    %cst_68 = arith.constant dense<0.000000e+00> : vector<256x16xf32>
    %62 = tpu.matmul %60, %61, %cst_68 {dimension_numbers = #tpu.dot_dimension_numbers<[1], [0], [0], [1], [0, 0, 1, 1], [], []>} : vector<256x16xf32>, vector<16x16xf32>, vector<256x16xf32> -> vector<256x16xf32>
    %c1_69 = arith.constant 1 : index
    %c0_70 = arith.constant 0 : index
    %63 = vector.load %arg9[%c1_69, %c0_70] : memref<4x16xf32, #tpu.memory_space<vmem>>, vector<1x16xf32>
    %64 = vector.broadcast %63 : vector<1x16xf32> to vector<256x16xf32>
    %65 = arith.addf %62, %64 : vector<256x16xf32>
    %66 = arith.negf %65 : vector<256x16xf32>
    %67 = math.exp %66 : vector<256x16xf32>
    %cst_71 = arith.constant 1.000000e+00 : f32
    %68 = vector.broadcast %cst_71 : f32 to vector<256x16xf32>
    %69 = arith.addf %68, %67 : vector<256x16xf32>
    %70 = arith.divf %68, %69 : vector<256x16xf32>
    %71 = arith.mulf %65, %70 : vector<256x16xf32>
    %c0_72 = arith.constant 0 : index
    %c0_73 = arith.constant 0 : index
    %72 = vector.load %arg15[%c0_72, %c0_73] : memref<256x64xf32, #tpu.memory_space<vmem>>, vector<256x16xf32>
    tpu.vector_store %arg15[%c0_72, %c0_73], %71 {strides = array<i32>} : memref<256x64xf32, #tpu.memory_space<vmem>>, vector<256x16xf32>,
    %73 = vector.shape_cast %71 : vector<256x16xf32> to vector<16x16x16xf32>
    %c2_74 = arith.constant 2 : index
    %c2_75 = arith.constant 2 : index
    %c0_76 = arith.constant 0 : index
    %74 = vector.load %arg13[%c2_74, %c2_75, %c0_76] : memref<20x20x16xf32, #tpu.memory_space<vmem>>, vector<16x16x16xf32>
    tpu.vector_store %arg13[%c2_74, %c2_75, %c0_76], %73 {strides = array<i32>} : memref<20x20x16xf32, #tpu.memory_space<vmem>>, vector<16x16x16xf32>,
    %c0_77 = arith.constant 0 : index
    %c0_78 = arith.constant 0 : index
    %c0_79 = arith.constant 0 : index
    %75 = vector.load %arg13[%c0_77, %c0_78, %c0_79] : memref<20x20x16xf32, #tpu.memory_space<vmem>>, vector<20x16x16xf32>
    %c0_80 = arith.constant 0 : index
    %c1_81 = arith.constant 1 : index
    %c0_82 = arith.constant 0 : index
    %76 = vector.load %arg13[%c0_80, %c1_81, %c0_82] : memref<20x20x16xf32, #tpu.memory_space<vmem>>, vector<20x16x16xf32>
    %77 = arith.maximumf %75, %76 : vector<20x16x16xf32>
    %c0_83 = arith.constant 0 : index
    %c2_84 = arith.constant 2 : index
    %c0_85 = arith.constant 0 : index
    %78 = vector.load %arg13[%c0_83, %c2_84, %c0_85] : memref<20x20x16xf32, #tpu.memory_space<vmem>>, vector<20x16x16xf32>
    %79 = arith.maximumf %77, %78 : vector<20x16x16xf32>
    %c0_86 = arith.constant 0 : index
    %c3 = arith.constant 3 : index
    %c0_87 = arith.constant 0 : index
    %80 = vector.load %arg13[%c0_86, %c3, %c0_87] : memref<20x20x16xf32, #tpu.memory_space<vmem>>, vector<20x16x16xf32>
    %81 = arith.maximumf %79, %80 : vector<20x16x16xf32>
    %c0_88 = arith.constant 0 : index
    %c4 = arith.constant 4 : index
    %c0_89 = arith.constant 0 : index
    %82 = vector.load %arg13[%c0_88, %c4, %c0_89] : memref<20x20x16xf32, #tpu.memory_space<vmem>>, vector<20x16x16xf32>
    %83 = arith.maximumf %81, %82 : vector<20x16x16xf32>
    %84 = vector.extract_strided_slice %83 {offsets = [0, 0, 0], sizes = [16, 16, 16], strides = [1, 1, 1]} : vector<20x16x16xf32> to vector<16x16x16xf32>
    %85 = vector.extract_strided_slice %83 {offsets = [1, 0, 0], sizes = [16, 16, 16], strides = [1, 1, 1]} : vector<20x16x16xf32> to vector<16x16x16xf32>
    %86 = arith.maximumf %84, %85 : vector<16x16x16xf32>
    %87 = vector.extract_strided_slice %83 {offsets = [2, 0, 0], sizes = [16, 16, 16], strides = [1, 1, 1]} : vector<20x16x16xf32> to vector<16x16x16xf32>
    %88 = arith.maximumf %86, %87 : vector<16x16x16xf32>
    %89 = vector.extract_strided_slice %83 {offsets = [3, 0, 0], sizes = [16, 16, 16], strides = [1, 1, 1]} : vector<20x16x16xf32> to vector<16x16x16xf32>
    %90 = arith.maximumf %88, %89 : vector<16x16x16xf32>
    %91 = vector.extract_strided_slice %83 {offsets = [4, 0, 0], sizes = [16, 16, 16], strides = [1, 1, 1]} : vector<20x16x16xf32> to vector<16x16x16xf32>
    %92 = arith.maximumf %90, %91 : vector<16x16x16xf32>
    %93 = vector.shape_cast %92 : vector<16x16x16xf32> to vector<256x16xf32>
    %c0_90 = arith.constant 0 : index
    %c16_91 = arith.constant 16 : index
    %94 = vector.load %arg15[%c0_90, %c16_91] : memref<256x64xf32, #tpu.memory_space<vmem>>, vector<256x16xf32>
    tpu.vector_store %arg15[%c0_90, %c16_91], %93 {strides = array<i32>} : memref<256x64xf32, #tpu.memory_space<vmem>>, vector<256x16xf32>,
    %95 = vector.shape_cast %93 : vector<256x16xf32> to vector<16x16x16xf32>
    %c2_92 = arith.constant 2 : index
    %c2_93 = arith.constant 2 : index
    %c0_94 = arith.constant 0 : index
    %96 = vector.load %arg13[%c2_92, %c2_93, %c0_94] : memref<20x20x16xf32, #tpu.memory_space<vmem>>, vector<16x16x16xf32>
    tpu.vector_store %arg13[%c2_92, %c2_93, %c0_94], %95 {strides = array<i32>} : memref<20x20x16xf32, #tpu.memory_space<vmem>>, vector<16x16x16xf32>,
    %c0_95 = arith.constant 0 : index
    %c0_96 = arith.constant 0 : index
    %c0_97 = arith.constant 0 : index
    %97 = vector.load %arg13[%c0_95, %c0_96, %c0_97] : memref<20x20x16xf32, #tpu.memory_space<vmem>>, vector<20x16x16xf32>
    %c0_98 = arith.constant 0 : index
    %c1_99 = arith.constant 1 : index
    %c0_100 = arith.constant 0 : index
    %98 = vector.load %arg13[%c0_98, %c1_99, %c0_100] : memref<20x20x16xf32, #tpu.memory_space<vmem>>, vector<20x16x16xf32>
    %99 = arith.maximumf %97, %98 : vector<20x16x16xf32>
    %c0_101 = arith.constant 0 : index
    %c2_102 = arith.constant 2 : index
    %c0_103 = arith.constant 0 : index
    %100 = vector.load %arg13[%c0_101, %c2_102, %c0_103] : memref<20x20x16xf32, #tpu.memory_space<vmem>>, vector<20x16x16xf32>
    %101 = arith.maximumf %99, %100 : vector<20x16x16xf32>
    %c0_104 = arith.constant 0 : index
    %c3_105 = arith.constant 3 : index
    %c0_106 = arith.constant 0 : index
    %102 = vector.load %arg13[%c0_104, %c3_105, %c0_106] : memref<20x20x16xf32, #tpu.memory_space<vmem>>, vector<20x16x16xf32>
    %103 = arith.maximumf %101, %102 : vector<20x16x16xf32>
    %c0_107 = arith.constant 0 : index
    %c4_108 = arith.constant 4 : index
    %c0_109 = arith.constant 0 : index
    %104 = vector.load %arg13[%c0_107, %c4_108, %c0_109] : memref<20x20x16xf32, #tpu.memory_space<vmem>>, vector<20x16x16xf32>
    %105 = arith.maximumf %103, %104 : vector<20x16x16xf32>
    %106 = vector.extract_strided_slice %105 {offsets = [0, 0, 0], sizes = [16, 16, 16], strides = [1, 1, 1]} : vector<20x16x16xf32> to vector<16x16x16xf32>
    %107 = vector.extract_strided_slice %105 {offsets = [1, 0, 0], sizes = [16, 16, 16], strides = [1, 1, 1]} : vector<20x16x16xf32> to vector<16x16x16xf32>
    %108 = arith.maximumf %106, %107 : vector<16x16x16xf32>
    %109 = vector.extract_strided_slice %105 {offsets = [2, 0, 0], sizes = [16, 16, 16], strides = [1, 1, 1]} : vector<20x16x16xf32> to vector<16x16x16xf32>
    %110 = arith.maximumf %108, %109 : vector<16x16x16xf32>
    %111 = vector.extract_strided_slice %105 {offsets = [3, 0, 0], sizes = [16, 16, 16], strides = [1, 1, 1]} : vector<20x16x16xf32> to vector<16x16x16xf32>
    %112 = arith.maximumf %110, %111 : vector<16x16x16xf32>
    %113 = vector.extract_strided_slice %105 {offsets = [4, 0, 0], sizes = [16, 16, 16], strides = [1, 1, 1]} : vector<20x16x16xf32> to vector<16x16x16xf32>
    %114 = arith.maximumf %112, %113 : vector<16x16x16xf32>
    %115 = vector.shape_cast %114 : vector<16x16x16xf32> to vector<256x16xf32>
    %c0_110 = arith.constant 0 : index
    %c32_111 = arith.constant 32 : index
    %116 = vector.load %arg15[%c0_110, %c32_111] : memref<256x64xf32, #tpu.memory_space<vmem>>, vector<256x16xf32>
    tpu.vector_store %arg15[%c0_110, %c32_111], %115 {strides = array<i32>} : memref<256x64xf32, #tpu.memory_space<vmem>>, vector<256x16xf32>,
    %117 = vector.shape_cast %115 : vector<256x16xf32> to vector<16x16x16xf32>
    %c2_112 = arith.constant 2 : index
    %c2_113 = arith.constant 2 : index
    %c0_114 = arith.constant 0 : index
    %118 = vector.load %arg13[%c2_112, %c2_113, %c0_114] : memref<20x20x16xf32, #tpu.memory_space<vmem>>, vector<16x16x16xf32>
    tpu.vector_store %arg13[%c2_112, %c2_113, %c0_114], %117 {strides = array<i32>} : memref<20x20x16xf32, #tpu.memory_space<vmem>>, vector<16x16x16xf32>,
    %c0_115 = arith.constant 0 : index
    %c0_116 = arith.constant 0 : index
    %c0_117 = arith.constant 0 : index
    %119 = vector.load %arg13[%c0_115, %c0_116, %c0_117] : memref<20x20x16xf32, #tpu.memory_space<vmem>>, vector<20x16x16xf32>
    %c0_118 = arith.constant 0 : index
    %c1_119 = arith.constant 1 : index
    %c0_120 = arith.constant 0 : index
    %120 = vector.load %arg13[%c0_118, %c1_119, %c0_120] : memref<20x20x16xf32, #tpu.memory_space<vmem>>, vector<20x16x16xf32>
    %121 = arith.maximumf %119, %120 : vector<20x16x16xf32>
    %c0_121 = arith.constant 0 : index
    %c2_122 = arith.constant 2 : index
    %c0_123 = arith.constant 0 : index
    %122 = vector.load %arg13[%c0_121, %c2_122, %c0_123] : memref<20x20x16xf32, #tpu.memory_space<vmem>>, vector<20x16x16xf32>
    %123 = arith.maximumf %121, %122 : vector<20x16x16xf32>
    %c0_124 = arith.constant 0 : index
    %c3_125 = arith.constant 3 : index
    %c0_126 = arith.constant 0 : index
    %124 = vector.load %arg13[%c0_124, %c3_125, %c0_126] : memref<20x20x16xf32, #tpu.memory_space<vmem>>, vector<20x16x16xf32>
    %125 = arith.maximumf %123, %124 : vector<20x16x16xf32>
    %c0_127 = arith.constant 0 : index
    %c4_128 = arith.constant 4 : index
    %c0_129 = arith.constant 0 : index
    %126 = vector.load %arg13[%c0_127, %c4_128, %c0_129] : memref<20x20x16xf32, #tpu.memory_space<vmem>>, vector<20x16x16xf32>
    %127 = arith.maximumf %125, %126 : vector<20x16x16xf32>
    %128 = vector.extract_strided_slice %127 {offsets = [0, 0, 0], sizes = [16, 16, 16], strides = [1, 1, 1]} : vector<20x16x16xf32> to vector<16x16x16xf32>
    %129 = vector.extract_strided_slice %127 {offsets = [1, 0, 0], sizes = [16, 16, 16], strides = [1, 1, 1]} : vector<20x16x16xf32> to vector<16x16x16xf32>
    %130 = arith.maximumf %128, %129 : vector<16x16x16xf32>
    %131 = vector.extract_strided_slice %127 {offsets = [2, 0, 0], sizes = [16, 16, 16], strides = [1, 1, 1]} : vector<20x16x16xf32> to vector<16x16x16xf32>
    %132 = arith.maximumf %130, %131 : vector<16x16x16xf32>
    %133 = vector.extract_strided_slice %127 {offsets = [3, 0, 0], sizes = [16, 16, 16], strides = [1, 1, 1]} : vector<20x16x16xf32> to vector<16x16x16xf32>
    %134 = arith.maximumf %132, %133 : vector<16x16x16xf32>
    %135 = vector.extract_strided_slice %127 {offsets = [4, 0, 0], sizes = [16, 16, 16], strides = [1, 1, 1]} : vector<20x16x16xf32> to vector<16x16x16xf32>
    %136 = arith.maximumf %134, %135 : vector<16x16x16xf32>
    %137 = vector.shape_cast %136 : vector<16x16x16xf32> to vector<256x16xf32>
    %c0_130 = arith.constant 0 : index
    %c48_131 = arith.constant 48 : index
    %138 = vector.load %arg15[%c0_130, %c48_131] : memref<256x64xf32, #tpu.memory_space<vmem>>, vector<256x16xf32>
    tpu.vector_store %arg15[%c0_130, %c48_131], %137 {strides = array<i32>} : memref<256x64xf32, #tpu.memory_space<vmem>>, vector<256x16xf32>,
    %c0_132 = arith.constant 0 : index
    %c0_133 = arith.constant 0 : index
    %139 = vector.load %arg15[%c0_132, %c0_133] : memref<256x64xf32, #tpu.memory_space<vmem>>, vector<256x64xf32>
    %c0_134 = arith.constant 0 : index
    %c0_135 = arith.constant 0 : index
    %140 = vector.load %arg6[%c0_134, %c0_135] : memref<64x16xf32, #tpu.memory_space<vmem>>, vector<64x16xf32>
    %cst_136 = arith.constant dense<0.000000e+00> : vector<256x16xf32>
    %141 = tpu.matmul %139, %140, %cst_136 {dimension_numbers = #tpu.dot_dimension_numbers<[1], [0], [0], [1], [0, 0, 1, 1], [], []>} : vector<256x64xf32>, vector<64x16xf32>, vector<256x16xf32> -> vector<256x16xf32>
    %c2_137 = arith.constant 2 : index
    %c0_138 = arith.constant 0 : index
    %142 = vector.load %arg9[%c2_137, %c0_138] : memref<4x16xf32, #tpu.memory_space<vmem>>, vector<1x16xf32>
    %143 = vector.broadcast %142 : vector<1x16xf32> to vector<256x16xf32>
    %144 = arith.addf %141, %143 : vector<256x16xf32>
    %145 = arith.negf %144 : vector<256x16xf32>
    %146 = math.exp %145 : vector<256x16xf32>
    %cst_139 = arith.constant 1.000000e+00 : f32
    %147 = vector.broadcast %cst_139 : f32 to vector<256x16xf32>
    %148 = arith.addf %147, %146 : vector<256x16xf32>
    %149 = arith.divf %147, %148 : vector<256x16xf32>
    %150 = arith.mulf %144, %149 : vector<256x16xf32>
    %151 = vector.shape_cast %150 : vector<256x16xf32> to vector<16x16x16xf32>
    %c1_140 = arith.constant 1 : index
    %c1_141 = arith.constant 1 : index
    %c0_142 = arith.constant 0 : index
    %152 = vector.load %arg12[%c1_140, %c1_141, %c0_142] : memref<18x18x16xf32, #tpu.memory_space<vmem>>, vector<16x16x16xf32>
    tpu.vector_store %arg12[%c1_140, %c1_141, %c0_142], %151 {strides = array<i32>} : memref<18x18x16xf32, #tpu.memory_space<vmem>>, vector<16x16x16xf32>,
    %c0_143 = arith.constant 0 : index
    %c0_144 = arith.constant 0 : index
    %c0_145 = arith.constant 0 : index
    %153 = vector.load %arg12[%c0_143, %c0_144, %c0_145] : memref<18x18x16xf32, #tpu.memory_space<vmem>>, vector<16x16x16xf32>
    %154 = vector.shape_cast %153 : vector<16x16x16xf32> to vector<256x16xf32>
    %c0_146 = arith.constant 0 : index
    %c0_147 = arith.constant 0 : index
    %155 = vector.load %arg14[%c0_146, %c0_147] : memref<256x144xf32, #tpu.memory_space<vmem>>, vector<256x16xf32>
    tpu.vector_store %arg14[%c0_146, %c0_147], %154 {strides = array<i32>} : memref<256x144xf32, #tpu.memory_space<vmem>>, vector<256x16xf32>,
    %c0_148 = arith.constant 0 : index
    %c1_149 = arith.constant 1 : index
    %c0_150 = arith.constant 0 : index
    %156 = vector.load %arg12[%c0_148, %c1_149, %c0_150] : memref<18x18x16xf32, #tpu.memory_space<vmem>>, vector<16x16x16xf32>
    %157 = vector.shape_cast %156 : vector<16x16x16xf32> to vector<256x16xf32>
    %c0_151 = arith.constant 0 : index
    %c16_152 = arith.constant 16 : index
    %158 = vector.load %arg14[%c0_151, %c16_152] : memref<256x144xf32, #tpu.memory_space<vmem>>, vector<256x16xf32>
    tpu.vector_store %arg14[%c0_151, %c16_152], %157 {strides = array<i32>} : memref<256x144xf32, #tpu.memory_space<vmem>>, vector<256x16xf32>,
    %c0_153 = arith.constant 0 : index
    %c2_154 = arith.constant 2 : index
    %c0_155 = arith.constant 0 : index
    %159 = vector.load %arg12[%c0_153, %c2_154, %c0_155] : memref<18x18x16xf32, #tpu.memory_space<vmem>>, vector<16x16x16xf32>
    %160 = vector.shape_cast %159 : vector<16x16x16xf32> to vector<256x16xf32>
    %c0_156 = arith.constant 0 : index
    %c32_157 = arith.constant 32 : index
    %161 = vector.load %arg14[%c0_156, %c32_157] : memref<256x144xf32, #tpu.memory_space<vmem>>, vector<256x16xf32>
    tpu.vector_store %arg14[%c0_156, %c32_157], %160 {strides = array<i32>} : memref<256x144xf32, #tpu.memory_space<vmem>>, vector<256x16xf32>,
    %c1_158 = arith.constant 1 : index
    %c0_159 = arith.constant 0 : index
    %c0_160 = arith.constant 0 : index
    %162 = vector.load %arg12[%c1_158, %c0_159, %c0_160] : memref<18x18x16xf32, #tpu.memory_space<vmem>>, vector<16x16x16xf32>
    %163 = vector.shape_cast %162 : vector<16x16x16xf32> to vector<256x16xf32>
    %c0_161 = arith.constant 0 : index
    %c48_162 = arith.constant 48 : index
    %164 = vector.load %arg14[%c0_161, %c48_162] : memref<256x144xf32, #tpu.memory_space<vmem>>, vector<256x16xf32>
    tpu.vector_store %arg14[%c0_161, %c48_162], %163 {strides = array<i32>} : memref<256x144xf32, #tpu.memory_space<vmem>>, vector<256x16xf32>,
    %c1_163 = arith.constant 1 : index
    %c1_164 = arith.constant 1 : index
    %c0_165 = arith.constant 0 : index
    %165 = vector.load %arg12[%c1_163, %c1_164, %c0_165] : memref<18x18x16xf32, #tpu.memory_space<vmem>>, vector<16x16x16xf32>
    %166 = vector.shape_cast %165 : vector<16x16x16xf32> to vector<256x16xf32>
    %c0_166 = arith.constant 0 : index
    %c64_167 = arith.constant 64 : index
    %167 = vector.load %arg14[%c0_166, %c64_167] : memref<256x144xf32, #tpu.memory_space<vmem>>, vector<256x16xf32>
    tpu.vector_store %arg14[%c0_166, %c64_167], %166 {strides = array<i32>} : memref<256x144xf32, #tpu.memory_space<vmem>>, vector<256x16xf32>,
    %c1_168 = arith.constant 1 : index
    %c2_169 = arith.constant 2 : index
    %c0_170 = arith.constant 0 : index
    %168 = vector.load %arg12[%c1_168, %c2_169, %c0_170] : memref<18x18x16xf32, #tpu.memory_space<vmem>>, vector<16x16x16xf32>
    %169 = vector.shape_cast %168 : vector<16x16x16xf32> to vector<256x16xf32>
    %c0_171 = arith.constant 0 : index
    %c80_172 = arith.constant 80 : index
    %170 = vector.load %arg14[%c0_171, %c80_172] : memref<256x144xf32, #tpu.memory_space<vmem>>, vector<256x16xf32>
    tpu.vector_store %arg14[%c0_171, %c80_172], %169 {strides = array<i32>} : memref<256x144xf32, #tpu.memory_space<vmem>>, vector<256x16xf32>,
    %c2_173 = arith.constant 2 : index
    %c0_174 = arith.constant 0 : index
    %c0_175 = arith.constant 0 : index
    %171 = vector.load %arg12[%c2_173, %c0_174, %c0_175] : memref<18x18x16xf32, #tpu.memory_space<vmem>>, vector<16x16x16xf32>
    %172 = vector.shape_cast %171 : vector<16x16x16xf32> to vector<256x16xf32>
    %c0_176 = arith.constant 0 : index
    %c96_177 = arith.constant 96 : index
    %173 = vector.load %arg14[%c0_176, %c96_177] : memref<256x144xf32, #tpu.memory_space<vmem>>, vector<256x16xf32>
    tpu.vector_store %arg14[%c0_176, %c96_177], %172 {strides = array<i32>} : memref<256x144xf32, #tpu.memory_space<vmem>>, vector<256x16xf32>,
    %c2_178 = arith.constant 2 : index
    %c1_179 = arith.constant 1 : index
    %c0_180 = arith.constant 0 : index
    %174 = vector.load %arg12[%c2_178, %c1_179, %c0_180] : memref<18x18x16xf32, #tpu.memory_space<vmem>>, vector<16x16x16xf32>
    %175 = vector.shape_cast %174 : vector<16x16x16xf32> to vector<256x16xf32>
    %c0_181 = arith.constant 0 : index
    %c112_182 = arith.constant 112 : index
    %176 = vector.load %arg14[%c0_181, %c112_182] : memref<256x144xf32, #tpu.memory_space<vmem>>, vector<256x16xf32>
    tpu.vector_store %arg14[%c0_181, %c112_182], %175 {strides = array<i32>} : memref<256x144xf32, #tpu.memory_space<vmem>>, vector<256x16xf32>,
    %c2_183 = arith.constant 2 : index
    %c2_184 = arith.constant 2 : index
    %c0_185 = arith.constant 0 : index
    %177 = vector.load %arg12[%c2_183, %c2_184, %c0_185] : memref<18x18x16xf32, #tpu.memory_space<vmem>>, vector<16x16x16xf32>
    %178 = vector.shape_cast %177 : vector<16x16x16xf32> to vector<256x16xf32>
    %c0_186 = arith.constant 0 : index
    %c128_187 = arith.constant 128 : index
    %179 = vector.load %arg14[%c0_186, %c128_187] : memref<256x144xf32, #tpu.memory_space<vmem>>, vector<256x16xf32>
    tpu.vector_store %arg14[%c0_186, %c128_187], %178 {strides = array<i32>} : memref<256x144xf32, #tpu.memory_space<vmem>>, vector<256x16xf32>,
    %c0_188 = arith.constant 0 : index
    %c0_189 = arith.constant 0 : index
    %180 = vector.load %arg14[%c0_188, %c0_189] : memref<256x144xf32, #tpu.memory_space<vmem>>, vector<256x144xf32>
    %c0_190 = arith.constant 0 : index
    %c0_191 = arith.constant 0 : index
    %181 = vector.load %arg7[%c0_190, %c0_191] : memref<144x16xf32, #tpu.memory_space<vmem>>, vector<144x16xf32>
    %cst_192 = arith.constant dense<0.000000e+00> : vector<256x16xf32>
    %182 = tpu.matmul %180, %181, %cst_192 {dimension_numbers = #tpu.dot_dimension_numbers<[1], [0], [0], [1], [0, 0, 1, 1], [], []>} : vector<256x144xf32>, vector<144x16xf32>, vector<256x16xf32> -> vector<256x16xf32>
    %c3_193 = arith.constant 3 : index
    %c0_194 = arith.constant 0 : index
    %183 = vector.load %arg9[%c3_193, %c0_194] : memref<4x16xf32, #tpu.memory_space<vmem>>, vector<1x16xf32>
    %184 = vector.broadcast %183 : vector<1x16xf32> to vector<256x16xf32>
    %185 = arith.addf %182, %184 : vector<256x16xf32>
    %186 = arith.negf %185 : vector<256x16xf32>
    %187 = math.exp %186 : vector<256x16xf32>
    %cst_195 = arith.constant 1.000000e+00 : f32
    %188 = vector.broadcast %cst_195 : f32 to vector<256x16xf32>
    %189 = arith.addf %188, %187 : vector<256x16xf32>
    %190 = arith.divf %188, %189 : vector<256x16xf32>
    %191 = arith.mulf %185, %190 : vector<256x16xf32>
    %c0_196 = arith.constant 0 : index
    %c16_197 = arith.constant 16 : index
    %192 = vector.load %arg16[%c0_196, %c16_197] : memref<256x32xf32, #tpu.memory_space<vmem>>, vector<256x16xf32>
    tpu.vector_store %arg16[%c0_196, %c16_197], %191 {strides = array<i32>} : memref<256x32xf32, #tpu.memory_space<vmem>>, vector<256x16xf32>,
    %c0_198 = arith.constant 0 : index
    %c0_199 = arith.constant 0 : index
    %193 = vector.load %arg16[%c0_198, %c0_199] : memref<256x32xf32, #tpu.memory_space<vmem>>, vector<256x32xf32>
    %c0_200 = arith.constant 0 : index
    %c0_201 = arith.constant 0 : index
    %194 = vector.load %arg8[%c0_200, %c0_201] : memref<32x32xf32, #tpu.memory_space<vmem>>, vector<32x32xf32>
    %cst_202 = arith.constant dense<0.000000e+00> : vector<256x32xf32>
    %195 = tpu.matmul %193, %194, %cst_202 {dimension_numbers = #tpu.dot_dimension_numbers<[1], [0], [0], [1], [0, 0, 1, 1], [], []>} : vector<256x32xf32>, vector<32x32xf32>, vector<256x32xf32> -> vector<256x32xf32>
    %c0_203 = arith.constant 0 : index
    %c0_204 = arith.constant 0 : index
    %196 = vector.load %arg10[%c0_203, %c0_204] : memref<1x32xf32, #tpu.memory_space<vmem>>, vector<1x32xf32>
    %197 = vector.broadcast %196 : vector<1x32xf32> to vector<256x32xf32>
    %198 = arith.addf %195, %197 : vector<256x32xf32>
    %199 = arith.negf %198 : vector<256x32xf32>
    %200 = math.exp %199 : vector<256x32xf32>
    %cst_205 = arith.constant 1.000000e+00 : f32
    %201 = vector.broadcast %cst_205 : f32 to vector<256x32xf32>
    %202 = arith.addf %201, %200 : vector<256x32xf32>
    %203 = arith.divf %201, %202 : vector<256x32xf32>
    %204 = arith.mulf %198, %203 : vector<256x32xf32>
    %205 = vector.shape_cast %204 : vector<256x32xf32> to vector<16x16x32xf32>
    %c0_206 = arith.constant 0 : index
    %c0_207 = arith.constant 0 : index
    %c0_208 = arith.constant 0 : index
    %c0_209 = arith.constant 0 : index
    %206 = vector.load %arg11[%c0_206, %c0_207, %c0_208, %c0_209] : memref<1x16x16x32xf32, #tpu.memory_space<vmem>>, vector<1x16x16x32xf32>
    %207 = vector.shape_cast %206 : vector<1x16x16x32xf32> to vector<16x16x32xf32>
    %208 = vector.shape_cast %205 : vector<16x16x32xf32> to vector<1x16x16x32xf32>
    tpu.vector_store %arg11[%c0_206, %c0_207, %c0_208, %c0_209], %208 {strides = array<i32>} : memref<1x16x16x32xf32, #tpu.memory_space<vmem>>, vector<1x16x16x32xf32>,
    return
  }
  func.func @transform_0(%arg0: i32) -> (i32, i32, i32, i32) {
    %c0_i32 = arith.constant 0 : i32
    %c0_i32_0 = arith.constant 0 : i32
    %c0_i32_1 = arith.constant 0 : i32
    %c0_i32_2 = arith.constant 0 : i32
    return %arg0, %c0_i32, %c0_i32_0, %c0_i32_1 : i32, i32, i32, i32
  }
  func.func @transform_1(%arg0: i32) -> (i32, i32) {
    %c0_i32 = arith.constant 0 : i32
    %c0_i32_0 = arith.constant 0 : i32
    %c0_i32_1 = arith.constant 0 : i32
    return %c0_i32, %c0_i32_0 : i32, i32
  }
  func.func @transform_2(%arg0: i32) -> (i32, i32) {
    %c0_i32 = arith.constant 0 : i32
    %c0_i32_0 = arith.constant 0 : i32
    %c0_i32_1 = arith.constant 0 : i32
    return %c0_i32, %c0_i32_0 : i32, i32
  }
  func.func @transform_3(%arg0: i32) -> (i32, i32) {
    %c0_i32 = arith.constant 0 : i32
    %c0_i32_0 = arith.constant 0 : i32
    %c0_i32_1 = arith.constant 0 : i32
    return %c0_i32, %c0_i32_0 : i32, i32
  }
  func.func @transform_4(%arg0: i32) -> (i32, i32) {
    %c0_i32 = arith.constant 0 : i32
    %c0_i32_0 = arith.constant 0 : i32
    %c0_i32_1 = arith.constant 0 : i32
    return %c0_i32, %c0_i32_0 : i32, i32
  }
  func.func @transform_5(%arg0: i32) -> (i32, i32) {
    %c0_i32 = arith.constant 0 : i32
    %c0_i32_0 = arith.constant 0 : i32
    %c0_i32_1 = arith.constant 0 : i32
    return %c0_i32, %c0_i32_0 : i32, i32
  }
  func.func @transform_6(%arg0: i32) -> (i32, i32) {
    %c0_i32 = arith.constant 0 : i32
    %c0_i32_0 = arith.constant 0 : i32
    %c0_i32_1 = arith.constant 0 : i32
    return %c0_i32, %c0_i32_0 : i32, i32
  }
  func.func @transform_7(%arg0: i32) -> (i32, i32) {
    %c0_i32 = arith.constant 0 : i32
    %c0_i32_0 = arith.constant 0 : i32
    %c0_i32_1 = arith.constant 0 : i32
    return %c0_i32, %c0_i32_0 : i32, i32
  }
  func.func @transform_8(%arg0: i32) -> (i32, i32) {
    %c0_i32 = arith.constant 0 : i32
    %c0_i32_0 = arith.constant 0 : i32
    %c0_i32_1 = arith.constant 0 : i32
    return %c0_i32, %c0_i32_0 : i32, i32
  }
  func.func @transform_9(%arg0: i32) -> (i32, i32) {
    %c0_i32 = arith.constant 0 : i32
    %c0_i32_0 = arith.constant 0 : i32
    %c0_i32_1 = arith.constant 0 : i32
    return %c0_i32, %c0_i32_0 : i32, i32
  }
  func.func @transform_10(%arg0: i32) -> (i32, i32, i32, i32) {
    %c0_i32 = arith.constant 0 : i32
    %c0_i32_0 = arith.constant 0 : i32
    %c0_i32_1 = arith.constant 0 : i32
    %c0_i32_2 = arith.constant 0 : i32
    return %arg0, %c0_i32, %c0_i32_0, %c0_i32_1 : i32, i32, i32, i32
  }
}

</mosaic_0001>

<llo_original>
// kernel: sppcspc_pallas.1
$region0: #{sppcspc_pallas.1}
  #allocation0 [shape = 'u32[]', space=smem, size = 0x4, offset = 0x4, fixed_abs, tag = 'smem constant byte address 0x4 - core index']
  #allocation1 [shape = 'u32[144,128]{1,0:T(1,128)}', space=vmem, size = 0x12000, scoped, tag = 'internal scratch']
  #allocation2 [shape = 'f32[18,18,16]{2,1,0:T(8,128)}', space=vmem, size = 0x36000, scoped, tag = 'scratch operand']
  #allocation3 [shape = 'f32[20,20,16]{2,1,0:T(8,128)}', space=vmem, size = 0x3c000, scoped, tag = 'scratch operand']
  #allocation4 [shape = 'f32[256,144]{1,0:T(8,128)}', space=vmem, size = 0x40000, scoped, tag = 'scratch operand']
  #allocation5 [shape = 'f32[256,64]{1,0:T(8,128)}', space=vmem, size = 0x20000, scoped, tag = 'scratch operand']
  #allocation6 [shape = 'f32[256,32]{1,0:T(8,128)}', space=vmem, size = 0x20000, scoped, tag = 'scratch operand']
  %s0 = inlined_call_operand.vmem [shape: f32[2,16,16,32], index: 0, kind: input, shape index: {}]
  %s1 = inlined_call_operand.vmem [shape: f32[32,32], index: 1, kind: input, shape index: {}]
  %s2 = inlined_call_operand.vmem [shape: f32[1,32], index: 2, kind: input, shape index: {}]
  %s3 = inlined_call_operand.vmem [shape: f32[144,16], index: 3, kind: input, shape index: {}]
  %s4 = inlined_call_operand.vmem [shape: f32[16,16], index: 4, kind: input, shape index: {}]
  %s5 = inlined_call_operand.vmem [shape: f32[64,16], index: 5, kind: input, shape index: {}]
  %s6 = inlined_call_operand.vmem [shape: f32[144,16], index: 6, kind: input, shape index: {}]
  %s7 = inlined_call_operand.vmem [shape: f32[32,32], index: 7, kind: input, shape index: {}]
  %s8 = inlined_call_operand.vmem [shape: f32[4,16], index: 8, kind: input, shape index: {}]
  %s9 = inlined_call_operand.vmem [shape: f32[1,32], index: 9, kind: input, shape index: {}]
  %s10 = inlined_call_operand.hbm [shape: f32[2,16,16,32], index: 10, kind: output, shape index: {}]
  %s11 = sld [smem:[#allocation0]]
  $region73: #{sppcspc_pallas.1} parent=0
    _
  %s13 = ssub.s32 1, %s11
  %s14 = scalar_select 0, %s13, %s11
  $region1: #{sppcspc_pallas.1} parent=0
    #allocation7 [shape = 'u8[262144]{0}', space=vmem, size = 0x40000, scoped, tag = 'output window, operand 0']
    #allocation8 [shape = 's32[2]{0}', space=sflag, size = 0x8, scoped, tag = 'scoped memory for sppcspc_pallas.1']
    %15 = vsyncpa [#allocation8], 0
    %s16 = scalar_lea.sflag [#allocation8], 1
    %17 = vsyncpa %s16, 0
    loop: start=0, step=1, limit=4
    $region2: #{sppcspc_pallas.1} parent=1 // loop_pre_header
      _
    $region3: #{sppcspc_pallas.1} parent=1 // loop_header
      %s19 = sphi 0, %s23
      %p20 = scmp.ge.s32.totalorder %s19, 4
      %s29 = sphi 0, %s31
      %s32 = sphi 0, %s29
      %s33 = sphi 0, %s32
      %s49 = sphi 0, %s33
      %s53 = sphi 0, %s53
      %s55 = sphi 0, %s53
      %s56 = sphi 0, %s55
      %s70 = sphi 0, %s56
      %s74 = sphi 0, %s74
      %s76 = sphi 0, %s74
      %s77 = sphi 0, %s76
      %s91 = sphi 0, %s77
      %s95 = sphi 0, %s95
      %s97 = sphi 0, %s95
      %s98 = sphi 0, %s97
      %s112 = sphi 0, %s98
      %s116 = sphi 0, %s116
      %s118 = sphi 0, %s116
      %s119 = sphi 0, %s118
      %s133 = sphi 0, %s119
      %s137 = sphi 0, %s137
      %s139 = sphi 0, %s137
      %s140 = sphi 0, %s139
      %s154 = sphi 0, %s140
      %s158 = sphi 0, %s158
      %s160 = sphi 0, %s158
      %s161 = sphi 0, %s160
      %s175 = sphi 0, %s161
      %s179 = sphi 0, %s179
      %s181 = sphi 0, %s179
      %s182 = sphi 0, %s181
      %s196 = sphi 0, %s182
      %s200 = sphi 0, %s200
      %s202 = sphi 0, %s200
      %s203 = sphi 0, %s202
      %s217 = sphi 0, %s203
      %s221 = sphi 0, %s221
      %s223 = sphi 0, %s221
      %s224 = sphi 0, %s223
      %s238 = sphi 0, %s224
      %s244 = sphi 0, %s246
      %s247 = sphi 0, %s244
      %s248 = sphi 0, %s247
      %s264 = sphi 0, %s248
    $region4: #{sppcspc_pallas.1} parent=1 // loop_header_branch
      %22 = sbr.rel (%p20) target = $region8
    $region5: #{sppcspc_pallas.1} parent=1 // loop_body
      %s24 = ssub.s32 %s19, 1
      %s25 = ssub.s32 %s19, 2
      %s26 = sadd.s32 %s19, 1
      %s27 = ssub.s32 %s19, %s26
      %p28 = scmp.eq.s32.totalorder %s27, 0
      %s30 = sadd.s32 %s29, 1
      %s31 = scalar_select %p28, %s29, %s30
      %p34 = pneg %p28
      %p35 = scmp.eq.s32.totalorder %s19, 1
      %p36 = por %p34, %p35
      %p37 = scmp.ne.s32.totalorder %s29, %s32
      %p38 = scmp.eq.s32.totalorder %s19, 0
      %p39 = por %p37, %p38
      %p40 = scmp.ne.s32.totalorder %s29, %s32
      %p41 = scmp.eq.s32.totalorder %s24, 1
      %p42 = por %p40, %p41
      %p43 = scmp.ne.s32.totalorder %s32, %s33
      %p44 = scmp.eq.s32.totalorder %s24, 0
      %p45 = por %p43, %p44
      %p46 = scmp.ne.s32.totalorder %s32, %s33
      %p47 = scmp.eq.s32.totalorder %s25, 1
      %p48 = por %p46, %p47
      %p50 = scmp.ne.s32.totalorder %s33, %s49
      %p51 = scmp.eq.s32.totalorder %s25, 0
      %p52 = por %p50, %p51
      %s54 = sadd.s32 %s53, 1
      %p57 = scmp.eq.s32.totalorder %s19, 1
      %p58 = scmp.ne.s32.totalorder %s53, %s55
      %p59 = scmp.eq.s32.totalorder %s19, 0
      %p60 = por %p58, %p59
      %p61 = scmp.ne.s32.totalorder %s53, %s55
      %p62 = scmp.eq.s32.totalorder %s24, 1
      %p63 = por %p61, %p62
      %p64 = scmp.ne.s32.totalorder %s55, %s56
      %p65 = scmp.eq.s32.totalorder %s24, 0
      %p66 = por %p64, %p65
      %p67 = scmp.ne.s32.totalorder %s55, %s56
      %p68 = scmp.eq.s32.totalorder %s25, 1
      %p69 = por %p67, %p68
      %p71 = scmp.ne.s32.totalorder %s56, %s70
      %p72 = scmp.eq.s32.totalorder %s25, 0
      %p73 = por %p71, %p72
      %s75 = sadd.s32 %s74, 1
      %p78 = scmp.eq.s32.totalorder %s19, 1
      %p79 = scmp.ne.s32.totalorder %s74, %s76
      %p80 = scmp.eq.s32.totalorder %s19, 0
      %p81 = por %p79, %p80
      %p82 = scmp.ne.s32.totalorder %s74, %s76
      %p83 = scmp.eq.s32.totalorder %s24, 1
      %p84 = por %p82, %p83
      %p85 = scmp.ne.s32.totalorder %s76, %s77
      %p86 = scmp.eq.s32.totalorder %s24, 0
      %p87 = por %p85, %p86
      %p88 = scmp.ne.s32.totalorder %s76, %s77
      %p89 = scmp.eq.s32.totalorder %s25, 1
      %p90 = por %p88, %p89
      %p92 = scmp.ne.s32.totalorder %s77, %s91
      %p93 = scmp.eq.s32.totalorder %s25, 0
      %p94 = por %p92, %p93
      %s96 = sadd.s32 %s95, 1
      %p99 = scmp.eq.s32.totalorder %s19, 1
      %p100 = scmp.ne.s32.totalorder %s95, %s97
      %p101 = scmp.eq.s32.totalorder %s19, 0
      %p102 = por %p100, %p101
      %p103 = scmp.ne.s32.totalorder %s95, %s97
      %p104 = scmp.eq.s32.totalorder %s24, 1
      %p105 = por %p103, %p104
      %p106 = scmp.ne.s32.totalorder %s97, %s98
      %p107 = scmp.eq.s32.totalorder %s24, 0
      %p108 = por %p106, %p107
      %p109 = scmp.ne.s32.totalorder %s97, %s98
      %p110 = scmp.eq.s32.totalorder %s25, 1
      %p111 = por %p109, %p110
      %p113 = scmp.ne.s32.totalorder %s98, %s112
      %p114 = scmp.eq.s32.totalorder %s25, 0
      %p115 = por %p113, %p114
      %s117 = sadd.s32 %s116, 1
      %p120 = scmp.eq.s32.totalorder %s19, 1
      %p121 = scmp.ne.s32.totalorder %s116, %s118
      %p122 = scmp.eq.s32.totalorder %s19, 0
      %p123 = por %p121, %p122
      %p124 = scmp.ne.s32.totalorder %s116, %s118
      %p125 = scmp.eq.s32.totalorder %s24, 1
      %p126 = por %p124, %p125
      %p127 = scmp.ne.s32.totalorder %s118, %s119
      %p128 = scmp.eq.s32.totalorder %s24, 0
      %p129 = por %p127, %p128
      %p130 = scmp.ne.s32.totalorder %s118, %s119
      %p131 = scmp.eq.s32.totalorder %s25, 1
      %p132 = por %p130, %p131
      %p134 = scmp.ne.s32.totalorder %s119, %s133
      %p135 = scmp.eq.s32.totalorder %s25, 0
      %p136 = por %p134, %p135
      %s138 = sadd.s32 %s137, 1
      %p141 = scmp.eq.s32.totalorder %s19, 1
      %p142 = scmp.ne.s32.totalorder %s137, %s139
      %p143 = scmp.eq.s32.totalorder %s19, 0
      %p144 = por %p142, %p143
      %p145 = scmp.ne.s32.totalorder %s137, %s139
      %p146 = scmp.eq.s32.totalorder %s24, 1
      %p147 = por %p145, %p146
      %p148 = scmp.ne.s32.totalorder %s139, %s140
      %p149 = scmp.eq.s32.totalorder %s24, 0
      %p150 = por %p148, %p149
      %p151 = scmp.ne.s32.totalorder %s139, %s140
      %p152 = scmp.eq.s32.totalorder %s25, 1
      %p153 = por %p151, %p152
      %p155 = scmp.ne.s32.totalorder %s140, %s154
      %p156 = scmp.eq.s32.totalorder %s25, 0
      %p157 = por %p155, %p156
      %s159 = sadd.s32 %s158, 1
      %p162 = scmp.eq.s32.totalorder %s19, 1
      %p163 = scmp.ne.s32.totalorder %s158, %s160
      %p164 = scmp.eq.s32.totalorder %s19, 0
      %p165 = por %p163, %p164
      %p166 = scmp.ne.s32.totalorder %s158, %s160
      %p167 = scmp.eq.s32.totalorder %s24, 1
      %p168 = por %p166, %p167
      %p169 = scmp.ne.s32.totalorder %s160, %s161
      %p170 = scmp.eq.s32.totalorder %s24, 0
      %p171 = por %p169, %p170
      %p172 = scmp.ne.s32.totalorder %s160, %s161
      %p173 = scmp.eq.s32.totalorder %s25, 1
      %p174 = por %p172, %p173
      %p176 = scmp.ne.s32.totalorder %s161, %s175
      %p177 = scmp.eq.s32.totalorder %s25, 0
      %p178 = por %p176, %p177
      %s180 = sadd.s32 %s179, 1
      %p183 = scmp.eq.s32.totalorder %s19, 1
      %p184 = scmp.ne.s32.totalorder %s179, %s181
      %p185 = scmp.eq.s32.totalorder %s19, 0
      %p186 = por %p184, %p185
      %p187 = scmp.ne.s32.totalorder %s179, %s181
      %p188 = scmp.eq.s32.totalorder %s24, 1
      %p189 = por %p187, %p188
      %p190 = scmp.ne.s32.totalorder %s181, %s182
      %p191 = scmp.eq.s32.totalorder %s24, 0
      %p192 = por %p190, %p191
      %p193 = scmp.ne.s32.totalorder %s181, %s182
      %p194 = scmp.eq.s32.totalorder %s25, 1
      %p195 = por %p193, %p194
      %p197 = scmp.ne.s32.totalorder %s182, %s196
      %p198 = scmp.eq.s32.totalorder %s25, 0
      %p199 = por %p197, %p198
      %s201 = sadd.s32 %s200, 1
      %p204 = scmp.eq.s32.totalorder %s19, 1
      %p205 = scmp.ne.s32.totalorder %s200, %s202
      %p206 = scmp.eq.s32.totalorder %s19, 0
      %p207 = por %p205, %p206
      %p208 = scmp.ne.s32.totalorder %s200, %s202
      %p209 = scmp.eq.s32.totalorder %s24, 1
      %p210 = por %p208, %p209
      %p211 = scmp.ne.s32.totalorder %s202, %s203
      %p212 = scmp.eq.s32.totalorder %s24, 0
      %p213 = por %p211, %p212
      %p214 = scmp.ne.s32.totalorder %s202, %s203
      %p215 = scmp.eq.s32.totalorder %s25, 1
      %p216 = por %p214, %p215
      %p218 = scmp.ne.s32.totalorder %s203, %s217
      %p219 = scmp.eq.s32.totalorder %s25, 0
      %p220 = por %p218, %p219
      %s222 = sadd.s32 %s221, 1
      %p225 = scmp.eq.s32.totalorder %s19, 1
      %p226 = scmp.ne.s32.totalorder %s221, %s223
      %p227 = scmp.eq.s32.totalorder %s19, 0
      %p228 = por %p226, %p227
      %p229 = scmp.ne.s32.totalorder %s221, %s223
      %p230 = scmp.eq.s32.totalorder %s24, 1
      %p231 = por %p229, %p230
      %p232 = scmp.ne.s32.totalorder %s223, %s224
      %p233 = scmp.eq.s32.totalorder %s24, 0
      %p234 = por %p232, %p233
      %p235 = scmp.ne.s32.totalorder %s223, %s224
      %p236 = scmp.eq.s32.totalorder %s25, 1
      %p237 = por %p235, %p236
      %p239 = scmp.ne.s32.totalorder %s224, %s238
      %p240 = scmp.eq.s32.totalorder %s25, 0
      %p241 = por %p239, %p240
      %s242 = ssub.s32 %s19, %s26
      %p243 = scmp.eq.s32.totalorder %s242, 0
      %s245 = sadd.s32 %s244, 1
      %s246 = scalar_select %p243, %s244, %s245
      %p249 = pneg %p243
      %p250 = scmp.eq.s32.totalorder %s19, 1
      %p251 = por %p249, %p250
      %p252 = scmp.ne.s32.totalorder %s244, %s247
      %p253 = scmp.eq.s32.totalorder %s19, 0
      %p254 = por %p252, %p253
      %p255 = scmp.ne.s32.totalorder %s244, %s247
      %p256 = scmp.eq.s32.totalorder %s24, 1
      %p257 = por %p255, %p256
      %p258 = scmp.ne.s32.totalorder %s247, %s248
      %p259 = scmp.eq.s32.totalorder %s24, 0
      %p260 = por %p258, %p259
      %p261 = scmp.ne.s32.totalorder %s247, %s248
      %p262 = scmp.eq.s32.totalorder %s25, 1
      %p263 = por %p261, %p262
      %p265 = scmp.ne.s32.totalorder %s248, %s264
      %p266 = scmp.eq.s32.totalorder %s25, 0
      %p267 = por %p265, %p266
      %p268 = scmp.le.s32.totalorder 1, %s19
      %p269 = scmp.lt.s32.totalorder %s19, 3
      %p270 = pnand %p268, %p269
      %p271 = pneg %p270
      // Predicated region
      $region9: #{sppcspc_pallas.1} parent=5 // pred_check
        _
      $region10: #{sppcspc_pallas.1} parent=5 // pred_check_branch
        %273 = sbr.rel (%p270) target = $region12
      $region11: #{sppcspc_pallas.1} parent=5 // pred_region
        %s274 = ssub.s32 %s19, 1
        // Predicated region
        $region13: #{sppcspc_pallas.1} parent=11 // pred_check
          %p275 = pneg %p66
        $region14: #{sppcspc_pallas.1} parent=11 // pred_check_branch
          %277 = sbr.rel (%p275) target = $region16
        $region15: #{sppcspc_pallas.1} parent=11 // pred_region
          _
        $region16: #{sppcspc_pallas.1} parent=11 // pred_fallthru
          _
        // Predicated region
        $region17: #{sppcspc_pallas.1} parent=11 // pred_check
          %p278 = pneg %p87
        $region18: #{sppcspc_pallas.1} parent=11 // pred_check_branch
          %280 = sbr.rel (%p278) target = $region20
        $region19: #{sppcspc_pallas.1} parent=11 // pred_region
          _
        $region20: #{sppcspc_pallas.1} parent=11 // pred_fallthru
          _
        // Predicated region
        $region21: #{sppcspc_pallas.1} parent=11 // pred_check
          %p281 = pneg %p108
        $region22: #{sppcspc_pallas.1} parent=11 // pred_check_branch
          %283 = sbr.rel (%p281) target = $region24
        $region23: #{sppcspc_pallas.1} parent=11 // pred_region
          _
        $region24: #{sppcspc_pallas.1} parent=11 // pred_fallthru
          _
        // Predicated region
        $region25: #{sppcspc_pallas.1} parent=11 // pred_check
          %p284 = pneg %p129
        $region26: #{sppcspc_pallas.1} parent=11 // pred_check_branch
          %286 = sbr.rel (%p284) target = $region28
        $region27: #{sppcspc_pallas.1} parent=11 // pred_region
          _
        $region28: #{sppcspc_pallas.1} parent=11 // pred_fallthru
          _
        // Predicated region
        $region29: #{sppcspc_pallas.1} parent=11 // pred_check
          %p287 = pneg %p150
        $region30: #{sppcspc_pallas.1} parent=11 // pred_check_branch
          %289 = sbr.rel (%p287) target = $region32
        $region31: #{sppcspc_pallas.1} parent=11 // pred_region
          _
        $region32: #{sppcspc_pallas.1} parent=11 // pred_fallthru
          _
        // Predicated region
        $region33: #{sppcspc_pallas.1} parent=11 // pred_check
          %p290 = pneg %p171
        $region34: #{sppcspc_pallas.1} parent=11 // pred_check_branch
          %292 = sbr.rel (%p290) target = $region36
        $region35: #{sppcspc_pallas.1} parent=11 // pred_region
          _
        $region36: #{sppcspc_pallas.1} parent=11 // pred_fallthru
          _
        // Predicated region
        $region37: #{sppcspc_pallas.1} parent=11 // pred_check
          %p293 = pneg %p192
        $region38: #{sppcspc_pallas.1} parent=11 // pred_check_branch
          %295 = sbr.rel (%p293) target = $region40
        $region39: #{sppcspc_pallas.1} parent=11 // pred_region
          _
        $region40: #{sppcspc_pallas.1} parent=11 // pred_fallthru
          _
        // Predicated region
        $region41: #{sppcspc_pallas.1} parent=11 // pred_check
          %p296 = pneg %p213
        $region42: #{sppcspc_pallas.1} parent=11 // pred_check_branch
          %298 = sbr.rel (%p296) target = $region44
        $region43: #{sppcspc_pallas.1} parent=11 // pred_region
          _
        $region44: #{sppcspc_pallas.1} parent=11 // pred_fallthru
          _
        // Predicated region
        $region45: #{sppcspc_pallas.1} parent=11 // pred_check
          %p299 = pneg %p234
        $region46: #{sppcspc_pallas.1} parent=11 // pred_check_branch
          %301 = sbr.rel (%p299) target = $region48
        $region47: #{sppcspc_pallas.1} parent=11 // pred_region
          _
        $region48: #{sppcspc_pallas.1} parent=11 // pred_fallthru
          _
      $region12: #{sppcspc_pallas.1} parent=5 // pred_fallthru
        _
      %p302 = scmp.lt.s32.totalorder %s19, 2
      // Predicated region
      $region49: #{sppcspc_pallas.1} parent=5 // pred_check
        %p303 = pneg %p302
      $region50: #{sppcspc_pallas.1} parent=5 // pred_check_branch
        %305 = sbr.rel (%p303) target = $region52
      $region51: #{sppcspc_pallas.1} parent=5 // pred_region
        // Predicated region
        $region53: #{sppcspc_pallas.1} parent=51 // pred_check
          %p306 = pneg %p39
        $region54: #{sppcspc_pallas.1} parent=51 // pred_check_branch
          %308 = sbr.rel (%p306) target = $region56
        $region55: #{sppcspc_pallas.1} parent=51 // pred_region
          %p309 = scmp.lt.s32.totalorder %s19, 1
          %s310 = scalar_select %p309, %s19, 1
          %s311 = smul.addr %s310, 32
          %s312 = smul.addr %s311, 8
          %s313 = scalar_lea.vmem %s0, %s312
        $region56: #{sppcspc_pallas.1} parent=51 // pred_fallthru
          _
      $region52: #{sppcspc_pallas.1} parent=5 // pred_fallthru
        _
      %p314 = scmp.le.s32.totalorder 1, %s19
      %p315 = scmp.lt.s32.totalorder %s19, 3
      %p316 = pnand %p314, %p315
      %p317 = pneg %p316
      // Predicated region
      $region57: #{sppcspc_pallas.1} parent=5 // pred_check
        _
      $region58: #{sppcspc_pallas.1} parent=5 // pred_check_branch
        %319 = sbr.rel (%p316) target = $region60
      $region59: #{sppcspc_pallas.1} parent=5 // pred_region
        %s320 = ssub.s32 %s19, 1
        %p321 = scmp.lt.s32.totalorder %s24, 1
        %s322 = scalar_select %p321, %s24, 1
        %s323 = smul.addr %s322, 32
        %s324 = smul.addr %s323, 8
        %s325 = scalar_lea.vmem %s0, %s324
        %p326 = pneg %p45
        %p327 = pneg %p42
        %p328 = pneg %p66
        %p329 = pneg %p63
        %p330 = pneg %p87
        %p331 = pneg %p84
        %p332 = pneg %p108
        %p333 = pneg %p105
        %p334 = pneg %p129
        %p335 = pneg %p126
        %p336 = pneg %p150
        %p337 = pneg %p147
        %p338 = pneg %p171
        %p339 = pneg %p168
        %p340 = pneg %p192
        %p341 = pneg %p189
        %p342 = pneg %p213
        %p343 = pneg %p210
        %p344 = pneg %p234
        %p345 = pneg %p231
        %p346 = pneg %p260
        %p347 = pneg %p257
        %s348 = sand.u32 %s247, 1
        %s349 = scalar_lea.sflag [#allocation8], %s348
        %s350 = sand.u32 %s247, 1
        %s351 = smul.addr %s350, 256
        %s352 = scalar_lea.vmem [#allocation7], %s351
        %p353 = scmp.lt.s32.totalorder %s24, 1
        %s354 = scalar_select %p353, %s24, 1
        %s355 = smul.addr %s354, 32
        %s356 = smul.addr %s355, 8
        %s357 = scalar_lea.vmem %s0, %s356
        %vm358 = vcmask 130048
        %359 = vst.msk [vmem:[#allocation2] sm:$0xff] %vm358, 0.0
        %360 = vst.msk [vmem:[#allocation2 + $0x8] sm:$0xff] %vm358, 0.0
        %vm361 = vcmask 123904
        %362 = vst.msk [vmem:[#allocation2 + $0x10] sm:$0x3] %vm361, 0.0
        %363 = vst.msk [vmem:[#allocation2 + $0x18] sm:$0xff] %vm358, 0.0
        %364 = vst.msk [vmem:[#allocation2 + $0x20] sm:$0xff] %vm358, 0.0
        %365 = vst.msk [vmem:[#allocation2 + $0x28] sm:$0x3] %vm361, 0.0
        %366 = vst.msk [vmem:[#allocation2 + $0x30] sm:$0xff] %vm358, 0.0
        %367 = vst.msk [vmem:[#allocation2 + $0x38] sm:$0xff] %vm358, 0.0
        %368 = vst.msk [vmem:[#allocation2 + $0x40] sm:$0x3] %vm361, 0.0
        %369 = vst.msk [vmem:[#allocation2 + $0x48] sm:$0xff] %vm358, 0.0
        %370 = vst.msk [vmem:[#allocation2 + $0x50] sm:$0xff] %vm358, 0.0
        %371 = vst.msk [vmem:[#allocation2 + $0x58] sm:$0x3] %vm361, 0.0
        %372 = vst.msk [vmem:[#allocation2 + $0x60] sm:$0xff] %vm358, 0.0
        %373 = vst.msk [vmem:[#allocation2 + $0x68] sm:$0xff] %vm358, 0.0
        %374 = vst.msk [vmem:[#allocation2 + $0x70] sm:$0x3] %vm361, 0.0
        %375 = vst.msk [vmem:[#allocation2 + $0x78] sm:$0xff] %vm358, 0.0
        %376 = vst.msk [vmem:[#allocation2 + $0x80] sm:$0xff] %vm358, 0.0
        %377 = vst.msk [vmem:[#allocation2 + $0x88] sm:$0x3] %vm361, 0.0
        %378 = vst.msk [vmem:[#allocation2 + $0x90] sm:$0xff] %vm358, 0.0
        %379 = vst.msk [vmem:[#allocation2 + $0x98] sm:$0xff] %vm358, 0.0
        %380 = vst.msk [vmem:[#allocation2 + $0xa0] sm:$0x3] %vm361, 0.0
        %381 = vst.msk [vmem:[#allocation2 + $0xa8] sm:$0xff] %vm358, 0.0
        %382 = vst.msk [vmem:[#allocation2 + $0xb0] sm:$0xff] %vm358, 0.0
        %383 = vst.msk [vmem:[#allocation2 + $0xb8] sm:$0x3] %vm361, 0.0
        %384 = vst.msk [vmem:[#allocation2 + $0xc0] sm:$0xff] %vm358, 0.0
        %385 = vst.msk [vmem:[#allocation2 + $0xc8] sm:$0xff] %vm358, 0.0
        %386 = vst.msk [vmem:[#allocation2 + $0xd0] sm:$0x3] %vm361, 0.0
        %387 = vst.msk [vmem:[#allocation2 + $0xd8] sm:$0xff] %vm358, 0.0
        %388 = vst.msk [vmem:[#allocation2 + $0xe0] sm:$0xff] %vm358, 0.0
        %389 = vst.msk [vmem:[#allocation2 + $0xe8] sm:$0x3] %vm361, 0.0
        %390 = vst.msk [vmem:[#allocation2 + $0xf0] sm:$0xff] %vm358, 0.0
        %391 = vst.msk [vmem:[#allocation2 + $0xf8] sm:$0xff] %vm358, 0.0
        %392 = vst.msk [vmem:[#allocation2 + $0x100] sm:$0x3] %vm361, 0.0
        %393 = vst.msk [vmem:[#allocation2 + $0x108] sm:$0xff] %vm358, 0.0
        %394 = vst.msk [vmem:[#allocation2 + $0x110] sm:$0xff] %vm358, 0.0
        %395 = vst.msk [vmem:[#allocation2 + $0x118] sm:$0x3] %vm361, 0.0
        %396 = vst.msk [vmem:[#allocation2 + $0x120] sm:$0xff] %vm358, 0.0
        %397 = vst.msk [vmem:[#allocation2 + $0x128] sm:$0xff] %vm358, 0.0
        %398 = vst.msk [vmem:[#allocation2 + $0x130] sm:$0x3] %vm361, 0.0
        %399 = vst.msk [vmem:[#allocation2 + $0x138] sm:$0xff] %vm358, 0.0
        %400 = vst.msk [vmem:[#allocation2 + $0x140] sm:$0xff] %vm358, 0.0
        %401 = vst.msk [vmem:[#allocation2 + $0x148] sm:$0x3] %vm361, 0.0
        %402 = vst.msk [vmem:[#allocation2 + $0x150] sm:$0xff] %vm358, 0.0
        %403 = vst.msk [vmem:[#allocation2 + $0x158] sm:$0xff] %vm358, 0.0
        %404 = vst.msk [vmem:[#allocation2 + $0x160] sm:$0x3] %vm361, 0.0
        %405 = vst.msk [vmem:[#allocation2 + $0x168] sm:$0xff] %vm358, 0.0
        %406 = vst.msk [vmem:[#allocation2 + $0x170] sm:$0xff] %vm358, 0.0
        %407 = vst.msk [vmem:[#allocation2 + $0x178] sm:$0x3] %vm361, 0.0
        %408 = vst.msk [vmem:[#allocation2 + $0x180] sm:$0xff] %vm358, 0.0
        %409 = vst.msk [vmem:[#allocation2 + $0x188] sm:$0xff] %vm358, 0.0
        %410 = vst.msk [vmem:[#allocation2 + $0x190] sm:$0x3] %vm361, 0.0
        %411 = vst.msk [vmem:[#allocation2 + $0x198] sm:$0xff] %vm358, 0.0
        %412 = vst.msk [vmem:[#allocation2 + $0x1a0] sm:$0xff] %vm358, 0.0
        %413 = vst.msk [vmem:[#allocation2 + $0x1a8] sm:$0x3] %vm361, 0.0
        %414 = vst.msk [vmem:[#allocation3] sm:$0xff] %vm358, -1e+30
        %415 = vst.msk [vmem:[#allocation3 + $0x8] sm:$0xff] %vm358, -1e+30
        %vm416 = vcmask 125952
        %417 = vst.msk [vmem:[#allocation3 + $0x10] sm:$0xf] %vm416, -1e+30
        %418 = vst.msk [vmem:[#allocation3 + $0x18] sm:$0xff] %vm358, -1e+30
        %419 = vst.msk [vmem:[#allocation3 + $0x20] sm:$0xff] %vm358, -1e+30
        %420 = vst.msk [vmem:[#allocation3 + $0x28] sm:$0xf] %vm416, -1e+30
        %421 = vst.msk [vmem:[#allocation3 + $0x30] sm:$0xff] %vm358, -1e+30
        %422 = vst.msk [vmem:[#allocation3 + $0x38] sm:$0xff] %vm358, -1e+30
        %423 = vst.msk [vmem:[#allocation3 + $0x40] sm:$0xf] %vm416, -1e+30
        %424 = vst.msk [vmem:[#allocation3 + $0x48] sm:$0xff] %vm358, -1e+30
        %425 = vst.msk [vmem:[#allocation3 + $0x50] sm:$0xff] %vm358, -1e+30
        %426 = vst.msk [vmem:[#allocation3 + $0x58] sm:$0xf] %vm416, -1e+30
        %427 = vst.msk [vmem:[#allocation3 + $0x60] sm:$0xff] %vm358, -1e+30
        %428 = vst.msk [vmem:[#allocation3 + $0x68] sm:$0xff] %vm358, -1e+30
        %429 = vst.msk [vmem:[#allocation3 + $0x70] sm:$0xf] %vm416, -1e+30
        %430 = vst.msk [vmem:[#allocation3 + $0x78] sm:$0xff] %vm358, -1e+30
        %431 = vst.msk [vmem:[#allocation3 + $0x80] sm:$0xff] %vm358, -1e+30
        %432 = vst.msk [vmem:[#allocation3 + $0x88] sm:$0xf] %vm416, -1e+30
        %433 = vst.msk [vmem:[#allocation3 + $0x90] sm:$0xff] %vm358, -1e+30
        %434 = vst.msk [vmem:[#allocation3 + $0x98] sm:$0xff] %vm358, -1e+30
        %435 = vst.msk [vmem:[#allocation3 + $0xa0] sm:$0xf] %vm416, -1e+30
        %436 = vst.msk [vmem:[#allocation3 + $0xa8] sm:$0xff] %vm358, -1e+30
        %437 = vst.msk [vmem:[#allocation3 + $0xb0] sm:$0xff] %vm358, -1e+30
        %438 = vst.msk [vmem:[#allocation3 + $0xb8] sm:$0xf] %vm416, -1e+30
        %439 = vst.msk [vmem:[#allocation3 + $0xc0] sm:$0xff] %vm358, -1e+30
        %440 = vst.msk [vmem:[#allocation3 + $0xc8] sm:$0xff] %vm358, -1e+30
        %441 = vst.msk [vmem:[#allocation3 + $0xd0] sm:$0xf] %vm416, -1e+30
        %442 = vst.msk [vmem:[#allocation3 + $0xd8] sm:$0xff] %vm358, -1e+30
        %443 = vst.msk [vmem:[#allocation3 + $0xe0] sm:$0xff] %vm358, -1e+30
        %444 = vst.msk [vmem:[#allocation3 + $0xe8] sm:$0xf] %vm416, -1e+30
        %445 = vst.msk [vmem:[#allocation3 + $0xf0] sm:$0xff] %vm358, -1e+30
        %446 = vst.msk [vmem:[#allocation3 + $0xf8] sm:$0xff] %vm358, -1e+30
        %447 = vst.msk [vmem:[#allocation3 + $0x100] sm:$0xf] %vm416, -1e+30
        %448 = vst.msk [vmem:[#allocation3 + $0x108] sm:$0xff] %vm358, -1e+30
        %449 = vst.msk [vmem:[#allocation3 + $0x110] sm:$0xff] %vm358, -1e+30
        %450 = vst.msk [vmem:[#allocation3 + $0x118] sm:$0xf] %vm416, -1e+30
        %451 = vst.msk [vmem:[#allocation3 + $0x120] sm:$0xff] %vm358, -1e+30
        %452 = vst.msk [vmem:[#allocation3 + $0x128] sm:$0xff] %vm358, -1e+30
        %453 = vst.msk [vmem:[#allocation3 + $0x130] sm:$0xf] %vm416, -1e+30
        %454 = vst.msk [vmem:[#allocation3 + $0x138] sm:$0xff] %vm358, -1e+30
        %455 = vst.msk [vmem:[#allocation3 + $0x140] sm:$0xff] %vm358, -1e+30
        %456 = vst.msk [vmem:[#allocation3 + $0x148] sm:$0xf] %vm416, -1e+30
        %457 = vst.msk [vmem:[#allocation3 + $0x150] sm:$0xff] %vm358, -1e+30
        %458 = vst.msk [vmem:[#allocation3 + $0x158] sm:$0xff] %vm358, -1e+30
        %459 = vst.msk [vmem:[#allocation3 + $0x160] sm:$0xf] %vm416, -1e+30
        %460 = vst.msk [vmem:[#allocation3 + $0x168] sm:$0xff] %vm358, -1e+30
        %461 = vst.msk [vmem:[#allocation3 + $0x170] sm:$0xff] %vm358, -1e+30
        %462 = vst.msk [vmem:[#allocation3 + $0x178] sm:$0xf] %vm416, -1e+30
        %463 = vst.msk [vmem:[#allocation3 + $0x180] sm:$0xff] %vm358, -1e+30
        %464 = vst.msk [vmem:[#allocation3 + $0x188] sm:$0xff] %vm358, -1e+30
        %465 = vst.msk [vmem:[#allocation3 + $0x190] sm:$0xf] %vm416, -1e+30
        %466 = vst.msk [vmem:[#allocation3 + $0x198] sm:$0xff] %vm358, -1e+30
        %467 = vst.msk [vmem:[#allocation3 + $0x1a0] sm:$0xff] %vm358, -1e+30
        %468 = vst.msk [vmem:[#allocation3 + $0x1a8] sm:$0xf] %vm416, -1e+30
        %469 = vst.msk [vmem:[#allocation3 + $0x1b0] sm:$0xff] %vm358, -1e+30
        %470 = vst.msk [vmem:[#allocation3 + $0x1b8] sm:$0xff] %vm358, -1e+30
        %471 = vst.msk [vmem:[#allocation3 + $0x1c0] sm:$0xf] %vm416, -1e+30
        %472 = vst.msk [vmem:[#allocation3 + $0x1c8] sm:$0xff] %vm358, -1e+30
        %473 = vst.msk [vmem:[#allocation3 + $0x1d0] sm:$0xff] %vm358, -1e+30
        %474 = vst.msk [vmem:[#allocation3 + $0x1d8] sm:$0xf] %vm416, -1e+30
        %v475 = vld [vmem:[%s357] sm:$0xff]
        %v476 = vld [vmem:[%s357 + $0x8] sm:$0xff]
        %v477 = vld [vmem:[%s357 + $0x10] sm:$0xff]
        %v478 = vld [vmem:[%s357 + $0x18] sm:$0xff]
        %v479 = vld [vmem:[%s357 + $0x20] sm:$0xff]
        %v480 = vld [vmem:[%s357 + $0x28] sm:$0xff]
        %v481 = vld [vmem:[%s357 + $0x30] sm:$0xff]
        %v482 = vld [vmem:[%s357 + $0x38] sm:$0xff]
        %v483 = vld [vmem:[%s357 + $0x40] sm:$0xff]
        %v484 = vld [vmem:[%s357 + $0x48] sm:$0xff]
        %v485 = vld [vmem:[%s357 + $0x50] sm:$0xff]
        %v486 = vld [vmem:[%s357 + $0x58] sm:$0xff]
        %v487 = vld [vmem:[%s357 + $0x60] sm:$0xff]
        %v488 = vld [vmem:[%s357 + $0x68] sm:$0xff]
        %v489 = vld [vmem:[%s357 + $0x70] sm:$0xff]
        %v490 = vld [vmem:[%s357 + $0x78] sm:$0xff]
        %v491 = vld [vmem:[%s357 + $0x80] sm:$0xff]
        %v492 = vld [vmem:[%s357 + $0x88] sm:$0xff]
        %v493 = vld [vmem:[%s357 + $0x90] sm:$0xff]
        %v494 = vld [vmem:[%s357 + $0x98] sm:$0xff]
        %v495 = vld [vmem:[%s357 + $0xa0] sm:$0xff]
        %v496 = vld [vmem:[%s357 + $0xa8] sm:$0xff]
        %v497 = vld [vmem:[%s357 + $0xb0] sm:$0xff]
        %v498 = vld [vmem:[%s357 + $0xb8] sm:$0xff]
        %v499 = vld [vmem:[%s357 + $0xc0] sm:$0xff]
        %v500 = vld [vmem:[%s357 + $0xc8] sm:$0xff]
        %v501 = vld [vmem:[%s357 + $0xd0] sm:$0xff]
        %v502 = vld [vmem:[%s357 + $0xd8] sm:$0xff]
        %v503 = vld [vmem:[%s357 + $0xe0] sm:$0xff]
        %v504 = vld [vmem:[%s357 + $0xe8] sm:$0xff]
        %v505 = vld [vmem:[%s357 + $0xf0] sm:$0xff]
        %v506 = vld [vmem:[%s357 + $0xf8] sm:$0xff]
        %v507 = vld [vmem:[%s1] sm:$0xff]
        %v508 = vld [vmem:[%s1 + $0x8] sm:$0xff]
        %v509 = vld [vmem:[%s1 + $0x10] sm:$0xff]
        %v510 = vld [vmem:[%s1 + $0x18] sm:$0xff]
        %v511 = vld [vmem:[%s2] sm:$0x1]
        %v513 = vlaneseq
        %v514 = vshrl.u32 %v513, 7
        %v515 = vsub.s32 0, %v514
        %v516 = vrot.slane %v511, %v515
        %vm518 = vcmask 261120
        %v520 = vsel %vm518, %v475, 0
        %v523 = vsel %vm518, %v476, 0
        %v526 = vsel %vm518, %v477, 0
        %v529 = vsel %vm518, %v478, 0
        %v532 = vsel %vm518, %v479, 0
        %v535 = vsel %vm518, %v480, 0
        %v538 = vsel %vm518, %v481, 0
        %v541 = vsel %vm518, %v482, 0
        %v544 = vsel %vm518, %v483, 0
        %v547 = vsel %vm518, %v484, 0
        %v550 = vsel %vm518, %v485, 0
        %v553 = vsel %vm518, %v486, 0
        %v556 = vsel %vm518, %v487, 0
        %v559 = vsel %vm518, %v488, 0
        %v562 = vsel %vm518, %v489, 0
        %v565 = vsel %vm518, %v490, 0
        %v568 = vsel %vm518, %v491, 0
        %v571 = vsel %vm518, %v492, 0
        %v574 = vsel %vm518, %v493, 0
        %v577 = vsel %vm518, %v494, 0
        %v580 = vsel %vm518, %v495, 0
        %v583 = vsel %vm518, %v496, 0
        %v586 = vsel %vm518, %v497, 0
        %v589 = vsel %vm518, %v498, 0
        %v592 = vsel %vm518, %v499, 0
        %v595 = vsel %vm518, %v500, 0
        %v598 = vsel %vm518, %v501, 0
        %v601 = vsel %vm518, %v502, 0
        %v604 = vsel %vm518, %v503, 0
        %v607 = vsel %vm518, %v504, 0
        %v610 = vsel %vm518, %v505, 0
        %v613 = vsel %vm518, %v506, 0
        %615 = vmatprep.subr.mxu0 0.0
        %616 = vmatpush1.msra.mxu0 0.0
        %617 = vmatprep.subr.mxu0 0.0
        %618 = vmatpush1.msra.mxu0 0.0
        %619 = vmatprep.subr.mxu0 0.0
        %620 = vmatpush1.msra.mxu0 0.0
        %621 = vmatprep.subr.mxu0 0.0
        %622 = vmatpush1.msra.mxu0 0.0
        %623 = vmatprep.subr.mxu0 0.0
        %624 = vmatpush1.msra.mxu0 0.0
        %625 = vmatprep.subr.mxu0 0.0
        %626 = vmatpush1.msra.mxu0 0.0
        %627 = vmatprep.subr.mxu0 0.0
        %628 = vmatpush1.msra.mxu0 0.0
        %629 = vmatprep.subr.mxu0 0.0
        %630 = vmatpush1.msra.mxu0 0.0
        %631 = vmatprep.subr.mxu0 0.0
        %632 = vmatpush1.msra.mxu0 0.0
        %633 = vmatprep.subr.mxu0 0.0
        %634 = vmatpush1.msra.mxu0 0.0
        %635 = vmatprep.subr.mxu0 0.0
        %636 = vmatpush1.msra.mxu0 0.0
        %637 = vmatprep.subr.mxu0 0.0
        %638 = vmatpush1.msra.mxu0 0.0
        %639 = vmatprep.subr.mxu0 0.0
        %640 = vmatpush1.msra.mxu0 %v510
        %641 = vmatprep.subr.mxu0 0.0
        %642 = vmatpush1.msra.mxu0 %v509
        %643 = vmatprep.subr.mxu0 0.0
        %644 = vmatpush1.msra.mxu0 %v508
        %645 = vmatprep.subr.mxu0 0.0
        %646 = vmatpush1.msra.mxu0 %v507
        %647 = vmatprep.subr.mxu0 0.0
        %648 = vmatpush2.msra.mxu0 0.0
        %649 = vmatprep.subr.mxu0 0.0
        %650 = vmatpush2.msra.mxu0 0.0
        %651 = vmatprep.subr.mxu0 0.0
        %652 = vmatpush2.msra.mxu0 0.0
        %653 = vmatprep.subr.mxu0 0.0
        %654 = vmatpush2.msra.mxu0 0.0
        %655 = vmatprep.subr.mxu0 0.0
        %656 = vmatpush2.msra.mxu0 0.0
        %657 = vmatprep.subr.mxu0 0.0
        %658 = vmatpush2.msra.mxu0 0.0
        %659 = vmatprep.subr.mxu0 0.0
        %660 = vmatpush2.msra.mxu0 0.0
        %661 = vmatprep.subr.mxu0 0.0
        %662 = vmatpush2.msra.mxu0 0.0
        %663 = vmatprep.subr.mxu0 0.0
        %664 = vmatpush2.msra.mxu0 0.0
        %665 = vmatprep.subr.mxu0 0.0
        %666 = vmatpush2.msra.mxu0 0.0
        %667 = vmatprep.subr.mxu0 0.0
        %668 = vmatpush2.msra.mxu0 0.0
        %669 = vmatprep.subr.mxu0 0.0
        %670 = vmatpush2.msra.mxu0 0.0
        %671 = vmatprep.subr.mxu0 0.0
        %672 = vmatpush2.msra.mxu0 0.0
        %673 = vmatprep.subr.mxu0 0.0
        %674 = vmatpush2.msra.mxu0 0.0
        %675 = vmatprep.subr.mxu0 0.0
        %676 = vmatpush2.msra.mxu0 0.0
        %677 = vmatprep.subr.mxu0 0.0
        %678 = vmatpush2.msra.mxu0 0.0
        %679 = vmatprep.mubr.f32.mxu0 0.0
        %680 = vmatmul.mubr.f32.gmra.mxu0 %v520
        %v681 = vpop.f32.mrf.mxu0
        %v682 = vadd.f32 %v516, %v681
        %v683 = vpop.f32.mrf.mxu0
        %684 = vmatprep.mubr.f32.mxu0 0.0
        %685 = vmatmul.mubr.f32.gmra.mxu0 %v523
        %v686 = vpop.f32.mrf.mxu0
        %v687 = vadd.f32 %v516, %v686
        %v688 = vpop.f32.mrf.mxu0
        %689 = vmatprep.mubr.f32.mxu0 0.0
        %690 = vmatmul.mubr.f32.gmra.mxu0 %v526
        %v691 = vpop.f32.mrf.mxu0
        %v692 = vadd.f32 %v516, %v691
        %v693 = vpop.f32.mrf.mxu0
        %694 = vmatprep.mubr.f32.mxu0 0.0
        %695 = vmatmul.mubr.f32.gmra.mxu0 %v529
        %v696 = vpop.f32.mrf.mxu0
        %v697 = vadd.f32 %v516, %v696
        %v698 = vpop.f32.mrf.mxu0
        %699 = vmatprep.mubr.f32.mxu0 0.0
        %700 = vmatmul.mubr.f32.gmra.mxu0 %v532
        %v701 = vpop.f32.mrf.mxu0
        %v702 = vadd.f32 %v516, %v701
        %v703 = vpop.f32.mrf.mxu0
        %704 = vmatprep.mubr.f32.mxu0 0.0
        %705 = vmatmul.mubr.f32.gmra.mxu0 %v535
        %v706 = vpop.f32.mrf.mxu0
        %v707 = vadd.f32 %v516, %v706
        %v708 = vpop.f32.mrf.mxu0
        %709 = vmatprep.mubr.f32.mxu0 0.0
        %710 = vmatmul.mubr.f32.gmra.mxu0 %v538
        %v711 = vpop.f32.mrf.mxu0
        %v712 = vadd.f32 %v516, %v711
        %v713 = vpop.f32.mrf.mxu0
        %714 = vmatprep.mubr.f32.mxu0 0.0
        %715 = vmatmul.mubr.f32.gmra.mxu0 %v541
        %v716 = vpop.f32.mrf.mxu0
        %v717 = vadd.f32 %v516, %v716
        %v718 = vpop.f32.mrf.mxu0
        %719 = vmatprep.mubr.f32.mxu0 0.0
        %720 = vmatmul.mubr.f32.gmra.mxu0 %v544
        %v721 = vpop.f32.mrf.mxu0
        %v722 = vadd.f32 %v516, %v721
        %v723 = vpop.f32.mrf.mxu0
        %724 = vmatprep.mubr.f32.mxu0 0.0
        %725 = vmatmul.mubr.f32.gmra.mxu0 %v547
        %v726 = vpop.f32.mrf.mxu0
        %v727 = vadd.f32 %v516, %v726
        %v728 = vpop.f32.mrf.mxu0
        %729 = vmatprep.mubr.f32.mxu0 0.0
        %730 = vmatmul.mubr.f32.gmra.mxu0 %v550
        %v731 = vpop.f32.mrf.mxu0
        %v732 = vadd.f32 %v516, %v731
        %v733 = vpop.f32.mrf.mxu0
        %734 = vmatprep.mubr.f32.mxu0 0.0
        %735 = vmatmul.mubr.f32.gmra.mxu0 %v553
        %v736 = vpop.f32.mrf.mxu0
        %v737 = vadd.f32 %v516, %v736
        %v738 = vpop.f32.mrf.mxu0
        %739 = vmatprep.mubr.f32.mxu0 0.0
        %740 = vmatmul.mubr.f32.gmra.mxu0 %v556
        %v741 = vpop.f32.mrf.mxu0
        %v742 = vadd.f32 %v516, %v741
        %v743 = vpop.f32.mrf.mxu0
        %744 = vmatprep.mubr.f32.mxu0 0.0
        %745 = vmatmul.mubr.f32.gmra.mxu0 %v559
        %v746 = vpop.f32.mrf.mxu0
        %v747 = vadd.f32 %v516, %v746
        %v748 = vpop.f32.mrf.mxu0
        %749 = vmatprep.mubr.f32.mxu0 0.0
        %750 = vmatmul.mubr.f32.gmra.mxu0 %v562
        %v751 = vpop.f32.mrf.mxu0
        %v752 = vadd.f32 %v516, %v751
        %v753 = vpop.f32.mrf.mxu0
        %754 = vmatprep.mubr.f32.mxu0 0.0
        %755 = vmatmul.mubr.f32.gmra.mxu0 %v565
        %v756 = vpop.f32.mrf.mxu0
        %v757 = vadd.f32 %v516, %v756
        %v758 = vpop.f32.mrf.mxu0
        %759 = vmatprep.mubr.f32.mxu0 0.0
        %760 = vmatmul.mubr.f32.gmra.mxu0 %v568
        %v761 = vpop.f32.mrf.mxu0
        %v762 = vadd.f32 %v516, %v761
        %v763 = vpop.f32.mrf.mxu0
        %764 = vmatprep.mubr.f32.mxu0 0.0
        %765 = vmatmul.mubr.f32.gmra.mxu0 %v571
        %v766 = vpop.f32.mrf.mxu0
        %v767 = vadd.f32 %v516, %v766
        %v768 = vpop.f32.mrf.mxu0
        %769 = vmatprep.mubr.f32.mxu0 0.0
        %770 = vmatmul.mubr.f32.gmra.mxu0 %v574
        %v771 = vpop.f32.mrf.mxu0
        %v772 = vadd.f32 %v516, %v771
        %v773 = vpop.f32.mrf.mxu0
        %774 = vmatprep.mubr.f32.mxu0 0.0
        %775 = vmatmul.mubr.f32.gmra.mxu0 %v577
        %v776 = vpop.f32.mrf.mxu0
        %v777 = vadd.f32 %v516, %v776
        %v778 = vpop.f32.mrf.mxu0
        %779 = vmatprep.mubr.f32.mxu0 0.0
        %780 = vmatmul.mubr.f32.gmra.mxu0 %v580
        %v781 = vpop.f32.mrf.mxu0
        %v782 = vadd.f32 %v516, %v781
        %v783 = vpop.f32.mrf.mxu0
        %784 = vmatprep.mubr.f32.mxu0 0.0
        %785 = vmatmul.mubr.f32.gmra.mxu0 %v583
        %v786 = vpop.f32.mrf.mxu0
        %v787 = vadd.f32 %v516, %v786
        %v788 = vpop.f32.mrf.mxu0
        %789 = vmatprep.mubr.f32.mxu0 0.0
        %790 = vmatmul.mubr.f32.gmra.mxu0 %v586
        %v791 = vpop.f32.mrf.mxu0
        %v792 = vadd.f32 %v516, %v791
        %v793 = vpop.f32.mrf.mxu0
        %794 = vmatprep.mubr.f32.mxu0 0.0
        %795 = vmatmul.mubr.f32.gmra.mxu0 %v589
        %v796 = vpop.f32.mrf.mxu0
        %v797 = vadd.f32 %v516, %v796
        %v798 = vpop.f32.mrf.mxu0
        %799 = vmatprep.mubr.f32.mxu0 0.0
        %800 = vmatmul.mubr.f32.gmra.mxu0 %v592
        %v801 = vpop.f32.mrf.mxu0
        %v802 = vadd.f32 %v516, %v801
        %v803 = vpop.f32.mrf.mxu0
        %804 = vmatprep.mubr.f32.mxu0 0.0
        %805 = vmatmul.mubr.f32.gmra.mxu0 %v595
        %v806 = vpop.f32.mrf.mxu0
        %v807 = vadd.f32 %v516, %v806
        %v808 = vpop.f32.mrf.mxu0
        %809 = vmatprep.mubr.f32.mxu0 0.0
        %810 = vmatmul.mubr.f32.gmra.mxu0 %v598
        %v811 = vpop.f32.mrf.mxu0
        %v812 = vadd.f32 %v516, %v811
        %v813 = vpop.f32.mrf.mxu0
        %814 = vmatprep.mubr.f32.mxu0 0.0
        %815 = vmatmul.mubr.f32.gmra.mxu0 %v601
        %v816 = vpop.f32.mrf.mxu0
        %v817 = vadd.f32 %v516, %v816
        %v818 = vpop.f32.mrf.mxu0
        %819 = vmatprep.mubr.f32.mxu0 0.0
        %820 = vmatmul.mubr.f32.gmra.mxu0 %v604
        %v821 = vpop.f32.mrf.mxu0
        %v822 = vadd.f32 %v516, %v821
        %v823 = vpop.f32.mrf.mxu0
        %824 = vmatprep.mubr.f32.mxu0 0.0
        %825 = vmatmul.mubr.f32.gmra.mxu0 %v607
        %v826 = vpop.f32.mrf.mxu0
        %v827 = vadd.f32 %v516, %v826
        %v828 = vpop.f32.mrf.mxu0
        %829 = vmatprep.mubr.f32.mxu0 0.0
        %830 = vmatmul.mubr.f32.gmra.mxu0 %v610
        %v831 = vpop.f32.mrf.mxu0
        %v832 = vadd.f32 %v516, %v831
        %v833 = vpop.f32.mrf.mxu0
        %834 = vmatprep.mubr.f32.mxu0 0.0
        %835 = vmatmul.mubr.f32.gmra.mxu0 %v613
        %v836 = vpop.f32.mrf.mxu0
        %v837 = vadd.f32 %v516, %v836
        %v838 = vpop.f32.mrf.mxu0
        %839 = vdwg.mxu0
        %v840 = vxor.u32 %v682, 2147483648
        %v841 = vxor.u32 %v687, 2147483648
        %v842 = vxor.u32 %v692, 2147483648
        %v843 = vxor.u32 %v697, 2147483648
        %v844 = vxor.u32 %v702, 2147483648
        %v845 = vxor.u32 %v707, 2147483648
        %v846 = vxor.u32 %v712, 2147483648
        %v847 = vxor.u32 %v717, 2147483648
        %v848 = vxor.u32 %v722, 2147483648
        %v849 = vxor.u32 %v727, 2147483648
        %v850 = vxor.u32 %v732, 2147483648
        %v851 = vxor.u32 %v737, 2147483648
        %v852 = vxor.u32 %v742, 2147483648
        %v853 = vxor.u32 %v747, 2147483648
        %v854 = vxor.u32 %v752, 2147483648
        %v855 = vxor.u32 %v757, 2147483648
        %v856 = vxor.u32 %v762, 2147483648
        %v857 = vxor.u32 %v767, 2147483648
        %v858 = vxor.u32 %v772, 2147483648
        %v859 = vxor.u32 %v777, 2147483648
        %v860 = vxor.u32 %v782, 2147483648
        %v861 = vxor.u32 %v787, 2147483648
        %v862 = vxor.u32 %v792, 2147483648
        %v863 = vxor.u32 %v797, 2147483648
        %v864 = vxor.u32 %v802, 2147483648
        %v865 = vxor.u32 %v807, 2147483648
        %v866 = vxor.u32 %v812, 2147483648
        %v867 = vxor.u32 %v817, 2147483648
        %v868 = vxor.u32 %v822, 2147483648
        %v869 = vxor.u32 %v827, 2147483648
        %v870 = vxor.u32 %v832, 2147483648
        %v871 = vxor.u32 %v837, 2147483648
        %v872 = vmul.f32 %v840, 1.442695
        %v873 = vpow.pop %v872
        %v874 = vmul.f32 %v841, 1.442695
        %v875 = vpow.pop %v874
        %v876 = vmul.f32 %v842, 1.442695
        %v877 = vpow.pop %v876
        %v878 = vmul.f32 %v843, 1.442695
        %v879 = vpow.pop %v878
        %v880 = vmul.f32 %v844, 1.442695
        %v881 = vpow.pop %v880
        %v882 = vmul.f32 %v845, 1.442695
        %v883 = vpow.pop %v882
        %v884 = vmul.f32 %v846, 1.442695
        %v885 = vpow.pop %v884
        %v886 = vmul.f32 %v847, 1.442695
        %v887 = vpow.pop %v886
        %v888 = vmul.f32 %v848, 1.442695
        %v889 = vpow.pop %v888
        %v890 = vmul.f32 %v849, 1.442695
        %v891 = vpow.pop %v890
        %v892 = vmul.f32 %v850, 1.442695
        %v893 = vpow.pop %v892
        %v894 = vmul.f32 %v851, 1.442695
        %v895 = vpow.pop %v894
        %v896 = vmul.f32 %v852, 1.442695
        %v897 = vpow.pop %v896
        %v898 = vmul.f32 %v853, 1.442695
        %v899 = vpow.pop %v898
        %v900 = vmul.f32 %v854, 1.442695
        %v901 = vpow.pop %v900
        %v902 = vmul.f32 %v855, 1.442695
        %v903 = vpow.pop %v902
        %v904 = vmul.f32 %v856, 1.442695
        %v905 = vpow.pop %v904
        %v906 = vmul.f32 %v857, 1.442695
        %v907 = vpow.pop %v906
        %v908 = vmul.f32 %v858, 1.442695
        %v909 = vpow.pop %v908
        %v910 = vmul.f32 %v859, 1.442695
        %v911 = vpow.pop %v910
        %v912 = vmul.f32 %v860, 1.442695
        %v913 = vpow.pop %v912
        %v914 = vmul.f32 %v861, 1.442695
        %v915 = vpow.pop %v914
        %v916 = vmul.f32 %v862, 1.442695
        %v917 = vpow.pop %v916
        %v918 = vmul.f32 %v863, 1.442695
        %v919 = vpow.pop %v918
        %v920 = vmul.f32 %v864, 1.442695
        %v921 = vpow.pop %v920
        %v922 = vmul.f32 %v865, 1.442695
        %v923 = vpow.pop %v922
        %v924 = vmul.f32 %v866, 1.442695
        %v925 = vpow.pop %v924
        %v926 = vmul.f32 %v867, 1.442695
        %v927 = vpow.pop %v926
        %v928 = vmul.f32 %v868, 1.442695
        %v929 = vpow.pop %v928
        %v930 = vmul.f32 %v869, 1.442695
        %v931 = vpow.pop %v930
        %v932 = vmul.f32 %v870, 1.442695
        %v933 = vpow.pop %v932
        %v934 = vmul.f32 %v871, 1.442695
        %v935 = vpow.pop %v934
        %v936 = vadd.f32 %v873, 1.0
        %v937 = vadd.f32 %v875, 1.0
        %v938 = vadd.f32 %v877, 1.0
        %v939 = vadd.f32 %v879, 1.0
        %v940 = vadd.f32 %v881, 1.0
        %v941 = vadd.f32 %v883, 1.0
        %v942 = vadd.f32 %v885, 1.0
        %v943 = vadd.f32 %v887, 1.0
        %v944 = vadd.f32 %v889, 1.0
        %v945 = vadd.f32 %v891, 1.0
        %v946 = vadd.f32 %v893, 1.0
        %v947 = vadd.f32 %v895, 1.0
        %v948 = vadd.f32 %v897, 1.0
        %v949 = vadd.f32 %v899, 1.0
        %v950 = vadd.f32 %v901, 1.0
        %v951 = vadd.f32 %v903, 1.0
        %v952 = vadd.f32 %v905, 1.0
        %v953 = vadd.f32 %v907, 1.0
        %v954 = vadd.f32 %v909, 1.0
        %v955 = vadd.f32 %v911, 1.0
        %v956 = vadd.f32 %v913, 1.0
        %v957 = vadd.f32 %v915, 1.0
        %v958 = vadd.f32 %v917, 1.0
        %v959 = vadd.f32 %v919, 1.0
        %v960 = vadd.f32 %v921, 1.0
        %v961 = vadd.f32 %v923, 1.0
        %v962 = vadd.f32 %v925, 1.0
        %v963 = vadd.f32 %v927, 1.0
        %v964 = vadd.f32 %v929, 1.0
        %v965 = vadd.f32 %v931, 1.0
        %v966 = vadd.f32 %v933, 1.0
        %v967 = vadd.f32 %v935, 1.0
        %v968 = vrcp.pop %v936
        %v969 = vmul.f32 1.0, %v968
        %v970 = vrcp.pop %v937
        %v971 = vmul.f32 1.0, %v970
        %v972 = vrcp.pop %v938
        %v973 = vmul.f32 1.0, %v972
        %v974 = vrcp.pop %v939
        %v975 = vmul.f32 1.0, %v974
        %v976 = vrcp.pop %v940
        %v977 = vmul.f32 1.0, %v976
        %v978 = vrcp.pop %v941
        %v979 = vmul.f32 1.0, %v978
        %v980 = vrcp.pop %v942
        %v981 = vmul.f32 1.0, %v980
        %v982 = vrcp.pop %v943
        %v983 = vmul.f32 1.0, %v982
        %v984 = vrcp.pop %v944
        %v985 = vmul.f32 1.0, %v984
        %v986 = vrcp.pop %v945
        %v987 = vmul.f32 1.0, %v986
        %v988 = vrcp.pop %v946
        %v989 = vmul.f32 1.0, %v988
        %v990 = vrcp.pop %v947
        %v991 = vmul.f32 1.0, %v990
        %v992 = vrcp.pop %v948
        %v993 = vmul.f32 1.0, %v992
        %v994 = vrcp.pop %v949
        %v995 = vmul.f32 1.0, %v994
        %v996 = vrcp.pop %v950
        %v997 = vmul.f32 1.0, %v996
        %v998 = vrcp.pop %v951
        %v999 = vmul.f32 1.0, %v998
        %v1000 = vrcp.pop %v952
        %v1001 = vmul.f32 1.0, %v1000
        %v1002 = vrcp.pop %v953
        %v1003 = vmul.f32 1.0, %v1002
        %v1004 = vrcp.pop %v954
        %v1005 = vmul.f32 1.0, %v1004
        %v1006 = vrcp.pop %v955
        %v1007 = vmul.f32 1.0, %v1006
        %v1008 = vrcp.pop %v956
        %v1009 = vmul.f32 1.0, %v1008
        %v1010 = vrcp.pop %v957
        %v1011 = vmul.f32 1.0, %v1010
        %v1012 = vrcp.pop %v958
        %v1013 = vmul.f32 1.0, %v1012
        %v1014 = vrcp.pop %v959
        %v1015 = vmul.f32 1.0, %v1014
        %v1016 = vrcp.pop %v960
        %v1017 = vmul.f32 1.0, %v1016
        %v1018 = vrcp.pop %v961
        %v1019 = vmul.f32 1.0, %v1018
        %v1020 = vrcp.pop %v962
        %v1021 = vmul.f32 1.0, %v1020
        %v1022 = vrcp.pop %v963
        %v1023 = vmul.f32 1.0, %v1022
        %v1024 = vrcp.pop %v964
        %v1025 = vmul.f32 1.0, %v1024
        %v1026 = vrcp.pop %v965
        %v1027 = vmul.f32 1.0, %v1026
        %v1028 = vrcp.pop %v966
        %v1029 = vmul.f32 1.0, %v1028
        %v1030 = vrcp.pop %v967
        %v1031 = vmul.f32 1.0, %v1030
        %v1032 = vmul.f32 %v682, %v969
        %v1033 = vmul.f32 %v687, %v971
        %v1034 = vmul.f32 %v692, %v973
        %v1035 = vmul.f32 %v697, %v975
        %v1036 = vmul.f32 %v702, %v977
        %v1037 = vmul.f32 %v707, %v979
        %v1038 = vmul.f32 %v712, %v981
        %v1039 = vmul.f32 %v717, %v983
        %v1040 = vmul.f32 %v722, %v985
        %v1041 = vmul.f32 %v727, %v987
        %v1042 = vmul.f32 %v732, %v989
        %v1043 = vmul.f32 %v737, %v991
        %v1044 = vmul.f32 %v742, %v993
        %v1045 = vmul.f32 %v747, %v995
        %v1046 = vmul.f32 %v752, %v997
        %v1047 = vmul.f32 %v757, %v999
        %v1048 = vmul.f32 %v762, %v1001
        %v1049 = vmul.f32 %v767, %v1003
        %v1050 = vmul.f32 %v772, %v1005
        %v1051 = vmul.f32 %v777, %v1007
        %v1052 = vmul.f32 %v782, %v1009
        %v1053 = vmul.f32 %v787, %v1011
        %v1054 = vmul.f32 %v792, %v1013
        %v1055 = vmul.f32 %v797, %v1015
        %v1056 = vmul.f32 %v802, %v1017
        %v1057 = vmul.f32 %v807, %v1019
        %v1058 = vmul.f32 %v812, %v1021
        %v1059 = vmul.f32 %v817, %v1023
        %v1060 = vmul.f32 %v822, %v1025
        %v1061 = vmul.f32 %v827, %v1027
        %v1062 = vmul.f32 %v832, %v1029
        %v1063 = vmul.f32 %v837, %v1031
        %1064 = vst.msk [vmem:[#allocation6] sm:$0xff] %vm518, %v1032
        %1065 = vst.msk [vmem:[#allocation6 + $0x8] sm:$0xff] %vm518, %v1033
        %1066 = vst.msk [vmem:[#allocation6 + $0x10] sm:$0xff] %vm518, %v1034
        %1067 = vst.msk [vmem:[#allocation6 + $0x18] sm:$0xff] %vm518, %v1035
        %1068 = vst.msk [vmem:[#allocation6 + $0x20] sm:$0xff] %vm518, %v1036
        %1069 = vst.msk [vmem:[#allocation6 + $0x28] sm:$0xff] %vm518, %v1037
        %1070 = vst.msk [vmem:[#allocation6 + $0x30] sm:$0xff] %vm518, %v1038
        %1071 = vst.msk [vmem:[#allocation6 + $0x38] sm:$0xff] %vm518, %v1039
        %1072 = vst.msk [vmem:[#allocation6 + $0x40] sm:$0xff] %vm518, %v1040
        %1073 = vst.msk [vmem:[#allocation6 + $0x48] sm:$0xff] %vm518, %v1041
        %1074 = vst.msk [vmem:[#allocation6 + $0x50] sm:$0xff] %vm518, %v1042
        %1075 = vst.msk [vmem:[#allocation6 + $0x58] sm:$0xff] %vm518, %v1043
        %1076 = vst.msk [vmem:[#allocation6 + $0x60] sm:$0xff] %vm518, %v1044
        %1077 = vst.msk [vmem:[#allocation6 + $0x68] sm:$0xff] %vm518, %v1045
        %1078 = vst.msk [vmem:[#allocation6 + $0x70] sm:$0xff] %vm518, %v1046
        %1079 = vst.msk [vmem:[#allocation6 + $0x78] sm:$0xff] %vm518, %v1047
        %1080 = vst.msk [vmem:[#allocation6 + $0x80] sm:$0xff] %vm518, %v1048
        %1081 = vst.msk [vmem:[#allocation6 + $0x88] sm:$0xff] %vm518, %v1049
        %1082 = vst.msk [vmem:[#allocation6 + $0x90] sm:$0xff] %vm518, %v1050
        %1083 = vst.msk [vmem:[#allocation6 + $0x98] sm:$0xff] %vm518, %v1051
        %1084 = vst.msk [vmem:[#allocation6 + $0xa0] sm:$0xff] %vm518, %v1052
        %1085 = vst.msk [vmem:[#allocation6 + $0xa8] sm:$0xff] %vm518, %v1053
        %1086 = vst.msk [vmem:[#allocation6 + $0xb0] sm:$0xff] %vm518, %v1054
        %1087 = vst.msk [vmem:[#allocation6 + $0xb8] sm:$0xff] %vm518, %v1055
        %1088 = vst.msk [vmem:[#allocation6 + $0xc0] sm:$0xff] %vm518, %v1056
        %1089 = vst.msk [vmem:[#allocation6 + $0xc8] sm:$0xff] %vm518, %v1057
        %1090 = vst.msk [vmem:[#allocation6 + $0xd0] sm:$0xff] %vm518, %v1058
        %1091 = vst.msk [vmem:[#allocation6 + $0xd8] sm:$0xff] %vm518, %v1059
        %1092 = vst.msk [vmem:[#allocation6 + $0xe0] sm:$0xff] %vm518, %v1060
        %1093 = vst.msk [vmem:[#allocation6 + $0xe8] sm:$0xff] %vm518, %v1061
        %1094 = vst.msk [vmem:[#allocation6 + $0xf0] sm:$0xff] %vm518, %v1062
        %1095 = vst.msk [vmem:[#allocation6 + $0xf8] sm:$0xff] %vm518, %v1063
        %v1096 = vld [vmem:[#allocation6] sm:$0xff]
        %v1097 = vld [vmem:[#allocation6 + $0x8] sm:$0xff]
        %v1098 = vld [vmem:[#allocation6 + $0x10] sm:$0xff]
        %v1099 = vld [vmem:[#allocation6 + $0x18] sm:$0xff]
        %v1100 = vld [vmem:[#allocation6 + $0x20] sm:$0xff]
        %v1101 = vld [vmem:[#allocation6 + $0x28] sm:$0xff]
        %v1102 = vld [vmem:[#allocation6 + $0x30] sm:$0xff]
        %v1103 = vld [vmem:[#allocation6 + $0x38] sm:$0xff]
        %v1104 = vld [vmem:[#allocation6 + $0x40] sm:$0xff]
        %v1105 = vld [vmem:[#allocation6 + $0x48] sm:$0xff]
        %v1106 = vld [vmem:[#allocation6 + $0x50] sm:$0xff]
        %v1107 = vld [vmem:[#allocation6 + $0x58] sm:$0xff]
        %v1108 = vld [vmem:[#allocation6 + $0x60] sm:$0xff]
        %v1109 = vld [vmem:[#allocation6 + $0x68] sm:$0xff]
        %v1110 = vld [vmem:[#allocation6 + $0x70] sm:$0xff]
        %v1111 = vld [vmem:[#allocation6 + $0x78] sm:$0xff]
        %v1112 = vld [vmem:[#allocation6 + $0x80] sm:$0xff]
        %v1113 = vld [vmem:[#allocation6 + $0x88] sm:$0xff]
        %v1114 = vld [vmem:[#allocation6 + $0x90] sm:$0xff]
        %v1115 = vld [vmem:[#allocation6 + $0x98] sm:$0xff]
        %v1116 = vld [vmem:[#allocation6 + $0xa0] sm:$0xff]
        %v1117 = vld [vmem:[#allocation6 + $0xa8] sm:$0xff]
        %v1118 = vld [vmem:[#allocation6 + $0xb0] sm:$0xff]
        %v1119 = vld [vmem:[#allocation6 + $0xb8] sm:$0xff]
        %v1120 = vld [vmem:[#allocation6 + $0xc0] sm:$0xff]
        %v1121 = vld [vmem:[#allocation6 + $0xc8] sm:$0xff]
        %v1122 = vld [vmem:[#allocation6 + $0xd0] sm:$0xff]
        %v1123 = vld [vmem:[#allocation6 + $0xd8] sm:$0xff]
        %v1124 = vld [vmem:[#allocation6 + $0xe0] sm:$0xff]
        %v1125 = vld [vmem:[#allocation6 + $0xe8] sm:$0xff]
        %v1126 = vld [vmem:[#allocation6 + $0xf0] sm:$0xff]
        %v1127 = vld [vmem:[#allocation6 + $0xf8] sm:$0xff]
        %1160 = vrot.lane.b32.xlu0 %v1096, 112
        %v1161 = vpop.permute.xlu0 %1160
        %1162 = vrot.lane.b32.xlu0 %v1097, 112
        %v1163 = vpop.permute.xlu0 %1162
        %1164 = vrot.lane.b32.xlu0 %v1098, 112
        %v1165 = vpop.permute.xlu0 %1164
        %1166 = vrot.lane.b32.xlu0 %v1099, 112
        %v1167 = vpop.permute.xlu0 %1166
        %1168 = vrot.lane.b32.xlu0 %v1100, 112
        %v1169 = vpop.permute.xlu0 %1168
        %1170 = vrot.lane.b32.xlu0 %v1101, 112
        %v1171 = vpop.permute.xlu0 %1170
        %1172 = vrot.lane.b32.xlu0 %v1102, 112
        %v1173 = vpop.permute.xlu0 %1172
        %1174 = vrot.lane.b32.xlu0 %v1103, 112
        %v1175 = vpop.permute.xlu0 %1174
        %1176 = vrot.lane.b32.xlu0 %v1104, 112
        %v1177 = vpop.permute.xlu0 %1176
        %1178 = vrot.lane.b32.xlu0 %v1105, 112
        %v1179 = vpop.permute.xlu0 %1178
        %1180 = vrot.lane.b32.xlu0 %v1106, 112
        %v1181 = vpop.permute.xlu0 %1180
        %1182 = vrot.lane.b32.xlu0 %v1107, 112
        %v1183 = vpop.permute.xlu0 %1182
        %1184 = vrot.lane.b32.xlu0 %v1108, 112
        %v1185 = vpop.permute.xlu0 %1184
        %1186 = vrot.lane.b32.xlu0 %v1109, 112
        %v1187 = vpop.permute.xlu0 %1186
        %1188 = vrot.lane.b32.xlu0 %v1110, 112
        %v1189 = vpop.permute.xlu0 %1188
        %1190 = vrot.lane.b32.xlu0 %v1111, 112
        %v1191 = vpop.permute.xlu0 %1190
        %1192 = vrot.lane.b32.xlu0 %v1112, 112
        %v1193 = vpop.permute.xlu0 %1192
        %1194 = vrot.lane.b32.xlu0 %v1113, 112
        %v1195 = vpop.permute.xlu0 %1194
        %1196 = vrot.lane.b32.xlu0 %v1114, 112
        %v1197 = vpop.permute.xlu0 %1196
        %1198 = vrot.lane.b32.xlu0 %v1115, 112
        %v1199 = vpop.permute.xlu0 %1198
        %1200 = vrot.lane.b32.xlu0 %v1116, 112
        %v1201 = vpop.permute.xlu0 %1200
        %1202 = vrot.lane.b32.xlu0 %v1117, 112
        %v1203 = vpop.permute.xlu0 %1202
        %1204 = vrot.lane.b32.xlu0 %v1118, 112
        %v1205 = vpop.permute.xlu0 %1204
        %1206 = vrot.lane.b32.xlu0 %v1119, 112
        %v1207 = vpop.permute.xlu0 %1206
        %1208 = vrot.lane.b32.xlu0 %v1120, 112
        %v1209 = vpop.permute.xlu0 %1208
        %1210 = vrot.lane.b32.xlu0 %v1121, 112
        %v1211 = vpop.permute.xlu0 %1210
        %1212 = vrot.lane.b32.xlu0 %v1122, 112
        %v1213 = vpop.permute.xlu0 %1212
        %1214 = vrot.lane.b32.xlu0 %v1123, 112
        %v1215 = vpop.permute.xlu0 %1214
        %1216 = vrot.lane.b32.xlu0 %v1124, 112
        %v1217 = vpop.permute.xlu0 %1216
        %1218 = vrot.lane.b32.xlu0 %v1125, 112
        %v1219 = vpop.permute.xlu0 %1218
        %1220 = vrot.lane.b32.xlu0 %v1126, 112
        %v1221 = vpop.permute.xlu0 %1220
        %1222 = vrot.lane.b32.xlu0 %v1127, 112
        %v1223 = vpop.permute.xlu0 %1222
        %s1256 = scalar_lea.vmem [#allocation2], 24
        %1257 = vst.msk [vmem:[%s1256 + $0x1] sm:$0xff] %vm358, %v1161
        %1258 = vst.msk [vmem:[%s1256 + $0x9] sm:$0xff] %vm358, %v1163
        %1259 = vst.msk [vmem:[%s1256 + $0x19] sm:$0xff] %vm358, %v1165
        %1260 = vst.msk [vmem:[%s1256 + $0x21] sm:$0xff] %vm358, %v1167
        %1261 = vst.msk [vmem:[%s1256 + $0x31] sm:$0xff] %vm358, %v1169
        %1262 = vst.msk [vmem:[%s1256 + $0x39] sm:$0xff] %vm358, %v1171
        %1263 = vst.msk [vmem:[%s1256 + $0x49] sm:$0xff] %vm358, %v1173
        %1264 = vst.msk [vmem:[%s1256 + $0x51] sm:$0xff] %vm358, %v1175
        %1265 = vst.msk [vmem:[%s1256 + $0x61] sm:$0xff] %vm358, %v1177
        %1266 = vst.msk [vmem:[%s1256 + $0x69] sm:$0xff] %vm358, %v1179
        %1267 = vst.msk [vmem:[%s1256 + $0x79] sm:$0xff] %vm358, %v1181
        %1268 = vst.msk [vmem:[%s1256 + $0x81] sm:$0xff] %vm358, %v1183
        %1269 = vst.msk [vmem:[%s1256 + $0x91] sm:$0xff] %vm358, %v1185
        %1270 = vst.msk [vmem:[%s1256 + $0x99] sm:$0xff] %vm358, %v1187
        %1271 = vst.msk [vmem:[%s1256 + $0xa9] sm:$0xff] %vm358, %v1189
        %1272 = vst.msk [vmem:[%s1256 + $0xb1] sm:$0xff] %vm358, %v1191
        %1273 = vst.msk [vmem:[%s1256 + $0xc1] sm:$0xff] %vm358, %v1193
        %1274 = vst.msk [vmem:[%s1256 + $0xc9] sm:$0xff] %vm358, %v1195
        %1275 = vst.msk [vmem:[%s1256 + $0xd9] sm:$0xff] %vm358, %v1197
        %1276 = vst.msk [vmem:[%s1256 + $0xe1] sm:$0xff] %vm358, %v1199
        %1277 = vst.msk [vmem:[%s1256 + $0xf1] sm:$0xff] %vm358, %v1201
        %1278 = vst.msk [vmem:[%s1256 + $0xf9] sm:$0xff] %vm358, %v1203
        %1279 = vst.msk [vmem:[%s1256 + $0x109] sm:$0xff] %vm358, %v1205
        %1280 = vst.msk [vmem:[%s1256 + $0x111] sm:$0xff] %vm358, %v1207
        %1281 = vst.msk [vmem:[%s1256 + $0x121] sm:$0xff] %vm358, %v1209
        %1282 = vst.msk [vmem:[%s1256 + $0x129] sm:$0xff] %vm358, %v1211
        %1283 = vst.msk [vmem:[%s1256 + $0x139] sm:$0xff] %vm358, %v1213
        %1284 = vst.msk [vmem:[%s1256 + $0x141] sm:$0xff] %vm358, %v1215
        %1285 = vst.msk [vmem:[%s1256 + $0x151] sm:$0xff] %vm358, %v1217
        %1286 = vst.msk [vmem:[%s1256 + $0x159] sm:$0xff] %vm358, %v1219
        %1287 = vst.msk [vmem:[%s1256 + $0x169] sm:$0xff] %vm358, %v1221
        %1288 = vst.msk [vmem:[%s1256 + $0x171] sm:$0xff] %vm358, %v1223
        %v1289 = vld [vmem:[#allocation2] sm:$0xff]
        %v1290 = vld [vmem:[#allocation2 + $0x8] sm:$0xff]
        %v1291 = vld [vmem:[#allocation2 + $0x18] sm:$0xff]
        %v1292 = vld [vmem:[#allocation2 + $0x20] sm:$0xff]
        %v1293 = vld [vmem:[#allocation2 + $0x30] sm:$0xff]
        %v1294 = vld [vmem:[#allocation2 + $0x38] sm:$0xff]
        %v1295 = vld [vmem:[#allocation2 + $0x48] sm:$0xff]
        %v1296 = vld [vmem:[#allocation2 + $0x50] sm:$0xff]
        %v1297 = vld [vmem:[#allocation2 + $0x60] sm:$0xff]
        %v1298 = vld [vmem:[#allocation2 + $0x68] sm:$0xff]
        %v1299 = vld [vmem:[#allocation2 + $0x78] sm:$0xff]
        %v1300 = vld [vmem:[#allocation2 + $0x80] sm:$0xff]
        %v1301 = vld [vmem:[#allocation2 + $0x90] sm:$0xff]
        %v1302 = vld [vmem:[#allocation2 + $0x98] sm:$0xff]
        %v1303 = vld [vmem:[#allocation2 + $0xa8] sm:$0xff]
        %v1304 = vld [vmem:[#allocation2 + $0xb0] sm:$0xff]
        %v1305 = vld [vmem:[#allocation2 + $0xc0] sm:$0xff]
        %v1306 = vld [vmem:[#allocation2 + $0xc8] sm:$0xff]
        %v1307 = vld [vmem:[#allocation2 + $0xd8] sm:$0xff]
        %v1308 = vld [vmem:[#allocation2 + $0xe0] sm:$0xff]
        %v1309 = vld [vmem:[#allocation2 + $0xf0] sm:$0xff]
        %v1310 = vld [vmem:[#allocation2 + $0xf8] sm:$0xff]
        %v1311 = vld [vmem:[#allocation2 + $0x108] sm:$0xff]
        %v1312 = vld [vmem:[#allocation2 + $0x110] sm:$0xff]
        %v1313 = vld [vmem:[#allocation2 + $0x120] sm:$0xff]
        %v1314 = vld [vmem:[#allocation2 + $0x128] sm:$0xff]
        %v1315 = vld [vmem:[#allocation2 + $0x138] sm:$0xff]
        %v1316 = vld [vmem:[#allocation2 + $0x140] sm:$0xff]
        %v1317 = vld [vmem:[#allocation2 + $0x150] sm:$0xff]
        %v1318 = vld [vmem:[#allocation2 + $0x158] sm:$0xff]
        %v1319 = vld [vmem:[#allocation2 + $0x168] sm:$0xff]
        %v1320 = vld [vmem:[#allocation2 + $0x170] sm:$0xff]
        %1321 = vst.msk [vmem:[#allocation4] sm:$0xff] %vm358, %v1289
        %1322 = vst.msk [vmem:[#allocation4 + $0x10] sm:$0xff] %vm358, %v1290
        %1323 = vst.msk [vmem:[#allocation4 + $0x20] sm:$0xff] %vm358, %v1291
        %1324 = vst.msk [vmem:[#allocation4 + $0x30] sm:$0xff] %vm358, %v1292
        %1325 = vst.msk [vmem:[#allocation4 + $0x40] sm:$0xff] %vm358, %v1293
        %1326 = vst.msk [vmem:[#allocation4 + $0x50] sm:$0xff] %vm358, %v1294
        %1327 = vst.msk [vmem:[#allocation4 + $0x60] sm:$0xff] %vm358, %v1295
        %1328 = vst.msk [vmem:[#allocation4 + $0x70] sm:$0xff] %vm358, %v1296
        %1329 = vst.msk [vmem:[#allocation4 + $0x80] sm:$0xff] %vm358, %v1297
        %1330 = vst.msk [vmem:[#allocation4 + $0x90] sm:$0xff] %vm358, %v1298
        %1331 = vst.msk [vmem:[#allocation4 + $0xa0] sm:$0xff] %vm358, %v1299
        %1332 = vst.msk [vmem:[#allocation4 + $0xb0] sm:$0xff] %vm358, %v1300
        %1333 = vst.msk [vmem:[#allocation4 + $0xc0] sm:$0xff] %vm358, %v1301
        %1334 = vst.msk [vmem:[#allocation4 + $0xd0] sm:$0xff] %vm358, %v1302
        %1335 = vst.msk [vmem:[#allocation4 + $0xe0] sm:$0xff] %vm358, %v1303
        %1336 = vst.msk [vmem:[#allocation4 + $0xf0] sm:$0xff] %vm358, %v1304
        %1337 = vst.msk [vmem:[#allocation4 + $0x100] sm:$0xff] %vm358, %v1305
        %1338 = vst.msk [vmem:[#allocation4 + $0x110] sm:$0xff] %vm358, %v1306
        %1339 = vst.msk [vmem:[#allocation4 + $0x120] sm:$0xff] %vm358, %v1307
        %1340 = vst.msk [vmem:[#allocation4 + $0x130] sm:$0xff] %vm358, %v1308
        %1341 = vst.msk [vmem:[#allocation4 + $0x140] sm:$0xff] %vm358, %v1309
        %1342 = vst.msk [vmem:[#allocation4 + $0x150] sm:$0xff] %vm358, %v1310
        %1343 = vst.msk [vmem:[#allocation4 + $0x160] sm:$0xff] %vm358, %v1311
        %1344 = vst.msk [vmem:[#allocation4 + $0x170] sm:$0xff] %vm358, %v1312
        %1345 = vst.msk [vmem:[#allocation4 + $0x180] sm:$0xff] %vm358, %v1313
        %1346 = vst.msk [vmem:[#allocation4 + $0x190] sm:$0xff] %vm358, %v1314
        %1347 = vst.msk [vmem:[#allocation4 + $0x1a0] sm:$0xff] %vm358, %v1315
        %1348 = vst.msk [vmem:[#allocation4 + $0x1b0] sm:$0xff] %vm358, %v1316
        %1349 = vst.msk [vmem:[#allocation4 + $0x1c0] sm:$0xff] %vm358, %v1317
        %1350 = vst.msk [vmem:[#allocation4 + $0x1d0] sm:$0xff] %vm358, %v1318
        %1351 = vst.msk [vmem:[#allocation4 + $0x1e0] sm:$0xff] %vm358, %v1319
        %1352 = vst.msk [vmem:[#allocation4 + $0x1f0] sm:$0xff] %vm358, %v1320
        %v1353 = vld [vmem:[#allocation2 + $0x1] sm:$0xff]
        %v1354 = vld [vmem:[#allocation2 + $0x9] sm:$0xff]
        %v1355 = vld [vmem:[#allocation2 + $0x19] sm:$0xff]
        %v1356 = vld [vmem:[#allocation2 + $0x21] sm:$0xff]
        %v1357 = vld [vmem:[#allocation2 + $0x31] sm:$0xff]
        %v1358 = vld [vmem:[#allocation2 + $0x39] sm:$0xff]
        %v1359 = vld [vmem:[#allocation2 + $0x49] sm:$0xff]
        %v1360 = vld [vmem:[#allocation2 + $0x51] sm:$0xff]
        %v1361 = vld [vmem:[#allocation2 + $0x61] sm:$0xff]
        %v1362 = vld [vmem:[#allocation2 + $0x69] sm:$0xff]
        %v1363 = vld [vmem:[#allocation2 + $0x79] sm:$0xff]
        %v1364 = vld [vmem:[#allocation2 + $0x81] sm:$0xff]
        %v1365 = vld [vmem:[#allocation2 + $0x91] sm:$0xff]
        %v1366 = vld [vmem:[#allocation2 + $0x99] sm:$0xff]
        %v1367 = vld [vmem:[#allocation2 + $0xa9] sm:$0xff]
        %v1368 = vld [vmem:[#allocation2 + $0xb1] sm:$0xff]
        %v1369 = vld [vmem:[#allocation2 + $0xc1] sm:$0xff]
        %v1370 = vld [vmem:[#allocation2 + $0xc9] sm:$0xff]
        %v1371 = vld [vmem:[#allocation2 + $0xd9] sm:$0xff]
        %v1372 = vld [vmem:[#allocation2 + $0xe1] sm:$0xff]
        %v1373 = vld [vmem:[#allocation2 + $0xf1] sm:$0xff]
        %v1374 = vld [vmem:[#allocation2 + $0xf9] sm:$0xff]
        %v1375 = vld [vmem:[#allocation2 + $0x109] sm:$0xff]
        %v1376 = vld [vmem:[#allocation2 + $0x111] sm:$0xff]
        %v1377 = vld [vmem:[#allocation2 + $0x121] sm:$0xff]
        %v1378 = vld [vmem:[#allocation2 + $0x129] sm:$0xff]
        %v1379 = vld [vmem:[#allocation2 + $0x139] sm:$0xff]
        %v1380 = vld [vmem:[#allocation2 + $0x141] sm:$0xff]
        %v1381 = vld [vmem:[#allocation2 + $0x151] sm:$0xff]
        %v1382 = vld [vmem:[#allocation2 + $0x159] sm:$0xff]
        %v1383 = vld [vmem:[#allocation2 + $0x169] sm:$0xff]
        %v1384 = vld [vmem:[#allocation2 + $0x171] sm:$0xff]
        %1417 = vrot.lane.b32.xlu0 %v1353, 16
        %v1418 = vpop.permute.xlu0 %1417
        %1419 = vrot.lane.b32.xlu0 %v1354, 16
        %v1420 = vpop.permute.xlu0 %1419
        %1421 = vrot.lane.b32.xlu0 %v1355, 16
        %v1422 = vpop.permute.xlu0 %1421
        %1423 = vrot.lane.b32.xlu0 %v1356, 16
        %v1424 = vpop.permute.xlu0 %1423
        %1425 = vrot.lane.b32.xlu0 %v1357, 16
        %v1426 = vpop.permute.xlu0 %1425
        %1427 = vrot.lane.b32.xlu0 %v1358, 16
        %v1428 = vpop.permute.xlu0 %1427
        %1429 = vrot.lane.b32.xlu0 %v1359, 16
        %v1430 = vpop.permute.xlu0 %1429
        %1431 = vrot.lane.b32.xlu0 %v1360, 16
        %v1432 = vpop.permute.xlu0 %1431
        %1433 = vrot.lane.b32.xlu0 %v1361, 16
        %v1434 = vpop.permute.xlu0 %1433
        %1435 = vrot.lane.b32.xlu0 %v1362, 16
        %v1436 = vpop.permute.xlu0 %1435
        %1437 = vrot.lane.b32.xlu0 %v1363, 16
        %v1438 = vpop.permute.xlu0 %1437
        %1439 = vrot.lane.b32.xlu0 %v1364, 16
        %v1440 = vpop.permute.xlu0 %1439
        %1441 = vrot.lane.b32.xlu0 %v1365, 16
        %v1442 = vpop.permute.xlu0 %1441
        %1443 = vrot.lane.b32.xlu0 %v1366, 16
        %v1444 = vpop.permute.xlu0 %1443
        %1445 = vrot.lane.b32.xlu0 %v1367, 16
        %v1446 = vpop.permute.xlu0 %1445
        %1447 = vrot.lane.b32.xlu0 %v1368, 16
        %v1448 = vpop.permute.xlu0 %1447
        %1449 = vrot.lane.b32.xlu0 %v1369, 16
        %v1450 = vpop.permute.xlu0 %1449
        %1451 = vrot.lane.b32.xlu0 %v1370, 16
        %v1452 = vpop.permute.xlu0 %1451
        %1453 = vrot.lane.b32.xlu0 %v1371, 16
        %v1454 = vpop.permute.xlu0 %1453
        %1455 = vrot.lane.b32.xlu0 %v1372, 16
        %v1456 = vpop.permute.xlu0 %1455
        %1457 = vrot.lane.b32.xlu0 %v1373, 16
        %v1458 = vpop.permute.xlu0 %1457
        %1459 = vrot.lane.b32.xlu0 %v1374, 16
        %v1460 = vpop.permute.xlu0 %1459
        %1461 = vrot.lane.b32.xlu0 %v1375, 16
        %v1462 = vpop.permute.xlu0 %1461
        %1463 = vrot.lane.b32.xlu0 %v1376, 16
        %v1464 = vpop.permute.xlu0 %1463
        %1465 = vrot.lane.b32.xlu0 %v1377, 16
        %v1466 = vpop.permute.xlu0 %1465
        %1467 = vrot.lane.b32.xlu0 %v1378, 16
        %v1468 = vpop.permute.xlu0 %1467
        %1469 = vrot.lane.b32.xlu0 %v1379, 16
        %v1470 = vpop.permute.xlu0 %1469
        %1471 = vrot.lane.b32.xlu0 %v1380, 16
        %v1472 = vpop.permute.xlu0 %1471
        %1473 = vrot.lane.b32.xlu0 %v1381, 16
        %v1474 = vpop.permute.xlu0 %1473
        %1475 = vrot.lane.b32.xlu0 %v1382, 16
        %v1476 = vpop.permute.xlu0 %1475
        %1477 = vrot.lane.b32.xlu0 %v1383, 16
        %v1478 = vpop.permute.xlu0 %1477
        %1479 = vrot.lane.b32.xlu0 %v1384, 16
        %v1480 = vpop.permute.xlu0 %1479
        %vm1513 = vcmask 261248
        %1514 = vst.msk [vmem:[#allocation4] sm:$0xff] %vm1513, %v1418
        %1515 = vst.msk [vmem:[#allocation4 + $0x10] sm:$0xff] %vm1513, %v1420
        %1516 = vst.msk [vmem:[#allocation4 + $0x20] sm:$0xff] %vm1513, %v1422
        %1517 = vst.msk [vmem:[#allocation4 + $0x30] sm:$0xff] %vm1513, %v1424
        %1518 = vst.msk [vmem:[#allocation4 + $0x40] sm:$0xff] %vm1513, %v1426
        %1519 = vst.msk [vmem:[#allocation4 + $0x50] sm:$0xff] %vm1513, %v1428
        %1520 = vst.msk [vmem:[#allocation4 + $0x60] sm:$0xff] %vm1513, %v1430
        %1521 = vst.msk [vmem:[#allocation4 + $0x70] sm:$0xff] %vm1513, %v1432
        %1522 = vst.msk [vmem:[#allocation4 + $0x80] sm:$0xff] %vm1513, %v1434
        %1523 = vst.msk [vmem:[#allocation4 + $0x90] sm:$0xff] %vm1513, %v1436
        %1524 = vst.msk [vmem:[#allocation4 + $0xa0] sm:$0xff] %vm1513, %v1438
        %1525 = vst.msk [vmem:[#allocation4 + $0xb0] sm:$0xff] %vm1513, %v1440
        %1526 = vst.msk [vmem:[#allocation4 + $0xc0] sm:$0xff] %vm1513, %v1442
        %1527 = vst.msk [vmem:[#allocation4 + $0xd0] sm:$0xff] %vm1513, %v1444
        %1528 = vst.msk [vmem:[#allocation4 + $0xe0] sm:$0xff] %vm1513, %v1446
        %1529 = vst.msk [vmem:[#allocation4 + $0xf0] sm:$0xff] %vm1513, %v1448
        %1530 = vst.msk [vmem:[#allocation4 + $0x100] sm:$0xff] %vm1513, %v1450
        %1531 = vst.msk [vmem:[#allocation4 + $0x110] sm:$0xff] %vm1513, %v1452
        %1532 = vst.msk [vmem:[#allocation4 + $0x120] sm:$0xff] %vm1513, %v1454
        %1533 = vst.msk [vmem:[#allocation4 + $0x130] sm:$0xff] %vm1513, %v1456
        %1534 = vst.msk [vmem:[#allocation4 + $0x140] sm:$0xff] %vm1513, %v1458
        %1535 = vst.msk [vmem:[#allocation4 + $0x150] sm:$0xff] %vm1513, %v1460
        %1536 = vst.msk [vmem:[#allocation4 + $0x160] sm:$0xff] %vm1513, %v1462
        %1537 = vst.msk [vmem:[#allocation4 + $0x170] sm:$0xff] %vm1513, %v1464
        %1538 = vst.msk [vmem:[#allocation4 + $0x180] sm:$0xff] %vm1513, %v1466
        %1539 = vst.msk [vmem:[#allocation4 + $0x190] sm:$0xff] %vm1513, %v1468
        %1540 = vst.msk [vmem:[#allocation4 + $0x1a0] sm:$0xff] %vm1513, %v1470
        %1541 = vst.msk [vmem:[#allocation4 + $0x1b0] sm:$0xff] %vm1513, %v1472
        %1542 = vst.msk [vmem:[#allocation4 + $0x1c0] sm:$0xff] %vm1513, %v1474
        %1543 = vst.msk [vmem:[#allocation4 + $0x1d0] sm:$0xff] %vm1513, %v1476
        %1544 = vst.msk [vmem:[#allocation4 + $0x1e0] sm:$0xff] %vm1513, %v1478
        %1545 = vst.msk [vmem:[#allocation4 + $0x1f0] sm:$0xff] %vm1513, %v1480
        %v1546 = vld [vmem:[#allocation2 + $0x2] sm:$0xff]
        %v1547 = vld [vmem:[#allocation2 + $0xa] sm:$0xff]
        %v1548 = vld [vmem:[#allocation2 + $0x1a] sm:$0xff]
        %v1549 = vld [vmem:[#allocation2 + $0x22] sm:$0xff]
        %v1550 = vld [vmem:[#allocation2 + $0x32] sm:$0xff]
        %v1551 = vld [vmem:[#allocation2 + $0x3a] sm:$0xff]
        %v1552 = vld [vmem:[#allocation2 + $0x4a] sm:$0xff]
        %v1553 = vld [vmem:[#allocation2 + $0x52] sm:$0xff]
        %v1554 = vld [vmem:[#allocation2 + $0x62] sm:$0xff]
        %v1555 = vld [vmem:[#allocation2 + $0x6a] sm:$0xff]
        %v1556 = vld [vmem:[#allocation2 + $0x7a] sm:$0xff]
        %v1557 = vld [vmem:[#allocation2 + $0x82] sm:$0xff]
        %v1558 = vld [vmem:[#allocation2 + $0x92] sm:$0xff]
        %v1559 = vld [vmem:[#allocation2 + $0x9a] sm:$0xff]
        %v1560 = vld [vmem:[#allocation2 + $0xaa] sm:$0xff]
        %v1561 = vld [vmem:[#allocation2 + $0xb2] sm:$0xff]
        %v1562 = vld [vmem:[#allocation2 + $0xc2] sm:$0xff]
        %v1563 = vld [vmem:[#allocation2 + $0xca] sm:$0xff]
        %v1564 = vld [vmem:[#allocation2 + $0xda] sm:$0xff]
        %v1565 = vld [vmem:[#allocation2 + $0xe2] sm:$0xff]
        %v1566 = vld [vmem:[#allocation2 + $0xf2] sm:$0xff]
        %v1567 = vld [vmem:[#allocation2 + $0xfa] sm:$0xff]
        %v1568 = vld [vmem:[#allocation2 + $0x10a] sm:$0xff]
        %v1569 = vld [vmem:[#allocation2 + $0x112] sm:$0xff]
        %v1570 = vld [vmem:[#allocation2 + $0x122] sm:$0xff]
        %v1571 = vld [vmem:[#allocation2 + $0x12a] sm:$0xff]
        %v1572 = vld [vmem:[#allocation2 + $0x13a] sm:$0xff]
        %v1573 = vld [vmem:[#allocation2 + $0x142] sm:$0xff]
        %v1574 = vld [vmem:[#allocation2 + $0x152] sm:$0xff]
        %v1575 = vld [vmem:[#allocation2 + $0x15a] sm:$0xff]
        %v1576 = vld [vmem:[#allocation2 + $0x16a] sm:$0xff]
        %v1577 = vld [vmem:[#allocation2 + $0x172] sm:$0xff]
        %1610 = vrot.lane.b32.xlu0 %v1546, 32
        %v1611 = vpop.permute.xlu0 %1610
        %1612 = vrot.lane.b32.xlu0 %v1547, 32
        %v1613 = vpop.permute.xlu0 %1612
        %1614 = vrot.lane.b32.xlu0 %v1548, 32
        %v1615 = vpop.permute.xlu0 %1614
        %1616 = vrot.lane.b32.xlu0 %v1549, 32
        %v1617 = vpop.permute.xlu0 %1616
        %1618 = vrot.lane.b32.xlu0 %v1550, 32
        %v1619 = vpop.permute.xlu0 %1618
        %1620 = vrot.lane.b32.xlu0 %v1551, 32
        %v1621 = vpop.permute.xlu0 %1620
        %1622 = vrot.lane.b32.xlu0 %v1552, 32
        %v1623 = vpop.permute.xlu0 %1622
        %1624 = vrot.lane.b32.xlu0 %v1553, 32
        %v1625 = vpop.permute.xlu0 %1624
        %1626 = vrot.lane.b32.xlu0 %v1554, 32
        %v1627 = vpop.permute.xlu0 %1626
        %1628 = vrot.lane.b32.xlu0 %v1555, 32
        %v1629 = vpop.permute.xlu0 %1628
        %1630 = vrot.lane.b32.xlu0 %v1556, 32
        %v1631 = vpop.permute.xlu0 %1630
        %1632 = vrot.lane.b32.xlu0 %v1557, 32
        %v1633 = vpop.permute.xlu0 %1632
        %1634 = vrot.lane.b32.xlu0 %v1558, 32
        %v1635 = vpop.permute.xlu0 %1634
        %1636 = vrot.lane.b32.xlu0 %v1559, 32
        %v1637 = vpop.permute.xlu0 %1636
        %1638 = vrot.lane.b32.xlu0 %v1560, 32
        %v1639 = vpop.permute.xlu0 %1638
        %1640 = vrot.lane.b32.xlu0 %v1561, 32
        %v1641 = vpop.permute.xlu0 %1640
        %1642 = vrot.lane.b32.xlu0 %v1562, 32
        %v1643 = vpop.permute.xlu0 %1642
        %1644 = vrot.lane.b32.xlu0 %v1563, 32
        %v1645 = vpop.permute.xlu0 %1644
        %1646 = vrot.lane.b32.xlu0 %v1564, 32
        %v1647 = vpop.permute.xlu0 %1646
        %1648 = vrot.lane.b32.xlu0 %v1565, 32
        %v1649 = vpop.permute.xlu0 %1648
        %1650 = vrot.lane.b32.xlu0 %v1566, 32
        %v1651 = vpop.permute.xlu0 %1650
        %1652 = vrot.lane.b32.xlu0 %v1567, 32
        %v1653 = vpop.permute.xlu0 %1652
        %1654 = vrot.lane.b32.xlu0 %v1568, 32
        %v1655 = vpop.permute.xlu0 %1654
        %1656 = vrot.lane.b32.xlu0 %v1569, 32
        %v1657 = vpop.permute.xlu0 %1656
        %1658 = vrot.lane.b32.xlu0 %v1570, 32
        %v1659 = vpop.permute.xlu0 %1658
        %1660 = vrot.lane.b32.xlu0 %v1571, 32
        %v1661 = vpop.permute.xlu0 %1660
        %1662 = vrot.lane.b32.xlu0 %v1572, 32
        %v1663 = vpop.permute.xlu0 %1662
        %1664 = vrot.lane.b32.xlu0 %v1573, 32
        %v1665 = vpop.permute.xlu0 %1664
        %1666 = vrot.lane.b32.xlu0 %v1574, 32
        %v1667 = vpop.permute.xlu0 %1666
        %1668 = vrot.lane.b32.xlu0 %v1575, 32
        %v1669 = vpop.permute.xlu0 %1668
        %1670 = vrot.lane.b32.xlu0 %v1576, 32
        %v1671 = vpop.permute.xlu0 %1670
        %1672 = vrot.lane.b32.xlu0 %v1577, 32
        %v1673 = vpop.permute.xlu0 %1672
        %vm1706 = vcmask 392448
        %1707 = vst.msk [vmem:[#allocation4] sm:$0xff] %vm1706, %v1611
        %1708 = vst.msk [vmem:[#allocation4 + $0x10] sm:$0xff] %vm1706, %v1613
        %1709 = vst.msk [vmem:[#allocation4 + $0x20] sm:$0xff] %vm1706, %v1615
        %1710 = vst.msk [vmem:[#allocation4 + $0x30] sm:$0xff] %vm1706, %v1617
        %1711 = vst.msk [vmem:[#allocation4 + $0x40] sm:$0xff] %vm1706, %v1619
        %1712 = vst.msk [vmem:[#allocation4 + $0x50] sm:$0xff] %vm1706, %v1621
        %1713 = vst.msk [vmem:[#allocation4 + $0x60] sm:$0xff] %vm1706, %v1623
        %1714 = vst.msk [vmem:[#allocation4 + $0x70] sm:$0xff] %vm1706, %v1625
        %1715 = vst.msk [vmem:[#allocation4 + $0x80] sm:$0xff] %vm1706, %v1627
        %1716 = vst.msk [vmem:[#allocation4 + $0x90] sm:$0xff] %vm1706, %v1629
        %1717 = vst.msk [vmem:[#allocation4 + $0xa0] sm:$0xff] %vm1706, %v1631
        %1718 = vst.msk [vmem:[#allocation4 + $0xb0] sm:$0xff] %vm1706, %v1633
        %1719 = vst.msk [vmem:[#allocation4 + $0xc0] sm:$0xff] %vm1706, %v1635
        %1720 = vst.msk [vmem:[#allocation4 + $0xd0] sm:$0xff] %vm1706, %v1637
        %1721 = vst.msk [vmem:[#allocation4 + $0xe0] sm:$0xff] %vm1706, %v1639
        %1722 = vst.msk [vmem:[#allocation4 + $0xf0] sm:$0xff] %vm1706, %v1641
        %1723 = vst.msk [vmem:[#allocation4 + $0x100] sm:$0xff] %vm1706, %v1643
        %1724 = vst.msk [vmem:[#allocation4 + $0x110] sm:$0xff] %vm1706, %v1645
        %1725 = vst.msk [vmem:[#allocation4 + $0x120] sm:$0xff] %vm1706, %v1647
        %1726 = vst.msk [vmem:[#allocation4 + $0x130] sm:$0xff] %vm1706, %v1649
        %1727 = vst.msk [vmem:[#allocation4 + $0x140] sm:$0xff] %vm1706, %v1651
        %1728 = vst.msk [vmem:[#allocation4 + $0x150] sm:$0xff] %vm1706, %v1653
        %1729 = vst.msk [vmem:[#allocation4 + $0x160] sm:$0xff] %vm1706, %v1655
        %1730 = vst.msk [vmem:[#allocation4 + $0x170] sm:$0xff] %vm1706, %v1657
        %1731 = vst.msk [vmem:[#allocation4 + $0x180] sm:$0xff] %vm1706, %v1659
        %1732 = vst.msk [vmem:[#allocation4 + $0x190] sm:$0xff] %vm1706, %v1661
        %1733 = vst.msk [vmem:[#allocation4 + $0x1a0] sm:$0xff] %vm1706, %v1663
        %1734 = vst.msk [vmem:[#allocation4 + $0x1b0] sm:$0xff] %vm1706, %v1665
        %1735 = vst.msk [vmem:[#allocation4 + $0x1c0] sm:$0xff] %vm1706, %v1667
        %1736 = vst.msk [vmem:[#allocation4 + $0x1d0] sm:$0xff] %vm1706, %v1669
        %1737 = vst.msk [vmem:[#allocation4 + $0x1e0] sm:$0xff] %vm1706, %v1671
        %1738 = vst.msk [vmem:[#allocation4 + $0x1f0] sm:$0xff] %vm1706, %v1673
        %v1739 = vld [vmem:[%s1256] sm:$0xff]
        %v1740 = vld [vmem:[%s1256 + $0x8] sm:$0xff]
        %v1741 = vld [vmem:[%s1256 + $0x18] sm:$0xff]
        %v1742 = vld [vmem:[%s1256 + $0x20] sm:$0xff]
        %v1743 = vld [vmem:[%s1256 + $0x30] sm:$0xff]
        %v1744 = vld [vmem:[%s1256 + $0x38] sm:$0xff]
        %v1745 = vld [vmem:[%s1256 + $0x48] sm:$0xff]
        %v1746 = vld [vmem:[%s1256 + $0x50] sm:$0xff]
        %v1747 = vld [vmem:[%s1256 + $0x60] sm:$0xff]
        %v1748 = vld [vmem:[%s1256 + $0x68] sm:$0xff]
        %v1749 = vld [vmem:[%s1256 + $0x78] sm:$0xff]
        %v1750 = vld [vmem:[%s1256 + $0x80] sm:$0xff]
        %v1751 = vld [vmem:[%s1256 + $0x90] sm:$0xff]
        %v1752 = vld [vmem:[%s1256 + $0x98] sm:$0xff]
        %v1753 = vld [vmem:[%s1256 + $0xa8] sm:$0xff]
        %v1754 = vld [vmem:[%s1256 + $0xb0] sm:$0xff]
        %v1755 = vld [vmem:[%s1256 + $0xc0] sm:$0xff]
        %v1756 = vld [vmem:[%s1256 + $0xc8] sm:$0xff]
        %v1757 = vld [vmem:[%s1256 + $0xd8] sm:$0xff]
        %v1758 = vld [vmem:[%s1256 + $0xe0] sm:$0xff]
        %v1759 = vld [vmem:[%s1256 + $0xf0] sm:$0xff]
        %v1760 = vld [vmem:[%s1256 + $0xf8] sm:$0xff]
        %v1761 = vld [vmem:[%s1256 + $0x108] sm:$0xff]
        %v1762 = vld [vmem:[%s1256 + $0x110] sm:$0xff]
        %v1763 = vld [vmem:[%s1256 + $0x120] sm:$0xff]
        %v1764 = vld [vmem:[%s1256 + $0x128] sm:$0xff]
        %v1765 = vld [vmem:[%s1256 + $0x138] sm:$0xff]
        %v1766 = vld [vmem:[%s1256 + $0x140] sm:$0xff]
        %v1767 = vld [vmem:[%s1256 + $0x150] sm:$0xff]
        %v1768 = vld [vmem:[%s1256 + $0x158] sm:$0xff]
        %v1769 = vld [vmem:[%s1256 + $0x168] sm:$0xff]
        %v1770 = vld [vmem:[%s1256 + $0x170] sm:$0xff]
        %1803 = vrot.lane.b32.xlu0 %v1739, 48
        %v1804 = vpop.permute.xlu0 %1803
        %1805 = vrot.lane.b32.xlu0 %v1740, 48
        %v1806 = vpop.permute.xlu0 %1805
        %1807 = vrot.lane.b32.xlu0 %v1741, 48
        %v1808 = vpop.permute.xlu0 %1807
        %1809 = vrot.lane.b32.xlu0 %v1742, 48
        %v1810 = vpop.permute.xlu0 %1809
        %1811 = vrot.lane.b32.xlu0 %v1743, 48
        %v1812 = vpop.permute.xlu0 %1811
        %1813 = vrot.lane.b32.xlu0 %v1744, 48
        %v1814 = vpop.permute.xlu0 %1813
        %1815 = vrot.lane.b32.xlu0 %v1745, 48
        %v1816 = vpop.permute.xlu0 %1815
        %1817 = vrot.lane.b32.xlu0 %v1746, 48
        %v1818 = vpop.permute.xlu0 %1817
        %1819 = vrot.lane.b32.xlu0 %v1747, 48
        %v1820 = vpop.permute.xlu0 %1819
        %1821 = vrot.lane.b32.xlu0 %v1748, 48
        %v1822 = vpop.permute.xlu0 %1821
        %1823 = vrot.lane.b32.xlu0 %v1749, 48
        %v1824 = vpop.permute.xlu0 %1823
        %1825 = vrot.lane.b32.xlu0 %v1750, 48
        %v1826 = vpop.permute.xlu0 %1825
        %1827 = vrot.lane.b32.xlu0 %v1751, 48
        %v1828 = vpop.permute.xlu0 %1827
        %1829 = vrot.lane.b32.xlu0 %v1752, 48
        %v1830 = vpop.permute.xlu0 %1829
        %1831 = vrot.lane.b32.xlu0 %v1753, 48
        %v1832 = vpop.permute.xlu0 %1831
        %1833 = vrot.lane.b32.xlu0 %v1754, 48
        %v1834 = vpop.permute.xlu0 %1833
        %1835 = vrot.lane.b32.xlu0 %v1755, 48
        %v1836 = vpop.permute.xlu0 %1835
        %1837 = vrot.lane.b32.xlu0 %v1756, 48
        %v1838 = vpop.permute.xlu0 %1837
        %1839 = vrot.lane.b32.xlu0 %v1757, 48
        %v1840 = vpop.permute.xlu0 %1839
        %1841 = vrot.lane.b32.xlu0 %v1758, 48
        %v1842 = vpop.permute.xlu0 %1841
        %1843 = vrot.lane.b32.xlu0 %v1759, 48
        %v1844 = vpop.permute.xlu0 %1843
        %1845 = vrot.lane.b32.xlu0 %v1760, 48
        %v1846 = vpop.permute.xlu0 %1845
        %1847 = vrot.lane.b32.xlu0 %v1761, 48
        %v1848 = vpop.permute.xlu0 %1847
        %1849 = vrot.lane.b32.xlu0 %v1762, 48
        %v1850 = vpop.permute.xlu0 %1849
        %1851 = vrot.lane.b32.xlu0 %v1763, 48
        %v1852 = vpop.permute.xlu0 %1851
        %1853 = vrot.lane.b32.xlu0 %v1764, 48
        %v1854 = vpop.permute.xlu0 %1853
        %1855 = vrot.lane.b32.xlu0 %v1765, 48
        %v1856 = vpop.permute.xlu0 %1855
        %1857 = vrot.lane.b32.xlu0 %v1766, 48
        %v1858 = vpop.permute.xlu0 %1857
        %1859 = vrot.lane.b32.xlu0 %v1767, 48
        %v1860 = vpop.permute.xlu0 %1859
        %1861 = vrot.lane.b32.xlu0 %v1768, 48
        %v1862 = vpop.permute.xlu0 %1861
        %1863 = vrot.lane.b32.xlu0 %v1769, 48
        %v1864 = vpop.permute.xlu0 %1863
        %1865 = vrot.lane.b32.xlu0 %v1770, 48
        %v1866 = vpop.permute.xlu0 %1865
        %vm1899 = vcmask 523648
        %1900 = vst.msk [vmem:[#allocation4] sm:$0xff] %vm1899, %v1804
        %1901 = vst.msk [vmem:[#allocation4 + $0x10] sm:$0xff] %vm1899, %v1806
        %1902 = vst.msk [vmem:[#allocation4 + $0x20] sm:$0xff] %vm1899, %v1808
        %1903 = vst.msk [vmem:[#allocation4 + $0x30] sm:$0xff] %vm1899, %v1810
        %1904 = vst.msk [vmem:[#allocation4 + $0x40] sm:$0xff] %vm1899, %v1812
        %1905 = vst.msk [vmem:[#allocation4 + $0x50] sm:$0xff] %vm1899, %v1814
        %1906 = vst.msk [vmem:[#allocation4 + $0x60] sm:$0xff] %vm1899, %v1816
        %1907 = vst.msk [vmem:[#allocation4 + $0x70] sm:$0xff] %vm1899, %v1818
        %1908 = vst.msk [vmem:[#allocation4 + $0x80] sm:$0xff] %vm1899, %v1820
        %1909 = vst.msk [vmem:[#allocation4 + $0x90] sm:$0xff] %vm1899, %v1822
        %1910 = vst.msk [vmem:[#allocation4 + $0xa0] sm:$0xff] %vm1899, %v1824
        %1911 = vst.msk [vmem:[#allocation4 + $0xb0] sm:$0xff] %vm1899, %v1826
        %1912 = vst.msk [vmem:[#allocation4 + $0xc0] sm:$0xff] %vm1899, %v1828
        %1913 = vst.msk [vmem:[#allocation4 + $0xd0] sm:$0xff] %vm1899, %v1830
        %1914 = vst.msk [vmem:[#allocation4 + $0xe0] sm:$0xff] %vm1899, %v1832
        %1915 = vst.msk [vmem:[#allocation4 + $0xf0] sm:$0xff] %vm1899, %v1834
        %1916 = vst.msk [vmem:[#allocation4 + $0x100] sm:$0xff] %vm1899, %v1836
        %1917 = vst.msk [vmem:[#allocation4 + $0x110] sm:$0xff] %vm1899, %v1838
        %1918 = vst.msk [vmem:[#allocation4 + $0x120] sm:$0xff] %vm1899, %v1840
        %1919 = vst.msk [vmem:[#allocation4 + $0x130] sm:$0xff] %vm1899, %v1842
        %1920 = vst.msk [vmem:[#allocation4 + $0x140] sm:$0xff] %vm1899, %v1844
        %1921 = vst.msk [vmem:[#allocation4 + $0x150] sm:$0xff] %vm1899, %v1846
        %1922 = vst.msk [vmem:[#allocation4 + $0x160] sm:$0xff] %vm1899, %v1848
        %1923 = vst.msk [vmem:[#allocation4 + $0x170] sm:$0xff] %vm1899, %v1850
        %1924 = vst.msk [vmem:[#allocation4 + $0x180] sm:$0xff] %vm1899, %v1852
        %1925 = vst.msk [vmem:[#allocation4 + $0x190] sm:$0xff] %vm1899, %v1854
        %1926 = vst.msk [vmem:[#allocation4 + $0x1a0] sm:$0xff] %vm1899, %v1856
        %1927 = vst.msk [vmem:[#allocation4 + $0x1b0] sm:$0xff] %vm1899, %v1858
        %1928 = vst.msk [vmem:[#allocation4 + $0x1c0] sm:$0xff] %vm1899, %v1860
        %1929 = vst.msk [vmem:[#allocation4 + $0x1d0] sm:$0xff] %vm1899, %v1862
        %1930 = vst.msk [vmem:[#allocation4 + $0x1e0] sm:$0xff] %vm1899, %v1864
        %1931 = vst.msk [vmem:[#allocation4 + $0x1f0] sm:$0xff] %vm1899, %v1866
        %v1932 = vld [vmem:[%s1256 + $0x1] sm:$0xff]
        %v1933 = vld [vmem:[%s1256 + $0x9] sm:$0xff]
        %v1934 = vld [vmem:[%s1256 + $0x19] sm:$0xff]
        %v1935 = vld [vmem:[%s1256 + $0x21] sm:$0xff]
        %v1936 = vld [vmem:[%s1256 + $0x31] sm:$0xff]
        %v1937 = vld [vmem:[%s1256 + $0x39] sm:$0xff]
        %v1938 = vld [vmem:[%s1256 + $0x49] sm:$0xff]
        %v1939 = vld [vmem:[%s1256 + $0x51] sm:$0xff]
        %v1940 = vld [vmem:[%s1256 + $0x61] sm:$0xff]
        %v1941 = vld [vmem:[%s1256 + $0x69] sm:$0xff]
        %v1942 = vld [vmem:[%s1256 + $0x79] sm:$0xff]
        %v1943 = vld [vmem:[%s1256 + $0x81] sm:$0xff]
        %v1944 = vld [vmem:[%s1256 + $0x91] sm:$0xff]
        %v1945 = vld [vmem:[%s1256 + $0x99] sm:$0xff]
        %v1946 = vld [vmem:[%s1256 + $0xa9] sm:$0xff]
        %v1947 = vld [vmem:[%s1256 + $0xb1] sm:$0xff]
        %v1948 = vld [vmem:[%s1256 + $0xc1] sm:$0xff]
        %v1949 = vld [vmem:[%s1256 + $0xc9] sm:$0xff]
        %v1950 = vld [vmem:[%s1256 + $0xd9] sm:$0xff]
        %v1951 = vld [vmem:[%s1256 + $0xe1] sm:$0xff]
        %v1952 = vld [vmem:[%s1256 + $0xf1] sm:$0xff]
        %v1953 = vld [vmem:[%s1256 + $0xf9] sm:$0xff]
        %v1954 = vld [vmem:[%s1256 + $0x109] sm:$0xff]
        %v1955 = vld [vmem:[%s1256 + $0x111] sm:$0xff]
        %v1956 = vld [vmem:[%s1256 + $0x121] sm:$0xff]
        %v1957 = vld [vmem:[%s1256 + $0x129] sm:$0xff]
        %v1958 = vld [vmem:[%s1256 + $0x139] sm:$0xff]
        %v1959 = vld [vmem:[%s1256 + $0x141] sm:$0xff]
        %v1960 = vld [vmem:[%s1256 + $0x151] sm:$0xff]
        %v1961 = vld [vmem:[%s1256 + $0x159] sm:$0xff]
        %v1962 = vld [vmem:[%s1256 + $0x169] sm:$0xff]
        %v1963 = vld [vmem:[%s1256 + $0x171] sm:$0xff]
        %1996 = vrot.lane.b32.xlu0 %v1932, 64
        %v1997 = vpop.permute.xlu0 %1996
        %1998 = vrot.lane.b32.xlu0 %v1933, 64
        %v1999 = vpop.permute.xlu0 %1998
        %2000 = vrot.lane.b32.xlu0 %v1934, 64
        %v2001 = vpop.permute.xlu0 %2000
        %2002 = vrot.lane.b32.xlu0 %v1935, 64
        %v2003 = vpop.permute.xlu0 %2002
        %2004 = vrot.lane.b32.xlu0 %v1936, 64
        %v2005 = vpop.permute.xlu0 %2004
        %2006 = vrot.lane.b32.xlu0 %v1937, 64
        %v2007 = vpop.permute.xlu0 %2006
        %2008 = vrot.lane.b32.xlu0 %v1938, 64
        %v2009 = vpop.permute.xlu0 %2008
        %2010 = vrot.lane.b32.xlu0 %v1939, 64
        %v2011 = vpop.permute.xlu0 %2010
        %2012 = vrot.lane.b32.xlu0 %v1940, 64
        %v2013 = vpop.permute.xlu0 %2012
        %2014 = vrot.lane.b32.xlu0 %v1941, 64
        %v2015 = vpop.permute.xlu0 %2014
        %2016 = vrot.lane.b32.xlu0 %v1942, 64
        %v2017 = vpop.permute.xlu0 %2016
        %2018 = vrot.lane.b32.xlu0 %v1943, 64
        %v2019 = vpop.permute.xlu0 %2018
        %2020 = vrot.lane.b32.xlu0 %v1944, 64
        %v2021 = vpop.permute.xlu0 %2020
        %2022 = vrot.lane.b32.xlu0 %v1945, 64
        %v2023 = vpop.permute.xlu0 %2022
        %2024 = vrot.lane.b32.xlu0 %v1946, 64
        %v2025 = vpop.permute.xlu0 %2024
        %2026 = vrot.lane.b32.xlu0 %v1947, 64
        %v2027 = vpop.permute.xlu0 %2026
        %2028 = vrot.lane.b32.xlu0 %v1948, 64
        %v2029 = vpop.permute.xlu0 %2028
        %2030 = vrot.lane.b32.xlu0 %v1949, 64
        %v2031 = vpop.permute.xlu0 %2030
        %2032 = vrot.lane.b32.xlu0 %v1950, 64
        %v2033 = vpop.permute.xlu0 %2032
        %2034 = vrot.lane.b32.xlu0 %v1951, 64
        %v2035 = vpop.permute.xlu0 %2034
        %2036 = vrot.lane.b32.xlu0 %v1952, 64
        %v2037 = vpop.permute.xlu0 %2036
        %2038 = vrot.lane.b32.xlu0 %v1953, 64
        %v2039 = vpop.permute.xlu0 %2038
        %2040 = vrot.lane.b32.xlu0 %v1954, 64
        %v2041 = vpop.permute.xlu0 %2040
        %2042 = vrot.lane.b32.xlu0 %v1955, 64
        %v2043 = vpop.permute.xlu0 %2042
        %2044 = vrot.lane.b32.xlu0 %v1956, 64
        %v2045 = vpop.permute.xlu0 %2044
        %2046 = vrot.lane.b32.xlu0 %v1957, 64
        %v2047 = vpop.permute.xlu0 %2046
        %2048 = vrot.lane.b32.xlu0 %v1958, 64
        %v2049 = vpop.permute.xlu0 %2048
        %2050 = vrot.lane.b32.xlu0 %v1959, 64
        %v2051 = vpop.permute.xlu0 %2050
        %2052 = vrot.lane.b32.xlu0 %v1960, 64
        %v2053 = vpop.permute.xlu0 %2052
        %2054 = vrot.lane.b32.xlu0 %v1961, 64
        %v2055 = vpop.permute.xlu0 %2054
        %2056 = vrot.lane.b32.xlu0 %v1962, 64
        %v2057 = vpop.permute.xlu0 %2056
        %2058 = vrot.lane.b32.xlu0 %v1963, 64
        %v2059 = vpop.permute.xlu0 %2058
        %vm2092 = vcmask 654848
        %2093 = vst.msk [vmem:[#allocation4] sm:$0xff] %vm2092, %v1997
        %2094 = vst.msk [vmem:[#allocation4 + $0x10] sm:$0xff] %vm2092, %v1999
        %2095 = vst.msk [vmem:[#allocation4 + $0x20] sm:$0xff] %vm2092, %v2001
        %2096 = vst.msk [vmem:[#allocation4 + $0x30] sm:$0xff] %vm2092, %v2003
        %2097 = vst.msk [vmem:[#allocation4 + $0x40] sm:$0xff] %vm2092, %v2005
        %2098 = vst.msk [vmem:[#allocation4 + $0x50] sm:$0xff] %vm2092, %v2007
        %2099 = vst.msk [vmem:[#allocation4 + $0x60] sm:$0xff] %vm2092, %v2009
        %2100 = vst.msk [vmem:[#allocation4 + $0x70] sm:$0xff] %vm2092, %v2011
        %2101 = vst.msk [vmem:[#allocation4 + $0x80] sm:$0xff] %vm2092, %v2013
        %2102 = vst.msk [vmem:[#allocation4 + $0x90] sm:$0xff] %vm2092, %v2015
        %2103 = vst.msk [vmem:[#allocation4 + $0xa0] sm:$0xff] %vm2092, %v2017
        %2104 = vst.msk [vmem:[#allocation4 + $0xb0] sm:$0xff] %vm2092, %v2019
        %2105 = vst.msk [vmem:[#allocation4 + $0xc0] sm:$0xff] %vm2092, %v2021
        %2106 = vst.msk [vmem:[#allocation4 + $0xd0] sm:$0xff] %vm2092, %v2023
        %2107 = vst.msk [vmem:[#allocation4 + $0xe0] sm:$0xff] %vm2092, %v2025
        %2108 = vst.msk [vmem:[#allocation4 + $0xf0] sm:$0xff] %vm2092, %v2027
        %2109 = vst.msk [vmem:[#allocation4 + $0x100] sm:$0xff] %vm2092, %v2029
        %2110 = vst.msk [vmem:[#allocation4 + $0x110] sm:$0xff] %vm2092, %v2031
        %2111 = vst.msk [vmem:[#allocation4 + $0x120] sm:$0xff] %vm2092, %v2033
        %2112 = vst.msk [vmem:[#allocation4 + $0x130] sm:$0xff] %vm2092, %v2035
        %2113 = vst.msk [vmem:[#allocation4 + $0x140] sm:$0xff] %vm2092, %v2037
        %2114 = vst.msk [vmem:[#allocation4 + $0x150] sm:$0xff] %vm2092, %v2039
        %2115 = vst.msk [vmem:[#allocation4 + $0x160] sm:$0xff] %vm2092, %v2041
        %2116 = vst.msk [vmem:[#allocation4 + $0x170] sm:$0xff] %vm2092, %v2043
        %2117 = vst.msk [vmem:[#allocation4 + $0x180] sm:$0xff] %vm2092, %v2045
        %2118 = vst.msk [vmem:[#allocation4 + $0x190] sm:$0xff] %vm2092, %v2047
        %2119 = vst.msk [vmem:[#allocation4 + $0x1a0] sm:$0xff] %vm2092, %v2049
        %2120 = vst.msk [vmem:[#allocation4 + $0x1b0] sm:$0xff] %vm2092, %v2051
        %2121 = vst.msk [vmem:[#allocation4 + $0x1c0] sm:$0xff] %vm2092, %v2053
        %2122 = vst.msk [vmem:[#allocation4 + $0x1d0] sm:$0xff] %vm2092, %v2055
        %2123 = vst.msk [vmem:[#allocation4 + $0x1e0] sm:$0xff] %vm2092, %v2057
        %2124 = vst.msk [vmem:[#allocation4 + $0x1f0] sm:$0xff] %vm2092, %v2059
        %v2125 = vld [vmem:[%s1256 + $0x2] sm:$0xff]
        %v2126 = vld [vmem:[%s1256 + $0xa] sm:$0xff]
        %v2127 = vld [vmem:[%s1256 + $0x1a] sm:$0xff]
        %v2128 = vld [vmem:[%s1256 + $0x22] sm:$0xff]
        %v2129 = vld [vmem:[%s1256 + $0x32] sm:$0xff]
        %v2130 = vld [vmem:[%s1256 + $0x3a] sm:$0xff]
        %v2131 = vld [vmem:[%s1256 + $0x4a] sm:$0xff]
        %v2132 = vld [vmem:[%s1256 + $0x52] sm:$0xff]
        %v2133 = vld [vmem:[%s1256 + $0x62] sm:$0xff]
        %v2134 = vld [vmem:[%s1256 + $0x6a] sm:$0xff]
        %v2135 = vld [vmem:[%s1256 + $0x7a] sm:$0xff]
        %v2136 = vld [vmem:[%s1256 + $0x82] sm:$0xff]
        %v2137 = vld [vmem:[%s1256 + $0x92] sm:$0xff]
        %v2138 = vld [vmem:[%s1256 + $0x9a] sm:$0xff]
        %v2139 = vld [vmem:[%s1256 + $0xaa] sm:$0xff]
        %v2140 = vld [vmem:[%s1256 + $0xb2] sm:$0xff]
        %v2141 = vld [vmem:[%s1256 + $0xc2] sm:$0xff]
        %v2142 = vld [vmem:[%s1256 + $0xca] sm:$0xff]
        %v2143 = vld [vmem:[%s1256 + $0xda] sm:$0xff]
        %v2144 = vld [vmem:[%s1256 + $0xe2] sm:$0xff]
        %v2145 = vld [vmem:[%s1256 + $0xf2] sm:$0xff]
        %v2146 = vld [vmem:[%s1256 + $0xfa] sm:$0xff]
        %v2147 = vld [vmem:[%s1256 + $0x10a] sm:$0xff]
        %v2148 = vld [vmem:[%s1256 + $0x112] sm:$0xff]
        %v2149 = vld [vmem:[%s1256 + $0x122] sm:$0xff]
        %v2150 = vld [vmem:[%s1256 + $0x12a] sm:$0xff]
        %v2151 = vld [vmem:[%s1256 + $0x13a] sm:$0xff]
        %v2152 = vld [vmem:[%s1256 + $0x142] sm:$0xff]
        %v2153 = vld [vmem:[%s1256 + $0x152] sm:$0xff]
        %v2154 = vld [vmem:[%s1256 + $0x15a] sm:$0xff]
        %v2155 = vld [vmem:[%s1256 + $0x16a] sm:$0xff]
        %v2156 = vld [vmem:[%s1256 + $0x172] sm:$0xff]
        %2189 = vrot.lane.b32.xlu0 %v2125, 80
        %v2190 = vpop.permute.xlu0 %2189
        %2191 = vrot.lane.b32.xlu0 %v2126, 80
        %v2192 = vpop.permute.xlu0 %2191
        %2193 = vrot.lane.b32.xlu0 %v2127, 80
        %v2194 = vpop.permute.xlu0 %2193
        %2195 = vrot.lane.b32.xlu0 %v2128, 80
        %v2196 = vpop.permute.xlu0 %2195
        %2197 = vrot.lane.b32.xlu0 %v2129, 80
        %v2198 = vpop.permute.xlu0 %2197
        %2199 = vrot.lane.b32.xlu0 %v2130, 80
        %v2200 = vpop.permute.xlu0 %2199
        %2201 = vrot.lane.b32.xlu0 %v2131, 80
        %v2202 = vpop.permute.xlu0 %2201
        %2203 = vrot.lane.b32.xlu0 %v2132, 80
        %v2204 = vpop.permute.xlu0 %2203
        %2205 = vrot.lane.b32.xlu0 %v2133, 80
        %v2206 = vpop.permute.xlu0 %2205
        %2207 = vrot.lane.b32.xlu0 %v2134, 80
        %v2208 = vpop.permute.xlu0 %2207
        %2209 = vrot.lane.b32.xlu0 %v2135, 80
        %v2210 = vpop.permute.xlu0 %2209
        %2211 = vrot.lane.b32.xlu0 %v2136, 80
        %v2212 = vpop.permute.xlu0 %2211
        %2213 = vrot.lane.b32.xlu0 %v2137, 80
        %v2214 = vpop.permute.xlu0 %2213
        %2215 = vrot.lane.b32.xlu0 %v2138, 80
        %v2216 = vpop.permute.xlu0 %2215
        %2217 = vrot.lane.b32.xlu0 %v2139, 80
        %v2218 = vpop.permute.xlu0 %2217
        %2219 = vrot.lane.b32.xlu0 %v2140, 80
        %v2220 = vpop.permute.xlu0 %2219
        %2221 = vrot.lane.b32.xlu0 %v2141, 80
        %v2222 = vpop.permute.xlu0 %2221
        %2223 = vrot.lane.b32.xlu0 %v2142, 80
        %v2224 = vpop.permute.xlu0 %2223
        %2225 = vrot.lane.b32.xlu0 %v2143, 80
        %v2226 = vpop.permute.xlu0 %2225
        %2227 = vrot.lane.b32.xlu0 %v2144, 80
        %v2228 = vpop.permute.xlu0 %2227
        %2229 = vrot.lane.b32.xlu0 %v2145, 80
        %v2230 = vpop.permute.xlu0 %2229
        %2231 = vrot.lane.b32.xlu0 %v2146, 80
        %v2232 = vpop.permute.xlu0 %2231
        %2233 = vrot.lane.b32.xlu0 %v2147, 80
        %v2234 = vpop.permute.xlu0 %2233
        %2235 = vrot.lane.b32.xlu0 %v2148, 80
        %v2236 = vpop.permute.xlu0 %2235
        %2237 = vrot.lane.b32.xlu0 %v2149, 80
        %v2238 = vpop.permute.xlu0 %2237
        %2239 = vrot.lane.b32.xlu0 %v2150, 80
        %v2240 = vpop.permute.xlu0 %2239
        %2241 = vrot.lane.b32.xlu0 %v2151, 80
        %v2242 = vpop.permute.xlu0 %2241
        %2243 = vrot.lane.b32.xlu0 %v2152, 80
        %v2244 = vpop.permute.xlu0 %2243
        %2245 = vrot.lane.b32.xlu0 %v2153, 80
        %v2246 = vpop.permute.xlu0 %2245
        %2247 = vrot.lane.b32.xlu0 %v2154, 80
        %v2248 = vpop.permute.xlu0 %2247
        %2249 = vrot.lane.b32.xlu0 %v2155, 80
        %v2250 = vpop.permute.xlu0 %2249
        %2251 = vrot.lane.b32.xlu0 %v2156, 80
        %v2252 = vpop.permute.xlu0 %2251
        %vm2285 = vcmask 786048
        %2286 = vst.msk [vmem:[#allocation4] sm:$0xff] %vm2285, %v2190
        %2287 = vst.msk [vmem:[#allocation4 + $0x10] sm:$0xff] %vm2285, %v2192
        %2288 = vst.msk [vmem:[#allocation4 + $0x20] sm:$0xff] %vm2285, %v2194
        %2289 = vst.msk [vmem:[#allocation4 + $0x30] sm:$0xff] %vm2285, %v2196
        %2290 = vst.msk [vmem:[#allocation4 + $0x40] sm:$0xff] %vm2285, %v2198
        %2291 = vst.msk [vmem:[#allocation4 + $0x50] sm:$0xff] %vm2285, %v2200
        %2292 = vst.msk [vmem:[#allocation4 + $0x60] sm:$0xff] %vm2285, %v2202
        %2293 = vst.msk [vmem:[#allocation4 + $0x70] sm:$0xff] %vm2285, %v2204
        %2294 = vst.msk [vmem:[#allocation4 + $0x80] sm:$0xff] %vm2285, %v2206
        %2295 = vst.msk [vmem:[#allocation4 + $0x90] sm:$0xff] %vm2285, %v2208
        %2296 = vst.msk [vmem:[#allocation4 + $0xa0] sm:$0xff] %vm2285, %v2210
        %2297 = vst.msk [vmem:[#allocation4 + $0xb0] sm:$0xff] %vm2285, %v2212
        %2298 = vst.msk [vmem:[#allocation4 + $0xc0] sm:$0xff] %vm2285, %v2214
        %2299 = vst.msk [vmem:[#allocation4 + $0xd0] sm:$0xff] %vm2285, %v2216
        %2300 = vst.msk [vmem:[#allocation4 + $0xe0] sm:$0xff] %vm2285, %v2218
        %2301 = vst.msk [vmem:[#allocation4 + $0xf0] sm:$0xff] %vm2285, %v2220
        %2302 = vst.msk [vmem:[#allocation4 + $0x100] sm:$0xff] %vm2285, %v2222
        %2303 = vst.msk [vmem:[#allocation4 + $0x110] sm:$0xff] %vm2285, %v2224
        %2304 = vst.msk [vmem:[#allocation4 + $0x120] sm:$0xff] %vm2285, %v2226
        %2305 = vst.msk [vmem:[#allocation4 + $0x130] sm:$0xff] %vm2285, %v2228
        %2306 = vst.msk [vmem:[#allocation4 + $0x140] sm:$0xff] %vm2285, %v2230
        %2307 = vst.msk [vmem:[#allocation4 + $0x150] sm:$0xff] %vm2285, %v2232
        %2308 = vst.msk [vmem:[#allocation4 + $0x160] sm:$0xff] %vm2285, %v2234
        %2309 = vst.msk [vmem:[#allocation4 + $0x170] sm:$0xff] %vm2285, %v2236
        %2310 = vst.msk [vmem:[#allocation4 + $0x180] sm:$0xff] %vm2285, %v2238
        %2311 = vst.msk [vmem:[#allocation4 + $0x190] sm:$0xff] %vm2285, %v2240
        %2312 = vst.msk [vmem:[#allocation4 + $0x1a0] sm:$0xff] %vm2285, %v2242
        %2313 = vst.msk [vmem:[#allocation4 + $0x1b0] sm:$0xff] %vm2285, %v2244
        %2314 = vst.msk [vmem:[#allocation4 + $0x1c0] sm:$0xff] %vm2285, %v2246
        %2315 = vst.msk [vmem:[#allocation4 + $0x1d0] sm:$0xff] %vm2285, %v2248
        %2316 = vst.msk [vmem:[#allocation4 + $0x1e0] sm:$0xff] %vm2285, %v2250
        %2317 = vst.msk [vmem:[#allocation4 + $0x1f0] sm:$0xff] %vm2285, %v2252
        %s2318 = scalar_lea.vmem [#allocation2], 48
        %v2319 = vld [vmem:[%s2318] sm:$0xff]
        %v2320 = vld [vmem:[%s2318 + $0x8] sm:$0xff]
        %v2321 = vld [vmem:[%s2318 + $0x18] sm:$0xff]
        %v2322 = vld [vmem:[%s2318 + $0x20] sm:$0xff]
        %v2323 = vld [vmem:[%s2318 + $0x30] sm:$0xff]
        %v2324 = vld [vmem:[%s2318 + $0x38] sm:$0xff]
        %v2325 = vld [vmem:[%s2318 + $0x48] sm:$0xff]
        %v2326 = vld [vmem:[%s2318 + $0x50] sm:$0xff]
        %v2327 = vld [vmem:[%s2318 + $0x60] sm:$0xff]
        %v2328 = vld [vmem:[%s2318 + $0x68] sm:$0xff]
        %v2329 = vld [vmem:[%s2318 + $0x78] sm:$0xff]
        %v2330 = vld [vmem:[%s2318 + $0x80] sm:$0xff]
        %v2331 = vld [vmem:[%s2318 + $0x90] sm:$0xff]
        %v2332 = vld [vmem:[%s2318 + $0x98] sm:$0xff]
        %v2333 = vld [vmem:[%s2318 + $0xa8] sm:$0xff]
        %v2334 = vld [vmem:[%s2318 + $0xb0] sm:$0xff]
        %v2335 = vld [vmem:[%s2318 + $0xc0] sm:$0xff]
        %v2336 = vld [vmem:[%s2318 + $0xc8] sm:$0xff]
        %v2337 = vld [vmem:[%s2318 + $0xd8] sm:$0xff]
        %v2338 = vld [vmem:[%s2318 + $0xe0] sm:$0xff]
        %v2339 = vld [vmem:[%s2318 + $0xf0] sm:$0xff]
        %v2340 = vld [vmem:[%s2318 + $0xf8] sm:$0xff]
        %v2341 = vld [vmem:[%s2318 + $0x108] sm:$0xff]
        %v2342 = vld [vmem:[%s2318 + $0x110] sm:$0xff]
        %v2343 = vld [vmem:[%s2318 + $0x120] sm:$0xff]
        %v2344 = vld [vmem:[%s2318 + $0x128] sm:$0xff]
        %v2345 = vld [vmem:[%s2318 + $0x138] sm:$0xff]
        %v2346 = vld [vmem:[%s2318 + $0x140] sm:$0xff]
        %v2347 = vld [vmem:[%s2318 + $0x150] sm:$0xff]
        %v2348 = vld [vmem:[%s2318 + $0x158] sm:$0xff]
        %v2349 = vld [vmem:[%s2318 + $0x168] sm:$0xff]
        %v2350 = vld [vmem:[%s2318 + $0x170] sm:$0xff]
        %2383 = vrot.lane.b32.xlu0 %v2319, 96
        %v2384 = vpop.permute.xlu0 %2383
        %2385 = vrot.lane.b32.xlu0 %v2320, 96
        %v2386 = vpop.permute.xlu0 %2385
        %2387 = vrot.lane.b32.xlu0 %v2321, 96
        %v2388 = vpop.permute.xlu0 %2387
        %2389 = vrot.lane.b32.xlu0 %v2322, 96
        %v2390 = vpop.permute.xlu0 %2389
        %2391 = vrot.lane.b32.xlu0 %v2323, 96
        %v2392 = vpop.permute.xlu0 %2391
        %2393 = vrot.lane.b32.xlu0 %v2324, 96
        %v2394 = vpop.permute.xlu0 %2393
        %2395 = vrot.lane.b32.xlu0 %v2325, 96
        %v2396 = vpop.permute.xlu0 %2395
        %2397 = vrot.lane.b32.xlu0 %v2326, 96
        %v2398 = vpop.permute.xlu0 %2397
        %2399 = vrot.lane.b32.xlu0 %v2327, 96
        %v2400 = vpop.permute.xlu0 %2399
        %2401 = vrot.lane.b32.xlu0 %v2328, 96
        %v2402 = vpop.permute.xlu0 %2401
        %2403 = vrot.lane.b32.xlu0 %v2329, 96
        %v2404 = vpop.permute.xlu0 %2403
        %2405 = vrot.lane.b32.xlu0 %v2330, 96
        %v2406 = vpop.permute.xlu0 %2405
        %2407 = vrot.lane.b32.xlu0 %v2331, 96
        %v2408 = vpop.permute.xlu0 %2407
        %2409 = vrot.lane.b32.xlu0 %v2332, 96
        %v2410 = vpop.permute.xlu0 %2409
        %2411 = vrot.lane.b32.xlu0 %v2333, 96
        %v2412 = vpop.permute.xlu0 %2411
        %2413 = vrot.lane.b32.xlu0 %v2334, 96
        %v2414 = vpop.permute.xlu0 %2413
        %2415 = vrot.lane.b32.xlu0 %v2335, 96
        %v2416 = vpop.permute.xlu0 %2415
        %2417 = vrot.lane.b32.xlu0 %v2336, 96
        %v2418 = vpop.permute.xlu0 %2417
        %2419 = vrot.lane.b32.xlu0 %v2337, 96
        %v2420 = vpop.permute.xlu0 %2419
        %2421 = vrot.lane.b32.xlu0 %v2338, 96
        %v2422 = vpop.permute.xlu0 %2421
        %2423 = vrot.lane.b32.xlu0 %v2339, 96
        %v2424 = vpop.permute.xlu0 %2423
        %2425 = vrot.lane.b32.xlu0 %v2340, 96
        %v2426 = vpop.permute.xlu0 %2425
        %2427 = vrot.lane.b32.xlu0 %v2341, 96
        %v2428 = vpop.permute.xlu0 %2427
        %2429 = vrot.lane.b32.xlu0 %v2342, 96
        %v2430 = vpop.permute.xlu0 %2429
        %2431 = vrot.lane.b32.xlu0 %v2343, 96
        %v2432 = vpop.permute.xlu0 %2431
        %2433 = vrot.lane.b32.xlu0 %v2344, 96
        %v2434 = vpop.permute.xlu0 %2433
        %2435 = vrot.lane.b32.xlu0 %v2345, 96
        %v2436 = vpop.permute.xlu0 %2435
        %2437 = vrot.lane.b32.xlu0 %v2346, 96
        %v2438 = vpop.permute.xlu0 %2437
        %2439 = vrot.lane.b32.xlu0 %v2347, 96
        %v2440 = vpop.permute.xlu0 %2439
        %2441 = vrot.lane.b32.xlu0 %v2348, 96
        %v2442 = vpop.permute.xlu0 %2441
        %2443 = vrot.lane.b32.xlu0 %v2349, 96
        %v2444 = vpop.permute.xlu0 %2443
        %2445 = vrot.lane.b32.xlu0 %v2350, 96
        %v2446 = vpop.permute.xlu0 %2445
        %vm2479 = vcmask 917248
        %2480 = vst.msk [vmem:[#allocation4] sm:$0xff] %vm2479, %v2384
        %2481 = vst.msk [vmem:[#allocation4 + $0x10] sm:$0xff] %vm2479, %v2386
        %2482 = vst.msk [vmem:[#allocation4 + $0x20] sm:$0xff] %vm2479, %v2388
        %2483 = vst.msk [vmem:[#allocation4 + $0x30] sm:$0xff] %vm2479, %v2390
        %2484 = vst.msk [vmem:[#allocation4 + $0x40] sm:$0xff] %vm2479, %v2392
        %2485 = vst.msk [vmem:[#allocation4 + $0x50] sm:$0xff] %vm2479, %v2394
        %2486 = vst.msk [vmem:[#allocation4 + $0x60] sm:$0xff] %vm2479, %v2396
        %2487 = vst.msk [vmem:[#allocation4 + $0x70] sm:$0xff] %vm2479, %v2398
        %2488 = vst.msk [vmem:[#allocation4 + $0x80] sm:$0xff] %vm2479, %v2400
        %2489 = vst.msk [vmem:[#allocation4 + $0x90] sm:$0xff] %vm2479, %v2402
        %2490 = vst.msk [vmem:[#allocation4 + $0xa0] sm:$0xff] %vm2479, %v2404
        %2491 = vst.msk [vmem:[#allocation4 + $0xb0] sm:$0xff] %vm2479, %v2406
        %2492 = vst.msk [vmem:[#allocation4 + $0xc0] sm:$0xff] %vm2479, %v2408
        %2493 = vst.msk [vmem:[#allocation4 + $0xd0] sm:$0xff] %vm2479, %v2410
        %2494 = vst.msk [vmem:[#allocation4 + $0xe0] sm:$0xff] %vm2479, %v2412
        %2495 = vst.msk [vmem:[#allocation4 + $0xf0] sm:$0xff] %vm2479, %v2414
        %2496 = vst.msk [vmem:[#allocation4 + $0x100] sm:$0xff] %vm2479, %v2416
        %2497 = vst.msk [vmem:[#allocation4 + $0x110] sm:$0xff] %vm2479, %v2418
        %2498 = vst.msk [vmem:[#allocation4 + $0x120] sm:$0xff] %vm2479, %v2420
        %2499 = vst.msk [vmem:[#allocation4 + $0x130] sm:$0xff] %vm2479, %v2422
        %2500 = vst.msk [vmem:[#allocation4 + $0x140] sm:$0xff] %vm2479, %v2424
        %2501 = vst.msk [vmem:[#allocation4 + $0x150] sm:$0xff] %vm2479, %v2426
        %2502 = vst.msk [vmem:[#allocation4 + $0x160] sm:$0xff] %vm2479, %v2428
        %2503 = vst.msk [vmem:[#allocation4 + $0x170] sm:$0xff] %vm2479, %v2430
        %2504 = vst.msk [vmem:[#allocation4 + $0x180] sm:$0xff] %vm2479, %v2432
        %2505 = vst.msk [vmem:[#allocation4 + $0x190] sm:$0xff] %vm2479, %v2434
        %2506 = vst.msk [vmem:[#allocation4 + $0x1a0] sm:$0xff] %vm2479, %v2436
        %2507 = vst.msk [vmem:[#allocation4 + $0x1b0] sm:$0xff] %vm2479, %v2438
        %2508 = vst.msk [vmem:[#allocation4 + $0x1c0] sm:$0xff] %vm2479, %v2440
        %2509 = vst.msk [vmem:[#allocation4 + $0x1d0] sm:$0xff] %vm2479, %v2442
        %2510 = vst.msk [vmem:[#allocation4 + $0x1e0] sm:$0xff] %vm2479, %v2444
        %2511 = vst.msk [vmem:[#allocation4 + $0x1f0] sm:$0xff] %vm2479, %v2446
        %v2512 = vld [vmem:[%s2318 + $0x1] sm:$0xff]
        %v2513 = vld [vmem:[%s2318 + $0x9] sm:$0xff]
        %v2514 = vld [vmem:[%s2318 + $0x19] sm:$0xff]
        %v2515 = vld [vmem:[%s2318 + $0x21] sm:$0xff]
        %v2516 = vld [vmem:[%s2318 + $0x31] sm:$0xff]
        %v2517 = vld [vmem:[%s2318 + $0x39] sm:$0xff]
        %v2518 = vld [vmem:[%s2318 + $0x49] sm:$0xff]
        %v2519 = vld [vmem:[%s2318 + $0x51] sm:$0xff]
        %v2520 = vld [vmem:[%s2318 + $0x61] sm:$0xff]
        %v2521 = vld [vmem:[%s2318 + $0x69] sm:$0xff]
        %v2522 = vld [vmem:[%s2318 + $0x79] sm:$0xff]
        %v2523 = vld [vmem:[%s2318 + $0x81] sm:$0xff]
        %v2524 = vld [vmem:[%s2318 + $0x91] sm:$0xff]
        %v2525 = vld [vmem:[%s2318 + $0x99] sm:$0xff]
        %v2526 = vld [vmem:[%s2318 + $0xa9] sm:$0xff]
        %v2527 = vld [vmem:[%s2318 + $0xb1] sm:$0xff]
        %v2528 = vld [vmem:[%s2318 + $0xc1] sm:$0xff]
        %v2529 = vld [vmem:[%s2318 + $0xc9] sm:$0xff]
        %v2530 = vld [vmem:[%s2318 + $0xd9] sm:$0xff]
        %v2531 = vld [vmem:[%s2318 + $0xe1] sm:$0xff]
        %v2532 = vld [vmem:[%s2318 + $0xf1] sm:$0xff]
        %v2533 = vld [vmem:[%s2318 + $0xf9] sm:$0xff]
        %v2534 = vld [vmem:[%s2318 + $0x109] sm:$0xff]
        %v2535 = vld [vmem:[%s2318 + $0x111] sm:$0xff]
        %v2536 = vld [vmem:[%s2318 + $0x121] sm:$0xff]
        %v2537 = vld [vmem:[%s2318 + $0x129] sm:$0xff]
        %v2538 = vld [vmem:[%s2318 + $0x139] sm:$0xff]
        %v2539 = vld [vmem:[%s2318 + $0x141] sm:$0xff]
        %v2540 = vld [vmem:[%s2318 + $0x151] sm:$0xff]
        %v2541 = vld [vmem:[%s2318 + $0x159] sm:$0xff]
        %v2542 = vld [vmem:[%s2318 + $0x169] sm:$0xff]
        %v2543 = vld [vmem:[%s2318 + $0x171] sm:$0xff]
        %2576 = vrot.lane.b32.xlu0 %v2512, 112
        %v2577 = vpop.permute.xlu0 %2576
        %2578 = vrot.lane.b32.xlu0 %v2513, 112
        %v2579 = vpop.permute.xlu0 %2578
        %2580 = vrot.lane.b32.xlu0 %v2514, 112
        %v2581 = vpop.permute.xlu0 %2580
        %2582 = vrot.lane.b32.xlu0 %v2515, 112
        %v2583 = vpop.permute.xlu0 %2582
        %2584 = vrot.lane.b32.xlu0 %v2516, 112
        %v2585 = vpop.permute.xlu0 %2584
        %2586 = vrot.lane.b32.xlu0 %v2517, 112
        %v2587 = vpop.permute.xlu0 %2586
        %2588 = vrot.lane.b32.xlu0 %v2518, 112
        %v2589 = vpop.permute.xlu0 %2588
        %2590 = vrot.lane.b32.xlu0 %v2519, 112
        %v2591 = vpop.permute.xlu0 %2590
        %2592 = vrot.lane.b32.xlu0 %v2520, 112
        %v2593 = vpop.permute.xlu0 %2592
        %2594 = vrot.lane.b32.xlu0 %v2521, 112
        %v2595 = vpop.permute.xlu0 %2594
        %2596 = vrot.lane.b32.xlu0 %v2522, 112
        %v2597 = vpop.permute.xlu0 %2596
        %2598 = vrot.lane.b32.xlu0 %v2523, 112
        %v2599 = vpop.permute.xlu0 %2598
        %2600 = vrot.lane.b32.xlu0 %v2524, 112
        %v2601 = vpop.permute.xlu0 %2600
        %2602 = vrot.lane.b32.xlu0 %v2525, 112
        %v2603 = vpop.permute.xlu0 %2602
        %2604 = vrot.lane.b32.xlu0 %v2526, 112
        %v2605 = vpop.permute.xlu0 %2604
        %2606 = vrot.lane.b32.xlu0 %v2527, 112
        %v2607 = vpop.permute.xlu0 %2606
        %2608 = vrot.lane.b32.xlu0 %v2528, 112
        %v2609 = vpop.permute.xlu0 %2608
        %2610 = vrot.lane.b32.xlu0 %v2529, 112
        %v2611 = vpop.permute.xlu0 %2610
        %2612 = vrot.lane.b32.xlu0 %v2530, 112
        %v2613 = vpop.permute.xlu0 %2612
        %2614 = vrot.lane.b32.xlu0 %v2531, 112
        %v2615 = vpop.permute.xlu0 %2614
        %2616 = vrot.lane.b32.xlu0 %v2532, 112
        %v2617 = vpop.permute.xlu0 %2616
        %2618 = vrot.lane.b32.xlu0 %v2533, 112
        %v2619 = vpop.permute.xlu0 %2618
        %2620 = vrot.lane.b32.xlu0 %v2534, 112
        %v2621 = vpop.permute.xlu0 %2620
        %2622 = vrot.lane.b32.xlu0 %v2535, 112
        %v2623 = vpop.permute.xlu0 %2622
        %2624 = vrot.lane.b32.xlu0 %v2536, 112
        %v2625 = vpop.permute.xlu0 %2624
        %2626 = vrot.lane.b32.xlu0 %v2537, 112
        %v2627 = vpop.permute.xlu0 %2626
        %2628 = vrot.lane.b32.xlu0 %v2538, 112
        %v2629 = vpop.permute.xlu0 %2628
        %2630 = vrot.lane.b32.xlu0 %v2539, 112
        %v2631 = vpop.permute.xlu0 %2630
        %2632 = vrot.lane.b32.xlu0 %v2540, 112
        %v2633 = vpop.permute.xlu0 %2632
        %2634 = vrot.lane.b32.xlu0 %v2541, 112
        %v2635 = vpop.permute.xlu0 %2634
        %2636 = vrot.lane.b32.xlu0 %v2542, 112
        %v2637 = vpop.permute.xlu0 %2636
        %2638 = vrot.lane.b32.xlu0 %v2543, 112
        %v2639 = vpop.permute.xlu0 %2638
        %vm2672 = vcmask 1048448
        %2673 = vst.msk [vmem:[#allocation4] sm:$0xff] %vm2672, %v2577
        %2674 = vst.msk [vmem:[#allocation4 + $0x10] sm:$0xff] %vm2672, %v2579
        %2675 = vst.msk [vmem:[#allocation4 + $0x20] sm:$0xff] %vm2672, %v2581
        %2676 = vst.msk [vmem:[#allocation4 + $0x30] sm:$0xff] %vm2672, %v2583
        %2677 = vst.msk [vmem:[#allocation4 + $0x40] sm:$0xff] %vm2672, %v2585
        %2678 = vst.msk [vmem:[#allocation4 + $0x50] sm:$0xff] %vm2672, %v2587
        %2679 = vst.msk [vmem:[#allocation4 + $0x60] sm:$0xff] %vm2672, %v2589
        %2680 = vst.msk [vmem:[#allocation4 + $0x70] sm:$0xff] %vm2672, %v2591
        %2681 = vst.msk [vmem:[#allocation4 + $0x80] sm:$0xff] %vm2672, %v2593
        %2682 = vst.msk [vmem:[#allocation4 + $0x90] sm:$0xff] %vm2672, %v2595
        %2683 = vst.msk [vmem:[#allocation4 + $0xa0] sm:$0xff] %vm2672, %v2597
        %2684 = vst.msk [vmem:[#allocation4 + $0xb0] sm:$0xff] %vm2672, %v2599
        %2685 = vst.msk [vmem:[#allocation4 + $0xc0] sm:$0xff] %vm2672, %v2601
        %2686 = vst.msk [vmem:[#allocation4 + $0xd0] sm:$0xff] %vm2672, %v2603
        %2687 = vst.msk [vmem:[#allocation4 + $0xe0] sm:$0xff] %vm2672, %v2605
        %2688 = vst.msk [vmem:[#allocation4 + $0xf0] sm:$0xff] %vm2672, %v2607
        %2689 = vst.msk [vmem:[#allocation4 + $0x100] sm:$0xff] %vm2672, %v2609
        %2690 = vst.msk [vmem:[#allocation4 + $0x110] sm:$0xff] %vm2672, %v2611
        %2691 = vst.msk [vmem:[#allocation4 + $0x120] sm:$0xff] %vm2672, %v2613
        %2692 = vst.msk [vmem:[#allocation4 + $0x130] sm:$0xff] %vm2672, %v2615
        %2693 = vst.msk [vmem:[#allocation4 + $0x140] sm:$0xff] %vm2672, %v2617
        %2694 = vst.msk [vmem:[#allocation4 + $0x150] sm:$0xff] %vm2672, %v2619
        %2695 = vst.msk [vmem:[#allocation4 + $0x160] sm:$0xff] %vm2672, %v2621
        %2696 = vst.msk [vmem:[#allocation4 + $0x170] sm:$0xff] %vm2672, %v2623
        %2697 = vst.msk [vmem:[#allocation4 + $0x180] sm:$0xff] %vm2672, %v2625
        %2698 = vst.msk [vmem:[#allocation4 + $0x190] sm:$0xff] %vm2672, %v2627
        %2699 = vst.msk [vmem:[#allocation4 + $0x1a0] sm:$0xff] %vm2672, %v2629
        %2700 = vst.msk [vmem:[#allocation4 + $0x1b0] sm:$0xff] %vm2672, %v2631
        %2701 = vst.msk [vmem:[#allocation4 + $0x1c0] sm:$0xff] %vm2672, %v2633
        %2702 = vst.msk [vmem:[#allocation4 + $0x1d0] sm:$0xff] %vm2672, %v2635
        %2703 = vst.msk [vmem:[#allocation4 + $0x1e0] sm:$0xff] %vm2672, %v2637
        %2704 = vst.msk [vmem:[#allocation4 + $0x1f0] sm:$0xff] %vm2672, %v2639
        %v2705 = vld [vmem:[%s2318 + $0x2] sm:$0xff]
        %v2706 = vld [vmem:[%s2318 + $0xa] sm:$0xff]
        %v2707 = vld [vmem:[%s2318 + $0x1a] sm:$0xff]
        %v2708 = vld [vmem:[%s2318 + $0x22] sm:$0xff]
        %v2709 = vld [vmem:[%s2318 + $0x32] sm:$0xff]
        %v2710 = vld [vmem:[%s2318 + $0x3a] sm:$0xff]
        %v2711 = vld [vmem:[%s2318 + $0x4a] sm:$0xff]
        %v2712 = vld [vmem:[%s2318 + $0x52] sm:$0xff]
        %v2713 = vld [vmem:[%s2318 + $0x62] sm:$0xff]
        %v2714 = vld [vmem:[%s2318 + $0x6a] sm:$0xff]
        %v2715 = vld [vmem:[%s2318 + $0x7a] sm:$0xff]
        %v2716 = vld [vmem:[%s2318 + $0x82] sm:$0xff]
        %v2717 = vld [vmem:[%s2318 + $0x92] sm:$0xff]
        %v2718 = vld [vmem:[%s2318 + $0x9a] sm:$0xff]
        %v2719 = vld [vmem:[%s2318 + $0xaa] sm:$0xff]
        %v2720 = vld [vmem:[%s2318 + $0xb2] sm:$0xff]
        %v2721 = vld [vmem:[%s2318 + $0xc2] sm:$0xff]
        %v2722 = vld [vmem:[%s2318 + $0xca] sm:$0xff]
        %v2723 = vld [vmem:[%s2318 + $0xda] sm:$0xff]
        %v2724 = vld [vmem:[%s2318 + $0xe2] sm:$0xff]
        %v2725 = vld [vmem:[%s2318 + $0xf2] sm:$0xff]
        %v2726 = vld [vmem:[%s2318 + $0xfa] sm:$0xff]
        %v2727 = vld [vmem:[%s2318 + $0x10a] sm:$0xff]
        %v2728 = vld [vmem:[%s2318 + $0x112] sm:$0xff]
        %v2729 = vld [vmem:[%s2318 + $0x122] sm:$0xff]
        %v2730 = vld [vmem:[%s2318 + $0x12a] sm:$0xff]
        %v2731 = vld [vmem:[%s2318 + $0x13a] sm:$0xff]
        %v2732 = vld [vmem:[%s2318 + $0x142] sm:$0xff]
        %v2733 = vld [vmem:[%s2318 + $0x152] sm:$0xff]
        %v2734 = vld [vmem:[%s2318 + $0x15a] sm:$0xff]
        %v2735 = vld [vmem:[%s2318 + $0x16a] sm:$0xff]
        %v2736 = vld [vmem:[%s2318 + $0x172] sm:$0xff]
        %2737 = vst.msk [vmem:[#allocation4 + $0x8] sm:$0xff] %vm358, %v2705
        %2738 = vst.msk [vmem:[#allocation4 + $0x18] sm:$0xff] %vm358, %v2706
        %2739 = vst.msk [vmem:[#allocation4 + $0x28] sm:$0xff] %vm358, %v2707
        %2740 = vst.msk [vmem:[#allocation4 + $0x38] sm:$0xff] %vm358, %v2708
        %2741 = vst.msk [vmem:[#allocation4 + $0x48] sm:$0xff] %vm358, %v2709
        %2742 = vst.msk [vmem:[#allocation4 + $0x58] sm:$0xff] %vm358, %v2710
        %2743 = vst.msk [vmem:[#allocation4 + $0x68] sm:$0xff] %vm358, %v2711
        %2744 = vst.msk [vmem:[#allocation4 + $0x78] sm:$0xff] %vm358, %v2712
        %2745 = vst.msk [vmem:[#allocation4 + $0x88] sm:$0xff] %vm358, %v2713
        %2746 = vst.msk [vmem:[#allocation4 + $0x98] sm:$0xff] %vm358, %v2714
        %2747 = vst.msk [vmem:[#allocation4 + $0xa8] sm:$0xff] %vm358, %v2715
        %2748 = vst.msk [vmem:[#allocation4 + $0xb8] sm:$0xff] %vm358, %v2716
        %2749 = vst.msk [vmem:[#allocation4 + $0xc8] sm:$0xff] %vm358, %v2717
        %2750 = vst.msk [vmem:[#allocation4 + $0xd8] sm:$0xff] %vm358, %v2718
        %2751 = vst.msk [vmem:[#allocation4 + $0xe8] sm:$0xff] %vm358, %v2719
        %2752 = vst.msk [vmem:[#allocation4 + $0xf8] sm:$0xff] %vm358, %v2720
        %2753 = vst.msk [vmem:[#allocation4 + $0x108] sm:$0xff] %vm358, %v2721
        %2754 = vst.msk [vmem:[#allocation4 + $0x118] sm:$0xff] %vm358, %v2722
        %2755 = vst.msk [vmem:[#allocation4 + $0x128] sm:$0xff] %vm358, %v2723
        %2756 = vst.msk [vmem:[#allocation4 + $0x138] sm:$0xff] %vm358, %v2724
        %2757 = vst.msk [vmem:[#allocation4 + $0x148] sm:$0xff] %vm358, %v2725
        %2758 = vst.msk [vmem:[#allocation4 + $0x158] sm:$0xff] %vm358, %v2726
        %2759 = vst.msk [vmem:[#allocation4 + $0x168] sm:$0xff] %vm358, %v2727
        %2760 = vst.msk [vmem:[#allocation4 + $0x178] sm:$0xff] %vm358, %v2728
        %2761 = vst.msk [vmem:[#allocation4 + $0x188] sm:$0xff] %vm358, %v2729
        %2762 = vst.msk [vmem:[#allocation4 + $0x198] sm:$0xff] %vm358, %v2730
        %2763 = vst.msk [vmem:[#allocation4 + $0x1a8] sm:$0xff] %vm358, %v2731
        %2764 = vst.msk [vmem:[#allocation4 + $0x1b8] sm:$0xff] %vm358, %v2732
        %2765 = vst.msk [vmem:[#allocation4 + $0x1c8] sm:$0xff] %vm358, %v2733
        %2766 = vst.msk [vmem:[#allocation4 + $0x1d8] sm:$0xff] %vm358, %v2734
        %2767 = vst.msk [vmem:[#allocation4 + $0x1e8] sm:$0xff] %vm358, %v2735
        %2768 = vst.msk [vmem:[#allocation4 + $0x1f8] sm:$0xff] %vm358, %v2736
        %v2769 = vld [vmem:[#allocation4] sm:$0xff]
        %v2770 = vld [vmem:[#allocation4 + $0x8] sm:$0xff]
        %v2771 = vld [vmem:[#allocation4 + $0x10] sm:$0xff]
        %v2772 = vld [vmem:[#allocation4 + $0x18] sm:$0xff]
        %v2773 = vld [vmem:[#allocation4 + $0x20] sm:$0xff]
        %v2774 = vld [vmem:[#allocation4 + $0x28] sm:$0xff]
        %v2775 = vld [vmem:[#allocation4 + $0x30] sm:$0xff]
        %v2776 = vld [vmem:[#allocation4 + $0x38] sm:$0xff]
        %v2777 = vld [vmem:[#allocation4 + $0x40] sm:$0xff]
        %v2778 = vld [vmem:[#allocation4 + $0x48] sm:$0xff]
        %v2779 = vld [vmem:[#allocation4 + $0x50] sm:$0xff]
        %v2780 = vld [vmem:[#allocation4 + $0x58] sm:$0xff]
        %v2781 = vld [vmem:[#allocation4 + $0x60] sm:$0xff]
        %v2782 = vld [vmem:[#allocation4 + $0x68] sm:$0xff]
        %v2783 = vld [vmem:[#allocation4 + $0x70] sm:$0xff]
        %v2784 = vld [vmem:[#allocation4 + $0x78] sm:$0xff]
        %v2785 = vld [vmem:[#allocation4 + $0x80] sm:$0xff]
        %v2786 = vld [vmem:[#allocation4 + $0x88] sm:$0xff]
        %v2787 = vld [vmem:[#allocation4 + $0x90] sm:$0xff]
        %v2788 = vld [vmem:[#allocation4 + $0x98] sm:$0xff]
        %v2789 = vld [vmem:[#allocation4 + $0xa0] sm:$0xff]
        %v2790 = vld [vmem:[#allocation4 + $0xa8] sm:$0xff]
        %v2791 = vld [vmem:[#allocation4 + $0xb0] sm:$0xff]
        %v2792 = vld [vmem:[#allocation4 + $0xb8] sm:$0xff]
        %v2793 = vld [vmem:[#allocation4 + $0xc0] sm:$0xff]
        %v2794 = vld [vmem:[#allocation4 + $0xc8] sm:$0xff]
        %v2795 = vld [vmem:[#allocation4 + $0xd0] sm:$0xff]
        %v2796 = vld [vmem:[#allocation4 + $0xd8] sm:$0xff]
        %v2797 = vld [vmem:[#allocation4 + $0xe0] sm:$0xff]
        %v2798 = vld [vmem:[#allocation4 + $0xe8] sm:$0xff]
        %v2799 = vld [vmem:[#allocation4 + $0xf0] sm:$0xff]
        %v2800 = vld [vmem:[#allocation4 + $0xf8] sm:$0xff]
        %v2801 = vld [vmem:[#allocation4 + $0x100] sm:$0xff]
        %v2802 = vld [vmem:[#allocation4 + $0x108] sm:$0xff]
        %v2803 = vld [vmem:[#allocation4 + $0x110] sm:$0xff]
        %v2804 = vld [vmem:[#allocation4 + $0x118] sm:$0xff]
        %v2805 = vld [vmem:[#allocation4 + $0x120] sm:$0xff]
        %v2806 = vld [vmem:[#allocation4 + $0x128] sm:$0xff]
        %v2807 = vld [vmem:[#allocation4 + $0x130] sm:$0xff]
        %v2808 = vld [vmem:[#allocation4 + $0x138] sm:$0xff]
        %v2809 = vld [vmem:[#allocation4 + $0x140] sm:$0xff]
        %v2810 = vld [vmem:[#allocation4 + $0x148] sm:$0xff]
        %v2811 = vld [vmem:[#allocation4 + $0x150] sm:$0xff]
        %v2812 = vld [vmem:[#allocation4 + $0x158] sm:$0xff]
        %v2813 = vld [vmem:[#allocation4 + $0x160] sm:$0xff]
        %v2814 = vld [vmem:[#allocation4 + $0x168] sm:$0xff]
        %v2815 = vld [vmem:[#allocation4 + $0x170] sm:$0xff]
        %v2816 = vld [vmem:[#allocation4 + $0x178] sm:$0xff]
        %v2817 = vld [vmem:[#allocation4 + $0x180] sm:$0xff]
        %v2818 = vld [vmem:[#allocation4 + $0x188] sm:$0xff]
        %v2819 = vld [vmem:[#allocation4 + $0x190] sm:$0xff]
        %v2820 = vld [vmem:[#allocation4 + $0x198] sm:$0xff]
        %v2821 = vld [vmem:[#allocation4 + $0x1a0] sm:$0xff]
        %v2822 = vld [vmem:[#allocation4 + $0x1a8] sm:$0xff]
        %v2823 = vld [vmem:[#allocation4 + $0x1b0] sm:$0xff]
        %v2824 = vld [vmem:[#allocation4 + $0x1b8] sm:$0xff]
        %v2825 = vld [vmem:[#allocation4 + $0x1c0] sm:$0xff]
        %v2826 = vld [vmem:[#allocation4 + $0x1c8] sm:$0xff]
        %v2827 = vld [vmem:[#allocation4 + $0x1d0] sm:$0xff]
        %v2828 = vld [vmem:[#allocation4 + $0x1d8] sm:$0xff]
        %v2829 = vld [vmem:[#allocation4 + $0x1e0] sm:$0xff]
        %v2830 = vld [vmem:[#allocation4 + $0x1e8] sm:$0xff]
        %v2831 = vld [vmem:[#allocation4 + $0x1f0] sm:$0xff]
        %v2832 = vld [vmem:[#allocation4 + $0x1f8] sm:$0xff]
        %v2833 = vld [vmem:[%s3] sm:$0xff]
        %v2834 = vld [vmem:[%s3 + $0x8] sm:$0xff]
        %v2835 = vld [vmem:[%s3 + $0x10] sm:$0xff]
        %v2836 = vld [vmem:[%s3 + $0x18] sm:$0xff]
        %v2837 = vld [vmem:[%s3 + $0x20] sm:$0xff]
        %v2838 = vld [vmem:[%s3 + $0x28] sm:$0xff]
        %v2839 = vld [vmem:[%s3 + $0x30] sm:$0xff]
        %v2840 = vld [vmem:[%s3 + $0x38] sm:$0xff]
        %v2841 = vld [vmem:[%s3 + $0x40] sm:$0xff]
        %v2842 = vld [vmem:[%s3 + $0x48] sm:$0xff]
        %v2843 = vld [vmem:[%s3 + $0x50] sm:$0xff]
        %v2844 = vld [vmem:[%s3 + $0x58] sm:$0xff]
        %v2845 = vld [vmem:[%s3 + $0x60] sm:$0xff]
        %v2846 = vld [vmem:[%s3 + $0x68] sm:$0xff]
        %v2847 = vld [vmem:[%s3 + $0x70] sm:$0xff]
        %v2848 = vld [vmem:[%s3 + $0x78] sm:$0xff]
        %v2849 = vld [vmem:[%s3 + $0x80] sm:$0xff]
        %v2850 = vld [vmem:[%s3 + $0x88] sm:$0xff]
        %v2851 = vld [vmem:[%s8] sm:$0x1]
        %v2852 = vlaneseq
        %v2853 = vshrl.u32 %v2852, 7
        %v2854 = vsub.s32 0, %v2853
        %v2855 = vrot.slane %v2851, %v2854
        %v2857 = vsel %vm358, %v2770, 0
        %v2860 = vsel %vm358, %v2772, 0
        %v2863 = vsel %vm358, %v2774, 0
        %v2866 = vsel %vm358, %v2776, 0
        %v2869 = vsel %vm358, %v2778, 0
        %v2872 = vsel %vm358, %v2780, 0
        %v2875 = vsel %vm358, %v2782, 0
        %v2878 = vsel %vm358, %v2784, 0
        %v2881 = vsel %vm358, %v2786, 0
        %v2884 = vsel %vm358, %v2788, 0
        %v2887 = vsel %vm358, %v2790, 0
        %v2890 = vsel %vm358, %v2792, 0
        %v2893 = vsel %vm358, %v2794, 0
        %v2896 = vsel %vm358, %v2796, 0
        %v2899 = vsel %vm358, %v2798, 0
        %v2902 = vsel %vm358, %v2800, 0
        %v2905 = vsel %vm358, %v2802, 0
        %v2908 = vsel %vm358, %v2804, 0
        %v2911 = vsel %vm358, %v2806, 0
        %v2914 = vsel %vm358, %v2808, 0
        %v2917 = vsel %vm358, %v2810, 0
        %v2920 = vsel %vm358, %v2812, 0
        %v2923 = vsel %vm358, %v2814, 0
        %v2926 = vsel %vm358, %v2816, 0
        %v2929 = vsel %vm358, %v2818, 0
        %v2932 = vsel %vm358, %v2820, 0
        %v2935 = vsel %vm358, %v2822, 0
        %v2938 = vsel %vm358, %v2824, 0
        %v2941 = vsel %vm358, %v2826, 0
        %v2944 = vsel %vm358, %v2828, 0
        %v2947 = vsel %vm358, %v2830, 0
        %v2950 = vsel %vm358, %v2832, 0
        %2952 = vmatprep.subr.mxu0 0.0
        %2953 = vmatpush1.msra.mxu0 %v2848
        %2954 = vmatprep.subr.mxu0 0.0
        %2955 = vmatpush1.msra.mxu0 %v2847
        %2956 = vmatprep.subr.mxu0 0.0
        %2957 = vmatpush1.msra.mxu0 %v2846
        %2958 = vmatprep.subr.mxu0 0.0
        %2959 = vmatpush1.msra.mxu0 %v2845
        %2960 = vmatprep.subr.mxu0 0.0
        %2961 = vmatpush1.msra.mxu0 %v2844
        %2962 = vmatprep.subr.mxu0 0.0
        %2963 = vmatpush1.msra.mxu0 %v2843
        %2964 = vmatprep.subr.mxu0 0.0
        %2965 = vmatpush1.msra.mxu0 %v2842
        %2966 = vmatprep.subr.mxu0 0.0
        %2967 = vmatpush1.msra.mxu0 %v2841
        %2968 = vmatprep.subr.mxu0 0.0
        %2969 = vmatpush1.msra.mxu0 %v2840
        %2970 = vmatprep.subr.mxu0 0.0
        %2971 = vmatpush1.msra.mxu0 %v2839
        %2972 = vmatprep.subr.mxu0 0.0
        %2973 = vmatpush1.msra.mxu0 %v2838
        %2974 = vmatprep.subr.mxu0 0.0
        %2975 = vmatpush1.msra.mxu0 %v2837
        %2976 = vmatprep.subr.mxu0 0.0
        %2977 = vmatpush1.msra.mxu0 %v2836
        %2978 = vmatprep.subr.mxu0 0.0
        %2979 = vmatpush1.msra.mxu0 %v2835
        %2980 = vmatprep.subr.mxu0 0.0
        %2981 = vmatpush1.msra.mxu0 %v2834
        %2982 = vmatprep.subr.mxu0 0.0
        %2983 = vmatpush1.msra.mxu0 %v2833
        %2984 = vmatprep.subr.mxu0 0.0
        %2985 = vmatpush2.msra.mxu0 0.0
        %2986 = vmatprep.subr.mxu0 0.0
        %2987 = vmatpush2.msra.mxu0 0.0
        %2988 = vmatprep.subr.mxu0 0.0
        %2989 = vmatpush2.msra.mxu0 0.0
        %2990 = vmatprep.subr.mxu0 0.0
        %2991 = vmatpush2.msra.mxu0 0.0
        %2992 = vmatprep.subr.mxu0 0.0
        %2993 = vmatpush2.msra.mxu0 0.0
        %2994 = vmatprep.subr.mxu0 0.0
        %2995 = vmatpush2.msra.mxu0 0.0
        %2996 = vmatprep.subr.mxu0 0.0
        %2997 = vmatpush2.msra.mxu0 0.0
        %2998 = vmatprep.subr.mxu0 0.0
        %2999 = vmatpush2.msra.mxu0 0.0
        %3000 = vmatprep.subr.mxu0 0.0
        %3001 = vmatpush2.msra.mxu0 0.0
        %3002 = vmatprep.subr.mxu0 0.0
        %3003 = vmatpush2.msra.mxu0 0.0
        %3004 = vmatprep.subr.mxu0 0.0
        %3005 = vmatpush2.msra.mxu0 0.0
        %3006 = vmatprep.subr.mxu0 0.0
        %3007 = vmatpush2.msra.mxu0 0.0
        %3008 = vmatprep.subr.mxu0 0.0
        %3009 = vmatpush2.msra.mxu0 0.0
        %3010 = vmatprep.subr.mxu0 0.0
        %3011 = vmatpush2.msra.mxu0 0.0
        %3012 = vmatprep.subr.mxu0 0.0
        %3013 = vmatpush2.msra.mxu0 %v2850
        %3014 = vmatprep.subr.mxu0 0.0
        %3015 = vmatpush2.msra.mxu0 %v2849
        %3016 = vmatprep.mubr.f32.mxu0 %v2857
        %3017 = vmatmul.mubr.f32.gmra.mxu0 %v2769
        %v3018 = vpop.f32.mrf.mxu0
        %v3019 = vadd.f32 %v2855, %v3018
        %v3020 = vpop.f32.mrf.mxu0
        %3021 = vmatprep.mubr.f32.mxu0 %v2860
        %3022 = vmatmul.mubr.f32.gmra.mxu0 %v2771
        %v3023 = vpop.f32.mrf.mxu0
        %v3024 = vadd.f32 %v2855, %v3023
        %v3025 = vpop.f32.mrf.mxu0
        %3026 = vmatprep.mubr.f32.mxu0 %v2863
        %3027 = vmatmul.mubr.f32.gmra.mxu0 %v2773
        %v3028 = vpop.f32.mrf.mxu0
        %v3029 = vadd.f32 %v2855, %v3028
        %v3030 = vpop.f32.mrf.mxu0
        %3031 = vmatprep.mubr.f32.mxu0 %v2866
        %3032 = vmatmul.mubr.f32.gmra.mxu0 %v2775
        %v3033 = vpop.f32.mrf.mxu0
        %v3034 = vadd.f32 %v2855, %v3033
        %v3035 = vpop.f32.mrf.mxu0
        %3036 = vmatprep.mubr.f32.mxu0 %v2869
        %3037 = vmatmul.mubr.f32.gmra.mxu0 %v2777
        %v3038 = vpop.f32.mrf.mxu0
        %v3039 = vadd.f32 %v2855, %v3038
        %v3040 = vpop.f32.mrf.mxu0
        %3041 = vmatprep.mubr.f32.mxu0 %v2872
        %3042 = vmatmul.mubr.f32.gmra.mxu0 %v2779
        %v3043 = vpop.f32.mrf.mxu0
        %v3044 = vadd.f32 %v2855, %v3043
        %v3045 = vpop.f32.mrf.mxu0
        %3046 = vmatprep.mubr.f32.mxu0 %v2875
        %3047 = vmatmul.mubr.f32.gmra.mxu0 %v2781
        %v3048 = vpop.f32.mrf.mxu0
        %v3049 = vadd.f32 %v2855, %v3048
        %v3050 = vpop.f32.mrf.mxu0
        %3051 = vmatprep.mubr.f32.mxu0 %v2878
        %3052 = vmatmul.mubr.f32.gmra.mxu0 %v2783
        %v3053 = vpop.f32.mrf.mxu0
        %v3054 = vadd.f32 %v2855, %v3053
        %v3055 = vpop.f32.mrf.mxu0
        %3056 = vmatprep.mubr.f32.mxu0 %v2881
        %3057 = vmatmul.mubr.f32.gmra.mxu0 %v2785
        %v3058 = vpop.f32.mrf.mxu0
        %v3059 = vadd.f32 %v2855, %v3058
        %v3060 = vpop.f32.mrf.mxu0
        %3061 = vmatprep.mubr.f32.mxu0 %v2884
        %3062 = vmatmul.mubr.f32.gmra.mxu0 %v2787
        %v3063 = vpop.f32.mrf.mxu0
        %v3064 = vadd.f32 %v2855, %v3063
        %v3065 = vpop.f32.mrf.mxu0
        %3066 = vmatprep.mubr.f32.mxu0 %v2887
        %3067 = vmatmul.mubr.f32.gmra.mxu0 %v2789
        %v3068 = vpop.f32.mrf.mxu0
        %v3069 = vadd.f32 %v2855, %v3068
        %v3070 = vpop.f32.mrf.mxu0
        %3071 = vmatprep.mubr.f32.mxu0 %v2890
        %3072 = vmatmul.mubr.f32.gmra.mxu0 %v2791
        %v3073 = vpop.f32.mrf.mxu0
        %v3074 = vadd.f32 %v2855, %v3073
        %v3075 = vpop.f32.mrf.mxu0
        %3076 = vmatprep.mubr.f32.mxu0 %v2893
        %3077 = vmatmul.mubr.f32.gmra.mxu0 %v2793
        %v3078 = vpop.f32.mrf.mxu0
        %v3079 = vadd.f32 %v2855, %v3078
        %v3080 = vpop.f32.mrf.mxu0
        %3081 = vmatprep.mubr.f32.mxu0 %v2896
        %3082 = vmatmul.mubr.f32.gmra.mxu0 %v2795
        %v3083 = vpop.f32.mrf.mxu0
        %v3084 = vadd.f32 %v2855, %v3083
        %v3085 = vpop.f32.mrf.mxu0
        %3086 = vmatprep.mubr.f32.mxu0 %v2899
        %3087 = vmatmul.mubr.f32.gmra.mxu0 %v2797
        %v3088 = vpop.f32.mrf.mxu0
        %v3089 = vadd.f32 %v2855, %v3088
        %v3090 = vpop.f32.mrf.mxu0
        %3091 = vmatprep.mubr.f32.mxu0 %v2902
        %3092 = vmatmul.mubr.f32.gmra.mxu0 %v2799
        %v3093 = vpop.f32.mrf.mxu0
        %v3094 = vadd.f32 %v2855, %v3093
        %v3095 = vpop.f32.mrf.mxu0
        %3096 = vmatprep.mubr.f32.mxu0 %v2905
        %3097 = vmatmul.mubr.f32.gmra.mxu0 %v2801
        %v3098 = vpop.f32.mrf.mxu0
        %v3099 = vadd.f32 %v2855, %v3098
        %v3100 = vpop.f32.mrf.mxu0
        %3101 = vmatprep.mubr.f32.mxu0 %v2908
        %3102 = vmatmul.mubr.f32.gmra.mxu0 %v2803
        %v3103 = vpop.f32.mrf.mxu0
        %v3104 = vadd.f32 %v2855, %v3103
        %v3105 = vpop.f32.mrf.mxu0
        %3106 = vmatprep.mubr.f32.mxu0 %v2911
        %3107 = vmatmul.mubr.f32.gmra.mxu0 %v2805
        %v3108 = vpop.f32.mrf.mxu0
        %v3109 = vadd.f32 %v2855, %v3108
        %v3110 = vpop.f32.mrf.mxu0
        %3111 = vmatprep.mubr.f32.mxu0 %v2914
        %3112 = vmatmul.mubr.f32.gmra.mxu0 %v2807
        %v3113 = vpop.f32.mrf.mxu0
        %v3114 = vadd.f32 %v2855, %v3113
        %v3115 = vpop.f32.mrf.mxu0
        %3116 = vmatprep.mubr.f32.mxu0 %v2917
        %3117 = vmatmul.mubr.f32.gmra.mxu0 %v2809
        %v3118 = vpop.f32.mrf.mxu0
        %v3119 = vadd.f32 %v2855, %v3118
        %v3120 = vpop.f32.mrf.mxu0
        %3121 = vmatprep.mubr.f32.mxu0 %v2920
        %3122 = vmatmul.mubr.f32.gmra.mxu0 %v2811
        %v3123 = vpop.f32.mrf.mxu0
        %v3124 = vadd.f32 %v2855, %v3123
        %v3125 = vpop.f32.mrf.mxu0
        %3126 = vmatprep.mubr.f32.mxu0 %v2923
        %3127 = vmatmul.mubr.f32.gmra.mxu0 %v2813
        %v3128 = vpop.f32.mrf.mxu0
        %v3129 = vadd.f32 %v2855, %v3128
        %v3130 = vpop.f32.mrf.mxu0
        %3131 = vmatprep.mubr.f32.mxu0 %v2926
        %3132 = vmatmul.mubr.f32.gmra.mxu0 %v2815
        %v3133 = vpop.f32.mrf.mxu0
        %v3134 = vadd.f32 %v2855, %v3133
        %v3135 = vpop.f32.mrf.mxu0
        %3136 = vmatprep.mubr.f32.mxu0 %v2929
        %3137 = vmatmul.mubr.f32.gmra.mxu0 %v2817
        %v3138 = vpop.f32.mrf.mxu0
        %v3139 = vadd.f32 %v2855, %v3138
        %v3140 = vpop.f32.mrf.mxu0
        %3141 = vmatprep.mubr.f32.mxu0 %v2932
        %3142 = vmatmul.mubr.f32.gmra.mxu0 %v2819
        %v3143 = vpop.f32.mrf.mxu0
        %v3144 = vadd.f32 %v2855, %v3143
        %v3145 = vpop.f32.mrf.mxu0
        %3146 = vmatprep.mubr.f32.mxu0 %v2935
        %3147 = vmatmul.mubr.f32.gmra.mxu0 %v2821
        %v3148 = vpop.f32.mrf.mxu0
        %v3149 = vadd.f32 %v2855, %v3148
        %v3150 = vpop.f32.mrf.mxu0
        %3151 = vmatprep.mubr.f32.mxu0 %v2938
        %3152 = vmatmul.mubr.f32.gmra.mxu0 %v2823
        %v3153 = vpop.f32.mrf.mxu0
        %v3154 = vadd.f32 %v2855, %v3153
        %v3155 = vpop.f32.mrf.mxu0
        %3156 = vmatprep.mubr.f32.mxu0 %v2941
        %3157 = vmatmul.mubr.f32.gmra.mxu0 %v2825
        %v3158 = vpop.f32.mrf.mxu0
        %v3159 = vadd.f32 %v2855, %v3158
        %v3160 = vpop.f32.mrf.mxu0
        %3161 = vmatprep.mubr.f32.mxu0 %v2944
        %3162 = vmatmul.mubr.f32.gmra.mxu0 %v2827
        %v3163 = vpop.f32.mrf.mxu0
        %v3164 = vadd.f32 %v2855, %v3163
        %v3165 = vpop.f32.mrf.mxu0
        %3166 = vmatprep.mubr.f32.mxu0 %v2947
        %3167 = vmatmul.mubr.f32.gmra.mxu0 %v2829
        %v3168 = vpop.f32.mrf.mxu0
        %v3169 = vadd.f32 %v2855, %v3168
        %v3170 = vpop.f32.mrf.mxu0
        %3171 = vmatprep.mubr.f32.mxu0 %v2950
        %3172 = vmatmul.mubr.f32.gmra.mxu0 %v2831
        %v3173 = vpop.f32.mrf.mxu0
        %v3174 = vadd.f32 %v2855, %v3173
        %v3175 = vpop.f32.mrf.mxu0
        %3176 = vdwg.mxu0
        %v3177 = vxor.u32 %v3019, 2147483648
        %v3178 = vxor.u32 %v3024, 2147483648
        %v3179 = vxor.u32 %v3029, 2147483648
        %v3180 = vxor.u32 %v3034, 2147483648
        %v3181 = vxor.u32 %v3039, 2147483648
        %v3182 = vxor.u32 %v3044, 2147483648
        %v3183 = vxor.u32 %v3049, 2147483648
        %v3184 = vxor.u32 %v3054, 2147483648
        %v3185 = vxor.u32 %v3059, 2147483648
        %v3186 = vxor.u32 %v3064, 2147483648
        %v3187 = vxor.u32 %v3069, 2147483648
        %v3188 = vxor.u32 %v3074, 2147483648
        %v3189 = vxor.u32 %v3079, 2147483648
        %v3190 = vxor.u32 %v3084, 2147483648
        %v3191 = vxor.u32 %v3089, 2147483648
        %v3192 = vxor.u32 %v3094, 2147483648
        %v3193 = vxor.u32 %v3099, 2147483648
        %v3194 = vxor.u32 %v3104, 2147483648
        %v3195 = vxor.u32 %v3109, 2147483648
        %v3196 = vxor.u32 %v3114, 2147483648
        %v3197 = vxor.u32 %v3119, 2147483648
        %v3198 = vxor.u32 %v3124, 2147483648
        %v3199 = vxor.u32 %v3129, 2147483648
        %v3200 = vxor.u32 %v3134, 2147483648
        %v3201 = vxor.u32 %v3139, 2147483648
        %v3202 = vxor.u32 %v3144, 2147483648
        %v3203 = vxor.u32 %v3149, 2147483648
        %v3204 = vxor.u32 %v3154, 2147483648
        %v3205 = vxor.u32 %v3159, 2147483648
        %v3206 = vxor.u32 %v3164, 2147483648
        %v3207 = vxor.u32 %v3169, 2147483648
        %v3208 = vxor.u32 %v3174, 2147483648
        %v3209 = vmul.f32 %v3177, 1.442695
        %v3210 = vpow.pop %v3209
        %v3211 = vmul.f32 %v3178, 1.442695
        %v3212 = vpow.pop %v3211
        %v3213 = vmul.f32 %v3179, 1.442695
        %v3214 = vpow.pop %v3213
        %v3215 = vmul.f32 %v3180, 1.442695
        %v3216 = vpow.pop %v3215
        %v3217 = vmul.f32 %v3181, 1.442695
        %v3218 = vpow.pop %v3217
        %v3219 = vmul.f32 %v3182, 1.442695
        %v3220 = vpow.pop %v3219
        %v3221 = vmul.f32 %v3183, 1.442695
        %v3222 = vpow.pop %v3221
        %v3223 = vmul.f32 %v3184, 1.442695
        %v3224 = vpow.pop %v3223
        %v3225 = vmul.f32 %v3185, 1.442695
        %v3226 = vpow.pop %v3225
        %v3227 = vmul.f32 %v3186, 1.442695
        %v3228 = vpow.pop %v3227
        %v3229 = vmul.f32 %v3187, 1.442695
        %v3230 = vpow.pop %v3229
        %v3231 = vmul.f32 %v3188, 1.442695
        %v3232 = vpow.pop %v3231
        %v3233 = vmul.f32 %v3189, 1.442695
        %v3234 = vpow.pop %v3233
        %v3235 = vmul.f32 %v3190, 1.442695
        %v3236 = vpow.pop %v3235
        %v3237 = vmul.f32 %v3191, 1.442695
        %v3238 = vpow.pop %v3237
        %v3239 = vmul.f32 %v3192, 1.442695
        %v3240 = vpow.pop %v3239
        %v3241 = vmul.f32 %v3193, 1.442695
        %v3242 = vpow.pop %v3241
        %v3243 = vmul.f32 %v3194, 1.442695
        %v3244 = vpow.pop %v3243
        %v3245 = vmul.f32 %v3195, 1.442695
        %v3246 = vpow.pop %v3245
        %v3247 = vmul.f32 %v3196, 1.442695
        %v3248 = vpow.pop %v3247
        %v3249 = vmul.f32 %v3197, 1.442695
        %v3250 = vpow.pop %v3249
        %v3251 = vmul.f32 %v3198, 1.442695
        %v3252 = vpow.pop %v3251
        %v3253 = vmul.f32 %v3199, 1.442695
        %v3254 = vpow.pop %v3253
        %v3255 = vmul.f32 %v3200, 1.442695
        %v3256 = vpow.pop %v3255
        %v3257 = vmul.f32 %v3201, 1.442695
        %v3258 = vpow.pop %v3257
        %v3259 = vmul.f32 %v3202, 1.442695
        %v3260 = vpow.pop %v3259
        %v3261 = vmul.f32 %v3203, 1.442695
        %v3262 = vpow.pop %v3261
        %v3263 = vmul.f32 %v3204, 1.442695
        %v3264 = vpow.pop %v3263
        %v3265 = vmul.f32 %v3205, 1.442695
        %v3266 = vpow.pop %v3265
        %v3267 = vmul.f32 %v3206, 1.442695
        %v3268 = vpow.pop %v3267
        %v3269 = vmul.f32 %v3207, 1.442695
        %v3270 = vpow.pop %v3269
        %v3271 = vmul.f32 %v3208, 1.442695
        %v3272 = vpow.pop %v3271
        %v3273 = vadd.f32 %v3210, 1.0
        %v3274 = vadd.f32 %v3212, 1.0
        %v3275 = vadd.f32 %v3214, 1.0
        %v3276 = vadd.f32 %v3216, 1.0
        %v3277 = vadd.f32 %v3218, 1.0
        %v3278 = vadd.f32 %v3220, 1.0
        %v3279 = vadd.f32 %v3222, 1.0
        %v3280 = vadd.f32 %v3224, 1.0
        %v3281 = vadd.f32 %v3226, 1.0
        %v3282 = vadd.f32 %v3228, 1.0
        %v3283 = vadd.f32 %v3230, 1.0
        %v3284 = vadd.f32 %v3232, 1.0
        %v3285 = vadd.f32 %v3234, 1.0
        %v3286 = vadd.f32 %v3236, 1.0
        %v3287 = vadd.f32 %v3238, 1.0
        %v3288 = vadd.f32 %v3240, 1.0
        %v3289 = vadd.f32 %v3242, 1.0
        %v3290 = vadd.f32 %v3244, 1.0
        %v3291 = vadd.f32 %v3246, 1.0
        %v3292 = vadd.f32 %v3248, 1.0
        %v3293 = vadd.f32 %v3250, 1.0
        %v3294 = vadd.f32 %v3252, 1.0
        %v3295 = vadd.f32 %v3254, 1.0
        %v3296 = vadd.f32 %v3256, 1.0
        %v3297 = vadd.f32 %v3258, 1.0
        %v3298 = vadd.f32 %v3260, 1.0
        %v3299 = vadd.f32 %v3262, 1.0
        %v3300 = vadd.f32 %v3264, 1.0
        %v3301 = vadd.f32 %v3266, 1.0
        %v3302 = vadd.f32 %v3268, 1.0
        %v3303 = vadd.f32 %v3270, 1.0
        %v3304 = vadd.f32 %v3272, 1.0
        %v3305 = vrcp.pop %v3273
        %v3306 = vmul.f32 1.0, %v3305
        %v3307 = vrcp.pop %v3274
        %v3308 = vmul.f32 1.0, %v3307
        %v3309 = vrcp.pop %v3275
        %v3310 = vmul.f32 1.0, %v3309
        %v3311 = vrcp.pop %v3276
        %v3312 = vmul.f32 1.0, %v3311
        %v3313 = vrcp.pop %v3277
        %v3314 = vmul.f32 1.0, %v3313
        %v3315 = vrcp.pop %v3278
        %v3316 = vmul.f32 1.0, %v3315
        %v3317 = vrcp.pop %v3279
        %v3318 = vmul.f32 1.0, %v3317
        %v3319 = vrcp.pop %v3280
        %v3320 = vmul.f32 1.0, %v3319
        %v3321 = vrcp.pop %v3281
        %v3322 = vmul.f32 1.0, %v3321
        %v3323 = vrcp.pop %v3282
        %v3324 = vmul.f32 1.0, %v3323
        %v3325 = vrcp.pop %v3283
        %v3326 = vmul.f32 1.0, %v3325
        %v3327 = vrcp.pop %v3284
        %v3328 = vmul.f32 1.0, %v3327
        %v3329 = vrcp.pop %v3285
        %v3330 = vmul.f32 1.0, %v3329
        %v3331 = vrcp.pop %v3286
        %v3332 = vmul.f32 1.0, %v3331
        %v3333 = vrcp.pop %v3287
        %v3334 = vmul.f32 1.0, %v3333
        %v3335 = vrcp.pop %v3288
        %v3336 = vmul.f32 1.0, %v3335
        %v3337 = vrcp.pop %v3289
        %v3338 = vmul.f32 1.0, %v3337
        %v3339 = vrcp.pop %v3290
        %v3340 = vmul.f32 1.0, %v3339
        %v3341 = vrcp.pop %v3291
        %v3342 = vmul.f32 1.0, %v3341
        %v3343 = vrcp.pop %v3292
        %v3344 = vmul.f32 1.0, %v3343
        %v3345 = vrcp.pop %v3293
        %v3346 = vmul.f32 1.0, %v3345
        %v3347 = vrcp.pop %v3294
        %v3348 = vmul.f32 1.0, %v3347
        %v3349 = vrcp.pop %v3295
        %v3350 = vmul.f32 1.0, %v3349
        %v3351 = vrcp.pop %v3296
        %v3352 = vmul.f32 1.0, %v3351
        %v3353 = vrcp.pop %v3297
        %v3354 = vmul.f32 1.0, %v3353
        %v3355 = vrcp.pop %v3298
        %v3356 = vmul.f32 1.0, %v3355
        %v3357 = vrcp.pop %v3299
        %v3358 = vmul.f32 1.0, %v3357
        %v3359 = vrcp.pop %v3300
        %v3360 = vmul.f32 1.0, %v3359
        %v3361 = vrcp.pop %v3301
        %v3362 = vmul.f32 1.0, %v3361
        %v3363 = vrcp.pop %v3302
        %v3364 = vmul.f32 1.0, %v3363
        %v3365 = vrcp.pop %v3303
        %v3366 = vmul.f32 1.0, %v3365
        %v3367 = vrcp.pop %v3304
        %v3368 = vmul.f32 1.0, %v3367
        %v3369 = vmul.f32 %v3019, %v3306
        %v3370 = vmul.f32 %v3024, %v3308
        %v3371 = vmul.f32 %v3029, %v3310
        %v3372 = vmul.f32 %v3034, %v3312
        %v3373 = vmul.f32 %v3039, %v3314
        %v3374 = vmul.f32 %v3044, %v3316
        %v3375 = vmul.f32 %v3049, %v3318
        %v3376 = vmul.f32 %v3054, %v3320
        %v3377 = vmul.f32 %v3059, %v3322
        %v3378 = vmul.f32 %v3064, %v3324
        %v3379 = vmul.f32 %v3069, %v3326
        %v3380 = vmul.f32 %v3074, %v3328
        %v3381 = vmul.f32 %v3079, %v3330
        %v3382 = vmul.f32 %v3084, %v3332
        %v3383 = vmul.f32 %v3089, %v3334
        %v3384 = vmul.f32 %v3094, %v3336
        %v3385 = vmul.f32 %v3099, %v3338
        %v3386 = vmul.f32 %v3104, %v3340
        %v3387 = vmul.f32 %v3109, %v3342
        %v3388 = vmul.f32 %v3114, %v3344
        %v3389 = vmul.f32 %v3119, %v3346
        %v3390 = vmul.f32 %v3124, %v3348
        %v3391 = vmul.f32 %v3129, %v3350
        %v3392 = vmul.f32 %v3134, %v3352
        %v3393 = vmul.f32 %v3139, %v3354
        %v3394 = vmul.f32 %v3144, %v3356
        %v3395 = vmul.f32 %v3149, %v3358
        %v3396 = vmul.f32 %v3154, %v3360
        %v3397 = vmul.f32 %v3159, %v3362
        %v3398 = vmul.f32 %v3164, %v3364
        %v3399 = vmul.f32 %v3169, %v3366
        %v3400 = vmul.f32 %v3174, %v3368
        %v3401 = vld [vmem:[%s4] sm:$0xff]
        %v3402 = vld [vmem:[%s4 + $0x8] sm:$0xff]
        %v3403 = vld [vmem:[%s8 + $0x1] sm:$0x1]
        %v3404 = vlaneseq
        %v3405 = vshrl.u32 %v3404, 7
        %v3406 = vsub.s32 0, %v3405
        %v3407 = vrot.slane %v3403, %v3406
        %v3409 = vsel %vm358, %v3369, 0
        %v3412 = vsel %vm358, %v3370, 0
        %v3415 = vsel %vm358, %v3371, 0
        %v3418 = vsel %vm358, %v3372, 0
        %v3421 = vsel %vm358, %v3373, 0
        %v3424 = vsel %vm358, %v3374, 0
        %v3427 = vsel %vm358, %v3375, 0
        %v3430 = vsel %vm358, %v3376, 0
        %v3433 = vsel %vm358, %v3377, 0
        %v3436 = vsel %vm358, %v3378, 0
        %v3439 = vsel %vm358, %v3379, 0
        %v3442 = vsel %vm358, %v3380, 0
        %v3445 = vsel %vm358, %v3381, 0
        %v3448 = vsel %vm358, %v3382, 0
        %v3451 = vsel %vm358, %v3383, 0
        %v3454 = vsel %vm358, %v3384, 0
        %v3457 = vsel %vm358, %v3385, 0
        %v3460 = vsel %vm358, %v3386, 0
        %v3463 = vsel %vm358, %v3387, 0
        %v3466 = vsel %vm358, %v3388, 0
        %v3469 = vsel %vm358, %v3389, 0
        %v3472 = vsel %vm358, %v3390, 0
        %v3475 = vsel %vm358, %v3391, 0
        %v3478 = vsel %vm358, %v3392, 0
        %v3481 = vsel %vm358, %v3393, 0
        %v3484 = vsel %vm358, %v3394, 0
        %v3487 = vsel %vm358, %v3395, 0
        %v3490 = vsel %vm358, %v3396, 0
        %v3493 = vsel %vm358, %v3397, 0
        %v3496 = vsel %vm358, %v3398, 0
        %v3499 = vsel %vm358, %v3399, 0
        %v3502 = vsel %vm358, %v3400, 0
        %3504 = vmatprep.subr.mxu0 0.0
        %3505 = vmatpush1.msra.mxu0 0.0
        %3506 = vmatprep.subr.mxu0 0.0
        %3507 = vmatpush1.msra.mxu0 0.0
        %3508 = vmatprep.subr.mxu0 0.0
        %3509 = vmatpush1.msra.mxu0 0.0
        %3510 = vmatprep.subr.mxu0 0.0
        %3511 = vmatpush1.msra.mxu0 0.0
        %3512 = vmatprep.subr.mxu0 0.0
        %3513 = vmatpush1.msra.mxu0 0.0
        %3514 = vmatprep.subr.mxu0 0.0
        %3515 = vmatpush1.msra.mxu0 0.0
        %3516 = vmatprep.subr.mxu0 0.0
        %3517 = vmatpush1.msra.mxu0 0.0
        %3518 = vmatprep.subr.mxu0 0.0
        %3519 = vmatpush1.msra.mxu0 0.0
        %3520 = vmatprep.subr.mxu0 0.0
        %3521 = vmatpush1.msra.mxu0 0.0
        %3522 = vmatprep.subr.mxu0 0.0
        %3523 = vmatpush1.msra.mxu0 0.0
        %3524 = vmatprep.subr.mxu0 0.0
        %3525 = vmatpush1.msra.mxu0 0.0
        %3526 = vmatprep.subr.mxu0 0.0
        %3527 = vmatpush1.msra.mxu0 0.0
        %3528 = vmatprep.subr.mxu0 0.0
        %3529 = vmatpush1.msra.mxu0 0.0
        %3530 = vmatprep.subr.mxu0 0.0
        %3531 = vmatpush1.msra.mxu0 0.0
        %3532 = vmatprep.subr.mxu0 0.0
        %3533 = vmatpush1.msra.mxu0 %v3402
        %3534 = vmatprep.subr.mxu0 0.0
        %3535 = vmatpush1.msra.mxu0 %v3401
        %3536 = vmatprep.subr.mxu0 0.0
        %3537 = vmatpush2.msra.mxu0 0.0
        %3538 = vmatprep.subr.mxu0 0.0
        %3539 = vmatpush2.msra.mxu0 0.0
        %3540 = vmatprep.subr.mxu0 0.0
        %3541 = vmatpush2.msra.mxu0 0.0
        %3542 = vmatprep.subr.mxu0 0.0
        %3543 = vmatpush2.msra.mxu0 0.0
        %3544 = vmatprep.subr.mxu0 0.0
        %3545 = vmatpush2.msra.mxu0 0.0
        %3546 = vmatprep.subr.mxu0 0.0
        %3547 = vmatpush2.msra.mxu0 0.0
        %3548 = vmatprep.subr.mxu0 0.0
        %3549 = vmatpush2.msra.mxu0 0.0
        %3550 = vmatprep.subr.mxu0 0.0
        %3551 = vmatpush2.msra.mxu0 0.0
        %3552 = vmatprep.subr.mxu0 0.0
        %3553 = vmatpush2.msra.mxu0 0.0
        %3554 = vmatprep.subr.mxu0 0.0
        %3555 = vmatpush2.msra.mxu0 0.0
        %3556 = vmatprep.subr.mxu0 0.0
        %3557 = vmatpush2.msra.mxu0 0.0
        %3558 = vmatprep.subr.mxu0 0.0
        %3559 = vmatpush2.msra.mxu0 0.0
        %3560 = vmatprep.subr.mxu0 0.0
        %3561 = vmatpush2.msra.mxu0 0.0
        %3562 = vmatprep.subr.mxu0 0.0
        %3563 = vmatpush2.msra.mxu0 0.0
        %3564 = vmatprep.subr.mxu0 0.0
        %3565 = vmatpush2.msra.mxu0 0.0
        %3566 = vmatprep.subr.mxu0 0.0
        %3567 = vmatpush2.msra.mxu0 0.0
        %3568 = vmatprep.mubr.f32.mxu0 0.0
        %3569 = vmatmul.mubr.f32.gmra.mxu0 %v3409
        %v3570 = vpop.f32.mrf.mxu0
        %v3571 = vadd.f32 %v3407, %v3570
        %v3572 = vpop.f32.mrf.mxu0
        %3573 = vmatprep.mubr.f32.mxu0 0.0
        %3574 = vmatmul.mubr.f32.gmra.mxu0 %v3412
        %v3575 = vpop.f32.mrf.mxu0
        %v3576 = vadd.f32 %v3407, %v3575
        %v3577 = vpop.f32.mrf.mxu0
        %3578 = vmatprep.mubr.f32.mxu0 0.0
        %3579 = vmatmul.mubr.f32.gmra.mxu0 %v3415
        %v3580 = vpop.f32.mrf.mxu0
        %v3581 = vadd.f32 %v3407, %v3580
        %v3582 = vpop.f32.mrf.mxu0
        %3583 = vmatprep.mubr.f32.mxu0 0.0
        %3584 = vmatmul.mubr.f32.gmra.mxu0 %v3418
        %v3585 = vpop.f32.mrf.mxu0
        %v3586 = vadd.f32 %v3407, %v3585
        %v3587 = vpop.f32.mrf.mxu0
        %3588 = vmatprep.mubr.f32.mxu0 0.0
        %3589 = vmatmul.mubr.f32.gmra.mxu0 %v3421
        %v3590 = vpop.f32.mrf.mxu0
        %v3591 = vadd.f32 %v3407, %v3590
        %v3592 = vpop.f32.mrf.mxu0
        %3593 = vmatprep.mubr.f32.mxu0 0.0
        %3594 = vmatmul.mubr.f32.gmra.mxu0 %v3424
        %v3595 = vpop.f32.mrf.mxu0
        %v3596 = vadd.f32 %v3407, %v3595
        %v3597 = vpop.f32.mrf.mxu0
        %3598 = vmatprep.mubr.f32.mxu0 0.0
        %3599 = vmatmul.mubr.f32.gmra.mxu0 %v3427
        %v3600 = vpop.f32.mrf.mxu0
        %v3601 = vadd.f32 %v3407, %v3600
        %v3602 = vpop.f32.mrf.mxu0
        %3603 = vmatprep.mubr.f32.mxu0 0.0
        %3604 = vmatmul.mubr.f32.gmra.mxu0 %v3430
        %v3605 = vpop.f32.mrf.mxu0
        %v3606 = vadd.f32 %v3407, %v3605
        %v3607 = vpop.f32.mrf.mxu0
        %3608 = vmatprep.mubr.f32.mxu0 0.0
        %3609 = vmatmul.mubr.f32.gmra.mxu0 %v3433
        %v3610 = vpop.f32.mrf.mxu0
        %v3611 = vadd.f32 %v3407, %v3610
        %v3612 = vpop.f32.mrf.mxu0
        %3613 = vmatprep.mubr.f32.mxu0 0.0
        %3614 = vmatmul.mubr.f32.gmra.mxu0 %v3436
        %v3615 = vpop.f32.mrf.mxu0
        %v3616 = vadd.f32 %v3407, %v3615
        %v3617 = vpop.f32.mrf.mxu0
        %3618 = vmatprep.mubr.f32.mxu0 0.0
        %3619 = vmatmul.mubr.f32.gmra.mxu0 %v3439
        %v3620 = vpop.f32.mrf.mxu0
        %v3621 = vadd.f32 %v3407, %v3620
        %v3622 = vpop.f32.mrf.mxu0
        %3623 = vmatprep.mubr.f32.mxu0 0.0
        %3624 = vmatmul.mubr.f32.gmra.mxu0 %v3442
        %v3625 = vpop.f32.mrf.mxu0
        %v3626 = vadd.f32 %v3407, %v3625
        %v3627 = vpop.f32.mrf.mxu0
        %3628 = vmatprep.mubr.f32.mxu0 0.0
        %3629 = vmatmul.mubr.f32.gmra.mxu0 %v3445
        %v3630 = vpop.f32.mrf.mxu0
        %v3631 = vadd.f32 %v3407, %v3630
        %v3632 = vpop.f32.mrf.mxu0
        %3633 = vmatprep.mubr.f32.mxu0 0.0
        %3634 = vmatmul.mubr.f32.gmra.mxu0 %v3448
        %v3635 = vpop.f32.mrf.mxu0
        %v3636 = vadd.f32 %v3407, %v3635
        %v3637 = vpop.f32.mrf.mxu0
        %3638 = vmatprep.mubr.f32.mxu0 0.0
        %3639 = vmatmul.mubr.f32.gmra.mxu0 %v3451
        %v3640 = vpop.f32.mrf.mxu0
        %v3641 = vadd.f32 %v3407, %v3640
        %v3642 = vpop.f32.mrf.mxu0
        %3643 = vmatprep.mubr.f32.mxu0 0.0
        %3644 = vmatmul.mubr.f32.gmra.mxu0 %v3454
        %v3645 = vpop.f32.mrf.mxu0
        %v3646 = vadd.f32 %v3407, %v3645
        %v3647 = vpop.f32.mrf.mxu0
        %3648 = vmatprep.mubr.f32.mxu0 0.0
        %3649 = vmatmul.mubr.f32.gmra.mxu0 %v3457
        %v3650 = vpop.f32.mrf.mxu0
        %v3651 = vadd.f32 %v3407, %v3650
        %v3652 = vpop.f32.mrf.mxu0
        %3653 = vmatprep.mubr.f32.mxu0 0.0
        %3654 = vmatmul.mubr.f32.gmra.mxu0 %v3460
        %v3655 = vpop.f32.mrf.mxu0
        %v3656 = vadd.f32 %v3407, %v3655
        %v3657 = vpop.f32.mrf.mxu0
        %3658 = vmatprep.mubr.f32.mxu0 0.0
        %3659 = vmatmul.mubr.f32.gmra.mxu0 %v3463
        %v3660 = vpop.f32.mrf.mxu0
        %v3661 = vadd.f32 %v3407, %v3660
        %v3662 = vpop.f32.mrf.mxu0
        %3663 = vmatprep.mubr.f32.mxu0 0.0
        %3664 = vmatmul.mubr.f32.gmra.mxu0 %v3466
        %v3665 = vpop.f32.mrf.mxu0
        %v3666 = vadd.f32 %v3407, %v3665
        %v3667 = vpop.f32.mrf.mxu0
        %3668 = vmatprep.mubr.f32.mxu0 0.0
        %3669 = vmatmul.mubr.f32.gmra.mxu0 %v3469
        %v3670 = vpop.f32.mrf.mxu0
        %v3671 = vadd.f32 %v3407, %v3670
        %v3672 = vpop.f32.mrf.mxu0
        %3673 = vmatprep.mubr.f32.mxu0 0.0
        %3674 = vmatmul.mubr.f32.gmra.mxu0 %v3472
        %v3675 = vpop.f32.mrf.mxu0
        %v3676 = vadd.f32 %v3407, %v3675
        %v3677 = vpop.f32.mrf.mxu0
        %3678 = vmatprep.mubr.f32.mxu0 0.0
        %3679 = vmatmul.mubr.f32.gmra.mxu0 %v3475
        %v3680 = vpop.f32.mrf.mxu0
        %v3681 = vadd.f32 %v3407, %v3680
        %v3682 = vpop.f32.mrf.mxu0
        %3683 = vmatprep.mubr.f32.mxu0 0.0
        %3684 = vmatmul.mubr.f32.gmra.mxu0 %v3478
        %v3685 = vpop.f32.mrf.mxu0
        %v3686 = vadd.f32 %v3407, %v3685
        %v3687 = vpop.f32.mrf.mxu0
        %3688 = vmatprep.mubr.f32.mxu0 0.0
        %3689 = vmatmul.mubr.f32.gmra.mxu0 %v3481
        %v3690 = vpop.f32.mrf.mxu0
        %v3691 = vadd.f32 %v3407, %v3690
        %v3692 = vpop.f32.mrf.mxu0
        %3693 = vmatprep.mubr.f32.mxu0 0.0
        %3694 = vmatmul.mubr.f32.gmra.mxu0 %v3484
        %v3695 = vpop.f32.mrf.mxu0
        %v3696 = vadd.f32 %v3407, %v3695
        %v3697 = vpop.f32.mrf.mxu0
        %3698 = vmatprep.mubr.f32.mxu0 0.0
        %3699 = vmatmul.mubr.f32.gmra.mxu0 %v3487
        %v3700 = vpop.f32.mrf.mxu0
        %v3701 = vadd.f32 %v3407, %v3700
        %v3702 = vpop.f32.mrf.mxu0
        %3703 = vmatprep.mubr.f32.mxu0 0.0
        %3704 = vmatmul.mubr.f32.gmra.mxu0 %v3490
        %v3705 = vpop.f32.mrf.mxu0
        %v3706 = vadd.f32 %v3407, %v3705
        %v3707 = vpop.f32.mrf.mxu0
        %3708 = vmatprep.mubr.f32.mxu0 0.0
        %3709 = vmatmul.mubr.f32.gmra.mxu0 %v3493
        %v3710 = vpop.f32.mrf.mxu0
        %v3711 = vadd.f32 %v3407, %v3710
        %v3712 = vpop.f32.mrf.mxu0
        %3713 = vmatprep.mubr.f32.mxu0 0.0
        %3714 = vmatmul.mubr.f32.gmra.mxu0 %v3496
        %v3715 = vpop.f32.mrf.mxu0
        %v3716 = vadd.f32 %v3407, %v3715
        %v3717 = vpop.f32.mrf.mxu0
        %3718 = vmatprep.mubr.f32.mxu0 0.0
        %3719 = vmatmul.mubr.f32.gmra.mxu0 %v3499
        %v3720 = vpop.f32.mrf.mxu0
        %v3721 = vadd.f32 %v3407, %v3720
        %v3722 = vpop.f32.mrf.mxu0
        %3723 = vmatprep.mubr.f32.mxu0 0.0
        %3724 = vmatmul.mubr.f32.gmra.mxu0 %v3502
        %v3725 = vpop.f32.mrf.mxu0
        %v3726 = vadd.f32 %v3407, %v3725
        %v3727 = vpop.f32.mrf.mxu0
        %3728 = vdwg.mxu0
        %v3729 = vxor.u32 %v3571, 2147483648
        %v3730 = vxor.u32 %v3576, 2147483648
        %v3731 = vxor.u32 %v3581, 2147483648
        %v3732 = vxor.u32 %v3586, 2147483648
        %v3733 = vxor.u32 %v3591, 2147483648
        %v3734 = vxor.u32 %v3596, 2147483648
        %v3735 = vxor.u32 %v3601, 2147483648
        %v3736 = vxor.u32 %v3606, 2147483648
        %v3737 = vxor.u32 %v3611, 2147483648
        %v3738 = vxor.u32 %v3616, 2147483648
        %v3739 = vxor.u32 %v3621, 2147483648
        %v3740 = vxor.u32 %v3626, 2147483648
        %v3741 = vxor.u32 %v3631, 2147483648
        %v3742 = vxor.u32 %v3636, 2147483648
        %v3743 = vxor.u32 %v3641, 2147483648
        %v3744 = vxor.u32 %v3646, 2147483648
        %v3745 = vxor.u32 %v3651, 2147483648
        %v3746 = vxor.u32 %v3656, 2147483648
        %v3747 = vxor.u32 %v3661, 2147483648
        %v3748 = vxor.u32 %v3666, 2147483648
        %v3749 = vxor.u32 %v3671, 2147483648
        %v3750 = vxor.u32 %v3676, 2147483648
        %v3751 = vxor.u32 %v3681, 2147483648
        %v3752 = vxor.u32 %v3686, 2147483648
        %v3753 = vxor.u32 %v3691, 2147483648
        %v3754 = vxor.u32 %v3696, 2147483648
        %v3755 = vxor.u32 %v3701, 2147483648
        %v3756 = vxor.u32 %v3706, 2147483648
        %v3757 = vxor.u32 %v3711, 2147483648
        %v3758 = vxor.u32 %v3716, 2147483648
        %v3759 = vxor.u32 %v3721, 2147483648
        %v3760 = vxor.u32 %v3726, 2147483648
        %v3761 = vmul.f32 %v3729, 1.442695
        %v3762 = vpow.pop %v3761
        %v3763 = vmul.f32 %v3730, 1.442695
        %v3764 = vpow.pop %v3763
        %v3765 = vmul.f32 %v3731, 1.442695
        %v3766 = vpow.pop %v3765
        %v3767 = vmul.f32 %v3732, 1.442695
        %v3768 = vpow.pop %v3767
        %v3769 = vmul.f32 %v3733, 1.442695
        %v3770 = vpow.pop %v3769
        %v3771 = vmul.f32 %v3734, 1.442695
        %v3772 = vpow.pop %v3771
        %v3773 = vmul.f32 %v3735, 1.442695
        %v3774 = vpow.pop %v3773
        %v3775 = vmul.f32 %v3736, 1.442695
        %v3776 = vpow.pop %v3775
        %v3777 = vmul.f32 %v3737, 1.442695
        %v3778 = vpow.pop %v3777
        %v3779 = vmul.f32 %v3738, 1.442695
        %v3780 = vpow.pop %v3779
        %v3781 = vmul.f32 %v3739, 1.442695
        %v3782 = vpow.pop %v3781
        %v3783 = vmul.f32 %v3740, 1.442695
        %v3784 = vpow.pop %v3783
        %v3785 = vmul.f32 %v3741, 1.442695
        %v3786 = vpow.pop %v3785
        %v3787 = vmul.f32 %v3742, 1.442695
        %v3788 = vpow.pop %v3787
        %v3789 = vmul.f32 %v3743, 1.442695
        %v3790 = vpow.pop %v3789
        %v3791 = vmul.f32 %v3744, 1.442695
        %v3792 = vpow.pop %v3791
        %v3793 = vmul.f32 %v3745, 1.442695
        %v3794 = vpow.pop %v3793
        %v3795 = vmul.f32 %v3746, 1.442695
        %v3796 = vpow.pop %v3795
        %v3797 = vmul.f32 %v3747, 1.442695
        %v3798 = vpow.pop %v3797
        %v3799 = vmul.f32 %v3748, 1.442695
        %v3800 = vpow.pop %v3799
        %v3801 = vmul.f32 %v3749, 1.442695
        %v3802 = vpow.pop %v3801
        %v3803 = vmul.f32 %v3750, 1.442695
        %v3804 = vpow.pop %v3803
        %v3805 = vmul.f32 %v3751, 1.442695
        %v3806 = vpow.pop %v3805
        %v3807 = vmul.f32 %v3752, 1.442695
        %v3808 = vpow.pop %v3807
        %v3809 = vmul.f32 %v3753, 1.442695
        %v3810 = vpow.pop %v3809
        %v3811 = vmul.f32 %v3754, 1.442695
        %v3812 = vpow.pop %v3811
        %v3813 = vmul.f32 %v3755, 1.442695
        %v3814 = vpow.pop %v3813
        %v3815 = vmul.f32 %v3756, 1.442695
        %v3816 = vpow.pop %v3815
        %v3817 = vmul.f32 %v3757, 1.442695
        %v3818 = vpow.pop %v3817
        %v3819 = vmul.f32 %v3758, 1.442695
        %v3820 = vpow.pop %v3819
        %v3821 = vmul.f32 %v3759, 1.442695
        %v3822 = vpow.pop %v3821
        %v3823 = vmul.f32 %v3760, 1.442695
        %v3824 = vpow.pop %v3823
        %v3825 = vadd.f32 %v3762, 1.0
        %v3826 = vadd.f32 %v3764, 1.0
        %v3827 = vadd.f32 %v3766, 1.0
        %v3828 = vadd.f32 %v3768, 1.0
        %v3829 = vadd.f32 %v3770, 1.0
        %v3830 = vadd.f32 %v3772, 1.0
        %v3831 = vadd.f32 %v3774, 1.0
        %v3832 = vadd.f32 %v3776, 1.0
        %v3833 = vadd.f32 %v3778, 1.0
        %v3834 = vadd.f32 %v3780, 1.0
        %v3835 = vadd.f32 %v3782, 1.0
        %v3836 = vadd.f32 %v3784, 1.0
        %v3837 = vadd.f32 %v3786, 1.0
        %v3838 = vadd.f32 %v3788, 1.0
        %v3839 = vadd.f32 %v3790, 1.0
        %v3840 = vadd.f32 %v3792, 1.0
        %v3841 = vadd.f32 %v3794, 1.0
        %v3842 = vadd.f32 %v3796, 1.0
        %v3843 = vadd.f32 %v3798, 1.0
        %v3844 = vadd.f32 %v3800, 1.0
        %v3845 = vadd.f32 %v3802, 1.0
        %v3846 = vadd.f32 %v3804, 1.0
        %v3847 = vadd.f32 %v3806, 1.0
        %v3848 = vadd.f32 %v3808, 1.0
        %v3849 = vadd.f32 %v3810, 1.0
        %v3850 = vadd.f32 %v3812, 1.0
        %v3851 = vadd.f32 %v3814, 1.0
        %v3852 = vadd.f32 %v3816, 1.0
        %v3853 = vadd.f32 %v3818, 1.0
        %v3854 = vadd.f32 %v3820, 1.0
        %v3855 = vadd.f32 %v3822, 1.0
        %v3856 = vadd.f32 %v3824, 1.0
        %v3857 = vrcp.pop %v3825
        %v3858 = vmul.f32 1.0, %v3857
        %v3859 = vrcp.pop %v3826
        %v3860 = vmul.f32 1.0, %v3859
        %v3861 = vrcp.pop %v3827
        %v3862 = vmul.f32 1.0, %v3861
        %v3863 = vrcp.pop %v3828
        %v3864 = vmul.f32 1.0, %v3863
        %v3865 = vrcp.pop %v3829
        %v3866 = vmul.f32 1.0, %v3865
        %v3867 = vrcp.pop %v3830
        %v3868 = vmul.f32 1.0, %v3867
        %v3869 = vrcp.pop %v3831
        %v3870 = vmul.f32 1.0, %v3869
        %v3871 = vrcp.pop %v3832
        %v3872 = vmul.f32 1.0, %v3871
        %v3873 = vrcp.pop %v3833
        %v3874 = vmul.f32 1.0, %v3873
        %v3875 = vrcp.pop %v3834
        %v3876 = vmul.f32 1.0, %v3875
        %v3877 = vrcp.pop %v3835
        %v3878 = vmul.f32 1.0, %v3877
        %v3879 = vrcp.pop %v3836
        %v3880 = vmul.f32 1.0, %v3879
        %v3881 = vrcp.pop %v3837
        %v3882 = vmul.f32 1.0, %v3881
        %v3883 = vrcp.pop %v3838
        %v3884 = vmul.f32 1.0, %v3883
        %v3885 = vrcp.pop %v3839
        %v3886 = vmul.f32 1.0, %v3885
        %v3887 = vrcp.pop %v3840
        %v3888 = vmul.f32 1.0, %v3887
        %v3889 = vrcp.pop %v3841
        %v3890 = vmul.f32 1.0, %v3889
        %v3891 = vrcp.pop %v3842
        %v3892 = vmul.f32 1.0, %v3891
        %v3893 = vrcp.pop %v3843
        %v3894 = vmul.f32 1.0, %v3893
        %v3895 = vrcp.pop %v3844
        %v3896 = vmul.f32 1.0, %v3895
        %v3897 = vrcp.pop %v3845
        %v3898 = vmul.f32 1.0, %v3897
        %v3899 = vrcp.pop %v3846
        %v3900 = vmul.f32 1.0, %v3899
        %v3901 = vrcp.pop %v3847
        %v3902 = vmul.f32 1.0, %v3901
        %v3903 = vrcp.pop %v3848
        %v3904 = vmul.f32 1.0, %v3903
        %v3905 = vrcp.pop %v3849
        %v3906 = vmul.f32 1.0, %v3905
        %v3907 = vrcp.pop %v3850
        %v3908 = vmul.f32 1.0, %v3907
        %v3909 = vrcp.pop %v3851
        %v3910 = vmul.f32 1.0, %v3909
        %v3911 = vrcp.pop %v3852
        %v3912 = vmul.f32 1.0, %v3911
        %v3913 = vrcp.pop %v3853
        %v3914 = vmul.f32 1.0, %v3913
        %v3915 = vrcp.pop %v3854
        %v3916 = vmul.f32 1.0, %v3915
        %v3917 = vrcp.pop %v3855
        %v3918 = vmul.f32 1.0, %v3917
        %v3919 = vrcp.pop %v3856
        %v3920 = vmul.f32 1.0, %v3919
        %v3921 = vmul.f32 %v3571, %v3858
        %v3922 = vmul.f32 %v3576, %v3860
        %v3923 = vmul.f32 %v3581, %v3862
        %v3924 = vmul.f32 %v3586, %v3864
        %v3925 = vmul.f32 %v3591, %v3866
        %v3926 = vmul.f32 %v3596, %v3868
        %v3927 = vmul.f32 %v3601, %v3870
        %v3928 = vmul.f32 %v3606, %v3872
        %v3929 = vmul.f32 %v3611, %v3874
        %v3930 = vmul.f32 %v3616, %v3876
        %v3931 = vmul.f32 %v3621, %v3878
        %v3932 = vmul.f32 %v3626, %v3880
        %v3933 = vmul.f32 %v3631, %v3882
        %v3934 = vmul.f32 %v3636, %v3884
        %v3935 = vmul.f32 %v3641, %v3886
        %v3936 = vmul.f32 %v3646, %v3888
        %v3937 = vmul.f32 %v3651, %v3890
        %v3938 = vmul.f32 %v3656, %v3892
        %v3939 = vmul.f32 %v3661, %v3894
        %v3940 = vmul.f32 %v3666, %v3896
        %v3941 = vmul.f32 %v3671, %v3898
        %v3942 = vmul.f32 %v3676, %v3900
        %v3943 = vmul.f32 %v3681, %v3902
        %v3944 = vmul.f32 %v3686, %v3904
        %v3945 = vmul.f32 %v3691, %v3906
        %v3946 = vmul.f32 %v3696, %v3908
        %v3947 = vmul.f32 %v3701, %v3910
        %v3948 = vmul.f32 %v3706, %v3912
        %v3949 = vmul.f32 %v3711, %v3914
        %v3950 = vmul.f32 %v3716, %v3916
        %v3951 = vmul.f32 %v3721, %v3918
        %v3952 = vmul.f32 %v3726, %v3920
        %3953 = vst.msk [vmem:[#allocation5] sm:$0xff] %vm358, %v3921
        %3954 = vst.msk [vmem:[#allocation5 + $0x8] sm:$0xff] %vm358, %v3922
        %3955 = vst.msk [vmem:[#allocation5 + $0x10] sm:$0xff] %vm358, %v3923
        %3956 = vst.msk [vmem:[#allocation5 + $0x18] sm:$0xff] %vm358, %v3924
        %3957 = vst.msk [vmem:[#allocation5 + $0x20] sm:$0xff] %vm358, %v3925
        %3958 = vst.msk [vmem:[#allocation5 + $0x28] sm:$0xff] %vm358, %v3926
        %3959 = vst.msk [vmem:[#allocation5 + $0x30] sm:$0xff] %vm358, %v3927
        %3960 = vst.msk [vmem:[#allocation5 + $0x38] sm:$0xff] %vm358, %v3928
        %3961 = vst.msk [vmem:[#allocation5 + $0x40] sm:$0xff] %vm358, %v3929
        %3962 = vst.msk [vmem:[#allocation5 + $0x48] sm:$0xff] %vm358, %v3930
        %3963 = vst.msk [vmem:[#allocation5 + $0x50] sm:$0xff] %vm358, %v3931
        %3964 = vst.msk [vmem:[#allocation5 + $0x58] sm:$0xff] %vm358, %v3932
        %3965 = vst.msk [vmem:[#allocation5 + $0x60] sm:$0xff] %vm358, %v3933
        %3966 = vst.msk [vmem:[#allocation5 + $0x68] sm:$0xff] %vm358, %v3934
        %3967 = vst.msk [vmem:[#allocation5 + $0x70] sm:$0xff] %vm358, %v3935
        %3968 = vst.msk [vmem:[#allocation5 + $0x78] sm:$0xff] %vm358, %v3936
        %3969 = vst.msk [vmem:[#allocation5 + $0x80] sm:$0xff] %vm358, %v3937
        %3970 = vst.msk [vmem:[#allocation5 + $0x88] sm:$0xff] %vm358, %v3938
        %3971 = vst.msk [vmem:[#allocation5 + $0x90] sm:$0xff] %vm358, %v3939
        %3972 = vst.msk [vmem:[#allocation5 + $0x98] sm:$0xff] %vm358, %v3940
        %3973 = vst.msk [vmem:[#allocation5 + $0xa0] sm:$0xff] %vm358, %v3941
        %3974 = vst.msk [vmem:[#allocation5 + $0xa8] sm:$0xff] %vm358, %v3942
        %3975 = vst.msk [vmem:[#allocation5 + $0xb0] sm:$0xff] %vm358, %v3943
        %3976 = vst.msk [vmem:[#allocation5 + $0xb8] sm:$0xff] %vm358, %v3944
        %3977 = vst.msk [vmem:[#allocation5 + $0xc0] sm:$0xff] %vm358, %v3945
        %3978 = vst.msk [vmem:[#allocation5 + $0xc8] sm:$0xff] %vm358, %v3946
        %3979 = vst.msk [vmem:[#allocation5 + $0xd0] sm:$0xff] %vm358, %v3947
        %3980 = vst.msk [vmem:[#allocation5 + $0xd8] sm:$0xff] %vm358, %v3948
        %3981 = vst.msk [vmem:[#allocation5 + $0xe0] sm:$0xff] %vm358, %v3949
        %3982 = vst.msk [vmem:[#allocation5 + $0xe8] sm:$0xff] %vm358, %v3950
        %3983 = vst.msk [vmem:[#allocation5 + $0xf0] sm:$0xff] %vm358, %v3951
        %3984 = vst.msk [vmem:[#allocation5 + $0xf8] sm:$0xff] %vm358, %v3952
        %s3985 = scalar_lea.vmem [#allocation3], 48
        %3986 = vst.msk [vmem:[%s3985 + $0x2] sm:$0xff] %vm358, %v3921
        %3987 = vst.msk [vmem:[%s3985 + $0xa] sm:$0xff] %vm358, %v3922
        %3988 = vst.msk [vmem:[%s3985 + $0x1a] sm:$0xff] %vm358, %v3923
        %3989 = vst.msk [vmem:[%s3985 + $0x22] sm:$0xff] %vm358, %v3924
        %3990 = vst.msk [vmem:[%s3985 + $0x32] sm:$0xff] %vm358, %v3925
        %3991 = vst.msk [vmem:[%s3985 + $0x3a] sm:$0xff] %vm358, %v3926
        %3992 = vst.msk [vmem:[%s3985 + $0x4a] sm:$0xff] %vm358, %v3927
        %3993 = vst.msk [vmem:[%s3985 + $0x52] sm:$0xff] %vm358, %v3928
        %3994 = vst.msk [vmem:[%s3985 + $0x62] sm:$0xff] %vm358, %v3929
        %3995 = vst.msk [vmem:[%s3985 + $0x6a] sm:$0xff] %vm358, %v3930
        %3996 = vst.msk [vmem:[%s3985 + $0x7a] sm:$0xff] %vm358, %v3931
        %3997 = vst.msk [vmem:[%s3985 + $0x82] sm:$0xff] %vm358, %v3932
        %3998 = vst.msk [vmem:[%s3985 + $0x92] sm:$0xff] %vm358, %v3933
        %3999 = vst.msk [vmem:[%s3985 + $0x9a] sm:$0xff] %vm358, %v3934
        %4000 = vst.msk [vmem:[%s3985 + $0xaa] sm:$0xff] %vm358, %v3935
        %4001 = vst.msk [vmem:[%s3985 + $0xb2] sm:$0xff] %vm358, %v3936
        %4002 = vst.msk [vmem:[%s3985 + $0xc2] sm:$0xff] %vm358, %v3937
        %4003 = vst.msk [vmem:[%s3985 + $0xca] sm:$0xff] %vm358, %v3938
        %4004 = vst.msk [vmem:[%s3985 + $0xda] sm:$0xff] %vm358, %v3939
        %4005 = vst.msk [vmem:[%s3985 + $0xe2] sm:$0xff] %vm358, %v3940
        %4006 = vst.msk [vmem:[%s3985 + $0xf2] sm:$0xff] %vm358, %v3941
        %4007 = vst.msk [vmem:[%s3985 + $0xfa] sm:$0xff] %vm358, %v3942
        %4008 = vst.msk [vmem:[%s3985 + $0x10a] sm:$0xff] %vm358, %v3943
        %4009 = vst.msk [vmem:[%s3985 + $0x112] sm:$0xff] %vm358, %v3944
        %4010 = vst.msk [vmem:[%s3985 + $0x122] sm:$0xff] %vm358, %v3945
        %4011 = vst.msk [vmem:[%s3985 + $0x12a] sm:$0xff] %vm358, %v3946
        %4012 = vst.msk [vmem:[%s3985 + $0x13a] sm:$0xff] %vm358, %v3947
        %4013 = vst.msk [vmem:[%s3985 + $0x142] sm:$0xff] %vm358, %v3948
        %4014 = vst.msk [vmem:[%s3985 + $0x152] sm:$0xff] %vm358, %v3949
        %4015 = vst.msk [vmem:[%s3985 + $0x15a] sm:$0xff] %vm358, %v3950
        %4016 = vst.msk [vmem:[%s3985 + $0x16a] sm:$0xff] %vm358, %v3951
        %4017 = vst.msk [vmem:[%s3985 + $0x172] sm:$0xff] %vm358, %v3952
        %v4018 = vld [vmem:[#allocation3] sm:$0xff]
        %v4019 = vld [vmem:[#allocation3 + $0x8] sm:$0xff]
        %v4020 = vld [vmem:[#allocation3 + $0x18] sm:$0xff]
        %v4021 = vld [vmem:[#allocation3 + $0x20] sm:$0xff]
        %v4022 = vld [vmem:[#allocation3 + $0x30] sm:$0xff]
        %v4023 = vld [vmem:[#allocation3 + $0x38] sm:$0xff]
        %v4024 = vld [vmem:[#allocation3 + $0x48] sm:$0xff]
        %v4025 = vld [vmem:[#allocation3 + $0x50] sm:$0xff]
        %v4026 = vld [vmem:[#allocation3 + $0x60] sm:$0xff]
        %v4027 = vld [vmem:[#allocation3 + $0x68] sm:$0xff]
        %v4028 = vld [vmem:[#allocation3 + $0x78] sm:$0xff]
        %v4029 = vld [vmem:[#allocation3 + $0x80] sm:$0xff]
        %v4030 = vld [vmem:[#allocation3 + $0x90] sm:$0xff]
        %v4031 = vld [vmem:[#allocation3 + $0x98] sm:$0xff]
        %v4032 = vld [vmem:[#allocation3 + $0xa8] sm:$0xff]
        %v4033 = vld [vmem:[#allocation3 + $0xb0] sm:$0xff]
        %v4034 = vld [vmem:[#allocation3 + $0xc0] sm:$0xff]
        %v4035 = vld [vmem:[#allocation3 + $0xc8] sm:$0xff]
        %v4036 = vld [vmem:[#allocation3 + $0xd8] sm:$0xff]
        %v4037 = vld [vmem:[#allocation3 + $0xe0] sm:$0xff]
        %v4038 = vld [vmem:[#allocation3 + $0xf0] sm:$0xff]
        %v4039 = vld [vmem:[#allocation3 + $0xf8] sm:$0xff]
        %v4040 = vld [vmem:[#allocation3 + $0x108] sm:$0xff]
        %v4041 = vld [vmem:[#allocation3 + $0x110] sm:$0xff]
        %v4042 = vld [vmem:[#allocation3 + $0x120] sm:$0xff]
        %v4043 = vld [vmem:[#allocation3 + $0x128] sm:$0xff]
        %v4044 = vld [vmem:[#allocation3 + $0x138] sm:$0xff]
        %v4045 = vld [vmem:[#allocation3 + $0x140] sm:$0xff]
        %v4046 = vld [vmem:[#allocation3 + $0x150] sm:$0xff]
        %v4047 = vld [vmem:[#allocation3 + $0x158] sm:$0xff]
        %v4048 = vld [vmem:[#allocation3 + $0x168] sm:$0xff]
        %v4049 = vld [vmem:[#allocation3 + $0x170] sm:$0xff]
        %v4050 = vld [vmem:[#allocation3 + $0x180] sm:$0xff]
        %v4051 = vld [vmem:[#allocation3 + $0x188] sm:$0xff]
        %v4052 = vld [vmem:[#allocation3 + $0x198] sm:$0xff]
        %v4053 = vld [vmem:[#allocation3 + $0x1a0] sm:$0xff]
        %v4054 = vld [vmem:[#allocation3 + $0x1b0] sm:$0xff]
        %v4055 = vld [vmem:[#allocation3 + $0x1b8] sm:$0xff]
        %v4056 = vld [vmem:[#allocation3 + $0x1c8] sm:$0xff]
        %v4057 = vld [vmem:[#allocation3 + $0x1d0] sm:$0xff]
        %v4058 = vld [vmem:[#allocation3 + $0x1] sm:$0xff]
        %v4059 = vld [vmem:[#allocation3 + $0x9] sm:$0xff]
        %v4060 = vld [vmem:[#allocation3 + $0x19] sm:$0xff]
        %v4061 = vld [vmem:[#allocation3 + $0x21] sm:$0xff]
        %v4062 = vld [vmem:[#allocation3 + $0x31] sm:$0xff]
        %v4063 = vld [vmem:[#allocation3 + $0x39] sm:$0xff]
        %v4064 = vld [vmem:[#allocation3 + $0x49] sm:$0xff]
        %v4065 = vld [vmem:[#allocation3 + $0x51] sm:$0xff]
        %v4066 = vld [vmem:[#allocation3 + $0x61] sm:$0xff]
        %v4067 = vld [vmem:[#allocation3 + $0x69] sm:$0xff]
        %v4068 = vld [vmem:[#allocation3 + $0x79] sm:$0xff]
        %v4069 = vld [vmem:[#allocation3 + $0x81] sm:$0xff]
        %v4070 = vld [vmem:[#allocation3 + $0x91] sm:$0xff]
        %v4071 = vld [vmem:[#allocation3 + $0x99] sm:$0xff]
        %v4072 = vld [vmem:[#allocation3 + $0xa9] sm:$0xff]
        %v4073 = vld [vmem:[#allocation3 + $0xb1] sm:$0xff]
        %v4074 = vld [vmem:[#allocation3 + $0xc1] sm:$0xff]
        %v4075 = vld [vmem:[#allocation3 + $0xc9] sm:$0xff]
        %v4076 = vld [vmem:[#allocation3 + $0xd9] sm:$0xff]
        %v4077 = vld [vmem:[#allocation3 + $0xe1] sm:$0xff]
        %v4078 = vld [vmem:[#allocation3 + $0xf1] sm:$0xff]
        %v4079 = vld [vmem:[#allocation3 + $0xf9] sm:$0xff]
        %v4080 = vld [vmem:[#allocation3 + $0x109] sm:$0xff]
        %v4081 = vld [vmem:[#allocation3 + $0x111] sm:$0xff]
        %v4082 = vld [vmem:[#allocation3 + $0x121] sm:$0xff]
        %v4083 = vld [vmem:[#allocation3 + $0x129] sm:$0xff]
        %v4084 = vld [vmem:[#allocation3 + $0x139] sm:$0xff]
        %v4085 = vld [vmem:[#allocation3 + $0x141] sm:$0xff]
        %v4086 = vld [vmem:[#allocation3 + $0x151] sm:$0xff]
        %v4087 = vld [vmem:[#allocation3 + $0x159] sm:$0xff]
        %v4088 = vld [vmem:[#allocation3 + $0x169] sm:$0xff]
        %v4089 = vld [vmem:[#allocation3 + $0x171] sm:$0xff]
        %v4090 = vld [vmem:[#allocation3 + $0x181] sm:$0xff]
        %v4091 = vld [vmem:[#allocation3 + $0x189] sm:$0xff]
        %v4092 = vld [vmem:[#allocation3 + $0x199] sm:$0xff]
        %v4093 = vld [vmem:[#allocation3 + $0x1a1] sm:$0xff]
        %v4094 = vld [vmem:[#allocation3 + $0x1b1] sm:$0xff]
        %v4095 = vld [vmem:[#allocation3 + $0x1b9] sm:$0xff]
        %v4096 = vld [vmem:[#allocation3 + $0x1c9] sm:$0xff]
        %v4097 = vld [vmem:[#allocation3 + $0x1d1] sm:$0xff]
        %v4098 = vmax.f32 %v4018, %v4058
        %v4099 = vmax.f32 %v4019, %v4059
        %v4100 = vmax.f32 %v4020, %v4060
        %v4101 = vmax.f32 %v4021, %v4061
        %v4102 = vmax.f32 %v4022, %v4062
        %v4103 = vmax.f32 %v4023, %v4063
        %v4104 = vmax.f32 %v4024, %v4064
        %v4105 = vmax.f32 %v4025, %v4065
        %v4106 = vmax.f32 %v4026, %v4066
        %v4107 = vmax.f32 %v4027, %v4067
        %v4108 = vmax.f32 %v4028, %v4068
        %v4109 = vmax.f32 %v4029, %v4069
        %v4110 = vmax.f32 %v4030, %v4070
        %v4111 = vmax.f32 %v4031, %v4071
        %v4112 = vmax.f32 %v4032, %v4072
        %v4113 = vmax.f32 %v4033, %v4073
        %v4114 = vmax.f32 %v4034, %v4074
        %v4115 = vmax.f32 %v4035, %v4075
        %v4116 = vmax.f32 %v4036, %v4076
        %v4117 = vmax.f32 %v4037, %v4077
        %v4118 = vmax.f32 %v4038, %v4078
        %v4119 = vmax.f32 %v4039, %v4079
        %v4120 = vmax.f32 %v4040, %v4080
        %v4121 = vmax.f32 %v4041, %v4081
        %v4122 = vmax.f32 %v4042, %v4082
        %v4123 = vmax.f32 %v4043, %v4083
        %v4124 = vmax.f32 %v4044, %v4084
        %v4125 = vmax.f32 %v4045, %v4085
        %v4126 = vmax.f32 %v4046, %v4086
        %v4127 = vmax.f32 %v4047, %v4087
        %v4128 = vmax.f32 %v4048, %v4088
        %v4129 = vmax.f32 %v4049, %v4089
        %v4130 = vmax.f32 %v4050, %v4090
        %v4131 = vmax.f32 %v4051, %v4091
        %v4132 = vmax.f32 %v4052, %v4092
        %v4133 = vmax.f32 %v4053, %v4093
        %v4134 = vmax.f32 %v4054, %v4094
        %v4135 = vmax.f32 %v4055, %v4095
        %v4136 = vmax.f32 %v4056, %v4096
        %v4137 = vmax.f32 %v4057, %v4097
        %v4138 = vld [vmem:[#allocation3 + $0x2] sm:$0xff]
        %v4139 = vld [vmem:[#allocation3 + $0xa] sm:$0xff]
        %v4140 = vld [vmem:[#allocation3 + $0x1a] sm:$0xff]
        %v4141 = vld [vmem:[#allocation3 + $0x22] sm:$0xff]
        %v4142 = vld [vmem:[#allocation3 + $0x32] sm:$0xff]
        %v4143 = vld [vmem:[#allocation3 + $0x3a] sm:$0xff]
        %v4144 = vld [vmem:[#allocation3 + $0x4a] sm:$0xff]
        %v4145 = vld [vmem:[#allocation3 + $0x52] sm:$0xff]
        %v4146 = vld [vmem:[#allocation3 + $0x62] sm:$0xff]
        %v4147 = vld [vmem:[#allocation3 + $0x6a] sm:$0xff]
        %v4148 = vld [vmem:[#allocation3 + $0x7a] sm:$0xff]
        %v4149 = vld [vmem:[#allocation3 + $0x82] sm:$0xff]
        %v4150 = vld [vmem:[#allocation3 + $0x92] sm:$0xff]
        %v4151 = vld [vmem:[#allocation3 + $0x9a] sm:$0xff]
        %v4152 = vld [vmem:[#allocation3 + $0xaa] sm:$0xff]
        %v4153 = vld [vmem:[#allocation3 + $0xb2] sm:$0xff]
        %v4154 = vld [vmem:[#allocation3 + $0xc2] sm:$0xff]
        %v4155 = vld [vmem:[#allocation3 + $0xca] sm:$0xff]
        %v4156 = vld [vmem:[#allocation3 + $0xda] sm:$0xff]
        %v4157 = vld [vmem:[#allocation3 + $0xe2] sm:$0xff]
        %v4158 = vld [vmem:[#allocation3 + $0xf2] sm:$0xff]
        %v4159 = vld [vmem:[#allocation3 + $0xfa] sm:$0xff]
        %v4160 = vld [vmem:[#allocation3 + $0x10a] sm:$0xff]
        %v4161 = vld [vmem:[#allocation3 + $0x112] sm:$0xff]
        %v4162 = vld [vmem:[#allocation3 + $0x122] sm:$0xff]
        %v4163 = vld [vmem:[#allocation3 + $0x12a] sm:$0xff]
        %v4164 = vld [vmem:[#allocation3 + $0x13a] sm:$0xff]
        %v4165 = vld [vmem:[#allocation3 + $0x142] sm:$0xff]
        %v4166 = vld [vmem:[#allocation3 + $0x152] sm:$0xff]
        %v4167 = vld [vmem:[#allocation3 + $0x15a] sm:$0xff]
        %v4168 = vld [vmem:[#allocation3 + $0x16a] sm:$0xff]
        %v4169 = vld [vmem:[#allocation3 + $0x172] sm:$0xff]
        %v4170 = vld [vmem:[#allocation3 + $0x182] sm:$0xff]
        %v4171 = vld [vmem:[#allocation3 + $0x18a] sm:$0xff]
        %v4172 = vld [vmem:[#allocation3 + $0x19a] sm:$0xff]
        %v4173 = vld [vmem:[#allocation3 + $0x1a2] sm:$0xff]
        %v4174 = vld [vmem:[#allocation3 + $0x1b2] sm:$0xff]
        %v4175 = vld [vmem:[#allocation3 + $0x1ba] sm:$0xff]
        %v4176 = vld [vmem:[#allocation3 + $0x1ca] sm:$0xff]
        %v4177 = vld [vmem:[#allocation3 + $0x1d2] sm:$0xff]
        %v4178 = vmax.f32 %v4098, %v4138
        %v4179 = vmax.f32 %v4099, %v4139
        %v4180 = vmax.f32 %v4100, %v4140
        %v4181 = vmax.f32 %v4101, %v4141
        %v4182 = vmax.f32 %v4102, %v4142
        %v4183 = vmax.f32 %v4103, %v4143
        %v4184 = vmax.f32 %v4104, %v4144
        %v4185 = vmax.f32 %v4105, %v4145
        %v4186 = vmax.f32 %v4106, %v4146
        %v4187 = vmax.f32 %v4107, %v4147
        %v4188 = vmax.f32 %v4108, %v4148
        %v4189 = vmax.f32 %v4109, %v4149
        %v4190 = vmax.f32 %v4110, %v4150
        %v4191 = vmax.f32 %v4111, %v4151
        %v4192 = vmax.f32 %v4112, %v4152
        %v4193 = vmax.f32 %v4113, %v4153
        %v4194 = vmax.f32 %v4114, %v4154
        %v4195 = vmax.f32 %v4115, %v4155
        %v4196 = vmax.f32 %v4116, %v4156
        %v4197 = vmax.f32 %v4117, %v4157
        %v4198 = vmax.f32 %v4118, %v4158
        %v4199 = vmax.f32 %v4119, %v4159
        %v4200 = vmax.f32 %v4120, %v4160
        %v4201 = vmax.f32 %v4121, %v4161
        %v4202 = vmax.f32 %v4122, %v4162
        %v4203 = vmax.f32 %v4123, %v4163
        %v4204 = vmax.f32 %v4124, %v4164
        %v4205 = vmax.f32 %v4125, %v4165
        %v4206 = vmax.f32 %v4126, %v4166
        %v4207 = vmax.f32 %v4127, %v4167
        %v4208 = vmax.f32 %v4128, %v4168
        %v4209 = vmax.f32 %v4129, %v4169
        %v4210 = vmax.f32 %v4130, %v4170
        %v4211 = vmax.f32 %v4131, %v4171
        %v4212 = vmax.f32 %v4132, %v4172
        %v4213 = vmax.f32 %v4133, %v4173
        %v4214 = vmax.f32 %v4134, %v4174
        %v4215 = vmax.f32 %v4135, %v4175
        %v4216 = vmax.f32 %v4136, %v4176
        %v4217 = vmax.f32 %v4137, %v4177
        %v4218 = vld [vmem:[#allocation3 + $0x3] sm:$0xff]
        %v4219 = vld [vmem:[#allocation3 + $0xb] sm:$0xff]
        %v4220 = vld [vmem:[#allocation3 + $0x1b] sm:$0xff]
        %v4221 = vld [vmem:[#allocation3 + $0x23] sm:$0xff]
        %v4222 = vld [vmem:[#allocation3 + $0x33] sm:$0xff]
        %v4223 = vld [vmem:[#allocation3 + $0x3b] sm:$0xff]
        %v4224 = vld [vmem:[#allocation3 + $0x4b] sm:$0xff]
        %v4225 = vld [vmem:[#allocation3 + $0x53] sm:$0xff]
        %v4226 = vld [vmem:[#allocation3 + $0x63] sm:$0xff]
        %v4227 = vld [vmem:[#allocation3 + $0x6b] sm:$0xff]
        %v4228 = vld [vmem:[#allocation3 + $0x7b] sm:$0xff]
        %v4229 = vld [vmem:[#allocation3 + $0x83] sm:$0xff]
        %v4230 = vld [vmem:[#allocation3 + $0x93] sm:$0xff]
        %v4231 = vld [vmem:[#allocation3 + $0x9b] sm:$0xff]
        %v4232 = vld [vmem:[#allocation3 + $0xab] sm:$0xff]
        %v4233 = vld [vmem:[#allocation3 + $0xb3] sm:$0xff]
        %v4234 = vld [vmem:[#allocation3 + $0xc3] sm:$0xff]
        %v4235 = vld [vmem:[#allocation3 + $0xcb] sm:$0xff]
        %v4236 = vld [vmem:[#allocation3 + $0xdb] sm:$0xff]
        %v4237 = vld [vmem:[#allocation3 + $0xe3] sm:$0xff]
        %v4238 = vld [vmem:[#allocation3 + $0xf3] sm:$0xff]
        %v4239 = vld [vmem:[#allocation3 + $0xfb] sm:$0xff]
        %v4240 = vld [vmem:[#allocation3 + $0x10b] sm:$0xff]
        %v4241 = vld [vmem:[#allocation3 + $0x113] sm:$0xff]
        %v4242 = vld [vmem:[#allocation3 + $0x123] sm:$0xff]
        %v4243 = vld [vmem:[#allocation3 + $0x12b] sm:$0xff]
        %v4244 = vld [vmem:[#allocation3 + $0x13b] sm:$0xff]
        %v4245 = vld [vmem:[#allocation3 + $0x143] sm:$0xff]
        %v4246 = vld [vmem:[#allocation3 + $0x153] sm:$0xff]
        %v4247 = vld [vmem:[#allocation3 + $0x15b] sm:$0xff]
        %v4248 = vld [vmem:[#allocation3 + $0x16b] sm:$0xff]
        %v4249 = vld [vmem:[#allocation3 + $0x173] sm:$0xff]
        %v4250 = vld [vmem:[#allocation3 + $0x183] sm:$0xff]
        %v4251 = vld [vmem:[#allocation3 + $0x18b] sm:$0xff]
        %v4252 = vld [vmem:[#allocation3 + $0x19b] sm:$0xff]
        %v4253 = vld [vmem:[#allocation3 + $0x1a3] sm:$0xff]
        %v4254 = vld [vmem:[#allocation3 + $0x1b3] sm:$0xff]
        %v4255 = vld [vmem:[#allocation3 + $0x1bb] sm:$0xff]
        %v4256 = vld [vmem:[#allocation3 + $0x1cb] sm:$0xff]
        %v4257 = vld [vmem:[#allocation3 + $0x1d3] sm:$0xff]
        %v4258 = vmax.f32 %v4178, %v4218
        %v4259 = vmax.f32 %v4179, %v4219
        %v4260 = vmax.f32 %v4180, %v4220
        %v4261 = vmax.f32 %v4181, %v4221
        %v4262 = vmax.f32 %v4182, %v4222
        %v4263 = vmax.f32 %v4183, %v4223
        %v4264 = vmax.f32 %v4184, %v4224
        %v4265 = vmax.f32 %v4185, %v4225
        %v4266 = vmax.f32 %v4186, %v4226
        %v4267 = vmax.f32 %v4187, %v4227
        %v4268 = vmax.f32 %v4188, %v4228
        %v4269 = vmax.f32 %v4189, %v4229
        %v4270 = vmax.f32 %v4190, %v4230
        %v4271 = vmax.f32 %v4191, %v4231
        %v4272 = vmax.f32 %v4192, %v4232
        %v4273 = vmax.f32 %v4193, %v4233
        %v4274 = vmax.f32 %v4194, %v4234
        %v4275 = vmax.f32 %v4195, %v4235
        %v4276 = vmax.f32 %v4196, %v4236
        %v4277 = vmax.f32 %v4197, %v4237
        %v4278 = vmax.f32 %v4198, %v4238
        %v4279 = vmax.f32 %v4199, %v4239
        %v4280 = vmax.f32 %v4200, %v4240
        %v4281 = vmax.f32 %v4201, %v4241
        %v4282 = vmax.f32 %v4202, %v4242
        %v4283 = vmax.f32 %v4203, %v4243
        %v4284 = vmax.f32 %v4204, %v4244
        %v4285 = vmax.f32 %v4205, %v4245
        %v4286 = vmax.f32 %v4206, %v4246
        %v4287 = vmax.f32 %v4207, %v4247
        %v4288 = vmax.f32 %v4208, %v4248
        %v4289 = vmax.f32 %v4209, %v4249
        %v4290 = vmax.f32 %v4210, %v4250
        %v4291 = vmax.f32 %v4211, %v4251
        %v4292 = vmax.f32 %v4212, %v4252
        %v4293 = vmax.f32 %v4213, %v4253
        %v4294 = vmax.f32 %v4214, %v4254
        %v4295 = vmax.f32 %v4215, %v4255
        %v4296 = vmax.f32 %v4216, %v4256
        %v4297 = vmax.f32 %v4217, %v4257
        %v4298 = vld [vmem:[#allocation3 + $0x4] sm:$0xff]
        %v4299 = vld [vmem:[#allocation3 + $0xc] sm:$0xff]
        %v4300 = vld [vmem:[#allocation3 + $0x1c] sm:$0xff]
        %v4301 = vld [vmem:[#allocation3 + $0x24] sm:$0xff]
        %v4302 = vld [vmem:[#allocation3 + $0x34] sm:$0xff]
        %v4303 = vld [vmem:[#allocation3 + $0x3c] sm:$0xff]
        %v4304 = vld [vmem:[#allocation3 + $0x4c] sm:$0xff]
        %v4305 = vld [vmem:[#allocation3 + $0x54] sm:$0xff]
        %v4306 = vld [vmem:[#allocation3 + $0x64] sm:$0xff]
        %v4307 = vld [vmem:[#allocation3 + $0x6c] sm:$0xff]
        %v4308 = vld [vmem:[#allocation3 + $0x7c] sm:$0xff]
        %v4309 = vld [vmem:[#allocation3 + $0x84] sm:$0xff]
        %v4310 = vld [vmem:[#allocation3 + $0x94] sm:$0xff]
        %v4311 = vld [vmem:[#allocation3 + $0x9c] sm:$0xff]
        %v4312 = vld [vmem:[#allocation3 + $0xac] sm:$0xff]
        %v4313 = vld [vmem:[#allocation3 + $0xb4] sm:$0xff]
        %v4314 = vld [vmem:[#allocation3 + $0xc4] sm:$0xff]
        %v4315 = vld [vmem:[#allocation3 + $0xcc] sm:$0xff]
        %v4316 = vld [vmem:[#allocation3 + $0xdc] sm:$0xff]
        %v4317 = vld [vmem:[#allocation3 + $0xe4] sm:$0xff]
        %v4318 = vld [vmem:[#allocation3 + $0xf4] sm:$0xff]
        %v4319 = vld [vmem:[#allocation3 + $0xfc] sm:$0xff]
        %v4320 = vld [vmem:[#allocation3 + $0x10c] sm:$0xff]
        %v4321 = vld [vmem:[#allocation3 + $0x114] sm:$0xff]
        %v4322 = vld [vmem:[#allocation3 + $0x124] sm:$0xff]
        %v4323 = vld [vmem:[#allocation3 + $0x12c] sm:$0xff]
        %v4324 = vld [vmem:[#allocation3 + $0x13c] sm:$0xff]
        %v4325 = vld [vmem:[#allocation3 + $0x144] sm:$0xff]
        %v4326 = vld [vmem:[#allocation3 + $0x154] sm:$0xff]
        %v4327 = vld [vmem:[#allocation3 + $0x15c] sm:$0xff]
        %v4328 = vld [vmem:[#allocation3 + $0x16c] sm:$0xff]
        %v4329 = vld [vmem:[#allocation3 + $0x174] sm:$0xff]
        %v4330 = vld [vmem:[#allocation3 + $0x184] sm:$0xff]
        %v4331 = vld [vmem:[#allocation3 + $0x18c] sm:$0xff]
        %v4332 = vld [vmem:[#allocation3 + $0x19c] sm:$0xff]
        %v4333 = vld [vmem:[#allocation3 + $0x1a4] sm:$0xff]
        %v4334 = vld [vmem:[#allocation3 + $0x1b4] sm:$0xff]
        %v4335 = vld [vmem:[#allocation3 + $0x1bc] sm:$0xff]
        %v4336 = vld [vmem:[#allocation3 + $0x1cc] sm:$0xff]
        %v4337 = vld [vmem:[#allocation3 + $0x1d4] sm:$0xff]
        %v4338 = vmax.f32 %v4258, %v4298
        %v4339 = vmax.f32 %v4259, %v4299
        %v4340 = vmax.f32 %v4260, %v4300
        %v4341 = vmax.f32 %v4261, %v4301
        %v4342 = vmax.f32 %v4262, %v4302
        %v4343 = vmax.f32 %v4263, %v4303
        %v4344 = vmax.f32 %v4264, %v4304
        %v4345 = vmax.f32 %v4265, %v4305
        %v4346 = vmax.f32 %v4266, %v4306
        %v4347 = vmax.f32 %v4267, %v4307
        %v4348 = vmax.f32 %v4268, %v4308
        %v4349 = vmax.f32 %v4269, %v4309
        %v4350 = vmax.f32 %v4270, %v4310
        %v4351 = vmax.f32 %v4271, %v4311
        %v4352 = vmax.f32 %v4272, %v4312
        %v4353 = vmax.f32 %v4273, %v4313
        %v4354 = vmax.f32 %v4274, %v4314
        %v4355 = vmax.f32 %v4275, %v4315
        %v4356 = vmax.f32 %v4276, %v4316
        %v4357 = vmax.f32 %v4277, %v4317
        %v4358 = vmax.f32 %v4278, %v4318
        %v4359 = vmax.f32 %v4279, %v4319
        %v4360 = vmax.f32 %v4280, %v4320
        %v4361 = vmax.f32 %v4281, %v4321
        %v4362 = vmax.f32 %v4282, %v4322
        %v4363 = vmax.f32 %v4283, %v4323
        %v4364 = vmax.f32 %v4284, %v4324
        %v4365 = vmax.f32 %v4285, %v4325
        %v4366 = vmax.f32 %v4286, %v4326
        %v4367 = vmax.f32 %v4287, %v4327
        %v4368 = vmax.f32 %v4288, %v4328
        %v4369 = vmax.f32 %v4289, %v4329
        %v4370 = vmax.f32 %v4290, %v4330
        %v4371 = vmax.f32 %v4291, %v4331
        %v4372 = vmax.f32 %v4292, %v4332
        %v4373 = vmax.f32 %v4293, %v4333
        %v4374 = vmax.f32 %v4294, %v4334
        %v4375 = vmax.f32 %v4295, %v4335
        %v4376 = vmax.f32 %v4296, %v4336
        %v4377 = vmax.f32 %v4297, %v4337
        %v4378 = vmax.f32 %v4338, %v4340
        %v4379 = vmax.f32 %v4339, %v4341
        %v4380 = vmax.f32 %v4340, %v4342
        %v4381 = vmax.f32 %v4341, %v4343
        %v4382 = vmax.f32 %v4342, %v4344
        %v4383 = vmax.f32 %v4343, %v4345
        %v4384 = vmax.f32 %v4344, %v4346
        %v4385 = vmax.f32 %v4345, %v4347
        %v4386 = vmax.f32 %v4346, %v4348
        %v4387 = vmax.f32 %v4347, %v4349
        %v4388 = vmax.f32 %v4348, %v4350
        %v4389 = vmax.f32 %v4349, %v4351
        %v4390 = vmax.f32 %v4350, %v4352
        %v4391 = vmax.f32 %v4351, %v4353
        %v4392 = vmax.f32 %v4352, %v4354
        %v4393 = vmax.f32 %v4353, %v4355
        %v4394 = vmax.f32 %v4354, %v4356
        %v4395 = vmax.f32 %v4355, %v4357
        %v4396 = vmax.f32 %v4356, %v4358
        %v4397 = vmax.f32 %v4357, %v4359
        %v4398 = vmax.f32 %v4358, %v4360
        %v4399 = vmax.f32 %v4359, %v4361
        %v4400 = vmax.f32 %v4360, %v4362
        %v4401 = vmax.f32 %v4361, %v4363
        %v4402 = vmax.f32 %v4362, %v4364
        %v4403 = vmax.f32 %v4363, %v4365
        %v4404 = vmax.f32 %v4364, %v4366
        %v4405 = vmax.f32 %v4365, %v4367
        %v4406 = vmax.f32 %v4366, %v4368
        %v4407 = vmax.f32 %v4367, %v4369
        %v4408 = vmax.f32 %v4368, %v4370
        %v4409 = vmax.f32 %v4369, %v4371
        %v4410 = vmax.f32 %v4378, %v4342
        %v4411 = vmax.f32 %v4379, %v4343
        %v4412 = vmax.f32 %v4380, %v4344
        %v4413 = vmax.f32 %v4381, %v4345
        %v4414 = vmax.f32 %v4382, %v4346
        %v4415 = vmax.f32 %v4383, %v4347
        %v4416 = vmax.f32 %v4384, %v4348
        %v4417 = vmax.f32 %v4385, %v4349
        %v4418 = vmax.f32 %v4386, %v4350
        %v4419 = vmax.f32 %v4387, %v4351
        %v4420 = vmax.f32 %v4388, %v4352
        %v4421 = vmax.f32 %v4389, %v4353
        %v4422 = vmax.f32 %v4390, %v4354
        %v4423 = vmax.f32 %v4391, %v4355
        %v4424 = vmax.f32 %v4392, %v4356
        %v4425 = vmax.f32 %v4393, %v4357
        %v4426 = vmax.f32 %v4394, %v4358
        %v4427 = vmax.f32 %v4395, %v4359
        %v4428 = vmax.f32 %v4396, %v4360
        %v4429 = vmax.f32 %v4397, %v4361
        %v4430 = vmax.f32 %v4398, %v4362
        %v4431 = vmax.f32 %v4399, %v4363
        %v4432 = vmax.f32 %v4400, %v4364
        %v4433 = vmax.f32 %v4401, %v4365
        %v4434 = vmax.f32 %v4402, %v4366
        %v4435 = vmax.f32 %v4403, %v4367
        %v4436 = vmax.f32 %v4404, %v4368
        %v4437 = vmax.f32 %v4405, %v4369
        %v4438 = vmax.f32 %v4406, %v4370
        %v4439 = vmax.f32 %v4407, %v4371
        %v4440 = vmax.f32 %v4408, %v4372
        %v4441 = vmax.f32 %v4409, %v4373
        %v4442 = vmax.f32 %v4410, %v4344
        %v4443 = vmax.f32 %v4411, %v4345
        %v4444 = vmax.f32 %v4412, %v4346
        %v4445 = vmax.f32 %v4413, %v4347
        %v4446 = vmax.f32 %v4414, %v4348
        %v4447 = vmax.f32 %v4415, %v4349
        %v4448 = vmax.f32 %v4416, %v4350
        %v4449 = vmax.f32 %v4417, %v4351
        %v4450 = vmax.f32 %v4418, %v4352
        %v4451 = vmax.f32 %v4419, %v4353
        %v4452 = vmax.f32 %v4420, %v4354
        %v4453 = vmax.f32 %v4421, %v4355
        %v4454 = vmax.f32 %v4422, %v4356
        %v4455 = vmax.f32 %v4423, %v4357
        %v4456 = vmax.f32 %v4424, %v4358
        %v4457 = vmax.f32 %v4425, %v4359
        %v4458 = vmax.f32 %v4426, %v4360
        %v4459 = vmax.f32 %v4427, %v4361
        %v4460 = vmax.f32 %v4428, %v4362
        %v4461 = vmax.f32 %v4429, %v4363
        %v4462 = vmax.f32 %v4430, %v4364
        %v4463 = vmax.f32 %v4431, %v4365
        %v4464 = vmax.f32 %v4432, %v4366
        %v4465 = vmax.f32 %v4433, %v4367
        %v4466 = vmax.f32 %v4434, %v4368
        %v4467 = vmax.f32 %v4435, %v4369
        %v4468 = vmax.f32 %v4436, %v4370
        %v4469 = vmax.f32 %v4437, %v4371
        %v4470 = vmax.f32 %v4438, %v4372
        %v4471 = vmax.f32 %v4439, %v4373
        %v4472 = vmax.f32 %v4440, %v4374
        %v4473 = vmax.f32 %v4441, %v4375
        %v4474 = vmax.f32 %v4442, %v4346
        %v4475 = vmax.f32 %v4443, %v4347
        %v4476 = vmax.f32 %v4444, %v4348
        %v4477 = vmax.f32 %v4445, %v4349
        %v4478 = vmax.f32 %v4446, %v4350
        %v4479 = vmax.f32 %v4447, %v4351
        %v4480 = vmax.f32 %v4448, %v4352
        %v4481 = vmax.f32 %v4449, %v4353
        %v4482 = vmax.f32 %v4450, %v4354
        %v4483 = vmax.f32 %v4451, %v4355
        %v4484 = vmax.f32 %v4452, %v4356
        %v4485 = vmax.f32 %v4453, %v4357
        %v4486 = vmax.f32 %v4454, %v4358
        %v4487 = vmax.f32 %v4455, %v4359
        %v4488 = vmax.f32 %v4456, %v4360
        %v4489 = vmax.f32 %v4457, %v4361
        %v4490 = vmax.f32 %v4458, %v4362
        %v4491 = vmax.f32 %v4459, %v4363
        %v4492 = vmax.f32 %v4460, %v4364
        %v4493 = vmax.f32 %v4461, %v4365
        %v4494 = vmax.f32 %v4462, %v4366
        %v4495 = vmax.f32 %v4463, %v4367
        %v4496 = vmax.f32 %v4464, %v4368
        %v4497 = vmax.f32 %v4465, %v4369
        %v4498 = vmax.f32 %v4466, %v4370
        %v4499 = vmax.f32 %v4467, %v4371
        %v4500 = vmax.f32 %v4468, %v4372
        %v4501 = vmax.f32 %v4469, %v4373
        %v4502 = vmax.f32 %v4470, %v4374
        %v4503 = vmax.f32 %v4471, %v4375
        %v4504 = vmax.f32 %v4472, %v4376
        %v4505 = vmax.f32 %v4473, %v4377
        %4538 = vrot.lane.b32.xlu0 %v4474, 16
        %v4539 = vpop.permute.xlu0 %4538
        %4540 = vrot.lane.b32.xlu0 %v4475, 16
        %v4541 = vpop.permute.xlu0 %4540
        %4542 = vrot.lane.b32.xlu0 %v4476, 16
        %v4543 = vpop.permute.xlu0 %4542
        %4544 = vrot.lane.b32.xlu0 %v4477, 16
        %v4545 = vpop.permute.xlu0 %4544
        %4546 = vrot.lane.b32.xlu0 %v4478, 16
        %v4547 = vpop.permute.xlu0 %4546
        %4548 = vrot.lane.b32.xlu0 %v4479, 16
        %v4549 = vpop.permute.xlu0 %4548
        %4550 = vrot.lane.b32.xlu0 %v4480, 16
        %v4551 = vpop.permute.xlu0 %4550
        %4552 = vrot.lane.b32.xlu0 %v4481, 16
        %v4553 = vpop.permute.xlu0 %4552
        %4554 = vrot.lane.b32.xlu0 %v4482, 16
        %v4555 = vpop.permute.xlu0 %4554
        %4556 = vrot.lane.b32.xlu0 %v4483, 16
        %v4557 = vpop.permute.xlu0 %4556
        %4558 = vrot.lane.b32.xlu0 %v4484, 16
        %v4559 = vpop.permute.xlu0 %4558
        %4560 = vrot.lane.b32.xlu0 %v4485, 16
        %v4561 = vpop.permute.xlu0 %4560
        %4562 = vrot.lane.b32.xlu0 %v4486, 16
        %v4563 = vpop.permute.xlu0 %4562
        %4564 = vrot.lane.b32.xlu0 %v4487, 16
        %v4565 = vpop.permute.xlu0 %4564
        %4566 = vrot.lane.b32.xlu0 %v4488, 16
        %v4567 = vpop.permute.xlu0 %4566
        %4568 = vrot.lane.b32.xlu0 %v4489, 16
        %v4569 = vpop.permute.xlu0 %4568
        %4570 = vrot.lane.b32.xlu0 %v4490, 16
        %v4571 = vpop.permute.xlu0 %4570
        %4572 = vrot.lane.b32.xlu0 %v4491, 16
        %v4573 = vpop.permute.xlu0 %4572
        %4574 = vrot.lane.b32.xlu0 %v4492, 16
        %v4575 = vpop.permute.xlu0 %4574
        %4576 = vrot.lane.b32.xlu0 %v4493, 16
        %v4577 = vpop.permute.xlu0 %4576
        %4578 = vrot.lane.b32.xlu0 %v4494, 16
        %v4579 = vpop.permute.xlu0 %4578
        %4580 = vrot.lane.b32.xlu0 %v4495, 16
        %v4581 = vpop.permute.xlu0 %4580
        %4582 = vrot.lane.b32.xlu0 %v4496, 16
        %v4583 = vpop.permute.xlu0 %4582
        %4584 = vrot.lane.b32.xlu0 %v4497, 16
        %v4585 = vpop.permute.xlu0 %4584
        %4586 = vrot.lane.b32.xlu0 %v4498, 16
        %v4587 = vpop.permute.xlu0 %4586
        %4588 = vrot.lane.b32.xlu0 %v4499, 16
        %v4589 = vpop.permute.xlu0 %4588
        %4590 = vrot.lane.b32.xlu0 %v4500, 16
        %v4591 = vpop.permute.xlu0 %4590
        %4592 = vrot.lane.b32.xlu0 %v4501, 16
        %v4593 = vpop.permute.xlu0 %4592
        %4594 = vrot.lane.b32.xlu0 %v4502, 16
        %v4595 = vpop.permute.xlu0 %4594
        %4596 = vrot.lane.b32.xlu0 %v4503, 16
        %v4597 = vpop.permute.xlu0 %4596
        %4598 = vrot.lane.b32.xlu0 %v4504, 16
        %v4599 = vpop.permute.xlu0 %4598
        %4600 = vrot.lane.b32.xlu0 %v4505, 16
        %v4601 = vpop.permute.xlu0 %4600
        %4634 = vst.msk [vmem:[#allocation5] sm:$0xff] %vm1513, %v4539
        %4635 = vst.msk [vmem:[#allocation5 + $0x8] sm:$0xff] %vm1513, %v4541
        %4636 = vst.msk [vmem:[#allocation5 + $0x10] sm:$0xff] %vm1513, %v4543
        %4637 = vst.msk [vmem:[#allocation5 + $0x18] sm:$0xff] %vm1513, %v4545
        %4638 = vst.msk [vmem:[#allocation5 + $0x20] sm:$0xff] %vm1513, %v4547
        %4639 = vst.msk [vmem:[#allocation5 + $0x28] sm:$0xff] %vm1513, %v4549
        %4640 = vst.msk [vmem:[#allocation5 + $0x30] sm:$0xff] %vm1513, %v4551
        %4641 = vst.msk [vmem:[#allocation5 + $0x38] sm:$0xff] %vm1513, %v4553
        %4642 = vst.msk [vmem:[#allocation5 + $0x40] sm:$0xff] %vm1513, %v4555
        %4643 = vst.msk [vmem:[#allocation5 + $0x48] sm:$0xff] %vm1513, %v4557
        %4644 = vst.msk [vmem:[#allocation5 + $0x50] sm:$0xff] %vm1513, %v4559
        %4645 = vst.msk [vmem:[#allocation5 + $0x58] sm:$0xff] %vm1513, %v4561
        %4646 = vst.msk [vmem:[#allocation5 + $0x60] sm:$0xff] %vm1513, %v4563
        %4647 = vst.msk [vmem:[#allocation5 + $0x68] sm:$0xff] %vm1513, %v4565
        %4648 = vst.msk [vmem:[#allocation5 + $0x70] sm:$0xff] %vm1513, %v4567
        %4649 = vst.msk [vmem:[#allocation5 + $0x78] sm:$0xff] %vm1513, %v4569
        %4650 = vst.msk [vmem:[#allocation5 + $0x80] sm:$0xff] %vm1513, %v4571
        %4651 = vst.msk [vmem:[#allocation5 + $0x88] sm:$0xff] %vm1513, %v4573
        %4652 = vst.msk [vmem:[#allocation5 + $0x90] sm:$0xff] %vm1513, %v4575
        %4653 = vst.msk [vmem:[#allocation5 + $0x98] sm:$0xff] %vm1513, %v4577
        %4654 = vst.msk [vmem:[#allocation5 + $0xa0] sm:$0xff] %vm1513, %v4579
        %4655 = vst.msk [vmem:[#allocation5 + $0xa8] sm:$0xff] %vm1513, %v4581
        %4656 = vst.msk [vmem:[#allocation5 + $0xb0] sm:$0xff] %vm1513, %v4583
        %4657 = vst.msk [vmem:[#allocation5 + $0xb8] sm:$0xff] %vm1513, %v4585
        %4658 = vst.msk [vmem:[#allocation5 + $0xc0] sm:$0xff] %vm1513, %v4587
        %4659 = vst.msk [vmem:[#allocation5 + $0xc8] sm:$0xff] %vm1513, %v4589
        %4660 = vst.msk [vmem:[#allocation5 + $0xd0] sm:$0xff] %vm1513, %v4591
        %4661 = vst.msk [vmem:[#allocation5 + $0xd8] sm:$0xff] %vm1513, %v4593
        %4662 = vst.msk [vmem:[#allocation5 + $0xe0] sm:$0xff] %vm1513, %v4595
        %4663 = vst.msk [vmem:[#allocation5 + $0xe8] sm:$0xff] %vm1513, %v4597
        %4664 = vst.msk [vmem:[#allocation5 + $0xf0] sm:$0xff] %vm1513, %v4599
        %4665 = vst.msk [vmem:[#allocation5 + $0xf8] sm:$0xff] %vm1513, %v4601
        %4666 = vst.msk [vmem:[%s3985 + $0x2] sm:$0xff] %vm358, %v4474
        %4667 = vst.msk [vmem:[%s3985 + $0xa] sm:$0xff] %vm358, %v4475
        %4668 = vst.msk [vmem:[%s3985 + $0x1a] sm:$0xff] %vm358, %v4476
        %4669 = vst.msk [vmem:[%s3985 + $0x22] sm:$0xff] %vm358, %v4477
        %4670 = vst.msk [vmem:[%s3985 + $0x32] sm:$0xff] %vm358, %v4478
        %4671 = vst.msk [vmem:[%s3985 + $0x3a] sm:$0xff] %vm358, %v4479
        %4672 = vst.msk [vmem:[%s3985 + $0x4a] sm:$0xff] %vm358, %v4480
        %4673 = vst.msk [vmem:[%s3985 + $0x52] sm:$0xff] %vm358, %v4481
        %4674 = vst.msk [vmem:[%s3985 + $0x62] sm:$0xff] %vm358, %v4482
        %4675 = vst.msk [vmem:[%s3985 + $0x6a] sm:$0xff] %vm358, %v4483
        %4676 = vst.msk [vmem:[%s3985 + $0x7a] sm:$0xff] %vm358, %v4484
        %4677 = vst.msk [vmem:[%s3985 + $0x82] sm:$0xff] %vm358, %v4485
        %4678 = vst.msk [vmem:[%s3985 + $0x92] sm:$0xff] %vm358, %v4486
        %4679 = vst.msk [vmem:[%s3985 + $0x9a] sm:$0xff] %vm358, %v4487
        %4680 = vst.msk [vmem:[%s3985 + $0xaa] sm:$0xff] %vm358, %v4488
        %4681 = vst.msk [vmem:[%s3985 + $0xb2] sm:$0xff] %vm358, %v4489
        %4682 = vst.msk [vmem:[%s3985 + $0xc2] sm:$0xff] %vm358, %v4490
        %4683 = vst.msk [vmem:[%s3985 + $0xca] sm:$0xff] %vm358, %v4491
        %4684 = vst.msk [vmem:[%s3985 + $0xda] sm:$0xff] %vm358, %v4492
        %4685 = vst.msk [vmem:[%s3985 + $0xe2] sm:$0xff] %vm358, %v4493
        %4686 = vst.msk [vmem:[%s3985 + $0xf2] sm:$0xff] %vm358, %v4494
        %4687 = vst.msk [vmem:[%s3985 + $0xfa] sm:$0xff] %vm358, %v4495
        %4688 = vst.msk [vmem:[%s3985 + $0x10a] sm:$0xff] %vm358, %v4496
        %4689 = vst.msk [vmem:[%s3985 + $0x112] sm:$0xff] %vm358, %v4497
        %4690 = vst.msk [vmem:[%s3985 + $0x122] sm:$0xff] %vm358, %v4498
        %4691 = vst.msk [vmem:[%s3985 + $0x12a] sm:$0xff] %vm358, %v4499
        %4692 = vst.msk [vmem:[%s3985 + $0x13a] sm:$0xff] %vm358, %v4500
        %4693 = vst.msk [vmem:[%s3985 + $0x142] sm:$0xff] %vm358, %v4501
        %4694 = vst.msk [vmem:[%s3985 + $0x152] sm:$0xff] %vm358, %v4502
        %4695 = vst.msk [vmem:[%s3985 + $0x15a] sm:$0xff] %vm358, %v4503
        %4696 = vst.msk [vmem:[%s3985 + $0x16a] sm:$0xff] %vm358, %v4504
        %4697 = vst.msk [vmem:[%s3985 + $0x172] sm:$0xff] %vm358, %v4505
        %v4698 = vld [vmem:[#allocation3] sm:$0xff]
        %v4699 = vld [vmem:[#allocation3 + $0x8] sm:$0xff]
        %v4700 = vld [vmem:[#allocation3 + $0x18] sm:$0xff]
        %v4701 = vld [vmem:[#allocation3 + $0x20] sm:$0xff]
        %v4702 = vld [vmem:[#allocation3 + $0x30] sm:$0xff]
        %v4703 = vld [vmem:[#allocation3 + $0x38] sm:$0xff]
        %v4704 = vld [vmem:[#allocation3 + $0x48] sm:$0xff]
        %v4705 = vld [vmem:[#allocation3 + $0x50] sm:$0xff]
        %v4706 = vld [vmem:[#allocation3 + $0x60] sm:$0xff]
        %v4707 = vld [vmem:[#allocation3 + $0x68] sm:$0xff]
        %v4708 = vld [vmem:[#allocation3 + $0x78] sm:$0xff]
        %v4709 = vld [vmem:[#allocation3 + $0x80] sm:$0xff]
        %v4710 = vld [vmem:[#allocation3 + $0x90] sm:$0xff]
        %v4711 = vld [vmem:[#allocation3 + $0x98] sm:$0xff]
        %v4712 = vld [vmem:[#allocation3 + $0xa8] sm:$0xff]
        %v4713 = vld [vmem:[#allocation3 + $0xb0] sm:$0xff]
        %v4714 = vld [vmem:[#allocation3 + $0xc0] sm:$0xff]
        %v4715 = vld [vmem:[#allocation3 + $0xc8] sm:$0xff]
        %v4716 = vld [vmem:[#allocation3 + $0xd8] sm:$0xff]
        %v4717 = vld [vmem:[#allocation3 + $0xe0] sm:$0xff]
        %v4718 = vld [vmem:[#allocation3 + $0xf0] sm:$0xff]
        %v4719 = vld [vmem:[#allocation3 + $0xf8] sm:$0xff]
        %v4720 = vld [vmem:[#allocation3 + $0x108] sm:$0xff]
        %v4721 = vld [vmem:[#allocation3 + $0x110] sm:$0xff]
        %v4722 = vld [vmem:[#allocation3 + $0x120] sm:$0xff]
        %v4723 = vld [vmem:[#allocation3 + $0x128] sm:$0xff]
        %v4724 = vld [vmem:[#allocation3 + $0x138] sm:$0xff]
        %v4725 = vld [vmem:[#allocation3 + $0x140] sm:$0xff]
        %v4726 = vld [vmem:[#allocation3 + $0x150] sm:$0xff]
        %v4727 = vld [vmem:[#allocation3 + $0x158] sm:$0xff]
        %v4728 = vld [vmem:[#allocation3 + $0x168] sm:$0xff]
        %v4729 = vld [vmem:[#allocation3 + $0x170] sm:$0xff]
        %v4730 = vld [vmem:[#allocation3 + $0x180] sm:$0xff]
        %v4731 = vld [vmem:[#allocation3 + $0x188] sm:$0xff]
        %v4732 = vld [vmem:[#allocation3 + $0x198] sm:$0xff]
        %v4733 = vld [vmem:[#allocation3 + $0x1a0] sm:$0xff]
        %v4734 = vld [vmem:[#allocation3 + $0x1b0] sm:$0xff]
        %v4735 = vld [vmem:[#allocation3 + $0x1b8] sm:$0xff]
        %v4736 = vld [vmem:[#allocation3 + $0x1c8] sm:$0xff]
        %v4737 = vld [vmem:[#allocation3 + $0x1d0] sm:$0xff]
        %v4738 = vld [vmem:[#allocation3 + $0x1] sm:$0xff]
        %v4739 = vld [vmem:[#allocation3 + $0x9] sm:$0xff]
        %v4740 = vld [vmem:[#allocation3 + $0x19] sm:$0xff]
        %v4741 = vld [vmem:[#allocation3 + $0x21] sm:$0xff]
        %v4742 = vld [vmem:[#allocation3 + $0x31] sm:$0xff]
        %v4743 = vld [vmem:[#allocation3 + $0x39] sm:$0xff]
        %v4744 = vld [vmem:[#allocation3 + $0x49] sm:$0xff]
        %v4745 = vld [vmem:[#allocation3 + $0x51] sm:$0xff]
        %v4746 = vld [vmem:[#allocation3 + $0x61] sm:$0xff]
        %v4747 = vld [vmem:[#allocation3 + $0x69] sm:$0xff]
        %v4748 = vld [vmem:[#allocation3 + $0x79] sm:$0xff]
        %v4749 = vld [vmem:[#allocation3 + $0x81] sm:$0xff]
        %v4750 = vld [vmem:[#allocation3 + $0x91] sm:$0xff]
        %v4751 = vld [vmem:[#allocation3 + $0x99] sm:$0xff]
        %v4752 = vld [vmem:[#allocation3 + $0xa9] sm:$0xff]
        %v4753 = vld [vmem:[#allocation3 + $0xb1] sm:$0xff]
        %v4754 = vld [vmem:[#allocation3 + $0xc1] sm:$0xff]
        %v4755 = vld [vmem:[#allocation3 + $0xc9] sm:$0xff]
        %v4756 = vld [vmem:[#allocation3 + $0xd9] sm:$0xff]
        %v4757 = vld [vmem:[#allocation3 + $0xe1] sm:$0xff]
        %v4758 = vld [vmem:[#allocation3 + $0xf1] sm:$0xff]
        %v4759 = vld [vmem:[#allocation3 + $0xf9] sm:$0xff]
        %v4760 = vld [vmem:[#allocation3 + $0x109] sm:$0xff]
        %v4761 = vld [vmem:[#allocation3 + $0x111] sm:$0xff]
        %v4762 = vld [vmem:[#allocation3 + $0x121] sm:$0xff]
        %v4763 = vld [vmem:[#allocation3 + $0x129] sm:$0xff]
        %v4764 = vld [vmem:[#allocation3 + $0x139] sm:$0xff]
        %v4765 = vld [vmem:[#allocation3 + $0x141] sm:$0xff]
        %v4766 = vld [vmem:[#allocation3 + $0x151] sm:$0xff]
        %v4767 = vld [vmem:[#allocation3 + $0x159] sm:$0xff]
        %v4768 = vld [vmem:[#allocation3 + $0x169] sm:$0xff]
        %v4769 = vld [vmem:[#allocation3 + $0x171] sm:$0xff]
        %v4770 = vld [vmem:[#allocation3 + $0x181] sm:$0xff]
        %v4771 = vld [vmem:[#allocation3 + $0x189] sm:$0xff]
        %v4772 = vld [vmem:[#allocation3 + $0x199] sm:$0xff]
        %v4773 = vld [vmem:[#allocation3 + $0x1a1] sm:$0xff]
        %v4774 = vld [vmem:[#allocation3 + $0x1b1] sm:$0xff]
        %v4775 = vld [vmem:[#allocation3 + $0x1b9] sm:$0xff]
        %v4776 = vld [vmem:[#allocation3 + $0x1c9] sm:$0xff]
        %v4777 = vld [vmem:[#allocation3 + $0x1d1] sm:$0xff]
        %v4778 = vmax.f32 %v4698, %v4738
        %v4779 = vmax.f32 %v4699, %v4739
        %v4780 = vmax.f32 %v4700, %v4740
        %v4781 = vmax.f32 %v4701, %v4741
        %v4782 = vmax.f32 %v4702, %v4742
        %v4783 = vmax.f32 %v4703, %v4743
        %v4784 = vmax.f32 %v4704, %v4744
        %v4785 = vmax.f32 %v4705, %v4745
        %v4786 = vmax.f32 %v4706, %v4746
        %v4787 = vmax.f32 %v4707, %v4747
        %v4788 = vmax.f32 %v4708, %v4748
        %v4789 = vmax.f32 %v4709, %v4749
        %v4790 = vmax.f32 %v4710, %v4750
        %v4791 = vmax.f32 %v4711, %v4751
        %v4792 = vmax.f32 %v4712, %v4752
        %v4793 = vmax.f32 %v4713, %v4753
        %v4794 = vmax.f32 %v4714, %v4754
        %v4795 = vmax.f32 %v4715, %v4755
        %v4796 = vmax.f32 %v4716, %v4756
        %v4797 = vmax.f32 %v4717, %v4757
        %v4798 = vmax.f32 %v4718, %v4758
        %v4799 = vmax.f32 %v4719, %v4759
        %v4800 = vmax.f32 %v4720, %v4760
        %v4801 = vmax.f32 %v4721, %v4761
        %v4802 = vmax.f32 %v4722, %v4762
        %v4803 = vmax.f32 %v4723, %v4763
        %v4804 = vmax.f32 %v4724, %v4764
        %v4805 = vmax.f32 %v4725, %v4765
        %v4806 = vmax.f32 %v4726, %v4766
        %v4807 = vmax.f32 %v4727, %v4767
        %v4808 = vmax.f32 %v4728, %v4768
        %v4809 = vmax.f32 %v4729, %v4769
        %v4810 = vmax.f32 %v4730, %v4770
        %v4811 = vmax.f32 %v4731, %v4771
        %v4812 = vmax.f32 %v4732, %v4772
        %v4813 = vmax.f32 %v4733, %v4773
        %v4814 = vmax.f32 %v4734, %v4774
        %v4815 = vmax.f32 %v4735, %v4775
        %v4816 = vmax.f32 %v4736, %v4776
        %v4817 = vmax.f32 %v4737, %v4777
        %v4818 = vld [vmem:[#allocation3 + $0x2] sm:$0xff]
        %v4819 = vld [vmem:[#allocation3 + $0xa] sm:$0xff]
        %v4820 = vld [vmem:[#allocation3 + $0x1a] sm:$0xff]
        %v4821 = vld [vmem:[#allocation3 + $0x22] sm:$0xff]
        %v4822 = vld [vmem:[#allocation3 + $0x32] sm:$0xff]
        %v4823 = vld [vmem:[#allocation3 + $0x3a] sm:$0xff]
        %v4824 = vld [vmem:[#allocation3 + $0x4a] sm:$0xff]
        %v4825 = vld [vmem:[#allocation3 + $0x52] sm:$0xff]
        %v4826 = vld [vmem:[#allocation3 + $0x62] sm:$0xff]
        %v4827 = vld [vmem:[#allocation3 + $0x6a] sm:$0xff]
        %v4828 = vld [vmem:[#allocation3 + $0x7a] sm:$0xff]
        %v4829 = vld [vmem:[#allocation3 + $0x82] sm:$0xff]
        %v4830 = vld [vmem:[#allocation3 + $0x92] sm:$0xff]
        %v4831 = vld [vmem:[#allocation3 + $0x9a] sm:$0xff]
        %v4832 = vld [vmem:[#allocation3 + $0xaa] sm:$0xff]
        %v4833 = vld [vmem:[#allocation3 + $0xb2] sm:$0xff]
        %v4834 = vld [vmem:[#allocation3 + $0xc2] sm:$0xff]
        %v4835 = vld [vmem:[#allocation3 + $0xca] sm:$0xff]
        %v4836 = vld [vmem:[#allocation3 + $0xda] sm:$0xff]
        %v4837 = vld [vmem:[#allocation3 + $0xe2] sm:$0xff]
        %v4838 = vld [vmem:[#allocation3 + $0xf2] sm:$0xff]
        %v4839 = vld [vmem:[#allocation3 + $0xfa] sm:$0xff]
        %v4840 = vld [vmem:[#allocation3 + $0x10a] sm:$0xff]
        %v4841 = vld [vmem:[#allocation3 + $0x112] sm:$0xff]
        %v4842 = vld [vmem:[#allocation3 + $0x122] sm:$0xff]
        %v4843 = vld [vmem:[#allocation3 + $0x12a] sm:$0xff]
        %v4844 = vld [vmem:[#allocation3 + $0x13a] sm:$0xff]
        %v4845 = vld [vmem:[#allocation3 + $0x142] sm:$0xff]
        %v4846 = vld [vmem:[#allocation3 + $0x152] sm:$0xff]
        %v4847 = vld [vmem:[#allocation3 + $0x15a] sm:$0xff]
        %v4848 = vld [vmem:[#allocation3 + $0x16a] sm:$0xff]
        %v4849 = vld [vmem:[#allocation3 + $0x172] sm:$0xff]
        %v4850 = vld [vmem:[#allocation3 + $0x182] sm:$0xff]
        %v4851 = vld [vmem:[#allocation3 + $0x18a] sm:$0xff]
        %v4852 = vld [vmem:[#allocation3 + $0x19a] sm:$0xff]
        %v4853 = vld [vmem:[#allocation3 + $0x1a2] sm:$0xff]
        %v4854 = vld [vmem:[#allocation3 + $0x1b2] sm:$0xff]
        %v4855 = vld [vmem:[#allocation3 + $0x1ba] sm:$0xff]
        %v4856 = vld [vmem:[#allocation3 + $0x1ca] sm:$0xff]
        %v4857 = vld [vmem:[#allocation3 + $0x1d2] sm:$0xff]
        %v4858 = vmax.f32 %v4778, %v4818
        %v4859 = vmax.f32 %v4779, %v4819
        %v4860 = vmax.f32 %v4780, %v4820
        %v4861 = vmax.f32 %v4781, %v4821
        %v4862 = vmax.f32 %v4782, %v4822
        %v4863 = vmax.f32 %v4783, %v4823
        %v4864 = vmax.f32 %v4784, %v4824
        %v4865 = vmax.f32 %v4785, %v4825
        %v4866 = vmax.f32 %v4786, %v4826
        %v4867 = vmax.f32 %v4787, %v4827
        %v4868 = vmax.f32 %v4788, %v4828
        %v4869 = vmax.f32 %v4789, %v4829
        %v4870 = vmax.f32 %v4790, %v4830
        %v4871 = vmax.f32 %v4791, %v4831
        %v4872 = vmax.f32 %v4792, %v4832
        %v4873 = vmax.f32 %v4793, %v4833
        %v4874 = vmax.f32 %v4794, %v4834
        %v4875 = vmax.f32 %v4795, %v4835
        %v4876 = vmax.f32 %v4796, %v4836
        %v4877 = vmax.f32 %v4797, %v4837
        %v4878 = vmax.f32 %v4798, %v4838
        %v4879 = vmax.f32 %v4799, %v4839
        %v4880 = vmax.f32 %v4800, %v4840
        %v4881 = vmax.f32 %v4801, %v4841
        %v4882 = vmax.f32 %v4802, %v4842
        %v4883 = vmax.f32 %v4803, %v4843
        %v4884 = vmax.f32 %v4804, %v4844
        %v4885 = vmax.f32 %v4805, %v4845
        %v4886 = vmax.f32 %v4806, %v4846
        %v4887 = vmax.f32 %v4807, %v4847
        %v4888 = vmax.f32 %v4808, %v4848
        %v4889 = vmax.f32 %v4809, %v4849
        %v4890 = vmax.f32 %v4810, %v4850
        %v4891 = vmax.f32 %v4811, %v4851
        %v4892 = vmax.f32 %v4812, %v4852
        %v4893 = vmax.f32 %v4813, %v4853
        %v4894 = vmax.f32 %v4814, %v4854
        %v4895 = vmax.f32 %v4815, %v4855
        %v4896 = vmax.f32 %v4816, %v4856
        %v4897 = vmax.f32 %v4817, %v4857
        %v4898 = vld [vmem:[#allocation3 + $0x3] sm:$0xff]
        %v4899 = vld [vmem:[#allocation3 + $0xb] sm:$0xff]
        %v4900 = vld [vmem:[#allocation3 + $0x1b] sm:$0xff]
        %v4901 = vld [vmem:[#allocation3 + $0x23] sm:$0xff]
        %v4902 = vld [vmem:[#allocation3 + $0x33] sm:$0xff]
        %v4903 = vld [vmem:[#allocation3 + $0x3b] sm:$0xff]
        %v4904 = vld [vmem:[#allocation3 + $0x4b] sm:$0xff]
        %v4905 = vld [vmem:[#allocation3 + $0x53] sm:$0xff]
        %v4906 = vld [vmem:[#allocation3 + $0x63] sm:$0xff]
        %v4907 = vld [vmem:[#allocation3 + $0x6b] sm:$0xff]
        %v4908 = vld [vmem:[#allocation3 + $0x7b] sm:$0xff]
        %v4909 = vld [vmem:[#allocation3 + $0x83] sm:$0xff]
        %v4910 = vld [vmem:[#allocation3 + $0x93] sm:$0xff]
        %v4911 = vld [vmem:[#allocation3 + $0x9b] sm:$0xff]
        %v4912 = vld [vmem:[#allocation3 + $0xab] sm:$0xff]
        %v4913 = vld [vmem:[#allocation3 + $0xb3] sm:$0xff]
        %v4914 = vld [vmem:[#allocation3 + $0xc3] sm:$0xff]
        %v4915 = vld [vmem:[#allocation3 + $0xcb] sm:$0xff]
        %v4916 = vld [vmem:[#allocation3 + $0xdb] sm:$0xff]
        %v4917 = vld [vmem:[#allocation3 + $0xe3] sm:$0xff]
        %v4918 = vld [vmem:[#allocation3 + $0xf3] sm:$0xff]
        %v4919 = vld [vmem:[#allocation3 + $0xfb] sm:$0xff]
        %v4920 = vld [vmem:[#allocation3 + $0x10b] sm:$0xff]
        %v4921 = vld [vmem:[#allocation3 + $0x113] sm:$0xff]
        %v4922 = vld [vmem:[#allocation3 + $0x123] sm:$0xff]
        %v4923 = vld [vmem:[#allocation3 + $0x12b] sm:$0xff]
        %v4924 = vld [vmem:[#allocation3 + $0x13b] sm:$0xff]
        %v4925 = vld [vmem:[#allocation3 + $0x143] sm:$0xff]
        %v4926 = vld [vmem:[#allocation3 + $0x153] sm:$0xff]
        %v4927 = vld [vmem:[#allocation3 + $0x15b] sm:$0xff]
        %v4928 = vld [vmem:[#allocation3 + $0x16b] sm:$0xff]
        %v4929 = vld [vmem:[#allocation3 + $0x173] sm:$0xff]
        %v4930 = vld [vmem:[#allocation3 + $0x183] sm:$0xff]
        %v4931 = vld [vmem:[#allocation3 + $0x18b] sm:$0xff]
        %v4932 = vld [vmem:[#allocation3 + $0x19b] sm:$0xff]
        %v4933 = vld [vmem:[#allocation3 + $0x1a3] sm:$0xff]
        %v4934 = vld [vmem:[#allocation3 + $0x1b3] sm:$0xff]
        %v4935 = vld [vmem:[#allocation3 + $0x1bb] sm:$0xff]
        %v4936 = vld [vmem:[#allocation3 + $0x1cb] sm:$0xff]
        %v4937 = vld [vmem:[#allocation3 + $0x1d3] sm:$0xff]
        %v4938 = vmax.f32 %v4858, %v4898
        %v4939 = vmax.f32 %v4859, %v4899
        %v4940 = vmax.f32 %v4860, %v4900
        %v4941 = vmax.f32 %v4861, %v4901
        %v4942 = vmax.f32 %v4862, %v4902
        %v4943 = vmax.f32 %v4863, %v4903
        %v4944 = vmax.f32 %v4864, %v4904
        %v4945 = vmax.f32 %v4865, %v4905
        %v4946 = vmax.f32 %v4866, %v4906
        %v4947 = vmax.f32 %v4867, %v4907
        %v4948 = vmax.f32 %v4868, %v4908
        %v4949 = vmax.f32 %v4869, %v4909
        %v4950 = vmax.f32 %v4870, %v4910
        %v4951 = vmax.f32 %v4871, %v4911
        %v4952 = vmax.f32 %v4872, %v4912
        %v4953 = vmax.f32 %v4873, %v4913
        %v4954 = vmax.f32 %v4874, %v4914
        %v4955 = vmax.f32 %v4875, %v4915
        %v4956 = vmax.f32 %v4876, %v4916
        %v4957 = vmax.f32 %v4877, %v4917
        %v4958 = vmax.f32 %v4878, %v4918
        %v4959 = vmax.f32 %v4879, %v4919
        %v4960 = vmax.f32 %v4880, %v4920
        %v4961 = vmax.f32 %v4881, %v4921
        %v4962 = vmax.f32 %v4882, %v4922
        %v4963 = vmax.f32 %v4883, %v4923
        %v4964 = vmax.f32 %v4884, %v4924
        %v4965 = vmax.f32 %v4885, %v4925
        %v4966 = vmax.f32 %v4886, %v4926
        %v4967 = vmax.f32 %v4887, %v4927
        %v4968 = vmax.f32 %v4888, %v4928
        %v4969 = vmax.f32 %v4889, %v4929
        %v4970 = vmax.f32 %v4890, %v4930
        %v4971 = vmax.f32 %v4891, %v4931
        %v4972 = vmax.f32 %v4892, %v4932
        %v4973 = vmax.f32 %v4893, %v4933
        %v4974 = vmax.f32 %v4894, %v4934
        %v4975 = vmax.f32 %v4895, %v4935
        %v4976 = vmax.f32 %v4896, %v4936
        %v4977 = vmax.f32 %v4897, %v4937
        %v4978 = vld [vmem:[#allocation3 + $0x4] sm:$0xff]
        %v4979 = vld [vmem:[#allocation3 + $0xc] sm:$0xff]
        %v4980 = vld [vmem:[#allocation3 + $0x1c] sm:$0xff]
        %v4981 = vld [vmem:[#allocation3 + $0x24] sm:$0xff]
        %v4982 = vld [vmem:[#allocation3 + $0x34] sm:$0xff]
        %v4983 = vld [vmem:[#allocation3 + $0x3c] sm:$0xff]
        %v4984 = vld [vmem:[#allocation3 + $0x4c] sm:$0xff]
        %v4985 = vld [vmem:[#allocation3 + $0x54] sm:$0xff]
        %v4986 = vld [vmem:[#allocation3 + $0x64] sm:$0xff]
        %v4987 = vld [vmem:[#allocation3 + $0x6c] sm:$0xff]
        %v4988 = vld [vmem:[#allocation3 + $0x7c] sm:$0xff]
        %v4989 = vld [vmem:[#allocation3 + $0x84] sm:$0xff]
        %v4990 = vld [vmem:[#allocation3 + $0x94] sm:$0xff]
        %v4991 = vld [vmem:[#allocation3 + $0x9c] sm:$0xff]
        %v4992 = vld [vmem:[#allocation3 + $0xac] sm:$0xff]
        %v4993 = vld [vmem:[#allocation3 + $0xb4] sm:$0xff]
        %v4994 = vld [vmem:[#allocation3 + $0xc4] sm:$0xff]
        %v4995 = vld [vmem:[#allocation3 + $0xcc] sm:$0xff]
        %v4996 = vld [vmem:[#allocation3 + $0xdc] sm:$0xff]
        %v4997 = vld [vmem:[#allocation3 + $0xe4] sm:$0xff]
        %v4998 = vld [vmem:[#allocation3 + $0xf4] sm:$0xff]
        %v4999 = vld [vmem:[#allocation3 + $0xfc] sm:$0xff]
        %v5000 = vld [vmem:[#allocation3 + $0x10c] sm:$0xff]
        %v5001 = vld [vmem:[#allocation3 + $0x114] sm:$0xff]
        %v5002 = vld [vmem:[#allocation3 + $0x124] sm:$0xff]
        %v5003 = vld [vmem:[#allocation3 + $0x12c] sm:$0xff]
        %v5004 = vld [vmem:[#allocation3 + $0x13c] sm:$0xff]
        %v5005 = vld [vmem:[#allocation3 + $0x144] sm:$0xff]
        %v5006 = vld [vmem:[#allocation3 + $0x154] sm:$0xff]
        %v5007 = vld [vmem:[#allocation3 + $0x15c] sm:$0xff]
        %v5008 = vld [vmem:[#allocation3 + $0x16c] sm:$0xff]
        %v5009 = vld [vmem:[#allocation3 + $0x174] sm:$0xff]
        %v5010 = vld [vmem:[#allocation3 + $0x184] sm:$0xff]
        %v5011 = vld [vmem:[#allocation3 + $0x18c] sm:$0xff]
        %v5012 = vld [vmem:[#allocation3 + $0x19c] sm:$0xff]
        %v5013 = vld [vmem:[#allocation3 + $0x1a4] sm:$0xff]
        %v5014 = vld [vmem:[#allocation3 + $0x1b4] sm:$0xff]
        %v5015 = vld [vmem:[#allocation3 + $0x1bc] sm:$0xff]
        %v5016 = vld [vmem:[#allocation3 + $0x1cc] sm:$0xff]
        %v5017 = vld [vmem:[#allocation3 + $0x1d4] sm:$0xff]
        %v5018 = vmax.f32 %v4938, %v4978
        %v5019 = vmax.f32 %v4939, %v4979
        %v5020 = vmax.f32 %v4940, %v4980
        %v5021 = vmax.f32 %v4941, %v4981
        %v5022 = vmax.f32 %v4942, %v4982
        %v5023 = vmax.f32 %v4943, %v4983
        %v5024 = vmax.f32 %v4944, %v4984
        %v5025 = vmax.f32 %v4945, %v4985
        %v5026 = vmax.f32 %v4946, %v4986
        %v5027 = vmax.f32 %v4947, %v4987
        %v5028 = vmax.f32 %v4948, %v4988
        %v5029 = vmax.f32 %v4949, %v4989
        %v5030 = vmax.f32 %v4950, %v4990
        %v5031 = vmax.f32 %v4951, %v4991
        %v5032 = vmax.f32 %v4952, %v4992
        %v5033 = vmax.f32 %v4953, %v4993
        %v5034 = vmax.f32 %v4954, %v4994
        %v5035 = vmax.f32 %v4955, %v4995
        %v5036 = vmax.f32 %v4956, %v4996
        %v5037 = vmax.f32 %v4957, %v4997
        %v5038 = vmax.f32 %v4958, %v4998
        %v5039 = vmax.f32 %v4959, %v4999
        %v5040 = vmax.f32 %v4960, %v5000
        %v5041 = vmax.f32 %v4961, %v5001
        %v5042 = vmax.f32 %v4962, %v5002
        %v5043 = vmax.f32 %v4963, %v5003
        %v5044 = vmax.f32 %v4964, %v5004
        %v5045 = vmax.f32 %v4965, %v5005
        %v5046 = vmax.f32 %v4966, %v5006
        %v5047 = vmax.f32 %v4967, %v5007
        %v5048 = vmax.f32 %v4968, %v5008
        %v5049 = vmax.f32 %v4969, %v5009
        %v5050 = vmax.f32 %v4970, %v5010
        %v5051 = vmax.f32 %v4971, %v5011
        %v5052 = vmax.f32 %v4972, %v5012
        %v5053 = vmax.f32 %v4973, %v5013
        %v5054 = vmax.f32 %v4974, %v5014
        %v5055 = vmax.f32 %v4975, %v5015
        %v5056 = vmax.f32 %v4976, %v5016
        %v5057 = vmax.f32 %v4977, %v5017
        %v5058 = vmax.f32 %v5018, %v5020
        %v5059 = vmax.f32 %v5019, %v5021
        %v5060 = vmax.f32 %v5020, %v5022
        %v5061 = vmax.f32 %v5021, %v5023
        %v5062 = vmax.f32 %v5022, %v5024
        %v5063 = vmax.f32 %v5023, %v5025
        %v5064 = vmax.f32 %v5024, %v5026
        %v5065 = vmax.f32 %v5025, %v5027
        %v5066 = vmax.f32 %v5026, %v5028
        %v5067 = vmax.f32 %v5027, %v5029
        %v5068 = vmax.f32 %v5028, %v5030
        %v5069 = vmax.f32 %v5029, %v5031
        %v5070 = vmax.f32 %v5030, %v5032
        %v5071 = vmax.f32 %v5031, %v5033
        %v5072 = vmax.f32 %v5032, %v5034
        %v5073 = vmax.f32 %v5033, %v5035
        %v5074 = vmax.f32 %v5034, %v5036
        %v5075 = vmax.f32 %v5035, %v5037
        %v5076 = vmax.f32 %v5036, %v5038
        %v5077 = vmax.f32 %v5037, %v5039
        %v5078 = vmax.f32 %v5038, %v5040
        %v5079 = vmax.f32 %v5039, %v5041
        %v5080 = vmax.f32 %v5040, %v5042
        %v5081 = vmax.f32 %v5041, %v5043
        %v5082 = vmax.f32 %v5042, %v5044
        %v5083 = vmax.f32 %v5043, %v5045
        %v5084 = vmax.f32 %v5044, %v5046
        %v5085 = vmax.f32 %v5045, %v5047
        %v5086 = vmax.f32 %v5046, %v5048
        %v5087 = vmax.f32 %v5047, %v5049
        %v5088 = vmax.f32 %v5048, %v5050
        %v5089 = vmax.f32 %v5049, %v5051
        %v5090 = vmax.f32 %v5058, %v5022
        %v5091 = vmax.f32 %v5059, %v5023
        %v5092 = vmax.f32 %v5060, %v5024
        %v5093 = vmax.f32 %v5061, %v5025
        %v5094 = vmax.f32 %v5062, %v5026
        %v5095 = vmax.f32 %v5063, %v5027
        %v5096 = vmax.f32 %v5064, %v5028
        %v5097 = vmax.f32 %v5065, %v5029
        %v5098 = vmax.f32 %v5066, %v5030
        %v5099 = vmax.f32 %v5067, %v5031
        %v5100 = vmax.f32 %v5068, %v5032
        %v5101 = vmax.f32 %v5069, %v5033
        %v5102 = vmax.f32 %v5070, %v5034
        %v5103 = vmax.f32 %v5071, %v5035
        %v5104 = vmax.f32 %v5072, %v5036
        %v5105 = vmax.f32 %v5073, %v5037
        %v5106 = vmax.f32 %v5074, %v5038
        %v5107 = vmax.f32 %v5075, %v5039
        %v5108 = vmax.f32 %v5076, %v5040
        %v5109 = vmax.f32 %v5077, %v5041
        %v5110 = vmax.f32 %v5078, %v5042
        %v5111 = vmax.f32 %v5079, %v5043
        %v5112 = vmax.f32 %v5080, %v5044
        %v5113 = vmax.f32 %v5081, %v5045
        %v5114 = vmax.f32 %v5082, %v5046
        %v5115 = vmax.f32 %v5083, %v5047
        %v5116 = vmax.f32 %v5084, %v5048
        %v5117 = vmax.f32 %v5085, %v5049
        %v5118 = vmax.f32 %v5086, %v5050
        %v5119 = vmax.f32 %v5087, %v5051
        %v5120 = vmax.f32 %v5088, %v5052
        %v5121 = vmax.f32 %v5089, %v5053
        %v5122 = vmax.f32 %v5090, %v5024
        %v5123 = vmax.f32 %v5091, %v5025
        %v5124 = vmax.f32 %v5092, %v5026
        %v5125 = vmax.f32 %v5093, %v5027
        %v5126 = vmax.f32 %v5094, %v5028
        %v5127 = vmax.f32 %v5095, %v5029
        %v5128 = vmax.f32 %v5096, %v5030
        %v5129 = vmax.f32 %v5097, %v5031
        %v5130 = vmax.f32 %v5098, %v5032
        %v5131 = vmax.f32 %v5099, %v5033
        %v5132 = vmax.f32 %v5100, %v5034
        %v5133 = vmax.f32 %v5101, %v5035
        %v5134 = vmax.f32 %v5102, %v5036
        %v5135 = vmax.f32 %v5103, %v5037
        %v5136 = vmax.f32 %v5104, %v5038
        %v5137 = vmax.f32 %v5105, %v5039
        %v5138 = vmax.f32 %v5106, %v5040
        %v5139 = vmax.f32 %v5107, %v5041
        %v5140 = vmax.f32 %v5108, %v5042
        %v5141 = vmax.f32 %v5109, %v5043
        %v5142 = vmax.f32 %v5110, %v5044
        %v5143 = vmax.f32 %v5111, %v5045
        %v5144 = vmax.f32 %v5112, %v5046
        %v5145 = vmax.f32 %v5113, %v5047
        %v5146 = vmax.f32 %v5114, %v5048
        %v5147 = vmax.f32 %v5115, %v5049
        %v5148 = vmax.f32 %v5116, %v5050
        %v5149 = vmax.f32 %v5117, %v5051
        %v5150 = vmax.f32 %v5118, %v5052
        %v5151 = vmax.f32 %v5119, %v5053
        %v5152 = vmax.f32 %v5120, %v5054
        %v5153 = vmax.f32 %v5121, %v5055
        %v5154 = vmax.f32 %v5122, %v5026
        %v5155 = vmax.f32 %v5123, %v5027
        %v5156 = vmax.f32 %v5124, %v5028
        %v5157 = vmax.f32 %v5125, %v5029
        %v5158 = vmax.f32 %v5126, %v5030
        %v5159 = vmax.f32 %v5127, %v5031
        %v5160 = vmax.f32 %v5128, %v5032
        %v5161 = vmax.f32 %v5129, %v5033
        %v5162 = vmax.f32 %v5130, %v5034
        %v5163 = vmax.f32 %v5131, %v5035
        %v5164 = vmax.f32 %v5132, %v5036
        %v5165 = vmax.f32 %v5133, %v5037
        %v5166 = vmax.f32 %v5134, %v5038
        %v5167 = vmax.f32 %v5135, %v5039
        %v5168 = vmax.f32 %v5136, %v5040
        %v5169 = vmax.f32 %v5137, %v5041
        %v5170 = vmax.f32 %v5138, %v5042
        %v5171 = vmax.f32 %v5139, %v5043
        %v5172 = vmax.f32 %v5140, %v5044
        %v5173 = vmax.f32 %v5141, %v5045
        %v5174 = vmax.f32 %v5142, %v5046
        %v5175 = vmax.f32 %v5143, %v5047
        %v5176 = vmax.f32 %v5144, %v5048
        %v5177 = vmax.f32 %v5145, %v5049
        %v5178 = vmax.f32 %v5146, %v5050
        %v5179 = vmax.f32 %v5147, %v5051
        %v5180 = vmax.f32 %v5148, %v5052
        %v5181 = vmax.f32 %v5149, %v5053
        %v5182 = vmax.f32 %v5150, %v5054
        %v5183 = vmax.f32 %v5151, %v5055
        %v5184 = vmax.f32 %v5152, %v5056
        %v5185 = vmax.f32 %v5153, %v5057
        %5218 = vrot.lane.b32.xlu0 %v5154, 32
        %v5219 = vpop.permute.xlu0 %5218
        %5220 = vrot.lane.b32.xlu0 %v5155, 32
        %v5221 = vpop.permute.xlu0 %5220
        %5222 = vrot.lane.b32.xlu0 %v5156, 32
        %v5223 = vpop.permute.xlu0 %5222
        %5224 = vrot.lane.b32.xlu0 %v5157, 32
        %v5225 = vpop.permute.xlu0 %5224
        %5226 = vrot.lane.b32.xlu0 %v5158, 32
        %v5227 = vpop.permute.xlu0 %5226
        %5228 = vrot.lane.b32.xlu0 %v5159, 32
        %v5229 = vpop.permute.xlu0 %5228
        %5230 = vrot.lane.b32.xlu0 %v5160, 32
        %v5231 = vpop.permute.xlu0 %5230
        %5232 = vrot.lane.b32.xlu0 %v5161, 32
        %v5233 = vpop.permute.xlu0 %5232
        %5234 = vrot.lane.b32.xlu0 %v5162, 32
        %v5235 = vpop.permute.xlu0 %5234
        %5236 = vrot.lane.b32.xlu0 %v5163, 32
        %v5237 = vpop.permute.xlu0 %5236
        %5238 = vrot.lane.b32.xlu0 %v5164, 32
        %v5239 = vpop.permute.xlu0 %5238
        %5240 = vrot.lane.b32.xlu0 %v5165, 32
        %v5241 = vpop.permute.xlu0 %5240
        %5242 = vrot.lane.b32.xlu0 %v5166, 32
        %v5243 = vpop.permute.xlu0 %5242
        %5244 = vrot.lane.b32.xlu0 %v5167, 32
        %v5245 = vpop.permute.xlu0 %5244
        %5246 = vrot.lane.b32.xlu0 %v5168, 32
        %v5247 = vpop.permute.xlu0 %5246
        %5248 = vrot.lane.b32.xlu0 %v5169, 32
        %v5249 = vpop.permute.xlu0 %5248
        %5250 = vrot.lane.b32.xlu0 %v5170, 32
        %v5251 = vpop.permute.xlu0 %5250
        %5252 = vrot.lane.b32.xlu0 %v5171, 32
        %v5253 = vpop.permute.xlu0 %5252
        %5254 = vrot.lane.b32.xlu0 %v5172, 32
        %v5255 = vpop.permute.xlu0 %5254
        %5256 = vrot.lane.b32.xlu0 %v5173, 32
        %v5257 = vpop.permute.xlu0 %5256
        %5258 = vrot.lane.b32.xlu0 %v5174, 32
        %v5259 = vpop.permute.xlu0 %5258
        %5260 = vrot.lane.b32.xlu0 %v5175, 32
        %v5261 = vpop.permute.xlu0 %5260
        %5262 = vrot.lane.b32.xlu0 %v5176, 32
        %v5263 = vpop.permute.xlu0 %5262
        %5264 = vrot.lane.b32.xlu0 %v5177, 32
        %v5265 = vpop.permute.xlu0 %5264
        %5266 = vrot.lane.b32.xlu0 %v5178, 32
        %v5267 = vpop.permute.xlu0 %5266
        %5268 = vrot.lane.b32.xlu0 %v5179, 32
        %v5269 = vpop.permute.xlu0 %5268
        %5270 = vrot.lane.b32.xlu0 %v5180, 32
        %v5271 = vpop.permute.xlu0 %5270
        %5272 = vrot.lane.b32.xlu0 %v5181, 32
        %v5273 = vpop.permute.xlu0 %5272
        %5274 = vrot.lane.b32.xlu0 %v5182, 32
        %v5275 = vpop.permute.xlu0 %5274
        %5276 = vrot.lane.b32.xlu0 %v5183, 32
        %v5277 = vpop.permute.xlu0 %5276
        %5278 = vrot.lane.b32.xlu0 %v5184, 32
        %v5279 = vpop.permute.xlu0 %5278
        %5280 = vrot.lane.b32.xlu0 %v5185, 32
        %v5281 = vpop.permute.xlu0 %5280
        %5314 = vst.msk [vmem:[#allocation5] sm:$0xff] %vm1706, %v5219
        %5315 = vst.msk [vmem:[#allocation5 + $0x8] sm:$0xff] %vm1706, %v5221
        %5316 = vst.msk [vmem:[#allocation5 + $0x10] sm:$0xff] %vm1706, %v5223
        %5317 = vst.msk [vmem:[#allocation5 + $0x18] sm:$0xff] %vm1706, %v5225
        %5318 = vst.msk [vmem:[#allocation5 + $0x20] sm:$0xff] %vm1706, %v5227
        %5319 = vst.msk [vmem:[#allocation5 + $0x28] sm:$0xff] %vm1706, %v5229
        %5320 = vst.msk [vmem:[#allocation5 + $0x30] sm:$0xff] %vm1706, %v5231
        %5321 = vst.msk [vmem:[#allocation5 + $0x38] sm:$0xff] %vm1706, %v5233
        %5322 = vst.msk [vmem:[#allocation5 + $0x40] sm:$0xff] %vm1706, %v5235
        %5323 = vst.msk [vmem:[#allocation5 + $0x48] sm:$0xff] %vm1706, %v5237
        %5324 = vst.msk [vmem:[#allocation5 + $0x50] sm:$0xff] %vm1706, %v5239
        %5325 = vst.msk [vmem:[#allocation5 + $0x58] sm:$0xff] %vm1706, %v5241
        %5326 = vst.msk [vmem:[#allocation5 + $0x60] sm:$0xff] %vm1706, %v5243
        %5327 = vst.msk [vmem:[#allocation5 + $0x68] sm:$0xff] %vm1706, %v5245
        %5328 = vst.msk [vmem:[#allocation5 + $0x70] sm:$0xff] %vm1706, %v5247
        %5329 = vst.msk [vmem:[#allocation5 + $0x78] sm:$0xff] %vm1706, %v5249
        %5330 = vst.msk [vmem:[#allocation5 + $0x80] sm:$0xff] %vm1706, %v5251
        %5331 = vst.msk [vmem:[#allocation5 + $0x88] sm:$0xff] %vm1706, %v5253
        %5332 = vst.msk [vmem:[#allocation5 + $0x90] sm:$0xff] %vm1706, %v5255
        %5333 = vst.msk [vmem:[#allocation5 + $0x98] sm:$0xff] %vm1706, %v5257
        %5334 = vst.msk [vmem:[#allocation5 + $0xa0] sm:$0xff] %vm1706, %v5259
        %5335 = vst.msk [vmem:[#allocation5 + $0xa8] sm:$0xff] %vm1706, %v5261
        %5336 = vst.msk [vmem:[#allocation5 + $0xb0] sm:$0xff] %vm1706, %v5263
        %5337 = vst.msk [vmem:[#allocation5 + $0xb8] sm:$0xff] %vm1706, %v5265
        %5338 = vst.msk [vmem:[#allocation5 + $0xc0] sm:$0xff] %vm1706, %v5267
        %5339 = vst.msk [vmem:[#allocation5 + $0xc8] sm:$0xff] %vm1706, %v5269
        %5340 = vst.msk [vmem:[#allocation5 + $0xd0] sm:$0xff] %vm1706, %v5271
        %5341 = vst.msk [vmem:[#allocation5 + $0xd8] sm:$0xff] %vm1706, %v5273
        %5342 = vst.msk [vmem:[#allocation5 + $0xe0] sm:$0xff] %vm1706, %v5275
        %5343 = vst.msk [vmem:[#allocation5 + $0xe8] sm:$0xff] %vm1706, %v5277
        %5344 = vst.msk [vmem:[#allocation5 + $0xf0] sm:$0xff] %vm1706, %v5279
        %5345 = vst.msk [vmem:[#allocation5 + $0xf8] sm:$0xff] %vm1706, %v5281
        %5346 = vst.msk [vmem:[%s3985 + $0x2] sm:$0xff] %vm358, %v5154
        %5347 = vst.msk [vmem:[%s3985 + $0xa] sm:$0xff] %vm358, %v5155
        %5348 = vst.msk [vmem:[%s3985 + $0x1a] sm:$0xff] %vm358, %v5156
        %5349 = vst.msk [vmem:[%s3985 + $0x22] sm:$0xff] %vm358, %v5157
        %5350 = vst.msk [vmem:[%s3985 + $0x32] sm:$0xff] %vm358, %v5158
        %5351 = vst.msk [vmem:[%s3985 + $0x3a] sm:$0xff] %vm358, %v5159
        %5352 = vst.msk [vmem:[%s3985 + $0x4a] sm:$0xff] %vm358, %v5160
        %5353 = vst.msk [vmem:[%s3985 + $0x52] sm:$0xff] %vm358, %v5161
        %5354 = vst.msk [vmem:[%s3985 + $0x62] sm:$0xff] %vm358, %v5162
        %5355 = vst.msk [vmem:[%s3985 + $0x6a] sm:$0xff] %vm358, %v5163
        %5356 = vst.msk [vmem:[%s3985 + $0x7a] sm:$0xff] %vm358, %v5164
        %5357 = vst.msk [vmem:[%s3985 + $0x82] sm:$0xff] %vm358, %v5165
        %5358 = vst.msk [vmem:[%s3985 + $0x92] sm:$0xff] %vm358, %v5166
        %5359 = vst.msk [vmem:[%s3985 + $0x9a] sm:$0xff] %vm358, %v5167
        %5360 = vst.msk [vmem:[%s3985 + $0xaa] sm:$0xff] %vm358, %v5168
        %5361 = vst.msk [vmem:[%s3985 + $0xb2] sm:$0xff] %vm358, %v5169
        %5362 = vst.msk [vmem:[%s3985 + $0xc2] sm:$0xff] %vm358, %v5170
        %5363 = vst.msk [vmem:[%s3985 + $0xca] sm:$0xff] %vm358, %v5171
        %5364 = vst.msk [vmem:[%s3985 + $0xda] sm:$0xff] %vm358, %v5172
        %5365 = vst.msk [vmem:[%s3985 + $0xe2] sm:$0xff] %vm358, %v5173
        %5366 = vst.msk [vmem:[%s3985 + $0xf2] sm:$0xff] %vm358, %v5174
        %5367 = vst.msk [vmem:[%s3985 + $0xfa] sm:$0xff] %vm358, %v5175
        %5368 = vst.msk [vmem:[%s3985 + $0x10a] sm:$0xff] %vm358, %v5176
        %5369 = vst.msk [vmem:[%s3985 + $0x112] sm:$0xff] %vm358, %v5177
        %5370 = vst.msk [vmem:[%s3985 + $0x122] sm:$0xff] %vm358, %v5178
        %5371 = vst.msk [vmem:[%s3985 + $0x12a] sm:$0xff] %vm358, %v5179
        %5372 = vst.msk [vmem:[%s3985 + $0x13a] sm:$0xff] %vm358, %v5180
        %5373 = vst.msk [vmem:[%s3985 + $0x142] sm:$0xff] %vm358, %v5181
        %5374 = vst.msk [vmem:[%s3985 + $0x152] sm:$0xff] %vm358, %v5182
        %5375 = vst.msk [vmem:[%s3985 + $0x15a] sm:$0xff] %vm358, %v5183
        %5376 = vst.msk [vmem:[%s3985 + $0x16a] sm:$0xff] %vm358, %v5184
        %5377 = vst.msk [vmem:[%s3985 + $0x172] sm:$0xff] %vm358, %v5185
        %v5378 = vld [vmem:[#allocation3] sm:$0xff]
        %v5379 = vld [vmem:[#allocation3 + $0x8] sm:$0xff]
        %v5380 = vld [vmem:[#allocation3 + $0x18] sm:$0xff]
        %v5381 = vld [vmem:[#allocation3 + $0x20] sm:$0xff]
        %v5382 = vld [vmem:[#allocation3 + $0x30] sm:$0xff]
        %v5383 = vld [vmem:[#allocation3 + $0x38] sm:$0xff]
        %v5384 = vld [vmem:[#allocation3 + $0x48] sm:$0xff]
        %v5385 = vld [vmem:[#allocation3 + $0x50] sm:$0xff]
        %v5386 = vld [vmem:[#allocation3 + $0x60] sm:$0xff]
        %v5387 = vld [vmem:[#allocation3 + $0x68] sm:$0xff]
        %v5388 = vld [vmem:[#allocation3 + $0x78] sm:$0xff]
        %v5389 = vld [vmem:[#allocation3 + $0x80] sm:$0xff]
        %v5390 = vld [vmem:[#allocation3 + $0x90] sm:$0xff]
        %v5391 = vld [vmem:[#allocation3 + $0x98] sm:$0xff]
        %v5392 = vld [vmem:[#allocation3 + $0xa8] sm:$0xff]
        %v5393 = vld [vmem:[#allocation3 + $0xb0] sm:$0xff]
        %v5394 = vld [vmem:[#allocation3 + $0xc0] sm:$0xff]
        %v5395 = vld [vmem:[#allocation3 + $0xc8] sm:$0xff]
        %v5396 = vld [vmem:[#allocation3 + $0xd8] sm:$0xff]
        %v5397 = vld [vmem:[#allocation3 + $0xe0] sm:$0xff]
        %v5398 = vld [vmem:[#allocation3 + $0xf0] sm:$0xff]
        %v5399 = vld [vmem:[#allocation3 + $0xf8] sm:$0xff]
        %v5400 = vld [vmem:[#allocation3 + $0x108] sm:$0xff]
        %v5401 = vld [vmem:[#allocation3 + $0x110] sm:$0xff]
        %v5402 = vld [vmem:[#allocation3 + $0x120] sm:$0xff]
        %v5403 = vld [vmem:[#allocation3 + $0x128] sm:$0xff]
        %v5404 = vld [vmem:[#allocation3 + $0x138] sm:$0xff]
        %v5405 = vld [vmem:[#allocation3 + $0x140] sm:$0xff]
        %v5406 = vld [vmem:[#allocation3 + $0x150] sm:$0xff]
        %v5407 = vld [vmem:[#allocation3 + $0x158] sm:$0xff]
        %v5408 = vld [vmem:[#allocation3 + $0x168] sm:$0xff]
        %v5409 = vld [vmem:[#allocation3 + $0x170] sm:$0xff]
        %v5410 = vld [vmem:[#allocation3 + $0x180] sm:$0xff]
        %v5411 = vld [vmem:[#allocation3 + $0x188] sm:$0xff]
        %v5412 = vld [vmem:[#allocation3 + $0x198] sm:$0xff]
        %v5413 = vld [vmem:[#allocation3 + $0x1a0] sm:$0xff]
        %v5414 = vld [vmem:[#allocation3 + $0x1b0] sm:$0xff]
        %v5415 = vld [vmem:[#allocation3 + $0x1b8] sm:$0xff]
        %v5416 = vld [vmem:[#allocation3 + $0x1c8] sm:$0xff]
        %v5417 = vld [vmem:[#allocation3 + $0x1d0] sm:$0xff]
        %v5418 = vld [vmem:[#allocation3 + $0x1] sm:$0xff]
        %v5419 = vld [vmem:[#allocation3 + $0x9] sm:$0xff]
        %v5420 = vld [vmem:[#allocation3 + $0x19] sm:$0xff]
        %v5421 = vld [vmem:[#allocation3 + $0x21] sm:$0xff]
        %v5422 = vld [vmem:[#allocation3 + $0x31] sm:$0xff]
        %v5423 = vld [vmem:[#allocation3 + $0x39] sm:$0xff]
        %v5424 = vld [vmem:[#allocation3 + $0x49] sm:$0xff]
        %v5425 = vld [vmem:[#allocation3 + $0x51] sm:$0xff]
        %v5426 = vld [vmem:[#allocation3 + $0x61] sm:$0xff]
        %v5427 = vld [vmem:[#allocation3 + $0x69] sm:$0xff]
        %v5428 = vld [vmem:[#allocation3 + $0x79] sm:$0xff]
        %v5429 = vld [vmem:[#allocation3 + $0x81] sm:$0xff]
        %v5430 = vld [vmem:[#allocation3 + $0x91] sm:$0xff]
        %v5431 = vld [vmem:[#allocation3 + $0x99] sm:$0xff]
        %v5432 = vld [vmem:[#allocation3 + $0xa9] sm:$0xff]
        %v5433 = vld [vmem:[#allocation3 + $0xb1] sm:$0xff]
        %v5434 = vld [vmem:[#allocation3 + $0xc1] sm:$0xff]
        %v5435 = vld [vmem:[#allocation3 + $0xc9] sm:$0xff]
        %v5436 = vld [vmem:[#allocation3 + $0xd9] sm:$0xff]
        %v5437 = vld [vmem:[#allocation3 + $0xe1] sm:$0xff]
        %v5438 = vld [vmem:[#allocation3 + $0xf1] sm:$0xff]
        %v5439 = vld [vmem:[#allocation3 + $0xf9] sm:$0xff]
        %v5440 = vld [vmem:[#allocation3 + $0x109] sm:$0xff]
        %v5441 = vld [vmem:[#allocation3 + $0x111] sm:$0xff]
        %v5442 = vld [vmem:[#allocation3 + $0x121] sm:$0xff]
        %v5443 = vld [vmem:[#allocation3 + $0x129] sm:$0xff]
        %v5444 = vld [vmem:[#allocation3 + $0x139] sm:$0xff]
        %v5445 = vld [vmem:[#allocation3 + $0x141] sm:$0xff]
        %v5446 = vld [vmem:[#allocation3 + $0x151] sm:$0xff]
        %v5447 = vld [vmem:[#allocation3 + $0x159] sm:$0xff]
        %v5448 = vld [vmem:[#allocation3 + $0x169] sm:$0xff]
        %v5449 = vld [vmem:[#allocation3 + $0x171] sm:$0xff]
        %v5450 = vld [vmem:[#allocation3 + $0x181] sm:$0xff]
        %v5451 = vld [vmem:[#allocation3 + $0x189] sm:$0xff]
        %v5452 = vld [vmem:[#allocation3 + $0x199] sm:$0xff]
        %v5453 = vld [vmem:[#allocation3 + $0x1a1] sm:$0xff]
        %v5454 = vld [vmem:[#allocation3 + $0x1b1] sm:$0xff]
        %v5455 = vld [vmem:[#allocation3 + $0x1b9] sm:$0xff]
        %v5456 = vld [vmem:[#allocation3 + $0x1c9] sm:$0xff]
        %v5457 = vld [vmem:[#allocation3 + $0x1d1] sm:$0xff]
        %v5458 = vmax.f32 %v5378, %v5418
        %v5459 = vmax.f32 %v5379, %v5419
        %v5460 = vmax.f32 %v5380, %v5420
        %v5461 = vmax.f32 %v5381, %v5421
        %v5462 = vmax.f32 %v5382, %v5422
        %v5463 = vmax.f32 %v5383, %v5423
        %v5464 = vmax.f32 %v5384, %v5424
        %v5465 = vmax.f32 %v5385, %v5425
        %v5466 = vmax.f32 %v5386, %v5426
        %v5467 = vmax.f32 %v5387, %v5427
        %v5468 = vmax.f32 %v5388, %v5428
        %v5469 = vmax.f32 %v5389, %v5429
        %v5470 = vmax.f32 %v5390, %v5430
        %v5471 = vmax.f32 %v5391, %v5431
        %v5472 = vmax.f32 %v5392, %v5432
        %v5473 = vmax.f32 %v5393, %v5433
        %v5474 = vmax.f32 %v5394, %v5434
        %v5475 = vmax.f32 %v5395, %v5435
        %v5476 = vmax.f32 %v5396, %v5436
        %v5477 = vmax.f32 %v5397, %v5437
        %v5478 = vmax.f32 %v5398, %v5438
        %v5479 = vmax.f32 %v5399, %v5439
        %v5480 = vmax.f32 %v5400, %v5440
        %v5481 = vmax.f32 %v5401, %v5441
        %v5482 = vmax.f32 %v5402, %v5442
        %v5483 = vmax.f32 %v5403, %v5443
        %v5484 = vmax.f32 %v5404, %v5444
        %v5485 = vmax.f32 %v5405, %v5445
        %v5486 = vmax.f32 %v5406, %v5446
        %v5487 = vmax.f32 %v5407, %v5447
        %v5488 = vmax.f32 %v5408, %v5448
        %v5489 = vmax.f32 %v5409, %v5449
        %v5490 = vmax.f32 %v5410, %v5450
        %v5491 = vmax.f32 %v5411, %v5451
        %v5492 = vmax.f32 %v5412, %v5452
        %v5493 = vmax.f32 %v5413, %v5453
        %v5494 = vmax.f32 %v5414, %v5454
        %v5495 = vmax.f32 %v5415, %v5455
        %v5496 = vmax.f32 %v5416, %v5456
        %v5497 = vmax.f32 %v5417, %v5457
        %v5498 = vld [vmem:[#allocation3 + $0x2] sm:$0xff]
        %v5499 = vld [vmem:[#allocation3 + $0xa] sm:$0xff]
        %v5500 = vld [vmem:[#allocation3 + $0x1a] sm:$0xff]
        %v5501 = vld [vmem:[#allocation3 + $0x22] sm:$0xff]
        %v5502 = vld [vmem:[#allocation3 + $0x32] sm:$0xff]
        %v5503 = vld [vmem:[#allocation3 + $0x3a] sm:$0xff]
        %v5504 = vld [vmem:[#allocation3 + $0x4a] sm:$0xff]
        %v5505 = vld [vmem:[#allocation3 + $0x52] sm:$0xff]
        %v5506 = vld [vmem:[#allocation3 + $0x62] sm:$0xff]
        %v5507 = vld [vmem:[#allocation3 + $0x6a] sm:$0xff]
        %v5508 = vld [vmem:[#allocation3 + $0x7a] sm:$0xff]
        %v5509 = vld [vmem:[#allocation3 + $0x82] sm:$0xff]
        %v5510 = vld [vmem:[#allocation3 + $0x92] sm:$0xff]
        %v5511 = vld [vmem:[#allocation3 + $0x9a] sm:$0xff]
        %v5512 = vld [vmem:[#allocation3 + $0xaa] sm:$0xff]
        %v5513 = vld [vmem:[#allocation3 + $0xb2] sm:$0xff]
        %v5514 = vld [vmem:[#allocation3 + $0xc2] sm:$0xff]
        %v5515 = vld [vmem:[#allocation3 + $0xca] sm:$0xff]
        %v5516 = vld [vmem:[#allocation3 + $0xda] sm:$0xff]
        %v5517 = vld [vmem:[#allocation3 + $0xe2] sm:$0xff]
        %v5518 = vld [vmem:[#allocation3 + $0xf2] sm:$0xff]
        %v5519 = vld [vmem:[#allocation3 + $0xfa] sm:$0xff]
        %v5520 = vld [vmem:[#allocation3 + $0x10a] sm:$0xff]
        %v5521 = vld [vmem:[#allocation3 + $0x112] sm:$0xff]
        %v5522 = vld [vmem:[#allocation3 + $0x122] sm:$0xff]
        %v5523 = vld [vmem:[#allocation3 + $0x12a] sm:$0xff]
        %v5524 = vld [vmem:[#allocation3 + $0x13a] sm:$0xff]
        %v5525 = vld [vmem:[#allocation3 + $0x142] sm:$0xff]
        %v5526 = vld [vmem:[#allocation3 + $0x152] sm:$0xff]
        %v5527 = vld [vmem:[#allocation3 + $0x15a] sm:$0xff]
        %v5528 = vld [vmem:[#allocation3 + $0x16a] sm:$0xff]
        %v5529 = vld [vmem:[#allocation3 + $0x172] sm:$0xff]
        %v5530 = vld [vmem:[#allocation3 + $0x182] sm:$0xff]
        %v5531 = vld [vmem:[#allocation3 + $0x18a] sm:$0xff]
        %v5532 = vld [vmem:[#allocation3 + $0x19a] sm:$0xff]
        %v5533 = vld [vmem:[#allocation3 + $0x1a2] sm:$0xff]
        %v5534 = vld [vmem:[#allocation3 + $0x1b2] sm:$0xff]
        %v5535 = vld [vmem:[#allocation3 + $0x1ba] sm:$0xff]
        %v5536 = vld [vmem:[#allocation3 + $0x1ca] sm:$0xff]
        %v5537 = vld [vmem:[#allocation3 + $0x1d2] sm:$0xff]
        %v5538 = vmax.f32 %v5458, %v5498
        %v5539 = vmax.f32 %v5459, %v5499
        %v5540 = vmax.f32 %v5460, %v5500
        %v5541 = vmax.f32 %v5461, %v5501
        %v5542 = vmax.f32 %v5462, %v5502
        %v5543 = vmax.f32 %v5463, %v5503
        %v5544 = vmax.f32 %v5464, %v5504
        %v5545 = vmax.f32 %v5465, %v5505
        %v5546 = vmax.f32 %v5466, %v5506
        %v5547 = vmax.f32 %v5467, %v5507
        %v5548 = vmax.f32 %v5468, %v5508
        %v5549 = vmax.f32 %v5469, %v5509
        %v5550 = vmax.f32 %v5470, %v5510
        %v5551 = vmax.f32 %v5471, %v5511
        %v5552 = vmax.f32 %v5472, %v5512
        %v5553 = vmax.f32 %v5473, %v5513
        %v5554 = vmax.f32 %v5474, %v5514
        %v5555 = vmax.f32 %v5475, %v5515
        %v5556 = vmax.f32 %v5476, %v5516
        %v5557 = vmax.f32 %v5477, %v5517
        %v5558 = vmax.f32 %v5478, %v5518
        %v5559 = vmax.f32 %v5479, %v5519
        %v5560 = vmax.f32 %v5480, %v5520
        %v5561 = vmax.f32 %v5481, %v5521
        %v5562 = vmax.f32 %v5482, %v5522
        %v5563 = vmax.f32 %v5483, %v5523
        %v5564 = vmax.f32 %v5484, %v5524
        %v5565 = vmax.f32 %v5485, %v5525
        %v5566 = vmax.f32 %v5486, %v5526
        %v5567 = vmax.f32 %v5487, %v5527
        %v5568 = vmax.f32 %v5488, %v5528
        %v5569 = vmax.f32 %v5489, %v5529
        %v5570 = vmax.f32 %v5490, %v5530
        %v5571 = vmax.f32 %v5491, %v5531
        %v5572 = vmax.f32 %v5492, %v5532
        %v5573 = vmax.f32 %v5493, %v5533
        %v5574 = vmax.f32 %v5494, %v5534
        %v5575 = vmax.f32 %v5495, %v5535
        %v5576 = vmax.f32 %v5496, %v5536
        %v5577 = vmax.f32 %v5497, %v5537
        %v5578 = vld [vmem:[#allocation3 + $0x3] sm:$0xff]
        %v5579 = vld [vmem:[#allocation3 + $0xb] sm:$0xff]
        %v5580 = vld [vmem:[#allocation3 + $0x1b] sm:$0xff]
        %v5581 = vld [vmem:[#allocation3 + $0x23] sm:$0xff]
        %v5582 = vld [vmem:[#allocation3 + $0x33] sm:$0xff]
        %v5583 = vld [vmem:[#allocation3 + $0x3b] sm:$0xff]
        %v5584 = vld [vmem:[#allocation3 + $0x4b] sm:$0xff]
        %v5585 = vld [vmem:[#allocation3 + $0x53] sm:$0xff]
        %v5586 = vld [vmem:[#allocation3 + $0x63] sm:$0xff]
        %v5587 = vld [vmem:[#allocation3 + $0x6b] sm:$0xff]
        %v5588 = vld [vmem:[#allocation3 + $0x7b] sm:$0xff]
        %v5589 = vld [vmem:[#allocation3 + $0x83] sm:$0xff]
        %v5590 = vld [vmem:[#allocation3 + $0x93] sm:$0xff]
        %v5591 = vld [vmem:[#allocation3 + $0x9b] sm:$0xff]
        %v5592 = vld [vmem:[#allocation3 + $0xab] sm:$0xff]
        %v5593 = vld [vmem:[#allocation3 + $0xb3] sm:$0xff]
        %v5594 = vld [vmem:[#allocation3 + $0xc3] sm:$0xff]
        %v5595 = vld [vmem:[#allocation3 + $0xcb] sm:$0xff]
        %v5596 = vld [vmem:[#allocation3 + $0xdb] sm:$0xff]
        %v5597 = vld [vmem:[#allocation3 + $0xe3] sm:$0xff]
        %v5598 = vld [vmem:[#allocation3 + $0xf3] sm:$0xff]
        %v5599 = vld [vmem:[#allocation3 + $0xfb] sm:$0xff]
        %v5600 = vld [vmem:[#allocation3 + $0x10b] sm:$0xff]
        %v5601 = vld [vmem:[#allocation3 + $0x113] sm:$0xff]
        %v5602 = vld [vmem:[#allocation3 + $0x123] sm:$0xff]
        %v5603 = vld [vmem:[#allocation3 + $0x12b] sm:$0xff]
        %v5604 = vld [vmem:[#allocation3 + $0x13b] sm:$0xff]
        %v5605 = vld [vmem:[#allocation3 + $0x143] sm:$0xff]
        %v5606 = vld [vmem:[#allocation3 + $0x153] sm:$0xff]
        %v5607 = vld [vmem:[#allocation3 + $0x15b] sm:$0xff]
        %v5608 = vld [vmem:[#allocation3 + $0x16b] sm:$0xff]
        %v5609 = vld [vmem:[#allocation3 + $0x173] sm:$0xff]
        %v5610 = vld [vmem:[#allocation3 + $0x183] sm:$0xff]
        %v5611 = vld [vmem:[#allocation3 + $0x18b] sm:$0xff]
        %v5612 = vld [vmem:[#allocation3 + $0x19b] sm:$0xff]
        %v5613 = vld [vmem:[#allocation3 + $0x1a3] sm:$0xff]
        %v5614 = vld [vmem:[#allocation3 + $0x1b3] sm:$0xff]
        %v5615 = vld [vmem:[#allocation3 + $0x1bb] sm:$0xff]
        %v5616 = vld [vmem:[#allocation3 + $0x1cb] sm:$0xff]
        %v5617 = vld [vmem:[#allocation3 + $0x1d3] sm:$0xff]
        %v5618 = vmax.f32 %v5538, %v5578
        %v5619 = vmax.f32 %v5539, %v5579
        %v5620 = vmax.f32 %v5540, %v5580
        %v5621 = vmax.f32 %v5541, %v5581
        %v5622 = vmax.f32 %v5542, %v5582
        %v5623 = vmax.f32 %v5543, %v5583
        %v5624 = vmax.f32 %v5544, %v5584
        %v5625 = vmax.f32 %v5545, %v5585
        %v5626 = vmax.f32 %v5546, %v5586
        %v5627 = vmax.f32 %v5547, %v5587
        %v5628 = vmax.f32 %v5548, %v5588
        %v5629 = vmax.f32 %v5549, %v5589
        %v5630 = vmax.f32 %v5550, %v5590
        %v5631 = vmax.f32 %v5551, %v5591
        %v5632 = vmax.f32 %v5552, %v5592
        %v5633 = vmax.f32 %v5553, %v5593
        %v5634 = vmax.f32 %v5554, %v5594
        %v5635 = vmax.f32 %v5555, %v5595
        %v5636 = vmax.f32 %v5556, %v5596
        %v5637 = vmax.f32 %v5557, %v5597
        %v5638 = vmax.f32 %v5558, %v5598
        %v5639 = vmax.f32 %v5559, %v5599
        %v5640 = vmax.f32 %v5560, %v5600
        %v5641 = vmax.f32 %v5561, %v5601
        %v5642 = vmax.f32 %v5562, %v5602
        %v5643 = vmax.f32 %v5563, %v5603
        %v5644 = vmax.f32 %v5564, %v5604
        %v5645 = vmax.f32 %v5565, %v5605
        %v5646 = vmax.f32 %v5566, %v5606
        %v5647 = vmax.f32 %v5567, %v5607
        %v5648 = vmax.f32 %v5568, %v5608
        %v5649 = vmax.f32 %v5569, %v5609
        %v5650 = vmax.f32 %v5570, %v5610
        %v5651 = vmax.f32 %v5571, %v5611
        %v5652 = vmax.f32 %v5572, %v5612
        %v5653 = vmax.f32 %v5573, %v5613
        %v5654 = vmax.f32 %v5574, %v5614
        %v5655 = vmax.f32 %v5575, %v5615
        %v5656 = vmax.f32 %v5576, %v5616
        %v5657 = vmax.f32 %v5577, %v5617
        %v5658 = vld [vmem:[#allocation3 + $0x4] sm:$0xff]
        %v5659 = vld [vmem:[#allocation3 + $0xc] sm:$0xff]
        %v5660 = vld [vmem:[#allocation3 + $0x1c] sm:$0xff]
        %v5661 = vld [vmem:[#allocation3 + $0x24] sm:$0xff]
        %v5662 = vld [vmem:[#allocation3 + $0x34] sm:$0xff]
        %v5663 = vld [vmem:[#allocation3 + $0x3c] sm:$0xff]
        %v5664 = vld [vmem:[#allocation3 + $0x4c] sm:$0xff]
        %v5665 = vld [vmem:[#allocation3 + $0x54] sm:$0xff]
        %v5666 = vld [vmem:[#allocation3 + $0x64] sm:$0xff]
        %v5667 = vld [vmem:[#allocation3 + $0x6c] sm:$0xff]
        %v5668 = vld [vmem:[#allocation3 + $0x7c] sm:$0xff]
        %v5669 = vld [vmem:[#allocation3 + $0x84] sm:$0xff]
        %v5670 = vld [vmem:[#allocation3 + $0x94] sm:$0xff]
        %v5671 = vld [vmem:[#allocation3 + $0x9c] sm:$0xff]
        %v5672 = vld [vmem:[#allocation3 + $0xac] sm:$0xff]
        %v5673 = vld [vmem:[#allocation3 + $0xb4] sm:$0xff]
        %v5674 = vld [vmem:[#allocation3 + $0xc4] sm:$0xff]
        %v5675 = vld [vmem:[#allocation3 + $0xcc] sm:$0xff]
        %v5676 = vld [vmem:[#allocation3 + $0xdc] sm:$0xff]
        %v5677 = vld [vmem:[#allocation3 + $0xe4] sm:$0xff]
        %v5678 = vld [vmem:[#allocation3 + $0xf4] sm:$0xff]
        %v5679 = vld [vmem:[#allocation3 + $0xfc] sm:$0xff]
        %v5680 = vld [vmem:[#allocation3 + $0x10c] sm:$0xff]
        %v5681 = vld [vmem:[#allocation3 + $0x114] sm:$0xff]
        %v5682 = vld [vmem:[#allocation3 + $0x124] sm:$0xff]
        %v5683 = vld [vmem:[#allocation3 + $0x12c] sm:$0xff]
        %v5684 = vld [vmem:[#allocation3 + $0x13c] sm:$0xff]
        %v5685 = vld [vmem:[#allocation3 + $0x144] sm:$0xff]
        %v5686 = vld [vmem:[#allocation3 + $0x154] sm:$0xff]
        %v5687 = vld [vmem:[#allocation3 + $0x15c] sm:$0xff]
        %v5688 = vld [vmem:[#allocation3 + $0x16c] sm:$0xff]
        %v5689 = vld [vmem:[#allocation3 + $0x174] sm:$0xff]
        %v5690 = vld [vmem:[#allocation3 + $0x184] sm:$0xff]
        %v5691 = vld [vmem:[#allocation3 + $0x18c] sm:$0xff]
        %v5692 = vld [vmem:[#allocation3 + $0x19c] sm:$0xff]
        %v5693 = vld [vmem:[#allocation3 + $0x1a4] sm:$0xff]
        %v5694 = vld [vmem:[#allocation3 + $0x1b4] sm:$0xff]
        %v5695 = vld [vmem:[#allocation3 + $0x1bc] sm:$0xff]
        %v5696 = vld [vmem:[#allocation3 + $0x1cc] sm:$0xff]
        %v5697 = vld [vmem:[#allocation3 + $0x1d4] sm:$0xff]
        %v5698 = vmax.f32 %v5618, %v5658
        %v5699 = vmax.f32 %v5619, %v5659
        %v5700 = vmax.f32 %v5620, %v5660
        %v5701 = vmax.f32 %v5621, %v5661
        %v5702 = vmax.f32 %v5622, %v5662
        %v5703 = vmax.f32 %v5623, %v5663
        %v5704 = vmax.f32 %v5624, %v5664
        %v5705 = vmax.f32 %v5625, %v5665
        %v5706 = vmax.f32 %v5626, %v5666
        %v5707 = vmax.f32 %v5627, %v5667
        %v5708 = vmax.f32 %v5628, %v5668
        %v5709 = vmax.f32 %v5629, %v5669
        %v5710 = vmax.f32 %v5630, %v5670
        %v5711 = vmax.f32 %v5631, %v5671
        %v5712 = vmax.f32 %v5632, %v5672
        %v5713 = vmax.f32 %v5633, %v5673
        %v5714 = vmax.f32 %v5634, %v5674
        %v5715 = vmax.f32 %v5635, %v5675
        %v5716 = vmax.f32 %v5636, %v5676
        %v5717 = vmax.f32 %v5637, %v5677
        %v5718 = vmax.f32 %v5638, %v5678
        %v5719 = vmax.f32 %v5639, %v5679
        %v5720 = vmax.f32 %v5640, %v5680
        %v5721 = vmax.f32 %v5641, %v5681
        %v5722 = vmax.f32 %v5642, %v5682
        %v5723 = vmax.f32 %v5643, %v5683
        %v5724 = vmax.f32 %v5644, %v5684
        %v5725 = vmax.f32 %v5645, %v5685
        %v5726 = vmax.f32 %v5646, %v5686
        %v5727 = vmax.f32 %v5647, %v5687
        %v5728 = vmax.f32 %v5648, %v5688
        %v5729 = vmax.f32 %v5649, %v5689
        %v5730 = vmax.f32 %v5650, %v5690
        %v5731 = vmax.f32 %v5651, %v5691
        %v5732 = vmax.f32 %v5652, %v5692
        %v5733 = vmax.f32 %v5653, %v5693
        %v5734 = vmax.f32 %v5654, %v5694
        %v5735 = vmax.f32 %v5655, %v5695
        %v5736 = vmax.f32 %v5656, %v5696
        %v5737 = vmax.f32 %v5657, %v5697
        %v5738 = vmax.f32 %v5698, %v5700
        %v5739 = vmax.f32 %v5699, %v5701
        %v5740 = vmax.f32 %v5700, %v5702
        %v5741 = vmax.f32 %v5701, %v5703
        %v5742 = vmax.f32 %v5702, %v5704
        %v5743 = vmax.f32 %v5703, %v5705
        %v5744 = vmax.f32 %v5704, %v5706
        %v5745 = vmax.f32 %v5705, %v5707
        %v5746 = vmax.f32 %v5706, %v5708
        %v5747 = vmax.f32 %v5707, %v5709
        %v5748 = vmax.f32 %v5708, %v5710
        %v5749 = vmax.f32 %v5709, %v5711
        %v5750 = vmax.f32 %v5710, %v5712
        %v5751 = vmax.f32 %v5711, %v5713
        %v5752 = vmax.f32 %v5712, %v5714
        %v5753 = vmax.f32 %v5713, %v5715
        %v5754 = vmax.f32 %v5714, %v5716
        %v5755 = vmax.f32 %v5715, %v5717
        %v5756 = vmax.f32 %v5716, %v5718
        %v5757 = vmax.f32 %v5717, %v5719
        %v5758 = vmax.f32 %v5718, %v5720
        %v5759 = vmax.f32 %v5719, %v5721
        %v5760 = vmax.f32 %v5720, %v5722
        %v5761 = vmax.f32 %v5721, %v5723
        %v5762 = vmax.f32 %v5722, %v5724
        %v5763 = vmax.f32 %v5723, %v5725
        %v5764 = vmax.f32 %v5724, %v5726
        %v5765 = vmax.f32 %v5725, %v5727
        %v5766 = vmax.f32 %v5726, %v5728
        %v5767 = vmax.f32 %v5727, %v5729
        %v5768 = vmax.f32 %v5728, %v5730
        %v5769 = vmax.f32 %v5729, %v5731
        %v5770 = vmax.f32 %v5738, %v5702
        %v5771 = vmax.f32 %v5739, %v5703
        %v5772 = vmax.f32 %v5740, %v5704
        %v5773 = vmax.f32 %v5741, %v5705
        %v5774 = vmax.f32 %v5742, %v5706
        %v5775 = vmax.f32 %v5743, %v5707
        %v5776 = vmax.f32 %v5744, %v5708
        %v5777 = vmax.f32 %v5745, %v5709
        %v5778 = vmax.f32 %v5746, %v5710
        %v5779 = vmax.f32 %v5747, %v5711
        %v5780 = vmax.f32 %v5748, %v5712
        %v5781 = vmax.f32 %v5749, %v5713
        %v5782 = vmax.f32 %v5750, %v5714
        %v5783 = vmax.f32 %v5751, %v5715
        %v5784 = vmax.f32 %v5752, %v5716
        %v5785 = vmax.f32 %v5753, %v5717
        %v5786 = vmax.f32 %v5754, %v5718
        %v5787 = vmax.f32 %v5755, %v5719
        %v5788 = vmax.f32 %v5756, %v5720
        %v5789 = vmax.f32 %v5757, %v5721
        %v5790 = vmax.f32 %v5758, %v5722
        %v5791 = vmax.f32 %v5759, %v5723
        %v5792 = vmax.f32 %v5760, %v5724
        %v5793 = vmax.f32 %v5761, %v5725
        %v5794 = vmax.f32 %v5762, %v5726
        %v5795 = vmax.f32 %v5763, %v5727
        %v5796 = vmax.f32 %v5764, %v5728
        %v5797 = vmax.f32 %v5765, %v5729
        %v5798 = vmax.f32 %v5766, %v5730
        %v5799 = vmax.f32 %v5767, %v5731
        %v5800 = vmax.f32 %v5768, %v5732
        %v5801 = vmax.f32 %v5769, %v5733
        %v5802 = vmax.f32 %v5770, %v5704
        %v5803 = vmax.f32 %v5771, %v5705
        %v5804 = vmax.f32 %v5772, %v5706
        %v5805 = vmax.f32 %v5773, %v5707
        %v5806 = vmax.f32 %v5774, %v5708
        %v5807 = vmax.f32 %v5775, %v5709
        %v5808 = vmax.f32 %v5776, %v5710
        %v5809 = vmax.f32 %v5777, %v5711
        %v5810 = vmax.f32 %v5778, %v5712
        %v5811 = vmax.f32 %v5779, %v5713
        %v5812 = vmax.f32 %v5780, %v5714
        %v5813 = vmax.f32 %v5781, %v5715
        %v5814 = vmax.f32 %v5782, %v5716
        %v5815 = vmax.f32 %v5783, %v5717
        %v5816 = vmax.f32 %v5784, %v5718
        %v5817 = vmax.f32 %v5785, %v5719
        %v5818 = vmax.f32 %v5786, %v5720
        %v5819 = vmax.f32 %v5787, %v5721
        %v5820 = vmax.f32 %v5788, %v5722
        %v5821 = vmax.f32 %v5789, %v5723
        %v5822 = vmax.f32 %v5790, %v5724
        %v5823 = vmax.f32 %v5791, %v5725
        %v5824 = vmax.f32 %v5792, %v5726
        %v5825 = vmax.f32 %v5793, %v5727
        %v5826 = vmax.f32 %v5794, %v5728
        %v5827 = vmax.f32 %v5795, %v5729
        %v5828 = vmax.f32 %v5796, %v5730
        %v5829 = vmax.f32 %v5797, %v5731
        %v5830 = vmax.f32 %v5798, %v5732
        %v5831 = vmax.f32 %v5799, %v5733
        %v5832 = vmax.f32 %v5800, %v5734
        %v5833 = vmax.f32 %v5801, %v5735
        %v5834 = vmax.f32 %v5802, %v5706
        %v5835 = vmax.f32 %v5803, %v5707
        %v5836 = vmax.f32 %v5804, %v5708
        %v5837 = vmax.f32 %v5805, %v5709
        %v5838 = vmax.f32 %v5806, %v5710
        %v5839 = vmax.f32 %v5807, %v5711
        %v5840 = vmax.f32 %v5808, %v5712
        %v5841 = vmax.f32 %v5809, %v5713
        %v5842 = vmax.f32 %v5810, %v5714
        %v5843 = vmax.f32 %v5811, %v5715
        %v5844 = vmax.f32 %v5812, %v5716
        %v5845 = vmax.f32 %v5813, %v5717
        %v5846 = vmax.f32 %v5814, %v5718
        %v5847 = vmax.f32 %v5815, %v5719
        %v5848 = vmax.f32 %v5816, %v5720
        %v5849 = vmax.f32 %v5817, %v5721
        %v5850 = vmax.f32 %v5818, %v5722
        %v5851 = vmax.f32 %v5819, %v5723
        %v5852 = vmax.f32 %v5820, %v5724
        %v5853 = vmax.f32 %v5821, %v5725
        %v5854 = vmax.f32 %v5822, %v5726
        %v5855 = vmax.f32 %v5823, %v5727
        %v5856 = vmax.f32 %v5824, %v5728
        %v5857 = vmax.f32 %v5825, %v5729
        %v5858 = vmax.f32 %v5826, %v5730
        %v5859 = vmax.f32 %v5827, %v5731
        %v5860 = vmax.f32 %v5828, %v5732
        %v5861 = vmax.f32 %v5829, %v5733
        %v5862 = vmax.f32 %v5830, %v5734
        %v5863 = vmax.f32 %v5831, %v5735
        %v5864 = vmax.f32 %v5832, %v5736
        %v5865 = vmax.f32 %v5833, %v5737
        %5898 = vrot.lane.b32.xlu0 %v5834, 48
        %v5899 = vpop.permute.xlu0 %5898
        %5900 = vrot.lane.b32.xlu0 %v5835, 48
        %v5901 = vpop.permute.xlu0 %5900
        %5902 = vrot.lane.b32.xlu0 %v5836, 48
        %v5903 = vpop.permute.xlu0 %5902
        %5904 = vrot.lane.b32.xlu0 %v5837, 48
        %v5905 = vpop.permute.xlu0 %5904
        %5906 = vrot.lane.b32.xlu0 %v5838, 48
        %v5907 = vpop.permute.xlu0 %5906
        %5908 = vrot.lane.b32.xlu0 %v5839, 48
        %v5909 = vpop.permute.xlu0 %5908
        %5910 = vrot.lane.b32.xlu0 %v5840, 48
        %v5911 = vpop.permute.xlu0 %5910
        %5912 = vrot.lane.b32.xlu0 %v5841, 48
        %v5913 = vpop.permute.xlu0 %5912
        %5914 = vrot.lane.b32.xlu0 %v5842, 48
        %v5915 = vpop.permute.xlu0 %5914
        %5916 = vrot.lane.b32.xlu0 %v5843, 48
        %v5917 = vpop.permute.xlu0 %5916
        %5918 = vrot.lane.b32.xlu0 %v5844, 48
        %v5919 = vpop.permute.xlu0 %5918
        %5920 = vrot.lane.b32.xlu0 %v5845, 48
        %v5921 = vpop.permute.xlu0 %5920
        %5922 = vrot.lane.b32.xlu0 %v5846, 48
        %v5923 = vpop.permute.xlu0 %5922
        %5924 = vrot.lane.b32.xlu0 %v5847, 48
        %v5925 = vpop.permute.xlu0 %5924
        %5926 = vrot.lane.b32.xlu0 %v5848, 48
        %v5927 = vpop.permute.xlu0 %5926
        %5928 = vrot.lane.b32.xlu0 %v5849, 48
        %v5929 = vpop.permute.xlu0 %5928
        %5930 = vrot.lane.b32.xlu0 %v5850, 48
        %v5931 = vpop.permute.xlu0 %5930
        %5932 = vrot.lane.b32.xlu0 %v5851, 48
        %v5933 = vpop.permute.xlu0 %5932
        %5934 = vrot.lane.b32.xlu0 %v5852, 48
        %v5935 = vpop.permute.xlu0 %5934
        %5936 = vrot.lane.b32.xlu0 %v5853, 48
        %v5937 = vpop.permute.xlu0 %5936
        %5938 = vrot.lane.b32.xlu0 %v5854, 48
        %v5939 = vpop.permute.xlu0 %5938
        %5940 = vrot.lane.b32.xlu0 %v5855, 48
        %v5941 = vpop.permute.xlu0 %5940
        %5942 = vrot.lane.b32.xlu0 %v5856, 48
        %v5943 = vpop.permute.xlu0 %5942
        %5944 = vrot.lane.b32.xlu0 %v5857, 48
        %v5945 = vpop.permute.xlu0 %5944
        %5946 = vrot.lane.b32.xlu0 %v5858, 48
        %v5947 = vpop.permute.xlu0 %5946
        %5948 = vrot.lane.b32.xlu0 %v5859, 48
        %v5949 = vpop.permute.xlu0 %5948
        %5950 = vrot.lane.b32.xlu0 %v5860, 48
        %v5951 = vpop.permute.xlu0 %5950
        %5952 = vrot.lane.b32.xlu0 %v5861, 48
        %v5953 = vpop.permute.xlu0 %5952
        %5954 = vrot.lane.b32.xlu0 %v5862, 48
        %v5955 = vpop.permute.xlu0 %5954
        %5956 = vrot.lane.b32.xlu0 %v5863, 48
        %v5957 = vpop.permute.xlu0 %5956
        %5958 = vrot.lane.b32.xlu0 %v5864, 48
        %v5959 = vpop.permute.xlu0 %5958
        %5960 = vrot.lane.b32.xlu0 %v5865, 48
        %v5961 = vpop.permute.xlu0 %5960
        %5994 = vst.msk [vmem:[#allocation5] sm:$0xff] %vm1899, %v5899
        %5995 = vst.msk [vmem:[#allocation5 + $0x8] sm:$0xff] %vm1899, %v5901
        %5996 = vst.msk [vmem:[#allocation5 + $0x10] sm:$0xff] %vm1899, %v5903
        %5997 = vst.msk [vmem:[#allocation5 + $0x18] sm:$0xff] %vm1899, %v5905
        %5998 = vst.msk [vmem:[#allocation5 + $0x20] sm:$0xff] %vm1899, %v5907
        %5999 = vst.msk [vmem:[#allocation5 + $0x28] sm:$0xff] %vm1899, %v5909
        %6000 = vst.msk [vmem:[#allocation5 + $0x30] sm:$0xff] %vm1899, %v5911
        %6001 = vst.msk [vmem:[#allocation5 + $0x38] sm:$0xff] %vm1899, %v5913
        %6002 = vst.msk [vmem:[#allocation5 + $0x40] sm:$0xff] %vm1899, %v5915
        %6003 = vst.msk [vmem:[#allocation5 + $0x48] sm:$0xff] %vm1899, %v5917
        %6004 = vst.msk [vmem:[#allocation5 + $0x50] sm:$0xff] %vm1899, %v5919
        %6005 = vst.msk [vmem:[#allocation5 + $0x58] sm:$0xff] %vm1899, %v5921
        %6006 = vst.msk [vmem:[#allocation5 + $0x60] sm:$0xff] %vm1899, %v5923
        %6007 = vst.msk [vmem:[#allocation5 + $0x68] sm:$0xff] %vm1899, %v5925
        %6008 = vst.msk [vmem:[#allocation5 + $0x70] sm:$0xff] %vm1899, %v5927
        %6009 = vst.msk [vmem:[#allocation5 + $0x78] sm:$0xff] %vm1899, %v5929
        %6010 = vst.msk [vmem:[#allocation5 + $0x80] sm:$0xff] %vm1899, %v5931
        %6011 = vst.msk [vmem:[#allocation5 + $0x88] sm:$0xff] %vm1899, %v5933
        %6012 = vst.msk [vmem:[#allocation5 + $0x90] sm:$0xff] %vm1899, %v5935
        %6013 = vst.msk [vmem:[#allocation5 + $0x98] sm:$0xff] %vm1899, %v5937
        %6014 = vst.msk [vmem:[#allocation5 + $0xa0] sm:$0xff] %vm1899, %v5939
        %6015 = vst.msk [vmem:[#allocation5 + $0xa8] sm:$0xff] %vm1899, %v5941
        %6016 = vst.msk [vmem:[#allocation5 + $0xb0] sm:$0xff] %vm1899, %v5943
        %6017 = vst.msk [vmem:[#allocation5 + $0xb8] sm:$0xff] %vm1899, %v5945
        %6018 = vst.msk [vmem:[#allocation5 + $0xc0] sm:$0xff] %vm1899, %v5947
        %6019 = vst.msk [vmem:[#allocation5 + $0xc8] sm:$0xff] %vm1899, %v5949
        %6020 = vst.msk [vmem:[#allocation5 + $0xd0] sm:$0xff] %vm1899, %v5951
        %6021 = vst.msk [vmem:[#allocation5 + $0xd8] sm:$0xff] %vm1899, %v5953
        %6022 = vst.msk [vmem:[#allocation5 + $0xe0] sm:$0xff] %vm1899, %v5955
        %6023 = vst.msk [vmem:[#allocation5 + $0xe8] sm:$0xff] %vm1899, %v5957
        %6024 = vst.msk [vmem:[#allocation5 + $0xf0] sm:$0xff] %vm1899, %v5959
        %6025 = vst.msk [vmem:[#allocation5 + $0xf8] sm:$0xff] %vm1899, %v5961
        %v6026 = vld [vmem:[#allocation5] sm:$0xff]
        %v6027 = vld [vmem:[#allocation5 + $0x8] sm:$0xff]
        %v6028 = vld [vmem:[#allocation5 + $0x10] sm:$0xff]
        %v6029 = vld [vmem:[#allocation5 + $0x18] sm:$0xff]
        %v6030 = vld [vmem:[#allocation5 + $0x20] sm:$0xff]
        %v6031 = vld [vmem:[#allocation5 + $0x28] sm:$0xff]
        %v6032 = vld [vmem:[#allocation5 + $0x30] sm:$0xff]
        %v6033 = vld [vmem:[#allocation5 + $0x38] sm:$0xff]
        %v6034 = vld [vmem:[#allocation5 + $0x40] sm:$0xff]
        %v6035 = vld [vmem:[#allocation5 + $0x48] sm:$0xff]
        %v6036 = vld [vmem:[#allocation5 + $0x50] sm:$0xff]
        %v6037 = vld [vmem:[#allocation5 + $0x58] sm:$0xff]
        %v6038 = vld [vmem:[#allocation5 + $0x60] sm:$0xff]
        %v6039 = vld [vmem:[#allocation5 + $0x68] sm:$0xff]
        %v6040 = vld [vmem:[#allocation5 + $0x70] sm:$0xff]
        %v6041 = vld [vmem:[#allocation5 + $0x78] sm:$0xff]
        %v6042 = vld [vmem:[#allocation5 + $0x80] sm:$0xff]
        %v6043 = vld [vmem:[#allocation5 + $0x88] sm:$0xff]
        %v6044 = vld [vmem:[#allocation5 + $0x90] sm:$0xff]
        %v6045 = vld [vmem:[#allocation5 + $0x98] sm:$0xff]
        %v6046 = vld [vmem:[#allocation5 + $0xa0] sm:$0xff]
        %v6047 = vld [vmem:[#allocation5 + $0xa8] sm:$0xff]
        %v6048 = vld [vmem:[#allocation5 + $0xb0] sm:$0xff]
        %v6049 = vld [vmem:[#allocation5 + $0xb8] sm:$0xff]
        %v6050 = vld [vmem:[#allocation5 + $0xc0] sm:$0xff]
        %v6051 = vld [vmem:[#allocation5 + $0xc8] sm:$0xff]
        %v6052 = vld [vmem:[#allocation5 + $0xd0] sm:$0xff]
        %v6053 = vld [vmem:[#allocation5 + $0xd8] sm:$0xff]
        %v6054 = vld [vmem:[#allocation5 + $0xe0] sm:$0xff]
        %v6055 = vld [vmem:[#allocation5 + $0xe8] sm:$0xff]
        %v6056 = vld [vmem:[#allocation5 + $0xf0] sm:$0xff]
        %v6057 = vld [vmem:[#allocation5 + $0xf8] sm:$0xff]
        %v6058 = vld [vmem:[%s5] sm:$0xff]
        %v6059 = vld [vmem:[%s5 + $0x8] sm:$0xff]
        %v6060 = vld [vmem:[%s5 + $0x10] sm:$0xff]
        %v6061 = vld [vmem:[%s5 + $0x18] sm:$0xff]
        %v6062 = vld [vmem:[%s5 + $0x20] sm:$0xff]
        %v6063 = vld [vmem:[%s5 + $0x28] sm:$0xff]
        %v6064 = vld [vmem:[%s5 + $0x30] sm:$0xff]
        %v6065 = vld [vmem:[%s5 + $0x38] sm:$0xff]
        %v6066 = vld [vmem:[%s8 + $0x2] sm:$0x1]
        %v6067 = vlaneseq
        %v6068 = vshrl.u32 %v6067, 7
        %v6069 = vsub.s32 0, %v6068
        %v6070 = vrot.slane %v6066, %v6069
        %vm6071 = vcmask 523264
        %v6073 = vsel %vm6071, %v6026, 0
        %v6076 = vsel %vm6071, %v6027, 0
        %v6079 = vsel %vm6071, %v6028, 0
        %v6082 = vsel %vm6071, %v6029, 0
        %v6085 = vsel %vm6071, %v6030, 0
        %v6088 = vsel %vm6071, %v6031, 0
        %v6091 = vsel %vm6071, %v6032, 0
        %v6094 = vsel %vm6071, %v6033, 0
        %v6097 = vsel %vm6071, %v6034, 0
        %v6100 = vsel %vm6071, %v6035, 0
        %v6103 = vsel %vm6071, %v6036, 0
        %v6106 = vsel %vm6071, %v6037, 0
        %v6109 = vsel %vm6071, %v6038, 0
        %v6112 = vsel %vm6071, %v6039, 0
        %v6115 = vsel %vm6071, %v6040, 0
        %v6118 = vsel %vm6071, %v6041, 0
        %v6121 = vsel %vm6071, %v6042, 0
        %v6124 = vsel %vm6071, %v6043, 0
        %v6127 = vsel %vm6071, %v6044, 0
        %v6130 = vsel %vm6071, %v6045, 0
        %v6133 = vsel %vm6071, %v6046, 0
        %v6136 = vsel %vm6071, %v6047, 0
        %v6139 = vsel %vm6071, %v6048, 0
        %v6142 = vsel %vm6071, %v6049, 0
        %v6145 = vsel %vm6071, %v6050, 0
        %v6148 = vsel %vm6071, %v6051, 0
        %v6151 = vsel %vm6071, %v6052, 0
        %v6154 = vsel %vm6071, %v6053, 0
        %v6157 = vsel %vm6071, %v6054, 0
        %v6160 = vsel %vm6071, %v6055, 0
        %v6163 = vsel %vm6071, %v6056, 0
        %v6166 = vsel %vm6071, %v6057, 0
        %6168 = vmatprep.subr.mxu0 0.0
        %6169 = vmatpush1.msra.mxu0 0.0
        %6170 = vmatprep.subr.mxu0 0.0
        %6171 = vmatpush1.msra.mxu0 0.0
        %6172 = vmatprep.subr.mxu0 0.0
        %6173 = vmatpush1.msra.mxu0 0.0
        %6174 = vmatprep.subr.mxu0 0.0
        %6175 = vmatpush1.msra.mxu0 0.0
        %6176 = vmatprep.subr.mxu0 0.0
        %6177 = vmatpush1.msra.mxu0 0.0
        %6178 = vmatprep.subr.mxu0 0.0
        %6179 = vmatpush1.msra.mxu0 0.0
        %6180 = vmatprep.subr.mxu0 0.0
        %6181 = vmatpush1.msra.mxu0 0.0
        %6182 = vmatprep.subr.mxu0 0.0
        %6183 = vmatpush1.msra.mxu0 0.0
        %6184 = vmatprep.subr.mxu0 0.0
        %6185 = vmatpush1.msra.mxu0 %v6065
        %6186 = vmatprep.subr.mxu0 0.0
        %6187 = vmatpush1.msra.mxu0 %v6064
        %6188 = vmatprep.subr.mxu0 0.0
        %6189 = vmatpush1.msra.mxu0 %v6063
        %6190 = vmatprep.subr.mxu0 0.0
        %6191 = vmatpush1.msra.mxu0 %v6062
        %6192 = vmatprep.subr.mxu0 0.0
        %6193 = vmatpush1.msra.mxu0 %v6061
        %6194 = vmatprep.subr.mxu0 0.0
        %6195 = vmatpush1.msra.mxu0 %v6060
        %6196 = vmatprep.subr.mxu0 0.0
        %6197 = vmatpush1.msra.mxu0 %v6059
        %6198 = vmatprep.subr.mxu0 0.0
        %6199 = vmatpush1.msra.mxu0 %v6058
        %6200 = vmatprep.subr.mxu0 0.0
        %6201 = vmatpush2.msra.mxu0 0.0
        %6202 = vmatprep.subr.mxu0 0.0
        %6203 = vmatpush2.msra.mxu0 0.0
        %6204 = vmatprep.subr.mxu0 0.0
        %6205 = vmatpush2.msra.mxu0 0.0
        %6206 = vmatprep.subr.mxu0 0.0
        %6207 = vmatpush2.msra.mxu0 0.0
        %6208 = vmatprep.subr.mxu0 0.0
        %6209 = vmatpush2.msra.mxu0 0.0
        %6210 = vmatprep.subr.mxu0 0.0
        %6211 = vmatpush2.msra.mxu0 0.0
        %6212 = vmatprep.subr.mxu0 0.0
        %6213 = vmatpush2.msra.mxu0 0.0
        %6214 = vmatprep.subr.mxu0 0.0
        %6215 = vmatpush2.msra.mxu0 0.0
        %6216 = vmatprep.subr.mxu0 0.0
        %6217 = vmatpush2.msra.mxu0 0.0
        %6218 = vmatprep.subr.mxu0 0.0
        %6219 = vmatpush2.msra.mxu0 0.0
        %6220 = vmatprep.subr.mxu0 0.0
        %6221 = vmatpush2.msra.mxu0 0.0
        %6222 = vmatprep.subr.mxu0 0.0
        %6223 = vmatpush2.msra.mxu0 0.0
        %6224 = vmatprep.subr.mxu0 0.0
        %6225 = vmatpush2.msra.mxu0 0.0
        %6226 = vmatprep.subr.mxu0 0.0
        %6227 = vmatpush2.msra.mxu0 0.0
        %6228 = vmatprep.subr.mxu0 0.0
        %6229 = vmatpush2.msra.mxu0 0.0
        %6230 = vmatprep.subr.mxu0 0.0
        %6231 = vmatpush2.msra.mxu0 0.0
        %6232 = vmatprep.mubr.f32.mxu0 0.0
        %6233 = vmatmul.mubr.f32.gmra.mxu0 %v6073
        %v6234 = vpop.f32.mrf.mxu0
        %v6235 = vadd.f32 %v6070, %v6234
        %v6236 = vpop.f32.mrf.mxu0
        %6237 = vmatprep.mubr.f32.mxu0 0.0
        %6238 = vmatmul.mubr.f32.gmra.mxu0 %v6076
        %v6239 = vpop.f32.mrf.mxu0
        %v6240 = vadd.f32 %v6070, %v6239
        %v6241 = vpop.f32.mrf.mxu0
        %6242 = vmatprep.mubr.f32.mxu0 0.0
        %6243 = vmatmul.mubr.f32.gmra.mxu0 %v6079
        %v6244 = vpop.f32.mrf.mxu0
        %v6245 = vadd.f32 %v6070, %v6244
        %v6246 = vpop.f32.mrf.mxu0
        %6247 = vmatprep.mubr.f32.mxu0 0.0
        %6248 = vmatmul.mubr.f32.gmra.mxu0 %v6082
        %v6249 = vpop.f32.mrf.mxu0
        %v6250 = vadd.f32 %v6070, %v6249
        %v6251 = vpop.f32.mrf.mxu0
        %6252 = vmatprep.mubr.f32.mxu0 0.0
        %6253 = vmatmul.mubr.f32.gmra.mxu0 %v6085
        %v6254 = vpop.f32.mrf.mxu0
        %v6255 = vadd.f32 %v6070, %v6254
        %v6256 = vpop.f32.mrf.mxu0
        %6257 = vmatprep.mubr.f32.mxu0 0.0
        %6258 = vmatmul.mubr.f32.gmra.mxu0 %v6088
        %v6259 = vpop.f32.mrf.mxu0
        %v6260 = vadd.f32 %v6070, %v6259
        %v6261 = vpop.f32.mrf.mxu0
        %6262 = vmatprep.mubr.f32.mxu0 0.0
        %6263 = vmatmul.mubr.f32.gmra.mxu0 %v6091
        %v6264 = vpop.f32.mrf.mxu0
        %v6265 = vadd.f32 %v6070, %v6264
        %v6266 = vpop.f32.mrf.mxu0
        %6267 = vmatprep.mubr.f32.mxu0 0.0
        %6268 = vmatmul.mubr.f32.gmra.mxu0 %v6094
        %v6269 = vpop.f32.mrf.mxu0
        %v6270 = vadd.f32 %v6070, %v6269
        %v6271 = vpop.f32.mrf.mxu0
        %6272 = vmatprep.mubr.f32.mxu0 0.0
        %6273 = vmatmul.mubr.f32.gmra.mxu0 %v6097
        %v6274 = vpop.f32.mrf.mxu0
        %v6275 = vadd.f32 %v6070, %v6274
        %v6276 = vpop.f32.mrf.mxu0
        %6277 = vmatprep.mubr.f32.mxu0 0.0
        %6278 = vmatmul.mubr.f32.gmra.mxu0 %v6100
        %v6279 = vpop.f32.mrf.mxu0
        %v6280 = vadd.f32 %v6070, %v6279
        %v6281 = vpop.f32.mrf.mxu0
        %6282 = vmatprep.mubr.f32.mxu0 0.0
        %6283 = vmatmul.mubr.f32.gmra.mxu0 %v6103
        %v6284 = vpop.f32.mrf.mxu0
        %v6285 = vadd.f32 %v6070, %v6284
        %v6286 = vpop.f32.mrf.mxu0
        %6287 = vmatprep.mubr.f32.mxu0 0.0
        %6288 = vmatmul.mubr.f32.gmra.mxu0 %v6106
        %v6289 = vpop.f32.mrf.mxu0
        %v6290 = vadd.f32 %v6070, %v6289
        %v6291 = vpop.f32.mrf.mxu0
        %6292 = vmatprep.mubr.f32.mxu0 0.0
        %6293 = vmatmul.mubr.f32.gmra.mxu0 %v6109
        %v6294 = vpop.f32.mrf.mxu0
        %v6295 = vadd.f32 %v6070, %v6294
        %v6296 = vpop.f32.mrf.mxu0
        %6297 = vmatprep.mubr.f32.mxu0 0.0
        %6298 = vmatmul.mubr.f32.gmra.mxu0 %v6112
        %v6299 = vpop.f32.mrf.mxu0
        %v6300 = vadd.f32 %v6070, %v6299
        %v6301 = vpop.f32.mrf.mxu0
        %6302 = vmatprep.mubr.f32.mxu0 0.0
        %6303 = vmatmul.mubr.f32.gmra.mxu0 %v6115
        %v6304 = vpop.f32.mrf.mxu0
        %v6305 = vadd.f32 %v6070, %v6304
        %v6306 = vpop.f32.mrf.mxu0
        %6307 = vmatprep.mubr.f32.mxu0 0.0
        %6308 = vmatmul.mubr.f32.gmra.mxu0 %v6118
        %v6309 = vpop.f32.mrf.mxu0
        %v6310 = vadd.f32 %v6070, %v6309
        %v6311 = vpop.f32.mrf.mxu0
        %6312 = vmatprep.mubr.f32.mxu0 0.0
        %6313 = vmatmul.mubr.f32.gmra.mxu0 %v6121
        %v6314 = vpop.f32.mrf.mxu0
        %v6315 = vadd.f32 %v6070, %v6314
        %v6316 = vpop.f32.mrf.mxu0
        %6317 = vmatprep.mubr.f32.mxu0 0.0
        %6318 = vmatmul.mubr.f32.gmra.mxu0 %v6124
        %v6319 = vpop.f32.mrf.mxu0
        %v6320 = vadd.f32 %v6070, %v6319
        %v6321 = vpop.f32.mrf.mxu0
        %6322 = vmatprep.mubr.f32.mxu0 0.0
        %6323 = vmatmul.mubr.f32.gmra.mxu0 %v6127
        %v6324 = vpop.f32.mrf.mxu0
        %v6325 = vadd.f32 %v6070, %v6324
        %v6326 = vpop.f32.mrf.mxu0
        %6327 = vmatprep.mubr.f32.mxu0 0.0
        %6328 = vmatmul.mubr.f32.gmra.mxu0 %v6130
        %v6329 = vpop.f32.mrf.mxu0
        %v6330 = vadd.f32 %v6070, %v6329
        %v6331 = vpop.f32.mrf.mxu0
        %6332 = vmatprep.mubr.f32.mxu0 0.0
        %6333 = vmatmul.mubr.f32.gmra.mxu0 %v6133
        %v6334 = vpop.f32.mrf.mxu0
        %v6335 = vadd.f32 %v6070, %v6334
        %v6336 = vpop.f32.mrf.mxu0
        %6337 = vmatprep.mubr.f32.mxu0 0.0
        %6338 = vmatmul.mubr.f32.gmra.mxu0 %v6136
        %v6339 = vpop.f32.mrf.mxu0
        %v6340 = vadd.f32 %v6070, %v6339
        %v6341 = vpop.f32.mrf.mxu0
        %6342 = vmatprep.mubr.f32.mxu0 0.0
        %6343 = vmatmul.mubr.f32.gmra.mxu0 %v6139
        %v6344 = vpop.f32.mrf.mxu0
        %v6345 = vadd.f32 %v6070, %v6344
        %v6346 = vpop.f32.mrf.mxu0
        %6347 = vmatprep.mubr.f32.mxu0 0.0
        %6348 = vmatmul.mubr.f32.gmra.mxu0 %v6142
        %v6349 = vpop.f32.mrf.mxu0
        %v6350 = vadd.f32 %v6070, %v6349
        %v6351 = vpop.f32.mrf.mxu0
        %6352 = vmatprep.mubr.f32.mxu0 0.0
        %6353 = vmatmul.mubr.f32.gmra.mxu0 %v6145
        %v6354 = vpop.f32.mrf.mxu0
        %v6355 = vadd.f32 %v6070, %v6354
        %v6356 = vpop.f32.mrf.mxu0
        %6357 = vmatprep.mubr.f32.mxu0 0.0
        %6358 = vmatmul.mubr.f32.gmra.mxu0 %v6148
        %v6359 = vpop.f32.mrf.mxu0
        %v6360 = vadd.f32 %v6070, %v6359
        %v6361 = vpop.f32.mrf.mxu0
        %6362 = vmatprep.mubr.f32.mxu0 0.0
        %6363 = vmatmul.mubr.f32.gmra.mxu0 %v6151
        %v6364 = vpop.f32.mrf.mxu0
        %v6365 = vadd.f32 %v6070, %v6364
        %v6366 = vpop.f32.mrf.mxu0
        %6367 = vmatprep.mubr.f32.mxu0 0.0
        %6368 = vmatmul.mubr.f32.gmra.mxu0 %v6154
        %v6369 = vpop.f32.mrf.mxu0
        %v6370 = vadd.f32 %v6070, %v6369
        %v6371 = vpop.f32.mrf.mxu0
        %6372 = vmatprep.mubr.f32.mxu0 0.0
        %6373 = vmatmul.mubr.f32.gmra.mxu0 %v6157
        %v6374 = vpop.f32.mrf.mxu0
        %v6375 = vadd.f32 %v6070, %v6374
        %v6376 = vpop.f32.mrf.mxu0
        %6377 = vmatprep.mubr.f32.mxu0 0.0
        %6378 = vmatmul.mubr.f32.gmra.mxu0 %v6160
        %v6379 = vpop.f32.mrf.mxu0
        %v6380 = vadd.f32 %v6070, %v6379
        %v6381 = vpop.f32.mrf.mxu0
        %6382 = vmatprep.mubr.f32.mxu0 0.0
        %6383 = vmatmul.mubr.f32.gmra.mxu0 %v6163
        %v6384 = vpop.f32.mrf.mxu0
        %v6385 = vadd.f32 %v6070, %v6384
        %v6386 = vpop.f32.mrf.mxu0
        %6387 = vmatprep.mubr.f32.mxu0 0.0
        %6388 = vmatmul.mubr.f32.gmra.mxu0 %v6166
        %v6389 = vpop.f32.mrf.mxu0
        %v6390 = vadd.f32 %v6070, %v6389
        %v6391 = vpop.f32.mrf.mxu0
        %6392 = vdwg.mxu0
        %v6393 = vxor.u32 %v6235, 2147483648
        %v6394 = vxor.u32 %v6240, 2147483648
        %v6395 = vxor.u32 %v6245, 2147483648
        %v6396 = vxor.u32 %v6250, 2147483648
        %v6397 = vxor.u32 %v6255, 2147483648
        %v6398 = vxor.u32 %v6260, 2147483648
        %v6399 = vxor.u32 %v6265, 2147483648
        %v6400 = vxor.u32 %v6270, 2147483648
        %v6401 = vxor.u32 %v6275, 2147483648
        %v6402 = vxor.u32 %v6280, 2147483648
        %v6403 = vxor.u32 %v6285, 2147483648
        %v6404 = vxor.u32 %v6290, 2147483648
        %v6405 = vxor.u32 %v6295, 2147483648
        %v6406 = vxor.u32 %v6300, 2147483648
        %v6407 = vxor.u32 %v6305, 2147483648
        %v6408 = vxor.u32 %v6310, 2147483648
        %v6409 = vxor.u32 %v6315, 2147483648
        %v6410 = vxor.u32 %v6320, 2147483648
        %v6411 = vxor.u32 %v6325, 2147483648
        %v6412 = vxor.u32 %v6330, 2147483648
        %v6413 = vxor.u32 %v6335, 2147483648
        %v6414 = vxor.u32 %v6340, 2147483648
        %v6415 = vxor.u32 %v6345, 2147483648
        %v6416 = vxor.u32 %v6350, 2147483648
        %v6417 = vxor.u32 %v6355, 2147483648
        %v6418 = vxor.u32 %v6360, 2147483648
        %v6419 = vxor.u32 %v6365, 2147483648
        %v6420 = vxor.u32 %v6370, 2147483648
        %v6421 = vxor.u32 %v6375, 2147483648
        %v6422 = vxor.u32 %v6380, 2147483648
        %v6423 = vxor.u32 %v6385, 2147483648
        %v6424 = vxor.u32 %v6390, 2147483648
        %v6425 = vmul.f32 %v6393, 1.442695
        %v6426 = vpow.pop %v6425
        %v6427 = vmul.f32 %v6394, 1.442695
        %v6428 = vpow.pop %v6427
        %v6429 = vmul.f32 %v6395, 1.442695
        %v6430 = vpow.pop %v6429
        %v6431 = vmul.f32 %v6396, 1.442695
        %v6432 = vpow.pop %v6431
        %v6433 = vmul.f32 %v6397, 1.442695
        %v6434 = vpow.pop %v6433
        %v6435 = vmul.f32 %v6398, 1.442695
        %v6436 = vpow.pop %v6435
        %v6437 = vmul.f32 %v6399, 1.442695
        %v6438 = vpow.pop %v6437
        %v6439 = vmul.f32 %v6400, 1.442695
        %v6440 = vpow.pop %v6439
        %v6441 = vmul.f32 %v6401, 1.442695
        %v6442 = vpow.pop %v6441
        %v6443 = vmul.f32 %v6402, 1.442695
        %v6444 = vpow.pop %v6443
        %v6445 = vmul.f32 %v6403, 1.442695
        %v6446 = vpow.pop %v6445
        %v6447 = vmul.f32 %v6404, 1.442695
        %v6448 = vpow.pop %v6447
        %v6449 = vmul.f32 %v6405, 1.442695
        %v6450 = vpow.pop %v6449
        %v6451 = vmul.f32 %v6406, 1.442695
        %v6452 = vpow.pop %v6451
        %v6453 = vmul.f32 %v6407, 1.442695
        %v6454 = vpow.pop %v6453
        %v6455 = vmul.f32 %v6408, 1.442695
        %v6456 = vpow.pop %v6455
        %v6457 = vmul.f32 %v6409, 1.442695
        %v6458 = vpow.pop %v6457
        %v6459 = vmul.f32 %v6410, 1.442695
        %v6460 = vpow.pop %v6459
        %v6461 = vmul.f32 %v6411, 1.442695
        %v6462 = vpow.pop %v6461
        %v6463 = vmul.f32 %v6412, 1.442695
        %v6464 = vpow.pop %v6463
        %v6465 = vmul.f32 %v6413, 1.442695
        %v6466 = vpow.pop %v6465
        %v6467 = vmul.f32 %v6414, 1.442695
        %v6468 = vpow.pop %v6467
        %v6469 = vmul.f32 %v6415, 1.442695
        %v6470 = vpow.pop %v6469
        %v6471 = vmul.f32 %v6416, 1.442695
        %v6472 = vpow.pop %v6471
        %v6473 = vmul.f32 %v6417, 1.442695
        %v6474 = vpow.pop %v6473
        %v6475 = vmul.f32 %v6418, 1.442695
        %v6476 = vpow.pop %v6475
        %v6477 = vmul.f32 %v6419, 1.442695
        %v6478 = vpow.pop %v6477
        %v6479 = vmul.f32 %v6420, 1.442695
        %v6480 = vpow.pop %v6479
        %v6481 = vmul.f32 %v6421, 1.442695
        %v6482 = vpow.pop %v6481
        %v6483 = vmul.f32 %v6422, 1.442695
        %v6484 = vpow.pop %v6483
        %v6485 = vmul.f32 %v6423, 1.442695
        %v6486 = vpow.pop %v6485
        %v6487 = vmul.f32 %v6424, 1.442695
        %v6488 = vpow.pop %v6487
        %v6489 = vadd.f32 %v6426, 1.0
        %v6490 = vadd.f32 %v6428, 1.0
        %v6491 = vadd.f32 %v6430, 1.0
        %v6492 = vadd.f32 %v6432, 1.0
        %v6493 = vadd.f32 %v6434, 1.0
        %v6494 = vadd.f32 %v6436, 1.0
        %v6495 = vadd.f32 %v6438, 1.0
        %v6496 = vadd.f32 %v6440, 1.0
        %v6497 = vadd.f32 %v6442, 1.0
        %v6498 = vadd.f32 %v6444, 1.0
        %v6499 = vadd.f32 %v6446, 1.0
        %v6500 = vadd.f32 %v6448, 1.0
        %v6501 = vadd.f32 %v6450, 1.0
        %v6502 = vadd.f32 %v6452, 1.0
        %v6503 = vadd.f32 %v6454, 1.0
        %v6504 = vadd.f32 %v6456, 1.0
        %v6505 = vadd.f32 %v6458, 1.0
        %v6506 = vadd.f32 %v6460, 1.0
        %v6507 = vadd.f32 %v6462, 1.0
        %v6508 = vadd.f32 %v6464, 1.0
        %v6509 = vadd.f32 %v6466, 1.0
        %v6510 = vadd.f32 %v6468, 1.0
        %v6511 = vadd.f32 %v6470, 1.0
        %v6512 = vadd.f32 %v6472, 1.0
        %v6513 = vadd.f32 %v6474, 1.0
        %v6514 = vadd.f32 %v6476, 1.0
        %v6515 = vadd.f32 %v6478, 1.0
        %v6516 = vadd.f32 %v6480, 1.0
        %v6517 = vadd.f32 %v6482, 1.0
        %v6518 = vadd.f32 %v6484, 1.0
        %v6519 = vadd.f32 %v6486, 1.0
        %v6520 = vadd.f32 %v6488, 1.0
        %v6521 = vrcp.pop %v6489
        %v6522 = vmul.f32 1.0, %v6521
        %v6523 = vrcp.pop %v6490
        %v6524 = vmul.f32 1.0, %v6523
        %v6525 = vrcp.pop %v6491
        %v6526 = vmul.f32 1.0, %v6525
        %v6527 = vrcp.pop %v6492
        %v6528 = vmul.f32 1.0, %v6527
        %v6529 = vrcp.pop %v6493
        %v6530 = vmul.f32 1.0, %v6529
        %v6531 = vrcp.pop %v6494
        %v6532 = vmul.f32 1.0, %v6531
        %v6533 = vrcp.pop %v6495
        %v6534 = vmul.f32 1.0, %v6533
        %v6535 = vrcp.pop %v6496
        %v6536 = vmul.f32 1.0, %v6535
        %v6537 = vrcp.pop %v6497
        %v6538 = vmul.f32 1.0, %v6537
        %v6539 = vrcp.pop %v6498
        %v6540 = vmul.f32 1.0, %v6539
        %v6541 = vrcp.pop %v6499
        %v6542 = vmul.f32 1.0, %v6541
        %v6543 = vrcp.pop %v6500
        %v6544 = vmul.f32 1.0, %v6543
        %v6545 = vrcp.pop %v6501
        %v6546 = vmul.f32 1.0, %v6545
        %v6547 = vrcp.pop %v6502
        %v6548 = vmul.f32 1.0, %v6547
        %v6549 = vrcp.pop %v6503
        %v6550 = vmul.f32 1.0, %v6549
        %v6551 = vrcp.pop %v6504
        %v6552 = vmul.f32 1.0, %v6551
        %v6553 = vrcp.pop %v6505
        %v6554 = vmul.f32 1.0, %v6553
        %v6555 = vrcp.pop %v6506
        %v6556 = vmul.f32 1.0, %v6555
        %v6557 = vrcp.pop %v6507
        %v6558 = vmul.f32 1.0, %v6557
        %v6559 = vrcp.pop %v6508
        %v6560 = vmul.f32 1.0, %v6559
        %v6561 = vrcp.pop %v6509
        %v6562 = vmul.f32 1.0, %v6561
        %v6563 = vrcp.pop %v6510
        %v6564 = vmul.f32 1.0, %v6563
        %v6565 = vrcp.pop %v6511
        %v6566 = vmul.f32 1.0, %v6565
        %v6567 = vrcp.pop %v6512
        %v6568 = vmul.f32 1.0, %v6567
        %v6569 = vrcp.pop %v6513
        %v6570 = vmul.f32 1.0, %v6569
        %v6571 = vrcp.pop %v6514
        %v6572 = vmul.f32 1.0, %v6571
        %v6573 = vrcp.pop %v6515
        %v6574 = vmul.f32 1.0, %v6573
        %v6575 = vrcp.pop %v6516
        %v6576 = vmul.f32 1.0, %v6575
        %v6577 = vrcp.pop %v6517
        %v6578 = vmul.f32 1.0, %v6577
        %v6579 = vrcp.pop %v6518
        %v6580 = vmul.f32 1.0, %v6579
        %v6581 = vrcp.pop %v6519
        %v6582 = vmul.f32 1.0, %v6581
        %v6583 = vrcp.pop %v6520
        %v6584 = vmul.f32 1.0, %v6583
        %v6585 = vmul.f32 %v6235, %v6522
        %v6586 = vmul.f32 %v6240, %v6524
        %v6587 = vmul.f32 %v6245, %v6526
        %v6588 = vmul.f32 %v6250, %v6528
        %v6589 = vmul.f32 %v6255, %v6530
        %v6590 = vmul.f32 %v6260, %v6532
        %v6591 = vmul.f32 %v6265, %v6534
        %v6592 = vmul.f32 %v6270, %v6536
        %v6593 = vmul.f32 %v6275, %v6538
        %v6594 = vmul.f32 %v6280, %v6540
        %v6595 = vmul.f32 %v6285, %v6542
        %v6596 = vmul.f32 %v6290, %v6544
        %v6597 = vmul.f32 %v6295, %v6546
        %v6598 = vmul.f32 %v6300, %v6548
        %v6599 = vmul.f32 %v6305, %v6550
        %v6600 = vmul.f32 %v6310, %v6552
        %v6601 = vmul.f32 %v6315, %v6554
        %v6602 = vmul.f32 %v6320, %v6556
        %v6603 = vmul.f32 %v6325, %v6558
        %v6604 = vmul.f32 %v6330, %v6560
        %v6605 = vmul.f32 %v6335, %v6562
        %v6606 = vmul.f32 %v6340, %v6564
        %v6607 = vmul.f32 %v6345, %v6566
        %v6608 = vmul.f32 %v6350, %v6568
        %v6609 = vmul.f32 %v6355, %v6570
        %v6610 = vmul.f32 %v6360, %v6572
        %v6611 = vmul.f32 %v6365, %v6574
        %v6612 = vmul.f32 %v6370, %v6576
        %v6613 = vmul.f32 %v6375, %v6578
        %v6614 = vmul.f32 %v6380, %v6580
        %v6615 = vmul.f32 %v6385, %v6582
        %v6616 = vmul.f32 %v6390, %v6584
        %6617 = vst.msk [vmem:[%s1256 + $0x1] sm:$0xff] %vm358, %v6585
        %6618 = vst.msk [vmem:[%s1256 + $0x9] sm:$0xff] %vm358, %v6586
        %6619 = vst.msk [vmem:[%s1256 + $0x19] sm:$0xff] %vm358, %v6587
        %6620 = vst.msk [vmem:[%s1256 + $0x21] sm:$0xff] %vm358, %v6588
        %6621 = vst.msk [vmem:[%s1256 + $0x31] sm:$0xff] %vm358, %v6589
        %6622 = vst.msk [vmem:[%s1256 + $0x39] sm:$0xff] %vm358, %v6590
        %6623 = vst.msk [vmem:[%s1256 + $0x49] sm:$0xff] %vm358, %v6591
        %6624 = vst.msk [vmem:[%s1256 + $0x51] sm:$0xff] %vm358, %v6592
        %6625 = vst.msk [vmem:[%s1256 + $0x61] sm:$0xff] %vm358, %v6593
        %6626 = vst.msk [vmem:[%s1256 + $0x69] sm:$0xff] %vm358, %v6594
        %6627 = vst.msk [vmem:[%s1256 + $0x79] sm:$0xff] %vm358, %v6595
        %6628 = vst.msk [vmem:[%s1256 + $0x81] sm:$0xff] %vm358, %v6596
        %6629 = vst.msk [vmem:[%s1256 + $0x91] sm:$0xff] %vm358, %v6597
        %6630 = vst.msk [vmem:[%s1256 + $0x99] sm:$0xff] %vm358, %v6598
        %6631 = vst.msk [vmem:[%s1256 + $0xa9] sm:$0xff] %vm358, %v6599
        %6632 = vst.msk [vmem:[%s1256 + $0xb1] sm:$0xff] %vm358, %v6600
        %6633 = vst.msk [vmem:[%s1256 + $0xc1] sm:$0xff] %vm358, %v6601
        %6634 = vst.msk [vmem:[%s1256 + $0xc9] sm:$0xff] %vm358, %v6602
        %6635 = vst.msk [vmem:[%s1256 + $0xd9] sm:$0xff] %vm358, %v6603
        %6636 = vst.msk [vmem:[%s1256 + $0xe1] sm:$0xff] %vm358, %v6604
        %6637 = vst.msk [vmem:[%s1256 + $0xf1] sm:$0xff] %vm358, %v6605
        %6638 = vst.msk [vmem:[%s1256 + $0xf9] sm:$0xff] %vm358, %v6606
        %6639 = vst.msk [vmem:[%s1256 + $0x109] sm:$0xff] %vm358, %v6607
        %6640 = vst.msk [vmem:[%s1256 + $0x111] sm:$0xff] %vm358, %v6608
        %6641 = vst.msk [vmem:[%s1256 + $0x121] sm:$0xff] %vm358, %v6609
        %6642 = vst.msk [vmem:[%s1256 + $0x129] sm:$0xff] %vm358, %v6610
        %6643 = vst.msk [vmem:[%s1256 + $0x139] sm:$0xff] %vm358, %v6611
        %6644 = vst.msk [vmem:[%s1256 + $0x141] sm:$0xff] %vm358, %v6612
        %6645 = vst.msk [vmem:[%s1256 + $0x151] sm:$0xff] %vm358, %v6613
        %6646 = vst.msk [vmem:[%s1256 + $0x159] sm:$0xff] %vm358, %v6614
        %6647 = vst.msk [vmem:[%s1256 + $0x169] sm:$0xff] %vm358, %v6615
        %6648 = vst.msk [vmem:[%s1256 + $0x171] sm:$0xff] %vm358, %v6616
        %v6649 = vld [vmem:[#allocation2] sm:$0xff]
        %v6650 = vld [vmem:[#allocation2 + $0x8] sm:$0xff]
        %v6651 = vld [vmem:[#allocation2 + $0x18] sm:$0xff]
        %v6652 = vld [vmem:[#allocation2 + $0x20] sm:$0xff]
        %v6653 = vld [vmem:[#allocation2 + $0x30] sm:$0xff]
        %v6654 = vld [vmem:[#allocation2 + $0x38] sm:$0xff]
        %v6655 = vld [vmem:[#allocation2 + $0x48] sm:$0xff]
        %v6656 = vld [vmem:[#allocation2 + $0x50] sm:$0xff]
        %v6657 = vld [vmem:[#allocation2 + $0x60] sm:$0xff]
        %v6658 = vld [vmem:[#allocation2 + $0x68] sm:$0xff]
        %v6659 = vld [vmem:[#allocation2 + $0x78] sm:$0xff]
        %v6660 = vld [vmem:[#allocation2 + $0x80] sm:$0xff]
        %v6661 = vld [vmem:[#allocation2 + $0x90] sm:$0xff]
        %v6662 = vld [vmem:[#allocation2 + $0x98] sm:$0xff]
        %v6663 = vld [vmem:[#allocation2 + $0xa8] sm:$0xff]
        %v6664 = vld [vmem:[#allocation2 + $0xb0] sm:$0xff]
        %v6665 = vld [vmem:[#allocation2 + $0xc0] sm:$0xff]
        %v6666 = vld [vmem:[#allocation2 + $0xc8] sm:$0xff]
        %v6667 = vld [vmem:[#allocation2 + $0xd8] sm:$0xff]
        %v6668 = vld [vmem:[#allocation2 + $0xe0] sm:$0xff]
        %v6669 = vld [vmem:[#allocation2 + $0xf0] sm:$0xff]
        %v6670 = vld [vmem:[#allocation2 + $0xf8] sm:$0xff]
        %v6671 = vld [vmem:[#allocation2 + $0x108] sm:$0xff]
        %v6672 = vld [vmem:[#allocation2 + $0x110] sm:$0xff]
        %v6673 = vld [vmem:[#allocation2 + $0x120] sm:$0xff]
        %v6674 = vld [vmem:[#allocation2 + $0x128] sm:$0xff]
        %v6675 = vld [vmem:[#allocation2 + $0x138] sm:$0xff]
        %v6676 = vld [vmem:[#allocation2 + $0x140] sm:$0xff]
        %v6677 = vld [vmem:[#allocation2 + $0x150] sm:$0xff]
        %v6678 = vld [vmem:[#allocation2 + $0x158] sm:$0xff]
        %v6679 = vld [vmem:[#allocation2 + $0x168] sm:$0xff]
        %v6680 = vld [vmem:[#allocation2 + $0x170] sm:$0xff]
        %6681 = vst.msk [vmem:[#allocation4] sm:$0xff] %vm358, %v6649
        %6682 = vst.msk [vmem:[#allocation4 + $0x10] sm:$0xff] %vm358, %v6650
        %6683 = vst.msk [vmem:[#allocation4 + $0x20] sm:$0xff] %vm358, %v6651
        %6684 = vst.msk [vmem:[#allocation4 + $0x30] sm:$0xff] %vm358, %v6652
        %6685 = vst.msk [vmem:[#allocation4 + $0x40] sm:$0xff] %vm358, %v6653
        %6686 = vst.msk [vmem:[#allocation4 + $0x50] sm:$0xff] %vm358, %v6654
        %6687 = vst.msk [vmem:[#allocation4 + $0x60] sm:$0xff] %vm358, %v6655
        %6688 = vst.msk [vmem:[#allocation4 + $0x70] sm:$0xff] %vm358, %v6656
        %6689 = vst.msk [vmem:[#allocation4 + $0x80] sm:$0xff] %vm358, %v6657
        %6690 = vst.msk [vmem:[#allocation4 + $0x90] sm:$0xff] %vm358, %v6658
        %6691 = vst.msk [vmem:[#allocation4 + $0xa0] sm:$0xff] %vm358, %v6659
        %6692 = vst.msk [vmem:[#allocation4 + $0xb0] sm:$0xff] %vm358, %v6660
        %6693 = vst.msk [vmem:[#allocation4 + $0xc0] sm:$0xff] %vm358, %v6661
        %6694 = vst.msk [vmem:[#allocation4 + $0xd0] sm:$0xff] %vm358, %v6662
        %6695 = vst.msk [vmem:[#allocation4 + $0xe0] sm:$0xff] %vm358, %v6663
        %6696 = vst.msk [vmem:[#allocation4 + $0xf0] sm:$0xff] %vm358, %v6664
        %6697 = vst.msk [vmem:[#allocation4 + $0x100] sm:$0xff] %vm358, %v6665
        %6698 = vst.msk [vmem:[#allocation4 + $0x110] sm:$0xff] %vm358, %v6666
        %6699 = vst.msk [vmem:[#allocation4 + $0x120] sm:$0xff] %vm358, %v6667
        %6700 = vst.msk [vmem:[#allocation4 + $0x130] sm:$0xff] %vm358, %v6668
        %6701 = vst.msk [vmem:[#allocation4 + $0x140] sm:$0xff] %vm358, %v6669
        %6702 = vst.msk [vmem:[#allocation4 + $0x150] sm:$0xff] %vm358, %v6670
        %6703 = vst.msk [vmem:[#allocation4 + $0x160] sm:$0xff] %vm358, %v6671
        %6704 = vst.msk [vmem:[#allocation4 + $0x170] sm:$0xff] %vm358, %v6672
        %6705 = vst.msk [vmem:[#allocation4 + $0x180] sm:$0xff] %vm358, %v6673
        %6706 = vst.msk [vmem:[#allocation4 + $0x190] sm:$0xff] %vm358, %v6674
        %6707 = vst.msk [vmem:[#allocation4 + $0x1a0] sm:$0xff] %vm358, %v6675
        %6708 = vst.msk [vmem:[#allocation4 + $0x1b0] sm:$0xff] %vm358, %v6676
        %6709 = vst.msk [vmem:[#allocation4 + $0x1c0] sm:$0xff] %vm358, %v6677
        %6710 = vst.msk [vmem:[#allocation4 + $0x1d0] sm:$0xff] %vm358, %v6678
        %6711 = vst.msk [vmem:[#allocation4 + $0x1e0] sm:$0xff] %vm358, %v6679
        %6712 = vst.msk [vmem:[#allocation4 + $0x1f0] sm:$0xff] %vm358, %v6680
        %v6713 = vld [vmem:[#allocation2 + $0x1] sm:$0xff]
        %v6714 = vld [vmem:[#allocation2 + $0x9] sm:$0xff]
        %v6715 = vld [vmem:[#allocation2 + $0x19] sm:$0xff]
        %v6716 = vld [vmem:[#allocation2 + $0x21] sm:$0xff]
        %v6717 = vld [vmem:[#allocation2 + $0x31] sm:$0xff]
        %v6718 = vld [vmem:[#allocation2 + $0x39] sm:$0xff]
        %v6719 = vld [vmem:[#allocation2 + $0x49] sm:$0xff]
        %v6720 = vld [vmem:[#allocation2 + $0x51] sm:$0xff]
        %v6721 = vld [vmem:[#allocation2 + $0x61] sm:$0xff]
        %v6722 = vld [vmem:[#allocation2 + $0x69] sm:$0xff]
        %v6723 = vld [vmem:[#allocation2 + $0x79] sm:$0xff]
        %v6724 = vld [vmem:[#allocation2 + $0x81] sm:$0xff]
        %v6725 = vld [vmem:[#allocation2 + $0x91] sm:$0xff]
        %v6726 = vld [vmem:[#allocation2 + $0x99] sm:$0xff]
        %v6727 = vld [vmem:[#allocation2 + $0xa9] sm:$0xff]
        %v6728 = vld [vmem:[#allocation2 + $0xb1] sm:$0xff]
        %v6729 = vld [vmem:[#allocation2 + $0xc1] sm:$0xff]
        %v6730 = vld [vmem:[#allocation2 + $0xc9] sm:$0xff]
        %v6731 = vld [vmem:[#allocation2 + $0xd9] sm:$0xff]
        %v6732 = vld [vmem:[#allocation2 + $0xe1] sm:$0xff]
        %v6733 = vld [vmem:[#allocation2 + $0xf1] sm:$0xff]
        %v6734 = vld [vmem:[#allocation2 + $0xf9] sm:$0xff]
        %v6735 = vld [vmem:[#allocation2 + $0x109] sm:$0xff]
        %v6736 = vld [vmem:[#allocation2 + $0x111] sm:$0xff]
        %v6737 = vld [vmem:[#allocation2 + $0x121] sm:$0xff]
        %v6738 = vld [vmem:[#allocation2 + $0x129] sm:$0xff]
        %v6739 = vld [vmem:[#allocation2 + $0x139] sm:$0xff]
        %v6740 = vld [vmem:[#allocation2 + $0x141] sm:$0xff]
        %v6741 = vld [vmem:[#allocation2 + $0x151] sm:$0xff]
        %v6742 = vld [vmem:[#allocation2 + $0x159] sm:$0xff]
        %v6743 = vld [vmem:[#allocation2 + $0x169] sm:$0xff]
        %v6744 = vld [vmem:[#allocation2 + $0x171] sm:$0xff]
        %6777 = vrot.lane.b32.xlu0 %v6713, 16
        %v6778 = vpop.permute.xlu0 %6777
        %6779 = vrot.lane.b32.xlu0 %v6714, 16
        %v6780 = vpop.permute.xlu0 %6779
        %6781 = vrot.lane.b32.xlu0 %v6715, 16
        %v6782 = vpop.permute.xlu0 %6781
        %6783 = vrot.lane.b32.xlu0 %v6716, 16
        %v6784 = vpop.permute.xlu0 %6783
        %6785 = vrot.lane.b32.xlu0 %v6717, 16
        %v6786 = vpop.permute.xlu0 %6785
        %6787 = vrot.lane.b32.xlu0 %v6718, 16
        %v6788 = vpop.permute.xlu0 %6787
        %6789 = vrot.lane.b32.xlu0 %v6719, 16
        %v6790 = vpop.permute.xlu0 %6789
        %6791 = vrot.lane.b32.xlu0 %v6720, 16
        %v6792 = vpop.permute.xlu0 %6791
        %6793 = vrot.lane.b32.xlu0 %v6721, 16
        %v6794 = vpop.permute.xlu0 %6793
        %6795 = vrot.lane.b32.xlu0 %v6722, 16
        %v6796 = vpop.permute.xlu0 %6795
        %6797 = vrot.lane.b32.xlu0 %v6723, 16
        %v6798 = vpop.permute.xlu0 %6797
        %6799 = vrot.lane.b32.xlu0 %v6724, 16
        %v6800 = vpop.permute.xlu0 %6799
        %6801 = vrot.lane.b32.xlu0 %v6725, 16
        %v6802 = vpop.permute.xlu0 %6801
        %6803 = vrot.lane.b32.xlu0 %v6726, 16
        %v6804 = vpop.permute.xlu0 %6803
        %6805 = vrot.lane.b32.xlu0 %v6727, 16
        %v6806 = vpop.permute.xlu0 %6805
        %6807 = vrot.lane.b32.xlu0 %v6728, 16
        %v6808 = vpop.permute.xlu0 %6807
        %6809 = vrot.lane.b32.xlu0 %v6729, 16
        %v6810 = vpop.permute.xlu0 %6809
        %6811 = vrot.lane.b32.xlu0 %v6730, 16
        %v6812 = vpop.permute.xlu0 %6811
        %6813 = vrot.lane.b32.xlu0 %v6731, 16
        %v6814 = vpop.permute.xlu0 %6813
        %6815 = vrot.lane.b32.xlu0 %v6732, 16
        %v6816 = vpop.permute.xlu0 %6815
        %6817 = vrot.lane.b32.xlu0 %v6733, 16
        %v6818 = vpop.permute.xlu0 %6817
        %6819 = vrot.lane.b32.xlu0 %v6734, 16
        %v6820 = vpop.permute.xlu0 %6819
        %6821 = vrot.lane.b32.xlu0 %v6735, 16
        %v6822 = vpop.permute.xlu0 %6821
        %6823 = vrot.lane.b32.xlu0 %v6736, 16
        %v6824 = vpop.permute.xlu0 %6823
        %6825 = vrot.lane.b32.xlu0 %v6737, 16
        %v6826 = vpop.permute.xlu0 %6825
        %6827 = vrot.lane.b32.xlu0 %v6738, 16
        %v6828 = vpop.permute.xlu0 %6827
        %6829 = vrot.lane.b32.xlu0 %v6739, 16
        %v6830 = vpop.permute.xlu0 %6829
        %6831 = vrot.lane.b32.xlu0 %v6740, 16
        %v6832 = vpop.permute.xlu0 %6831
        %6833 = vrot.lane.b32.xlu0 %v6741, 16
        %v6834 = vpop.permute.xlu0 %6833
        %6835 = vrot.lane.b32.xlu0 %v6742, 16
        %v6836 = vpop.permute.xlu0 %6835
        %6837 = vrot.lane.b32.xlu0 %v6743, 16
        %v6838 = vpop.permute.xlu0 %6837
        %6839 = vrot.lane.b32.xlu0 %v6744, 16
        %v6840 = vpop.permute.xlu0 %6839
        %6873 = vst.msk [vmem:[#allocation4] sm:$0xff] %vm1513, %v6778
        %6874 = vst.msk [vmem:[#allocation4 + $0x10] sm:$0xff] %vm1513, %v6780
        %6875 = vst.msk [vmem:[#allocation4 + $0x20] sm:$0xff] %vm1513, %v6782
        %6876 = vst.msk [vmem:[#allocation4 + $0x30] sm:$0xff] %vm1513, %v6784
        %6877 = vst.msk [vmem:[#allocation4 + $0x40] sm:$0xff] %vm1513, %v6786
        %6878 = vst.msk [vmem:[#allocation4 + $0x50] sm:$0xff] %vm1513, %v6788
        %6879 = vst.msk [vmem:[#allocation4 + $0x60] sm:$0xff] %vm1513, %v6790
        %6880 = vst.msk [vmem:[#allocation4 + $0x70] sm:$0xff] %vm1513, %v6792
        %6881 = vst.msk [vmem:[#allocation4 + $0x80] sm:$0xff] %vm1513, %v6794
        %6882 = vst.msk [vmem:[#allocation4 + $0x90] sm:$0xff] %vm1513, %v6796
        %6883 = vst.msk [vmem:[#allocation4 + $0xa0] sm:$0xff] %vm1513, %v6798
        %6884 = vst.msk [vmem:[#allocation4 + $0xb0] sm:$0xff] %vm1513, %v6800
        %6885 = vst.msk [vmem:[#allocation4 + $0xc0] sm:$0xff] %vm1513, %v6802
        %6886 = vst.msk [vmem:[#allocation4 + $0xd0] sm:$0xff] %vm1513, %v6804
        %6887 = vst.msk [vmem:[#allocation4 + $0xe0] sm:$0xff] %vm1513, %v6806
        %6888 = vst.msk [vmem:[#allocation4 + $0xf0] sm:$0xff] %vm1513, %v6808
        %6889 = vst.msk [vmem:[#allocation4 + $0x100] sm:$0xff] %vm1513, %v6810
        %6890 = vst.msk [vmem:[#allocation4 + $0x110] sm:$0xff] %vm1513, %v6812
        %6891 = vst.msk [vmem:[#allocation4 + $0x120] sm:$0xff] %vm1513, %v6814
        %6892 = vst.msk [vmem:[#allocation4 + $0x130] sm:$0xff] %vm1513, %v6816
        %6893 = vst.msk [vmem:[#allocation4 + $0x140] sm:$0xff] %vm1513, %v6818
        %6894 = vst.msk [vmem:[#allocation4 + $0x150] sm:$0xff] %vm1513, %v6820
        %6895 = vst.msk [vmem:[#allocation4 + $0x160] sm:$0xff] %vm1513, %v6822
        %6896 = vst.msk [vmem:[#allocation4 + $0x170] sm:$0xff] %vm1513, %v6824
        %6897 = vst.msk [vmem:[#allocation4 + $0x180] sm:$0xff] %vm1513, %v6826
        %6898 = vst.msk [vmem:[#allocation4 + $0x190] sm:$0xff] %vm1513, %v6828
        %6899 = vst.msk [vmem:[#allocation4 + $0x1a0] sm:$0xff] %vm1513, %v6830
        %6900 = vst.msk [vmem:[#allocation4 + $0x1b0] sm:$0xff] %vm1513, %v6832
        %6901 = vst.msk [vmem:[#allocation4 + $0x1c0] sm:$0xff] %vm1513, %v6834
        %6902 = vst.msk [vmem:[#allocation4 + $0x1d0] sm:$0xff] %vm1513, %v6836
        %6903 = vst.msk [vmem:[#allocation4 + $0x1e0] sm:$0xff] %vm1513, %v6838
        %6904 = vst.msk [vmem:[#allocation4 + $0x1f0] sm:$0xff] %vm1513, %v6840
        %v6905 = vld [vmem:[#allocation2 + $0x2] sm:$0xff]
        %v6906 = vld [vmem:[#allocation2 + $0xa] sm:$0xff]
        %v6907 = vld [vmem:[#allocation2 + $0x1a] sm:$0xff]
        %v6908 = vld [vmem:[#allocation2 + $0x22] sm:$0xff]
        %v6909 = vld [vmem:[#allocation2 + $0x32] sm:$0xff]
        %v6910 = vld [vmem:[#allocation2 + $0x3a] sm:$0xff]
        %v6911 = vld [vmem:[#allocation2 + $0x4a] sm:$0xff]
        %v6912 = vld [vmem:[#allocation2 + $0x52] sm:$0xff]
        %v6913 = vld [vmem:[#allocation2 + $0x62] sm:$0xff]
        %v6914 = vld [vmem:[#allocation2 + $0x6a] sm:$0xff]
        %v6915 = vld [vmem:[#allocation2 + $0x7a] sm:$0xff]
        %v6916 = vld [vmem:[#allocation2 + $0x82] sm:$0xff]
        %v6917 = vld [vmem:[#allocation2 + $0x92] sm:$0xff]
        %v6918 = vld [vmem:[#allocation2 + $0x9a] sm:$0xff]
        %v6919 = vld [vmem:[#allocation2 + $0xaa] sm:$0xff]
        %v6920 = vld [vmem:[#allocation2 + $0xb2] sm:$0xff]
        %v6921 = vld [vmem:[#allocation2 + $0xc2] sm:$0xff]
        %v6922 = vld [vmem:[#allocation2 + $0xca] sm:$0xff]
        %v6923 = vld [vmem:[#allocation2 + $0xda] sm:$0xff]
        %v6924 = vld [vmem:[#allocation2 + $0xe2] sm:$0xff]
        %v6925 = vld [vmem:[#allocation2 + $0xf2] sm:$0xff]
        %v6926 = vld [vmem:[#allocation2 + $0xfa] sm:$0xff]
        %v6927 = vld [vmem:[#allocation2 + $0x10a] sm:$0xff]
        %v6928 = vld [vmem:[#allocation2 + $0x112] sm:$0xff]
        %v6929 = vld [vmem:[#allocation2 + $0x122] sm:$0xff]
        %v6930 = vld [vmem:[#allocation2 + $0x12a] sm:$0xff]
        %v6931 = vld [vmem:[#allocation2 + $0x13a] sm:$0xff]
        %v6932 = vld [vmem:[#allocation2 + $0x142] sm:$0xff]
        %v6933 = vld [vmem:[#allocation2 + $0x152] sm:$0xff]
        %v6934 = vld [vmem:[#allocation2 + $0x15a] sm:$0xff]
        %v6935 = vld [vmem:[#allocation2 + $0x16a] sm:$0xff]
        %v6936 = vld [vmem:[#allocation2 + $0x172] sm:$0xff]
        %6969 = vrot.lane.b32.xlu0 %v6905, 32
        %v6970 = vpop.permute.xlu0 %6969
        %6971 = vrot.lane.b32.xlu0 %v6906, 32
        %v6972 = vpop.permute.xlu0 %6971
        %6973 = vrot.lane.b32.xlu0 %v6907, 32
        %v6974 = vpop.permute.xlu0 %6973
        %6975 = vrot.lane.b32.xlu0 %v6908, 32
        %v6976 = vpop.permute.xlu0 %6975
        %6977 = vrot.lane.b32.xlu0 %v6909, 32
        %v6978 = vpop.permute.xlu0 %6977
        %6979 = vrot.lane.b32.xlu0 %v6910, 32
        %v6980 = vpop.permute.xlu0 %6979
        %6981 = vrot.lane.b32.xlu0 %v6911, 32
        %v6982 = vpop.permute.xlu0 %6981
        %6983 = vrot.lane.b32.xlu0 %v6912, 32
        %v6984 = vpop.permute.xlu0 %6983
        %6985 = vrot.lane.b32.xlu0 %v6913, 32
        %v6986 = vpop.permute.xlu0 %6985
        %6987 = vrot.lane.b32.xlu0 %v6914, 32
        %v6988 = vpop.permute.xlu0 %6987
        %6989 = vrot.lane.b32.xlu0 %v6915, 32
        %v6990 = vpop.permute.xlu0 %6989
        %6991 = vrot.lane.b32.xlu0 %v6916, 32
        %v6992 = vpop.permute.xlu0 %6991
        %6993 = vrot.lane.b32.xlu0 %v6917, 32
        %v6994 = vpop.permute.xlu0 %6993
        %6995 = vrot.lane.b32.xlu0 %v6918, 32
        %v6996 = vpop.permute.xlu0 %6995
        %6997 = vrot.lane.b32.xlu0 %v6919, 32
        %v6998 = vpop.permute.xlu0 %6997
        %6999 = vrot.lane.b32.xlu0 %v6920, 32
        %v7000 = vpop.permute.xlu0 %6999
        %7001 = vrot.lane.b32.xlu0 %v6921, 32
        %v7002 = vpop.permute.xlu0 %7001
        %7003 = vrot.lane.b32.xlu0 %v6922, 32
        %v7004 = vpop.permute.xlu0 %7003
        %7005 = vrot.lane.b32.xlu0 %v6923, 32
        %v7006 = vpop.permute.xlu0 %7005
        %7007 = vrot.lane.b32.xlu0 %v6924, 32
        %v7008 = vpop.permute.xlu0 %7007
        %7009 = vrot.lane.b32.xlu0 %v6925, 32
        %v7010 = vpop.permute.xlu0 %7009
        %7011 = vrot.lane.b32.xlu0 %v6926, 32
        %v7012 = vpop.permute.xlu0 %7011
        %7013 = vrot.lane.b32.xlu0 %v6927, 32
        %v7014 = vpop.permute.xlu0 %7013
        %7015 = vrot.lane.b32.xlu0 %v6928, 32
        %v7016 = vpop.permute.xlu0 %7015
        %7017 = vrot.lane.b32.xlu0 %v6929, 32
        %v7018 = vpop.permute.xlu0 %7017
        %7019 = vrot.lane.b32.xlu0 %v6930, 32
        %v7020 = vpop.permute.xlu0 %7019
        %7021 = vrot.lane.b32.xlu0 %v6931, 32
        %v7022 = vpop.permute.xlu0 %7021
        %7023 = vrot.lane.b32.xlu0 %v6932, 32
        %v7024 = vpop.permute.xlu0 %7023
        %7025 = vrot.lane.b32.xlu0 %v6933, 32
        %v7026 = vpop.permute.xlu0 %7025
        %7027 = vrot.lane.b32.xlu0 %v6934, 32
        %v7028 = vpop.permute.xlu0 %7027
        %7029 = vrot.lane.b32.xlu0 %v6935, 32
        %v7030 = vpop.permute.xlu0 %7029
        %7031 = vrot.lane.b32.xlu0 %v6936, 32
        %v7032 = vpop.permute.xlu0 %7031
        %7065 = vst.msk [vmem:[#allocation4] sm:$0xff] %vm1706, %v6970
        %7066 = vst.msk [vmem:[#allocation4 + $0x10] sm:$0xff] %vm1706, %v6972
        %7067 = vst.msk [vmem:[#allocation4 + $0x20] sm:$0xff] %vm1706, %v6974
        %7068 = vst.msk [vmem:[#allocation4 + $0x30] sm:$0xff] %vm1706, %v6976
        %7069 = vst.msk [vmem:[#allocation4 + $0x40] sm:$0xff] %vm1706, %v6978
        %7070 = vst.msk [vmem:[#allocation4 + $0x50] sm:$0xff] %vm1706, %v6980
        %7071 = vst.msk [vmem:[#allocation4 + $0x60] sm:$0xff] %vm1706, %v6982
        %7072 = vst.msk [vmem:[#allocation4 + $0x70] sm:$0xff] %vm1706, %v6984
        %7073 = vst.msk [vmem:[#allocation4 + $0x80] sm:$0xff] %vm1706, %v6986
        %7074 = vst.msk [vmem:[#allocation4 + $0x90] sm:$0xff] %vm1706, %v6988
        %7075 = vst.msk [vmem:[#allocation4 + $0xa0] sm:$0xff] %vm1706, %v6990
        %7076 = vst.msk [vmem:[#allocation4 + $0xb0] sm:$0xff] %vm1706, %v6992
        %7077 = vst.msk [vmem:[#allocation4 + $0xc0] sm:$0xff] %vm1706, %v6994
        %7078 = vst.msk [vmem:[#allocation4 + $0xd0] sm:$0xff] %vm1706, %v6996
        %7079 = vst.msk [vmem:[#allocation4 + $0xe0] sm:$0xff] %vm1706, %v6998
        %7080 = vst.msk [vmem:[#allocation4 + $0xf0] sm:$0xff] %vm1706, %v7000
        %7081 = vst.msk [vmem:[#allocation4 + $0x100] sm:$0xff] %vm1706, %v7002
        %7082 = vst.msk [vmem:[#allocation4 + $0x110] sm:$0xff] %vm1706, %v7004
        %7083 = vst.msk [vmem:[#allocation4 + $0x120] sm:$0xff] %vm1706, %v7006
        %7084 = vst.msk [vmem:[#allocation4 + $0x130] sm:$0xff] %vm1706, %v7008
        %7085 = vst.msk [vmem:[#allocation4 + $0x140] sm:$0xff] %vm1706, %v7010
        %7086 = vst.msk [vmem:[#allocation4 + $0x150] sm:$0xff] %vm1706, %v7012
        %7087 = vst.msk [vmem:[#allocation4 + $0x160] sm:$0xff] %vm1706, %v7014
        %7088 = vst.msk [vmem:[#allocation4 + $0x170] sm:$0xff] %vm1706, %v7016
        %7089 = vst.msk [vmem:[#allocation4 + $0x180] sm:$0xff] %vm1706, %v7018
        %7090 = vst.msk [vmem:[#allocation4 + $0x190] sm:$0xff] %vm1706, %v7020
        %7091 = vst.msk [vmem:[#allocation4 + $0x1a0] sm:$0xff] %vm1706, %v7022
        %7092 = vst.msk [vmem:[#allocation4 + $0x1b0] sm:$0xff] %vm1706, %v7024
        %7093 = vst.msk [vmem:[#allocation4 + $0x1c0] sm:$0xff] %vm1706, %v7026
        %7094 = vst.msk [vmem:[#allocation4 + $0x1d0] sm:$0xff] %vm1706, %v7028
        %7095 = vst.msk [vmem:[#allocation4 + $0x1e0] sm:$0xff] %vm1706, %v7030
        %7096 = vst.msk [vmem:[#allocation4 + $0x1f0] sm:$0xff] %vm1706, %v7032
        %v7097 = vld [vmem:[%s1256] sm:$0xff]
        %v7098 = vld [vmem:[%s1256 + $0x8] sm:$0xff]
        %v7099 = vld [vmem:[%s1256 + $0x18] sm:$0xff]
        %v7100 = vld [vmem:[%s1256 + $0x20] sm:$0xff]
        %v7101 = vld [vmem:[%s1256 + $0x30] sm:$0xff]
        %v7102 = vld [vmem:[%s1256 + $0x38] sm:$0xff]
        %v7103 = vld [vmem:[%s1256 + $0x48] sm:$0xff]
        %v7104 = vld [vmem:[%s1256 + $0x50] sm:$0xff]
        %v7105 = vld [vmem:[%s1256 + $0x60] sm:$0xff]
        %v7106 = vld [vmem:[%s1256 + $0x68] sm:$0xff]
        %v7107 = vld [vmem:[%s1256 + $0x78] sm:$0xff]
        %v7108 = vld [vmem:[%s1256 + $0x80] sm:$0xff]
        %v7109 = vld [vmem:[%s1256 + $0x90] sm:$0xff]
        %v7110 = vld [vmem:[%s1256 + $0x98] sm:$0xff]
        %v7111 = vld [vmem:[%s1256 + $0xa8] sm:$0xff]
        %v7112 = vld [vmem:[%s1256 + $0xb0] sm:$0xff]
        %v7113 = vld [vmem:[%s1256 + $0xc0] sm:$0xff]
        %v7114 = vld [vmem:[%s1256 + $0xc8] sm:$0xff]
        %v7115 = vld [vmem:[%s1256 + $0xd8] sm:$0xff]
        %v7116 = vld [vmem:[%s1256 + $0xe0] sm:$0xff]
        %v7117 = vld [vmem:[%s1256 + $0xf0] sm:$0xff]
        %v7118 = vld [vmem:[%s1256 + $0xf8] sm:$0xff]
        %v7119 = vld [vmem:[%s1256 + $0x108] sm:$0xff]
        %v7120 = vld [vmem:[%s1256 + $0x110] sm:$0xff]
        %v7121 = vld [vmem:[%s1256 + $0x120] sm:$0xff]
        %v7122 = vld [vmem:[%s1256 + $0x128] sm:$0xff]
        %v7123 = vld [vmem:[%s1256 + $0x138] sm:$0xff]
        %v7124 = vld [vmem:[%s1256 + $0x140] sm:$0xff]
        %v7125 = vld [vmem:[%s1256 + $0x150] sm:$0xff]
        %v7126 = vld [vmem:[%s1256 + $0x158] sm:$0xff]
        %v7127 = vld [vmem:[%s1256 + $0x168] sm:$0xff]
        %v7128 = vld [vmem:[%s1256 + $0x170] sm:$0xff]
        %7161 = vrot.lane.b32.xlu0 %v7097, 48
        %v7162 = vpop.permute.xlu0 %7161
        %7163 = vrot.lane.b32.xlu0 %v7098, 48
        %v7164 = vpop.permute.xlu0 %7163
        %7165 = vrot.lane.b32.xlu0 %v7099, 48
        %v7166 = vpop.permute.xlu0 %7165
        %7167 = vrot.lane.b32.xlu0 %v7100, 48
        %v7168 = vpop.permute.xlu0 %7167
        %7169 = vrot.lane.b32.xlu0 %v7101, 48
        %v7170 = vpop.permute.xlu0 %7169
        %7171 = vrot.lane.b32.xlu0 %v7102, 48
        %v7172 = vpop.permute.xlu0 %7171
        %7173 = vrot.lane.b32.xlu0 %v7103, 48
        %v7174 = vpop.permute.xlu0 %7173
        %7175 = vrot.lane.b32.xlu0 %v7104, 48
        %v7176 = vpop.permute.xlu0 %7175
        %7177 = vrot.lane.b32.xlu0 %v7105, 48
        %v7178 = vpop.permute.xlu0 %7177
        %7179 = vrot.lane.b32.xlu0 %v7106, 48
        %v7180 = vpop.permute.xlu0 %7179
        %7181 = vrot.lane.b32.xlu0 %v7107, 48
        %v7182 = vpop.permute.xlu0 %7181
        %7183 = vrot.lane.b32.xlu0 %v7108, 48
        %v7184 = vpop.permute.xlu0 %7183
        %7185 = vrot.lane.b32.xlu0 %v7109, 48
        %v7186 = vpop.permute.xlu0 %7185
        %7187 = vrot.lane.b32.xlu0 %v7110, 48
        %v7188 = vpop.permute.xlu0 %7187
        %7189 = vrot.lane.b32.xlu0 %v7111, 48
        %v7190 = vpop.permute.xlu0 %7189
        %7191 = vrot.lane.b32.xlu0 %v7112, 48
        %v7192 = vpop.permute.xlu0 %7191
        %7193 = vrot.lane.b32.xlu0 %v7113, 48
        %v7194 = vpop.permute.xlu0 %7193
        %7195 = vrot.lane.b32.xlu0 %v7114, 48
        %v7196 = vpop.permute.xlu0 %7195
        %7197 = vrot.lane.b32.xlu0 %v7115, 48
        %v7198 = vpop.permute.xlu0 %7197
        %7199 = vrot.lane.b32.xlu0 %v7116, 48
        %v7200 = vpop.permute.xlu0 %7199
        %7201 = vrot.lane.b32.xlu0 %v7117, 48
        %v7202 = vpop.permute.xlu0 %7201
        %7203 = vrot.lane.b32.xlu0 %v7118, 48
        %v7204 = vpop.permute.xlu0 %7203
        %7205 = vrot.lane.b32.xlu0 %v7119, 48
        %v7206 = vpop.permute.xlu0 %7205
        %7207 = vrot.lane.b32.xlu0 %v7120, 48
        %v7208 = vpop.permute.xlu0 %7207
        %7209 = vrot.lane.b32.xlu0 %v7121, 48
        %v7210 = vpop.permute.xlu0 %7209
        %7211 = vrot.lane.b32.xlu0 %v7122, 48
        %v7212 = vpop.permute.xlu0 %7211
        %7213 = vrot.lane.b32.xlu0 %v7123, 48
        %v7214 = vpop.permute.xlu0 %7213
        %7215 = vrot.lane.b32.xlu0 %v7124, 48
        %v7216 = vpop.permute.xlu0 %7215
        %7217 = vrot.lane.b32.xlu0 %v7125, 48
        %v7218 = vpop.permute.xlu0 %7217
        %7219 = vrot.lane.b32.xlu0 %v7126, 48
        %v7220 = vpop.permute.xlu0 %7219
        %7221 = vrot.lane.b32.xlu0 %v7127, 48
        %v7222 = vpop.permute.xlu0 %7221
        %7223 = vrot.lane.b32.xlu0 %v7128, 48
        %v7224 = vpop.permute.xlu0 %7223
        %7257 = vst.msk [vmem:[#allocation4] sm:$0xff] %vm1899, %v7162
        %7258 = vst.msk [vmem:[#allocation4 + $0x10] sm:$0xff] %vm1899, %v7164
        %7259 = vst.msk [vmem:[#allocation4 + $0x20] sm:$0xff] %vm1899, %v7166
        %7260 = vst.msk [vmem:[#allocation4 + $0x30] sm:$0xff] %vm1899, %v7168
        %7261 = vst.msk [vmem:[#allocation4 + $0x40] sm:$0xff] %vm1899, %v7170
        %7262 = vst.msk [vmem:[#allocation4 + $0x50] sm:$0xff] %vm1899, %v7172
        %7263 = vst.msk [vmem:[#allocation4 + $0x60] sm:$0xff] %vm1899, %v7174
        %7264 = vst.msk [vmem:[#allocation4 + $0x70] sm:$0xff] %vm1899, %v7176
        %7265 = vst.msk [vmem:[#allocation4 + $0x80] sm:$0xff] %vm1899, %v7178
        %7266 = vst.msk [vmem:[#allocation4 + $0x90] sm:$0xff] %vm1899, %v7180
        %7267 = vst.msk [vmem:[#allocation4 + $0xa0] sm:$0xff] %vm1899, %v7182
        %7268 = vst.msk [vmem:[#allocation4 + $0xb0] sm:$0xff] %vm1899, %v7184
        %7269 = vst.msk [vmem:[#allocation4 + $0xc0] sm:$0xff] %vm1899, %v7186
        %7270 = vst.msk [vmem:[#allocation4 + $0xd0] sm:$0xff] %vm1899, %v7188
        %7271 = vst.msk [vmem:[#allocation4 + $0xe0] sm:$0xff] %vm1899, %v7190
        %7272 = vst.msk [vmem:[#allocation4 + $0xf0] sm:$0xff] %vm1899, %v7192
        %7273 = vst.msk [vmem:[#allocation4 + $0x100] sm:$0xff] %vm1899, %v7194
        %7274 = vst.msk [vmem:[#allocation4 + $0x110] sm:$0xff] %vm1899, %v7196
        %7275 = vst.msk [vmem:[#allocation4 + $0x120] sm:$0xff] %vm1899, %v7198
        %7276 = vst.msk [vmem:[#allocation4 + $0x130] sm:$0xff] %vm1899, %v7200
        %7277 = vst.msk [vmem:[#allocation4 + $0x140] sm:$0xff] %vm1899, %v7202
        %7278 = vst.msk [vmem:[#allocation4 + $0x150] sm:$0xff] %vm1899, %v7204
        %7279 = vst.msk [vmem:[#allocation4 + $0x160] sm:$0xff] %vm1899, %v7206
        %7280 = vst.msk [vmem:[#allocation4 + $0x170] sm:$0xff] %vm1899, %v7208
        %7281 = vst.msk [vmem:[#allocation4 + $0x180] sm:$0xff] %vm1899, %v7210
        %7282 = vst.msk [vmem:[#allocation4 + $0x190] sm:$0xff] %vm1899, %v7212
        %7283 = vst.msk [vmem:[#allocation4 + $0x1a0] sm:$0xff] %vm1899, %v7214
        %7284 = vst.msk [vmem:[#allocation4 + $0x1b0] sm:$0xff] %vm1899, %v7216
        %7285 = vst.msk [vmem:[#allocation4 + $0x1c0] sm:$0xff] %vm1899, %v7218
        %7286 = vst.msk [vmem:[#allocation4 + $0x1d0] sm:$0xff] %vm1899, %v7220
        %7287 = vst.msk [vmem:[#allocation4 + $0x1e0] sm:$0xff] %vm1899, %v7222
        %7288 = vst.msk [vmem:[#allocation4 + $0x1f0] sm:$0xff] %vm1899, %v7224
        %v7289 = vld [vmem:[%s1256 + $0x1] sm:$0xff]
        %v7290 = vld [vmem:[%s1256 + $0x9] sm:$0xff]
        %v7291 = vld [vmem:[%s1256 + $0x19] sm:$0xff]
        %v7292 = vld [vmem:[%s1256 + $0x21] sm:$0xff]
        %v7293 = vld [vmem:[%s1256 + $0x31] sm:$0xff]
        %v7294 = vld [vmem:[%s1256 + $0x39] sm:$0xff]
        %v7295 = vld [vmem:[%s1256 + $0x49] sm:$0xff]
        %v7296 = vld [vmem:[%s1256 + $0x51] sm:$0xff]
        %v7297 = vld [vmem:[%s1256 + $0x61] sm:$0xff]
        %v7298 = vld [vmem:[%s1256 + $0x69] sm:$0xff]
        %v7299 = vld [vmem:[%s1256 + $0x79] sm:$0xff]
        %v7300 = vld [vmem:[%s1256 + $0x81] sm:$0xff]
        %v7301 = vld [vmem:[%s1256 + $0x91] sm:$0xff]
        %v7302 = vld [vmem:[%s1256 + $0x99] sm:$0xff]
        %v7303 = vld [vmem:[%s1256 + $0xa9] sm:$0xff]
        %v7304 = vld [vmem:[%s1256 + $0xb1] sm:$0xff]
        %v7305 = vld [vmem:[%s1256 + $0xc1] sm:$0xff]
        %v7306 = vld [vmem:[%s1256 + $0xc9] sm:$0xff]
        %v7307 = vld [vmem:[%s1256 + $0xd9] sm:$0xff]
        %v7308 = vld [vmem:[%s1256 + $0xe1] sm:$0xff]
        %v7309 = vld [vmem:[%s1256 + $0xf1] sm:$0xff]
        %v7310 = vld [vmem:[%s1256 + $0xf9] sm:$0xff]
        %v7311 = vld [vmem:[%s1256 + $0x109] sm:$0xff]
        %v7312 = vld [vmem:[%s1256 + $0x111] sm:$0xff]
        %v7313 = vld [vmem:[%s1256 + $0x121] sm:$0xff]
        %v7314 = vld [vmem:[%s1256 + $0x129] sm:$0xff]
        %v7315 = vld [vmem:[%s1256 + $0x139] sm:$0xff]
        %v7316 = vld [vmem:[%s1256 + $0x141] sm:$0xff]
        %v7317 = vld [vmem:[%s1256 + $0x151] sm:$0xff]
        %v7318 = vld [vmem:[%s1256 + $0x159] sm:$0xff]
        %v7319 = vld [vmem:[%s1256 + $0x169] sm:$0xff]
        %v7320 = vld [vmem:[%s1256 + $0x171] sm:$0xff]
        %7353 = vrot.lane.b32.xlu0 %v7289, 64
        %v7354 = vpop.permute.xlu0 %7353
        %7355 = vrot.lane.b32.xlu0 %v7290, 64
        %v7356 = vpop.permute.xlu0 %7355
        %7357 = vrot.lane.b32.xlu0 %v7291, 64
        %v7358 = vpop.permute.xlu0 %7357
        %7359 = vrot.lane.b32.xlu0 %v7292, 64
        %v7360 = vpop.permute.xlu0 %7359
        %7361 = vrot.lane.b32.xlu0 %v7293, 64
        %v7362 = vpop.permute.xlu0 %7361
        %7363 = vrot.lane.b32.xlu0 %v7294, 64
        %v7364 = vpop.permute.xlu0 %7363
        %7365 = vrot.lane.b32.xlu0 %v7295, 64
        %v7366 = vpop.permute.xlu0 %7365
        %7367 = vrot.lane.b32.xlu0 %v7296, 64
        %v7368 = vpop.permute.xlu0 %7367
        %7369 = vrot.lane.b32.xlu0 %v7297, 64
        %v7370 = vpop.permute.xlu0 %7369
        %7371 = vrot.lane.b32.xlu0 %v7298, 64
        %v7372 = vpop.permute.xlu0 %7371
        %7373 = vrot.lane.b32.xlu0 %v7299, 64
        %v7374 = vpop.permute.xlu0 %7373
        %7375 = vrot.lane.b32.xlu0 %v7300, 64
        %v7376 = vpop.permute.xlu0 %7375
        %7377 = vrot.lane.b32.xlu0 %v7301, 64
        %v7378 = vpop.permute.xlu0 %7377
        %7379 = vrot.lane.b32.xlu0 %v7302, 64
        %v7380 = vpop.permute.xlu0 %7379
        %7381 = vrot.lane.b32.xlu0 %v7303, 64
        %v7382 = vpop.permute.xlu0 %7381
        %7383 = vrot.lane.b32.xlu0 %v7304, 64
        %v7384 = vpop.permute.xlu0 %7383
        %7385 = vrot.lane.b32.xlu0 %v7305, 64
        %v7386 = vpop.permute.xlu0 %7385
        %7387 = vrot.lane.b32.xlu0 %v7306, 64
        %v7388 = vpop.permute.xlu0 %7387
        %7389 = vrot.lane.b32.xlu0 %v7307, 64
        %v7390 = vpop.permute.xlu0 %7389
        %7391 = vrot.lane.b32.xlu0 %v7308, 64
        %v7392 = vpop.permute.xlu0 %7391
        %7393 = vrot.lane.b32.xlu0 %v7309, 64
        %v7394 = vpop.permute.xlu0 %7393
        %7395 = vrot.lane.b32.xlu0 %v7310, 64
        %v7396 = vpop.permute.xlu0 %7395
        %7397 = vrot.lane.b32.xlu0 %v7311, 64
        %v7398 = vpop.permute.xlu0 %7397
        %7399 = vrot.lane.b32.xlu0 %v7312, 64
        %v7400 = vpop.permute.xlu0 %7399
        %7401 = vrot.lane.b32.xlu0 %v7313, 64
        %v7402 = vpop.permute.xlu0 %7401
        %7403 = vrot.lane.b32.xlu0 %v7314, 64
        %v7404 = vpop.permute.xlu0 %7403
        %7405 = vrot.lane.b32.xlu0 %v7315, 64
        %v7406 = vpop.permute.xlu0 %7405
        %7407 = vrot.lane.b32.xlu0 %v7316, 64
        %v7408 = vpop.permute.xlu0 %7407
        %7409 = vrot.lane.b32.xlu0 %v7317, 64
        %v7410 = vpop.permute.xlu0 %7409
        %7411 = vrot.lane.b32.xlu0 %v7318, 64
        %v7412 = vpop.permute.xlu0 %7411
        %7413 = vrot.lane.b32.xlu0 %v7319, 64
        %v7414 = vpop.permute.xlu0 %7413
        %7415 = vrot.lane.b32.xlu0 %v7320, 64
        %v7416 = vpop.permute.xlu0 %7415
        %7449 = vst.msk [vmem:[#allocation4] sm:$0xff] %vm2092, %v7354
        %7450 = vst.msk [vmem:[#allocation4 + $0x10] sm:$0xff] %vm2092, %v7356
        %7451 = vst.msk [vmem:[#allocation4 + $0x20] sm:$0xff] %vm2092, %v7358
        %7452 = vst.msk [vmem:[#allocation4 + $0x30] sm:$0xff] %vm2092, %v7360
        %7453 = vst.msk [vmem:[#allocation4 + $0x40] sm:$0xff] %vm2092, %v7362
        %7454 = vst.msk [vmem:[#allocation4 + $0x50] sm:$0xff] %vm2092, %v7364
        %7455 = vst.msk [vmem:[#allocation4 + $0x60] sm:$0xff] %vm2092, %v7366
        %7456 = vst.msk [vmem:[#allocation4 + $0x70] sm:$0xff] %vm2092, %v7368
        %7457 = vst.msk [vmem:[#allocation4 + $0x80] sm:$0xff] %vm2092, %v7370
        %7458 = vst.msk [vmem:[#allocation4 + $0x90] sm:$0xff] %vm2092, %v7372
        %7459 = vst.msk [vmem:[#allocation4 + $0xa0] sm:$0xff] %vm2092, %v7374
        %7460 = vst.msk [vmem:[#allocation4 + $0xb0] sm:$0xff] %vm2092, %v7376
        %7461 = vst.msk [vmem:[#allocation4 + $0xc0] sm:$0xff] %vm2092, %v7378
        %7462 = vst.msk [vmem:[#allocation4 + $0xd0] sm:$0xff] %vm2092, %v7380
        %7463 = vst.msk [vmem:[#allocation4 + $0xe0] sm:$0xff] %vm2092, %v7382
        %7464 = vst.msk [vmem:[#allocation4 + $0xf0] sm:$0xff] %vm2092, %v7384
        %7465 = vst.msk [vmem:[#allocation4 + $0x100] sm:$0xff] %vm2092, %v7386
        %7466 = vst.msk [vmem:[#allocation4 + $0x110] sm:$0xff] %vm2092, %v7388
        %7467 = vst.msk [vmem:[#allocation4 + $0x120] sm:$0xff] %vm2092, %v7390
        %7468 = vst.msk [vmem:[#allocation4 + $0x130] sm:$0xff] %vm2092, %v7392
        %7469 = vst.msk [vmem:[#allocation4 + $0x140] sm:$0xff] %vm2092, %v7394
        %7470 = vst.msk [vmem:[#allocation4 + $0x150] sm:$0xff] %vm2092, %v7396
        %7471 = vst.msk [vmem:[#allocation4 + $0x160] sm:$0xff] %vm2092, %v7398
        %7472 = vst.msk [vmem:[#allocation4 + $0x170] sm:$0xff] %vm2092, %v7400
        %7473 = vst.msk [vmem:[#allocation4 + $0x180] sm:$0xff] %vm2092, %v7402
        %7474 = vst.msk [vmem:[#allocation4 + $0x190] sm:$0xff] %vm2092, %v7404
        %7475 = vst.msk [vmem:[#allocation4 + $0x1a0] sm:$0xff] %vm2092, %v7406
        %7476 = vst.msk [vmem:[#allocation4 + $0x1b0] sm:$0xff] %vm2092, %v7408
        %7477 = vst.msk [vmem:[#allocation4 + $0x1c0] sm:$0xff] %vm2092, %v7410
        %7478 = vst.msk [vmem:[#allocation4 + $0x1d0] sm:$0xff] %vm2092, %v7412
        %7479 = vst.msk [vmem:[#allocation4 + $0x1e0] sm:$0xff] %vm2092, %v7414
        %7480 = vst.msk [vmem:[#allocation4 + $0x1f0] sm:$0xff] %vm2092, %v7416
        %v7481 = vld [vmem:[%s1256 + $0x2] sm:$0xff]
        %v7482 = vld [vmem:[%s1256 + $0xa] sm:$0xff]
        %v7483 = vld [vmem:[%s1256 + $0x1a] sm:$0xff]
        %v7484 = vld [vmem:[%s1256 + $0x22] sm:$0xff]
        %v7485 = vld [vmem:[%s1256 + $0x32] sm:$0xff]
        %v7486 = vld [vmem:[%s1256 + $0x3a] sm:$0xff]
        %v7487 = vld [vmem:[%s1256 + $0x4a] sm:$0xff]
        %v7488 = vld [vmem:[%s1256 + $0x52] sm:$0xff]
        %v7489 = vld [vmem:[%s1256 + $0x62] sm:$0xff]
        %v7490 = vld [vmem:[%s1256 + $0x6a] sm:$0xff]
        %v7491 = vld [vmem:[%s1256 + $0x7a] sm:$0xff]
        %v7492 = vld [vmem:[%s1256 + $0x82] sm:$0xff]
        %v7493 = vld [vmem:[%s1256 + $0x92] sm:$0xff]
        %v7494 = vld [vmem:[%s1256 + $0x9a] sm:$0xff]
        %v7495 = vld [vmem:[%s1256 + $0xaa] sm:$0xff]
        %v7496 = vld [vmem:[%s1256 + $0xb2] sm:$0xff]
        %v7497 = vld [vmem:[%s1256 + $0xc2] sm:$0xff]
        %v7498 = vld [vmem:[%s1256 + $0xca] sm:$0xff]
        %v7499 = vld [vmem:[%s1256 + $0xda] sm:$0xff]
        %v7500 = vld [vmem:[%s1256 + $0xe2] sm:$0xff]
        %v7501 = vld [vmem:[%s1256 + $0xf2] sm:$0xff]
        %v7502 = vld [vmem:[%s1256 + $0xfa] sm:$0xff]
        %v7503 = vld [vmem:[%s1256 + $0x10a] sm:$0xff]
        %v7504 = vld [vmem:[%s1256 + $0x112] sm:$0xff]
        %v7505 = vld [vmem:[%s1256 + $0x122] sm:$0xff]
        %v7506 = vld [vmem:[%s1256 + $0x12a] sm:$0xff]
        %v7507 = vld [vmem:[%s1256 + $0x13a] sm:$0xff]
        %v7508 = vld [vmem:[%s1256 + $0x142] sm:$0xff]
        %v7509 = vld [vmem:[%s1256 + $0x152] sm:$0xff]
        %v7510 = vld [vmem:[%s1256 + $0x15a] sm:$0xff]
        %v7511 = vld [vmem:[%s1256 + $0x16a] sm:$0xff]
        %v7512 = vld [vmem:[%s1256 + $0x172] sm:$0xff]
        %7545 = vrot.lane.b32.xlu0 %v7481, 80
        %v7546 = vpop.permute.xlu0 %7545
        %7547 = vrot.lane.b32.xlu0 %v7482, 80
        %v7548 = vpop.permute.xlu0 %7547
        %7549 = vrot.lane.b32.xlu0 %v7483, 80
        %v7550 = vpop.permute.xlu0 %7549
        %7551 = vrot.lane.b32.xlu0 %v7484, 80
        %v7552 = vpop.permute.xlu0 %7551
        %7553 = vrot.lane.b32.xlu0 %v7485, 80
        %v7554 = vpop.permute.xlu0 %7553
        %7555 = vrot.lane.b32.xlu0 %v7486, 80
        %v7556 = vpop.permute.xlu0 %7555
        %7557 = vrot.lane.b32.xlu0 %v7487, 80
        %v7558 = vpop.permute.xlu0 %7557
        %7559 = vrot.lane.b32.xlu0 %v7488, 80
        %v7560 = vpop.permute.xlu0 %7559
        %7561 = vrot.lane.b32.xlu0 %v7489, 80
        %v7562 = vpop.permute.xlu0 %7561
        %7563 = vrot.lane.b32.xlu0 %v7490, 80
        %v7564 = vpop.permute.xlu0 %7563
        %7565 = vrot.lane.b32.xlu0 %v7491, 80
        %v7566 = vpop.permute.xlu0 %7565
        %7567 = vrot.lane.b32.xlu0 %v7492, 80
        %v7568 = vpop.permute.xlu0 %7567
        %7569 = vrot.lane.b32.xlu0 %v7493, 80
        %v7570 = vpop.permute.xlu0 %7569
        %7571 = vrot.lane.b32.xlu0 %v7494, 80
        %v7572 = vpop.permute.xlu0 %7571
        %7573 = vrot.lane.b32.xlu0 %v7495, 80
        %v7574 = vpop.permute.xlu0 %7573
        %7575 = vrot.lane.b32.xlu0 %v7496, 80
        %v7576 = vpop.permute.xlu0 %7575
        %7577 = vrot.lane.b32.xlu0 %v7497, 80
        %v7578 = vpop.permute.xlu0 %7577
        %7579 = vrot.lane.b32.xlu0 %v7498, 80
        %v7580 = vpop.permute.xlu0 %7579
        %7581 = vrot.lane.b32.xlu0 %v7499, 80
        %v7582 = vpop.permute.xlu0 %7581
        %7583 = vrot.lane.b32.xlu0 %v7500, 80
        %v7584 = vpop.permute.xlu0 %7583
        %7585 = vrot.lane.b32.xlu0 %v7501, 80
        %v7586 = vpop.permute.xlu0 %7585
        %7587 = vrot.lane.b32.xlu0 %v7502, 80
        %v7588 = vpop.permute.xlu0 %7587
        %7589 = vrot.lane.b32.xlu0 %v7503, 80
        %v7590 = vpop.permute.xlu0 %7589
        %7591 = vrot.lane.b32.xlu0 %v7504, 80
        %v7592 = vpop.permute.xlu0 %7591
        %7593 = vrot.lane.b32.xlu0 %v7505, 80
        %v7594 = vpop.permute.xlu0 %7593
        %7595 = vrot.lane.b32.xlu0 %v7506, 80
        %v7596 = vpop.permute.xlu0 %7595
        %7597 = vrot.lane.b32.xlu0 %v7507, 80
        %v7598 = vpop.permute.xlu0 %7597
        %7599 = vrot.lane.b32.xlu0 %v7508, 80
        %v7600 = vpop.permute.xlu0 %7599
        %7601 = vrot.lane.b32.xlu0 %v7509, 80
        %v7602 = vpop.permute.xlu0 %7601
        %7603 = vrot.lane.b32.xlu0 %v7510, 80
        %v7604 = vpop.permute.xlu0 %7603
        %7605 = vrot.lane.b32.xlu0 %v7511, 80
        %v7606 = vpop.permute.xlu0 %7605
        %7607 = vrot.lane.b32.xlu0 %v7512, 80
        %v7608 = vpop.permute.xlu0 %7607
        %7641 = vst.msk [vmem:[#allocation4] sm:$0xff] %vm2285, %v7546
        %7642 = vst.msk [vmem:[#allocation4 + $0x10] sm:$0xff] %vm2285, %v7548
        %7643 = vst.msk [vmem:[#allocation4 + $0x20] sm:$0xff] %vm2285, %v7550
        %7644 = vst.msk [vmem:[#allocation4 + $0x30] sm:$0xff] %vm2285, %v7552
        %7645 = vst.msk [vmem:[#allocation4 + $0x40] sm:$0xff] %vm2285, %v7554
        %7646 = vst.msk [vmem:[#allocation4 + $0x50] sm:$0xff] %vm2285, %v7556
        %7647 = vst.msk [vmem:[#allocation4 + $0x60] sm:$0xff] %vm2285, %v7558
        %7648 = vst.msk [vmem:[#allocation4 + $0x70] sm:$0xff] %vm2285, %v7560
        %7649 = vst.msk [vmem:[#allocation4 + $0x80] sm:$0xff] %vm2285, %v7562
        %7650 = vst.msk [vmem:[#allocation4 + $0x90] sm:$0xff] %vm2285, %v7564
        %7651 = vst.msk [vmem:[#allocation4 + $0xa0] sm:$0xff] %vm2285, %v7566
        %7652 = vst.msk [vmem:[#allocation4 + $0xb0] sm:$0xff] %vm2285, %v7568
        %7653 = vst.msk [vmem:[#allocation4 + $0xc0] sm:$0xff] %vm2285, %v7570
        %7654 = vst.msk [vmem:[#allocation4 + $0xd0] sm:$0xff] %vm2285, %v7572
        %7655 = vst.msk [vmem:[#allocation4 + $0xe0] sm:$0xff] %vm2285, %v7574
        %7656 = vst.msk [vmem:[#allocation4 + $0xf0] sm:$0xff] %vm2285, %v7576
        %7657 = vst.msk [vmem:[#allocation4 + $0x100] sm:$0xff] %vm2285, %v7578
        %7658 = vst.msk [vmem:[#allocation4 + $0x110] sm:$0xff] %vm2285, %v7580
        %7659 = vst.msk [vmem:[#allocation4 + $0x120] sm:$0xff] %vm2285, %v7582
        %7660 = vst.msk [vmem:[#allocation4 + $0x130] sm:$0xff] %vm2285, %v7584
        %7661 = vst.msk [vmem:[#allocation4 + $0x140] sm:$0xff] %vm2285, %v7586
        %7662 = vst.msk [vmem:[#allocation4 + $0x150] sm:$0xff] %vm2285, %v7588
        %7663 = vst.msk [vmem:[#allocation4 + $0x160] sm:$0xff] %vm2285, %v7590
        %7664 = vst.msk [vmem:[#allocation4 + $0x170] sm:$0xff] %vm2285, %v7592
        %7665 = vst.msk [vmem:[#allocation4 + $0x180] sm:$0xff] %vm2285, %v7594
        %7666 = vst.msk [vmem:[#allocation4 + $0x190] sm:$0xff] %vm2285, %v7596
        %7667 = vst.msk [vmem:[#allocation4 + $0x1a0] sm:$0xff] %vm2285, %v7598
        %7668 = vst.msk [vmem:[#allocation4 + $0x1b0] sm:$0xff] %vm2285, %v7600
        %7669 = vst.msk [vmem:[#allocation4 + $0x1c0] sm:$0xff] %vm2285, %v7602
        %7670 = vst.msk [vmem:[#allocation4 + $0x1d0] sm:$0xff] %vm2285, %v7604
        %7671 = vst.msk [vmem:[#allocation4 + $0x1e0] sm:$0xff] %vm2285, %v7606
        %7672 = vst.msk [vmem:[#allocation4 + $0x1f0] sm:$0xff] %vm2285, %v7608
        %v7673 = vld [vmem:[%s2318] sm:$0xff]
        %v7674 = vld [vmem:[%s2318 + $0x8] sm:$0xff]
        %v7675 = vld [vmem:[%s2318 + $0x18] sm:$0xff]
        %v7676 = vld [vmem:[%s2318 + $0x20] sm:$0xff]
        %v7677 = vld [vmem:[%s2318 + $0x30] sm:$0xff]
        %v7678 = vld [vmem:[%s2318 + $0x38] sm:$0xff]
        %v7679 = vld [vmem:[%s2318 + $0x48] sm:$0xff]
        %v7680 = vld [vmem:[%s2318 + $0x50] sm:$0xff]
        %v7681 = vld [vmem:[%s2318 + $0x60] sm:$0xff]
        %v7682 = vld [vmem:[%s2318 + $0x68] sm:$0xff]
        %v7683 = vld [vmem:[%s2318 + $0x78] sm:$0xff]
        %v7684 = vld [vmem:[%s2318 + $0x80] sm:$0xff]
        %v7685 = vld [vmem:[%s2318 + $0x90] sm:$0xff]
        %v7686 = vld [vmem:[%s2318 + $0x98] sm:$0xff]
        %v7687 = vld [vmem:[%s2318 + $0xa8] sm:$0xff]
        %v7688 = vld [vmem:[%s2318 + $0xb0] sm:$0xff]
        %v7689 = vld [vmem:[%s2318 + $0xc0] sm:$0xff]
        %v7690 = vld [vmem:[%s2318 + $0xc8] sm:$0xff]
        %v7691 = vld [vmem:[%s2318 + $0xd8] sm:$0xff]
        %v7692 = vld [vmem:[%s2318 + $0xe0] sm:$0xff]
        %v7693 = vld [vmem:[%s2318 + $0xf0] sm:$0xff]
        %v7694 = vld [vmem:[%s2318 + $0xf8] sm:$0xff]
        %v7695 = vld [vmem:[%s2318 + $0x108] sm:$0xff]
        %v7696 = vld [vmem:[%s2318 + $0x110] sm:$0xff]
        %v7697 = vld [vmem:[%s2318 + $0x120] sm:$0xff]
        %v7698 = vld [vmem:[%s2318 + $0x128] sm:$0xff]
        %v7699 = vld [vmem:[%s2318 + $0x138] sm:$0xff]
        %v7700 = vld [vmem:[%s2318 + $0x140] sm:$0xff]
        %v7701 = vld [vmem:[%s2318 + $0x150] sm:$0xff]
        %v7702 = vld [vmem:[%s2318 + $0x158] sm:$0xff]
        %v7703 = vld [vmem:[%s2318 + $0x168] sm:$0xff]
        %v7704 = vld [vmem:[%s2318 + $0x170] sm:$0xff]
        %7737 = vrot.lane.b32.xlu0 %v7673, 96
        %v7738 = vpop.permute.xlu0 %7737
        %7739 = vrot.lane.b32.xlu0 %v7674, 96
        %v7740 = vpop.permute.xlu0 %7739
        %7741 = vrot.lane.b32.xlu0 %v7675, 96
        %v7742 = vpop.permute.xlu0 %7741
        %7743 = vrot.lane.b32.xlu0 %v7676, 96
        %v7744 = vpop.permute.xlu0 %7743
        %7745 = vrot.lane.b32.xlu0 %v7677, 96
        %v7746 = vpop.permute.xlu0 %7745
        %7747 = vrot.lane.b32.xlu0 %v7678, 96
        %v7748 = vpop.permute.xlu0 %7747
        %7749 = vrot.lane.b32.xlu0 %v7679, 96
        %v7750 = vpop.permute.xlu0 %7749
        %7751 = vrot.lane.b32.xlu0 %v7680, 96
        %v7752 = vpop.permute.xlu0 %7751
        %7753 = vrot.lane.b32.xlu0 %v7681, 96
        %v7754 = vpop.permute.xlu0 %7753
        %7755 = vrot.lane.b32.xlu0 %v7682, 96
        %v7756 = vpop.permute.xlu0 %7755
        %7757 = vrot.lane.b32.xlu0 %v7683, 96
        %v7758 = vpop.permute.xlu0 %7757
        %7759 = vrot.lane.b32.xlu0 %v7684, 96
        %v7760 = vpop.permute.xlu0 %7759
        %7761 = vrot.lane.b32.xlu0 %v7685, 96
        %v7762 = vpop.permute.xlu0 %7761
        %7763 = vrot.lane.b32.xlu0 %v7686, 96
        %v7764 = vpop.permute.xlu0 %7763
        %7765 = vrot.lane.b32.xlu0 %v7687, 96
        %v7766 = vpop.permute.xlu0 %7765
        %7767 = vrot.lane.b32.xlu0 %v7688, 96
        %v7768 = vpop.permute.xlu0 %7767
        %7769 = vrot.lane.b32.xlu0 %v7689, 96
        %v7770 = vpop.permute.xlu0 %7769
        %7771 = vrot.lane.b32.xlu0 %v7690, 96
        %v7772 = vpop.permute.xlu0 %7771
        %7773 = vrot.lane.b32.xlu0 %v7691, 96
        %v7774 = vpop.permute.xlu0 %7773
        %7775 = vrot.lane.b32.xlu0 %v7692, 96
        %v7776 = vpop.permute.xlu0 %7775
        %7777 = vrot.lane.b32.xlu0 %v7693, 96
        %v7778 = vpop.permute.xlu0 %7777
        %7779 = vrot.lane.b32.xlu0 %v7694, 96
        %v7780 = vpop.permute.xlu0 %7779
        %7781 = vrot.lane.b32.xlu0 %v7695, 96
        %v7782 = vpop.permute.xlu0 %7781
        %7783 = vrot.lane.b32.xlu0 %v7696, 96
        %v7784 = vpop.permute.xlu0 %7783
        %7785 = vrot.lane.b32.xlu0 %v7697, 96
        %v7786 = vpop.permute.xlu0 %7785
        %7787 = vrot.lane.b32.xlu0 %v7698, 96
        %v7788 = vpop.permute.xlu0 %7787
        %7789 = vrot.lane.b32.xlu0 %v7699, 96
        %v7790 = vpop.permute.xlu0 %7789
        %7791 = vrot.lane.b32.xlu0 %v7700, 96
        %v7792 = vpop.permute.xlu0 %7791
        %7793 = vrot.lane.b32.xlu0 %v7701, 96
        %v7794 = vpop.permute.xlu0 %7793
        %7795 = vrot.lane.b32.xlu0 %v7702, 96
        %v7796 = vpop.permute.xlu0 %7795
        %7797 = vrot.lane.b32.xlu0 %v7703, 96
        %v7798 = vpop.permute.xlu0 %7797
        %7799 = vrot.lane.b32.xlu0 %v7704, 96
        %v7800 = vpop.permute.xlu0 %7799
        %7833 = vst.msk [vmem:[#allocation4] sm:$0xff] %vm2479, %v7738
        %7834 = vst.msk [vmem:[#allocation4 + $0x10] sm:$0xff] %vm2479, %v7740
        %7835 = vst.msk [vmem:[#allocation4 + $0x20] sm:$0xff] %vm2479, %v7742
        %7836 = vst.msk [vmem:[#allocation4 + $0x30] sm:$0xff] %vm2479, %v7744
        %7837 = vst.msk [vmem:[#allocation4 + $0x40] sm:$0xff] %vm2479, %v7746
        %7838 = vst.msk [vmem:[#allocation4 + $0x50] sm:$0xff] %vm2479, %v7748
        %7839 = vst.msk [vmem:[#allocation4 + $0x60] sm:$0xff] %vm2479, %v7750
        %7840 = vst.msk [vmem:[#allocation4 + $0x70] sm:$0xff] %vm2479, %v7752
        %7841 = vst.msk [vmem:[#allocation4 + $0x80] sm:$0xff] %vm2479, %v7754
        %7842 = vst.msk [vmem:[#allocation4 + $0x90] sm:$0xff] %vm2479, %v7756
        %7843 = vst.msk [vmem:[#allocation4 + $0xa0] sm:$0xff] %vm2479, %v7758
        %7844 = vst.msk [vmem:[#allocation4 + $0xb0] sm:$0xff] %vm2479, %v7760
        %7845 = vst.msk [vmem:[#allocation4 + $0xc0] sm:$0xff] %vm2479, %v7762
        %7846 = vst.msk [vmem:[#allocation4 + $0xd0] sm:$0xff] %vm2479, %v7764
        %7847 = vst.msk [vmem:[#allocation4 + $0xe0] sm:$0xff] %vm2479, %v7766
        %7848 = vst.msk [vmem:[#allocation4 + $0xf0] sm:$0xff] %vm2479, %v7768
        %7849 = vst.msk [vmem:[#allocation4 + $0x100] sm:$0xff] %vm2479, %v7770
        %7850 = vst.msk [vmem:[#allocation4 + $0x110] sm:$0xff] %vm2479, %v7772
        %7851 = vst.msk [vmem:[#allocation4 + $0x120] sm:$0xff] %vm2479, %v7774
        %7852 = vst.msk [vmem:[#allocation4 + $0x130] sm:$0xff] %vm2479, %v7776
        %7853 = vst.msk [vmem:[#allocation4 + $0x140] sm:$0xff] %vm2479, %v7778
        %7854 = vst.msk [vmem:[#allocation4 + $0x150] sm:$0xff] %vm2479, %v7780
        %7855 = vst.msk [vmem:[#allocation4 + $0x160] sm:$0xff] %vm2479, %v7782
        %7856 = vst.msk [vmem:[#allocation4 + $0x170] sm:$0xff] %vm2479, %v7784
        %7857 = vst.msk [vmem:[#allocation4 + $0x180] sm:$0xff] %vm2479, %v7786
        %7858 = vst.msk [vmem:[#allocation4 + $0x190] sm:$0xff] %vm2479, %v7788
        %7859 = vst.msk [vmem:[#allocation4 + $0x1a0] sm:$0xff] %vm2479, %v7790
        %7860 = vst.msk [vmem:[#allocation4 + $0x1b0] sm:$0xff] %vm2479, %v7792
        %7861 = vst.msk [vmem:[#allocation4 + $0x1c0] sm:$0xff] %vm2479, %v7794
        %7862 = vst.msk [vmem:[#allocation4 + $0x1d0] sm:$0xff] %vm2479, %v7796
        %7863 = vst.msk [vmem:[#allocation4 + $0x1e0] sm:$0xff] %vm2479, %v7798
        %7864 = vst.msk [vmem:[#allocation4 + $0x1f0] sm:$0xff] %vm2479, %v7800
        %v7865 = vld [vmem:[%s2318 + $0x1] sm:$0xff]
        %v7866 = vld [vmem:[%s2318 + $0x9] sm:$0xff]
        %v7867 = vld [vmem:[%s2318 + $0x19] sm:$0xff]
        %v7868 = vld [vmem:[%s2318 + $0x21] sm:$0xff]
        %v7869 = vld [vmem:[%s2318 + $0x31] sm:$0xff]
        %v7870 = vld [vmem:[%s2318 + $0x39] sm:$0xff]
        %v7871 = vld [vmem:[%s2318 + $0x49] sm:$0xff]
        %v7872 = vld [vmem:[%s2318 + $0x51] sm:$0xff]
        %v7873 = vld [vmem:[%s2318 + $0x61] sm:$0xff]
        %v7874 = vld [vmem:[%s2318 + $0x69] sm:$0xff]
        %v7875 = vld [vmem:[%s2318 + $0x79] sm:$0xff]
        %v7876 = vld [vmem:[%s2318 + $0x81] sm:$0xff]
        %v7877 = vld [vmem:[%s2318 + $0x91] sm:$0xff]
        %v7878 = vld [vmem:[%s2318 + $0x99] sm:$0xff]
        %v7879 = vld [vmem:[%s2318 + $0xa9] sm:$0xff]
        %v7880 = vld [vmem:[%s2318 + $0xb1] sm:$0xff]
        %v7881 = vld [vmem:[%s2318 + $0xc1] sm:$0xff]
        %v7882 = vld [vmem:[%s2318 + $0xc9] sm:$0xff]
        %v7883 = vld [vmem:[%s2318 + $0xd9] sm:$0xff]
        %v7884 = vld [vmem:[%s2318 + $0xe1] sm:$0xff]
        %v7885 = vld [vmem:[%s2318 + $0xf1] sm:$0xff]
        %v7886 = vld [vmem:[%s2318 + $0xf9] sm:$0xff]
        %v7887 = vld [vmem:[%s2318 + $0x109] sm:$0xff]
        %v7888 = vld [vmem:[%s2318 + $0x111] sm:$0xff]
        %v7889 = vld [vmem:[%s2318 + $0x121] sm:$0xff]
        %v7890 = vld [vmem:[%s2318 + $0x129] sm:$0xff]
        %v7891 = vld [vmem:[%s2318 + $0x139] sm:$0xff]
        %v7892 = vld [vmem:[%s2318 + $0x141] sm:$0xff]
        %v7893 = vld [vmem:[%s2318 + $0x151] sm:$0xff]
        %v7894 = vld [vmem:[%s2318 + $0x159] sm:$0xff]
        %v7895 = vld [vmem:[%s2318 + $0x169] sm:$0xff]
        %v7896 = vld [vmem:[%s2318 + $0x171] sm:$0xff]
        %7929 = vrot.lane.b32.xlu0 %v7865, 112
        %v7930 = vpop.permute.xlu0 %7929
        %7931 = vrot.lane.b32.xlu0 %v7866, 112
        %v7932 = vpop.permute.xlu0 %7931
        %7933 = vrot.lane.b32.xlu0 %v7867, 112
        %v7934 = vpop.permute.xlu0 %7933
        %7935 = vrot.lane.b32.xlu0 %v7868, 112
        %v7936 = vpop.permute.xlu0 %7935
        %7937 = vrot.lane.b32.xlu0 %v7869, 112
        %v7938 = vpop.permute.xlu0 %7937
        %7939 = vrot.lane.b32.xlu0 %v7870, 112
        %v7940 = vpop.permute.xlu0 %7939
        %7941 = vrot.lane.b32.xlu0 %v7871, 112
        %v7942 = vpop.permute.xlu0 %7941
        %7943 = vrot.lane.b32.xlu0 %v7872, 112
        %v7944 = vpop.permute.xlu0 %7943
        %7945 = vrot.lane.b32.xlu0 %v7873, 112
        %v7946 = vpop.permute.xlu0 %7945
        %7947 = vrot.lane.b32.xlu0 %v7874, 112
        %v7948 = vpop.permute.xlu0 %7947
        %7949 = vrot.lane.b32.xlu0 %v7875, 112
        %v7950 = vpop.permute.xlu0 %7949
        %7951 = vrot.lane.b32.xlu0 %v7876, 112
        %v7952 = vpop.permute.xlu0 %7951
        %7953 = vrot.lane.b32.xlu0 %v7877, 112
        %v7954 = vpop.permute.xlu0 %7953
        %7955 = vrot.lane.b32.xlu0 %v7878, 112
        %v7956 = vpop.permute.xlu0 %7955
        %7957 = vrot.lane.b32.xlu0 %v7879, 112
        %v7958 = vpop.permute.xlu0 %7957
        %7959 = vrot.lane.b32.xlu0 %v7880, 112
        %v7960 = vpop.permute.xlu0 %7959
        %7961 = vrot.lane.b32.xlu0 %v7881, 112
        %v7962 = vpop.permute.xlu0 %7961
        %7963 = vrot.lane.b32.xlu0 %v7882, 112
        %v7964 = vpop.permute.xlu0 %7963
        %7965 = vrot.lane.b32.xlu0 %v7883, 112
        %v7966 = vpop.permute.xlu0 %7965
        %7967 = vrot.lane.b32.xlu0 %v7884, 112
        %v7968 = vpop.permute.xlu0 %7967
        %7969 = vrot.lane.b32.xlu0 %v7885, 112
        %v7970 = vpop.permute.xlu0 %7969
        %7971 = vrot.lane.b32.xlu0 %v7886, 112
        %v7972 = vpop.permute.xlu0 %7971
        %7973 = vrot.lane.b32.xlu0 %v7887, 112
        %v7974 = vpop.permute.xlu0 %7973
        %7975 = vrot.lane.b32.xlu0 %v7888, 112
        %v7976 = vpop.permute.xlu0 %7975
        %7977 = vrot.lane.b32.xlu0 %v7889, 112
        %v7978 = vpop.permute.xlu0 %7977
        %7979 = vrot.lane.b32.xlu0 %v7890, 112
        %v7980 = vpop.permute.xlu0 %7979
        %7981 = vrot.lane.b32.xlu0 %v7891, 112
        %v7982 = vpop.permute.xlu0 %7981
        %7983 = vrot.lane.b32.xlu0 %v7892, 112
        %v7984 = vpop.permute.xlu0 %7983
        %7985 = vrot.lane.b32.xlu0 %v7893, 112
        %v7986 = vpop.permute.xlu0 %7985
        %7987 = vrot.lane.b32.xlu0 %v7894, 112
        %v7988 = vpop.permute.xlu0 %7987
        %7989 = vrot.lane.b32.xlu0 %v7895, 112
        %v7990 = vpop.permute.xlu0 %7989
        %7991 = vrot.lane.b32.xlu0 %v7896, 112
        %v7992 = vpop.permute.xlu0 %7991
        %8025 = vst.msk [vmem:[#allocation4] sm:$0xff] %vm2672, %v7930
        %8026 = vst.msk [vmem:[#allocation4 + $0x10] sm:$0xff] %vm2672, %v7932
        %8027 = vst.msk [vmem:[#allocation4 + $0x20] sm:$0xff] %vm2672, %v7934
        %8028 = vst.msk [vmem:[#allocation4 + $0x30] sm:$0xff] %vm2672, %v7936
        %8029 = vst.msk [vmem:[#allocation4 + $0x40] sm:$0xff] %vm2672, %v7938
        %8030 = vst.msk [vmem:[#allocation4 + $0x50] sm:$0xff] %vm2672, %v7940
        %8031 = vst.msk [vmem:[#allocation4 + $0x60] sm:$0xff] %vm2672, %v7942
        %8032 = vst.msk [vmem:[#allocation4 + $0x70] sm:$0xff] %vm2672, %v7944
        %8033 = vst.msk [vmem:[#allocation4 + $0x80] sm:$0xff] %vm2672, %v7946
        %8034 = vst.msk [vmem:[#allocation4 + $0x90] sm:$0xff] %vm2672, %v7948
        %8035 = vst.msk [vmem:[#allocation4 + $0xa0] sm:$0xff] %vm2672, %v7950
        %8036 = vst.msk [vmem:[#allocation4 + $0xb0] sm:$0xff] %vm2672, %v7952
        %8037 = vst.msk [vmem:[#allocation4 + $0xc0] sm:$0xff] %vm2672, %v7954
        %8038 = vst.msk [vmem:[#allocation4 + $0xd0] sm:$0xff] %vm2672, %v7956
        %8039 = vst.msk [vmem:[#allocation4 + $0xe0] sm:$0xff] %vm2672, %v7958
        %8040 = vst.msk [vmem:[#allocation4 + $0xf0] sm:$0xff] %vm2672, %v7960
        %8041 = vst.msk [vmem:[#allocation4 + $0x100] sm:$0xff] %vm2672, %v7962
        %8042 = vst.msk [vmem:[#allocation4 + $0x110] sm:$0xff] %vm2672, %v7964
        %8043 = vst.msk [vmem:[#allocation4 + $0x120] sm:$0xff] %vm2672, %v7966
        %8044 = vst.msk [vmem:[#allocation4 + $0x130] sm:$0xff] %vm2672, %v7968
        %8045 = vst.msk [vmem:[#allocation4 + $0x140] sm:$0xff] %vm2672, %v7970
        %8046 = vst.msk [vmem:[#allocation4 + $0x150] sm:$0xff] %vm2672, %v7972
        %8047 = vst.msk [vmem:[#allocation4 + $0x160] sm:$0xff] %vm2672, %v7974
        %8048 = vst.msk [vmem:[#allocation4 + $0x170] sm:$0xff] %vm2672, %v7976
        %8049 = vst.msk [vmem:[#allocation4 + $0x180] sm:$0xff] %vm2672, %v7978
        %8050 = vst.msk [vmem:[#allocation4 + $0x190] sm:$0xff] %vm2672, %v7980
        %8051 = vst.msk [vmem:[#allocation4 + $0x1a0] sm:$0xff] %vm2672, %v7982
        %8052 = vst.msk [vmem:[#allocation4 + $0x1b0] sm:$0xff] %vm2672, %v7984
        %8053 = vst.msk [vmem:[#allocation4 + $0x1c0] sm:$0xff] %vm2672, %v7986
        %8054 = vst.msk [vmem:[#allocation4 + $0x1d0] sm:$0xff] %vm2672, %v7988
        %8055 = vst.msk [vmem:[#allocation4 + $0x1e0] sm:$0xff] %vm2672, %v7990
        %8056 = vst.msk [vmem:[#allocation4 + $0x1f0] sm:$0xff] %vm2672, %v7992
        %v8057 = vld [vmem:[%s2318 + $0x2] sm:$0xff]
        %v8058 = vld [vmem:[%s2318 + $0xa] sm:$0xff]
        %v8059 = vld [vmem:[%s2318 + $0x1a] sm:$0xff]
        %v8060 = vld [vmem:[%s2318 + $0x22] sm:$0xff]
        %v8061 = vld [vmem:[%s2318 + $0x32] sm:$0xff]
        %v8062 = vld [vmem:[%s2318 + $0x3a] sm:$0xff]
        %v8063 = vld [vmem:[%s2318 + $0x4a] sm:$0xff]
        %v8064 = vld [vmem:[%s2318 + $0x52] sm:$0xff]
        %v8065 = vld [vmem:[%s2318 + $0x62] sm:$0xff]
        %v8066 = vld [vmem:[%s2318 + $0x6a] sm:$0xff]
        %v8067 = vld [vmem:[%s2318 + $0x7a] sm:$0xff]
        %v8068 = vld [vmem:[%s2318 + $0x82] sm:$0xff]
        %v8069 = vld [vmem:[%s2318 + $0x92] sm:$0xff]
        %v8070 = vld [vmem:[%s2318 + $0x9a] sm:$0xff]
        %v8071 = vld [vmem:[%s2318 + $0xaa] sm:$0xff]
        %v8072 = vld [vmem:[%s2318 + $0xb2] sm:$0xff]
        %v8073 = vld [vmem:[%s2318 + $0xc2] sm:$0xff]
        %v8074 = vld [vmem:[%s2318 + $0xca] sm:$0xff]
        %v8075 = vld [vmem:[%s2318 + $0xda] sm:$0xff]
        %v8076 = vld [vmem:[%s2318 + $0xe2] sm:$0xff]
        %v8077 = vld [vmem:[%s2318 + $0xf2] sm:$0xff]
        %v8078 = vld [vmem:[%s2318 + $0xfa] sm:$0xff]
        %v8079 = vld [vmem:[%s2318 + $0x10a] sm:$0xff]
        %v8080 = vld [vmem:[%s2318 + $0x112] sm:$0xff]
        %v8081 = vld [vmem:[%s2318 + $0x122] sm:$0xff]
        %v8082 = vld [vmem:[%s2318 + $0x12a] sm:$0xff]
        %v8083 = vld [vmem:[%s2318 + $0x13a] sm:$0xff]
        %v8084 = vld [vmem:[%s2318 + $0x142] sm:$0xff]
        %v8085 = vld [vmem:[%s2318 + $0x152] sm:$0xff]
        %v8086 = vld [vmem:[%s2318 + $0x15a] sm:$0xff]
        %v8087 = vld [vmem:[%s2318 + $0x16a] sm:$0xff]
        %v8088 = vld [vmem:[%s2318 + $0x172] sm:$0xff]
        %8089 = vst.msk [vmem:[#allocation4 + $0x8] sm:$0xff] %vm358, %v8057
        %8090 = vst.msk [vmem:[#allocation4 + $0x18] sm:$0xff] %vm358, %v8058
        %8091 = vst.msk [vmem:[#allocation4 + $0x28] sm:$0xff] %vm358, %v8059
        %8092 = vst.msk [vmem:[#allocation4 + $0x38] sm:$0xff] %vm358, %v8060
        %8093 = vst.msk [vmem:[#allocation4 + $0x48] sm:$0xff] %vm358, %v8061
        %8094 = vst.msk [vmem:[#allocation4 + $0x58] sm:$0xff] %vm358, %v8062
        %8095 = vst.msk [vmem:[#allocation4 + $0x68] sm:$0xff] %vm358, %v8063
        %8096 = vst.msk [vmem:[#allocation4 + $0x78] sm:$0xff] %vm358, %v8064
        %8097 = vst.msk [vmem:[#allocation4 + $0x88] sm:$0xff] %vm358, %v8065
        %8098 = vst.msk [vmem:[#allocation4 + $0x98] sm:$0xff] %vm358, %v8066
        %8099 = vst.msk [vmem:[#allocation4 + $0xa8] sm:$0xff] %vm358, %v8067
        %8100 = vst.msk [vmem:[#allocation4 + $0xb8] sm:$0xff] %vm358, %v8068
        %8101 = vst.msk [vmem:[#allocation4 + $0xc8] sm:$0xff] %vm358, %v8069
        %8102 = vst.msk [vmem:[#allocation4 + $0xd8] sm:$0xff] %vm358, %v8070
        %8103 = vst.msk [vmem:[#allocation4 + $0xe8] sm:$0xff] %vm358, %v8071
        %8104 = vst.msk [vmem:[#allocation4 + $0xf8] sm:$0xff] %vm358, %v8072
        %8105 = vst.msk [vmem:[#allocation4 + $0x108] sm:$0xff] %vm358, %v8073
        %8106 = vst.msk [vmem:[#allocation4 + $0x118] sm:$0xff] %vm358, %v8074
        %8107 = vst.msk [vmem:[#allocation4 + $0x128] sm:$0xff] %vm358, %v8075
        %8108 = vst.msk [vmem:[#allocation4 + $0x138] sm:$0xff] %vm358, %v8076
        %8109 = vst.msk [vmem:[#allocation4 + $0x148] sm:$0xff] %vm358, %v8077
        %8110 = vst.msk [vmem:[#allocation4 + $0x158] sm:$0xff] %vm358, %v8078
        %8111 = vst.msk [vmem:[#allocation4 + $0x168] sm:$0xff] %vm358, %v8079
        %8112 = vst.msk [vmem:[#allocation4 + $0x178] sm:$0xff] %vm358, %v8080
        %8113 = vst.msk [vmem:[#allocation4 + $0x188] sm:$0xff] %vm358, %v8081
        %8114 = vst.msk [vmem:[#allocation4 + $0x198] sm:$0xff] %vm358, %v8082
        %8115 = vst.msk [vmem:[#allocation4 + $0x1a8] sm:$0xff] %vm358, %v8083
        %8116 = vst.msk [vmem:[#allocation4 + $0x1b8] sm:$0xff] %vm358, %v8084
        %8117 = vst.msk [vmem:[#allocation4 + $0x1c8] sm:$0xff] %vm358, %v8085
        %8118 = vst.msk [vmem:[#allocation4 + $0x1d8] sm:$0xff] %vm358, %v8086
        %8119 = vst.msk [vmem:[#allocation4 + $0x1e8] sm:$0xff] %vm358, %v8087
        %8120 = vst.msk [vmem:[#allocation4 + $0x1f8] sm:$0xff] %vm358, %v8088
        %v8121 = vld [vmem:[#allocation4] sm:$0xff]
        %v8122 = vld [vmem:[#allocation4 + $0x8] sm:$0xff]
        %v8123 = vld [vmem:[#allocation4 + $0x10] sm:$0xff]
        %v8124 = vld [vmem:[#allocation4 + $0x18] sm:$0xff]
        %v8125 = vld [vmem:[#allocation4 + $0x20] sm:$0xff]
        %v8126 = vld [vmem:[#allocation4 + $0x28] sm:$0xff]
        %v8127 = vld [vmem:[#allocation4 + $0x30] sm:$0xff]
        %v8128 = vld [vmem:[#allocation4 + $0x38] sm:$0xff]
        %v8129 = vld [vmem:[#allocation4 + $0x40] sm:$0xff]
        %v8130 = vld [vmem:[#allocation4 + $0x48] sm:$0xff]
        %v8131 = vld [vmem:[#allocation4 + $0x50] sm:$0xff]
        %v8132 = vld [vmem:[#allocation4 + $0x58] sm:$0xff]
        %v8133 = vld [vmem:[#allocation4 + $0x60] sm:$0xff]
        %v8134 = vld [vmem:[#allocation4 + $0x68] sm:$0xff]
        %v8135 = vld [vmem:[#allocation4 + $0x70] sm:$0xff]
        %v8136 = vld [vmem:[#allocation4 + $0x78] sm:$0xff]
        %v8137 = vld [vmem:[#allocation4 + $0x80] sm:$0xff]
        %v8138 = vld [vmem:[#allocation4 + $0x88] sm:$0xff]
        %v8139 = vld [vmem:[#allocation4 + $0x90] sm:$0xff]
        %v8140 = vld [vmem:[#allocation4 + $0x98] sm:$0xff]
        %v8141 = vld [vmem:[#allocation4 + $0xa0] sm:$0xff]
        %v8142 = vld [vmem:[#allocation4 + $0xa8] sm:$0xff]
        %v8143 = vld [vmem:[#allocation4 + $0xb0] sm:$0xff]
        %v8144 = vld [vmem:[#allocation4 + $0xb8] sm:$0xff]
        %v8145 = vld [vmem:[#allocation4 + $0xc0] sm:$0xff]
        %v8146 = vld [vmem:[#allocation4 + $0xc8] sm:$0xff]
        %v8147 = vld [vmem:[#allocation4 + $0xd0] sm:$0xff]
        %v8148 = vld [vmem:[#allocation4 + $0xd8] sm:$0xff]
        %v8149 = vld [vmem:[#allocation4 + $0xe0] sm:$0xff]
        %v8150 = vld [vmem:[#allocation4 + $0xe8] sm:$0xff]
        %v8151 = vld [vmem:[#allocation4 + $0xf0] sm:$0xff]
        %v8152 = vld [vmem:[#allocation4 + $0xf8] sm:$0xff]
        %v8153 = vld [vmem:[#allocation4 + $0x100] sm:$0xff]
        %v8154 = vld [vmem:[#allocation4 + $0x108] sm:$0xff]
        %v8155 = vld [vmem:[#allocation4 + $0x110] sm:$0xff]
        %v8156 = vld [vmem:[#allocation4 + $0x118] sm:$0xff]
        %v8157 = vld [vmem:[#allocation4 + $0x120] sm:$0xff]
        %v8158 = vld [vmem:[#allocation4 + $0x128] sm:$0xff]
        %v8159 = vld [vmem:[#allocation4 + $0x130] sm:$0xff]
        %v8160 = vld [vmem:[#allocation4 + $0x138] sm:$0xff]
        %v8161 = vld [vmem:[#allocation4 + $0x140] sm:$0xff]
        %v8162 = vld [vmem:[#allocation4 + $0x148] sm:$0xff]
        %v8163 = vld [vmem:[#allocation4 + $0x150] sm:$0xff]
        %v8164 = vld [vmem:[#allocation4 + $0x158] sm:$0xff]
        %v8165 = vld [vmem:[#allocation4 + $0x160] sm:$0xff]
        %v8166 = vld [vmem:[#allocation4 + $0x168] sm:$0xff]
        %v8167 = vld [vmem:[#allocation4 + $0x170] sm:$0xff]
        %v8168 = vld [vmem:[#allocation4 + $0x178] sm:$0xff]
        %v8169 = vld [vmem:[#allocation4 + $0x180] sm:$0xff]
        %v8170 = vld [vmem:[#allocation4 + $0x188] sm:$0xff]
        %v8171 = vld [vmem:[#allocation4 + $0x190] sm:$0xff]
        %v8172 = vld [vmem:[#allocation4 + $0x198] sm:$0xff]
        %v8173 = vld [vmem:[#allocation4 + $0x1a0] sm:$0xff]
        %v8174 = vld [vmem:[#allocation4 + $0x1a8] sm:$0xff]
        %v8175 = vld [vmem:[#allocation4 + $0x1b0] sm:$0xff]
        %v8176 = vld [vmem:[#allocation4 + $0x1b8] sm:$0xff]
        %v8177 = vld [vmem:[#allocation4 + $0x1c0] sm:$0xff]
        %v8178 = vld [vmem:[#allocation4 + $0x1c8] sm:$0xff]
        %v8179 = vld [vmem:[#allocation4 + $0x1d0] sm:$0xff]
        %v8180 = vld [vmem:[#allocation4 + $0x1d8] sm:$0xff]
        %v8181 = vld [vmem:[#allocation4 + $0x1e0] sm:$0xff]
        %v8182 = vld [vmem:[#allocation4 + $0x1e8] sm:$0xff]
        %v8183 = vld [vmem:[#allocation4 + $0x1f0] sm:$0xff]
        %v8184 = vld [vmem:[#allocation4 + $0x1f8] sm:$0xff]
        %v8185 = vld [vmem:[%s6] sm:$0xff]
        %v8186 = vld [vmem:[%s6 + $0x8] sm:$0xff]
        %v8187 = vld [vmem:[%s6 + $0x10] sm:$0xff]
        %v8188 = vld [vmem:[%s6 + $0x18] sm:$0xff]
        %v8189 = vld [vmem:[%s6 + $0x20] sm:$0xff]
        %v8190 = vld [vmem:[%s6 + $0x28] sm:$0xff]
        %v8191 = vld [vmem:[%s6 + $0x30] sm:$0xff]
        %v8192 = vld [vmem:[%s6 + $0x38] sm:$0xff]
        %v8193 = vld [vmem:[%s6 + $0x40] sm:$0xff]
        %v8194 = vld [vmem:[%s6 + $0x48] sm:$0xff]
        %v8195 = vld [vmem:[%s6 + $0x50] sm:$0xff]
        %v8196 = vld [vmem:[%s6 + $0x58] sm:$0xff]
        %v8197 = vld [vmem:[%s6 + $0x60] sm:$0xff]
        %v8198 = vld [vmem:[%s6 + $0x68] sm:$0xff]
        %v8199 = vld [vmem:[%s6 + $0x70] sm:$0xff]
        %v8200 = vld [vmem:[%s6 + $0x78] sm:$0xff]
        %v8201 = vld [vmem:[%s6 + $0x80] sm:$0xff]
        %v8202 = vld [vmem:[%s6 + $0x88] sm:$0xff]
        %v8203 = vld [vmem:[%s8 + $0x3] sm:$0x1]
        %v8204 = vlaneseq
        %v8205 = vshrl.u32 %v8204, 7
        %v8206 = vsub.s32 0, %v8205
        %v8207 = vrot.slane %v8203, %v8206
        %v8209 = vsel %vm358, %v8122, 0
        %v8212 = vsel %vm358, %v8124, 0
        %v8215 = vsel %vm358, %v8126, 0
        %v8218 = vsel %vm358, %v8128, 0
        %v8221 = vsel %vm358, %v8130, 0
        %v8224 = vsel %vm358, %v8132, 0
        %v8227 = vsel %vm358, %v8134, 0
        %v8230 = vsel %vm358, %v8136, 0
        %v8233 = vsel %vm358, %v8138, 0
        %v8236 = vsel %vm358, %v8140, 0
        %v8239 = vsel %vm358, %v8142, 0
        %v8242 = vsel %vm358, %v8144, 0
        %v8245 = vsel %vm358, %v8146, 0
        %v8248 = vsel %vm358, %v8148, 0
        %v8251 = vsel %vm358, %v8150, 0
        %v8254 = vsel %vm358, %v8152, 0
        %v8257 = vsel %vm358, %v8154, 0
        %v8260 = vsel %vm358, %v8156, 0
        %v8263 = vsel %vm358, %v8158, 0
        %v8266 = vsel %vm358, %v8160, 0
        %v8269 = vsel %vm358, %v8162, 0
        %v8272 = vsel %vm358, %v8164, 0
        %v8275 = vsel %vm358, %v8166, 0
        %v8278 = vsel %vm358, %v8168, 0
        %v8281 = vsel %vm358, %v8170, 0
        %v8284 = vsel %vm358, %v8172, 0
        %v8287 = vsel %vm358, %v8174, 0
        %v8290 = vsel %vm358, %v8176, 0
        %v8293 = vsel %vm358, %v8178, 0
        %v8296 = vsel %vm358, %v8180, 0
        %v8299 = vsel %vm358, %v8182, 0
        %v8302 = vsel %vm358, %v8184, 0
        %8304 = vmatprep.subr.mxu0 0.0
        %8305 = vmatpush1.msra.mxu0 %v8200
        %8306 = vmatprep.subr.mxu0 0.0
        %8307 = vmatpush1.msra.mxu0 %v8199
        %8308 = vmatprep.subr.mxu0 0.0
        %8309 = vmatpush1.msra.mxu0 %v8198
        %8310 = vmatprep.subr.mxu0 0.0
        %8311 = vmatpush1.msra.mxu0 %v8197
        %8312 = vmatprep.subr.mxu0 0.0
        %8313 = vmatpush1.msra.mxu0 %v8196
        %8314 = vmatprep.subr.mxu0 0.0
        %8315 = vmatpush1.msra.mxu0 %v8195
        %8316 = vmatprep.subr.mxu0 0.0
        %8317 = vmatpush1.msra.mxu0 %v8194
        %8318 = vmatprep.subr.mxu0 0.0
        %8319 = vmatpush1.msra.mxu0 %v8193
        %8320 = vmatprep.subr.mxu0 0.0
        %8321 = vmatpush1.msra.mxu0 %v8192
        %8322 = vmatprep.subr.mxu0 0.0
        %8323 = vmatpush1.msra.mxu0 %v8191
        %8324 = vmatprep.subr.mxu0 0.0
        %8325 = vmatpush1.msra.mxu0 %v8190
        %8326 = vmatprep.subr.mxu0 0.0
        %8327 = vmatpush1.msra.mxu0 %v8189
        %8328 = vmatprep.subr.mxu0 0.0
        %8329 = vmatpush1.msra.mxu0 %v8188
        %8330 = vmatprep.subr.mxu0 0.0
        %8331 = vmatpush1.msra.mxu0 %v8187
        %8332 = vmatprep.subr.mxu0 0.0
        %8333 = vmatpush1.msra.mxu0 %v8186
        %8334 = vmatprep.subr.mxu0 0.0
        %8335 = vmatpush1.msra.mxu0 %v8185
        %8336 = vmatprep.subr.mxu0 0.0
        %8337 = vmatpush2.msra.mxu0 0.0
        %8338 = vmatprep.subr.mxu0 0.0
        %8339 = vmatpush2.msra.mxu0 0.0
        %8340 = vmatprep.subr.mxu0 0.0
        %8341 = vmatpush2.msra.mxu0 0.0
        %8342 = vmatprep.subr.mxu0 0.0
        %8343 = vmatpush2.msra.mxu0 0.0
        %8344 = vmatprep.subr.mxu0 0.0
        %8345 = vmatpush2.msra.mxu0 0.0
        %8346 = vmatprep.subr.mxu0 0.0
        %8347 = vmatpush2.msra.mxu0 0.0
        %8348 = vmatprep.subr.mxu0 0.0
        %8349 = vmatpush2.msra.mxu0 0.0
        %8350 = vmatprep.subr.mxu0 0.0
        %8351 = vmatpush2.msra.mxu0 0.0
        %8352 = vmatprep.subr.mxu0 0.0
        %8353 = vmatpush2.msra.mxu0 0.0
        %8354 = vmatprep.subr.mxu0 0.0
        %8355 = vmatpush2.msra.mxu0 0.0
        %8356 = vmatprep.subr.mxu0 0.0
        %8357 = vmatpush2.msra.mxu0 0.0
        %8358 = vmatprep.subr.mxu0 0.0
        %8359 = vmatpush2.msra.mxu0 0.0
        %8360 = vmatprep.subr.mxu0 0.0
        %8361 = vmatpush2.msra.mxu0 0.0
        %8362 = vmatprep.subr.mxu0 0.0
        %8363 = vmatpush2.msra.mxu0 0.0
        %8364 = vmatprep.subr.mxu0 0.0
        %8365 = vmatpush2.msra.mxu0 %v8202
        %8366 = vmatprep.subr.mxu0 0.0
        %8367 = vmatpush2.msra.mxu0 %v8201
        %8368 = vmatprep.mubr.f32.mxu0 %v8209
        %8369 = vmatmul.mubr.f32.gmra.mxu0 %v8121
        %v8370 = vpop.f32.mrf.mxu0
        %v8371 = vadd.f32 %v8207, %v8370
        %v8372 = vpop.f32.mrf.mxu0
        %8373 = vmatprep.mubr.f32.mxu0 %v8212
        %8374 = vmatmul.mubr.f32.gmra.mxu0 %v8123
        %v8375 = vpop.f32.mrf.mxu0
        %v8376 = vadd.f32 %v8207, %v8375
        %v8377 = vpop.f32.mrf.mxu0
        %8378 = vmatprep.mubr.f32.mxu0 %v8215
        %8379 = vmatmul.mubr.f32.gmra.mxu0 %v8125
        %v8380 = vpop.f32.mrf.mxu0
        %v8381 = vadd.f32 %v8207, %v8380
        %v8382 = vpop.f32.mrf.mxu0
        %8383 = vmatprep.mubr.f32.mxu0 %v8218
        %8384 = vmatmul.mubr.f32.gmra.mxu0 %v8127
        %v8385 = vpop.f32.mrf.mxu0
        %v8386 = vadd.f32 %v8207, %v8385
        %v8387 = vpop.f32.mrf.mxu0
        %8388 = vmatprep.mubr.f32.mxu0 %v8221
        %8389 = vmatmul.mubr.f32.gmra.mxu0 %v8129
        %v8390 = vpop.f32.mrf.mxu0
        %v8391 = vadd.f32 %v8207, %v8390
        %v8392 = vpop.f32.mrf.mxu0
        %8393 = vmatprep.mubr.f32.mxu0 %v8224
        %8394 = vmatmul.mubr.f32.gmra.mxu0 %v8131
        %v8395 = vpop.f32.mrf.mxu0
        %v8396 = vadd.f32 %v8207, %v8395
        %v8397 = vpop.f32.mrf.mxu0
        %8398 = vmatprep.mubr.f32.mxu0 %v8227
        %8399 = vmatmul.mubr.f32.gmra.mxu0 %v8133
        %v8400 = vpop.f32.mrf.mxu0
        %v8401 = vadd.f32 %v8207, %v8400
        %v8402 = vpop.f32.mrf.mxu0
        %8403 = vmatprep.mubr.f32.mxu0 %v8230
        %8404 = vmatmul.mubr.f32.gmra.mxu0 %v8135
        %v8405 = vpop.f32.mrf.mxu0
        %v8406 = vadd.f32 %v8207, %v8405
        %v8407 = vpop.f32.mrf.mxu0
        %8408 = vmatprep.mubr.f32.mxu0 %v8233
        %8409 = vmatmul.mubr.f32.gmra.mxu0 %v8137
        %v8410 = vpop.f32.mrf.mxu0
        %v8411 = vadd.f32 %v8207, %v8410
        %v8412 = vpop.f32.mrf.mxu0
        %8413 = vmatprep.mubr.f32.mxu0 %v8236
        %8414 = vmatmul.mubr.f32.gmra.mxu0 %v8139
        %v8415 = vpop.f32.mrf.mxu0
        %v8416 = vadd.f32 %v8207, %v8415
        %v8417 = vpop.f32.mrf.mxu0
        %8418 = vmatprep.mubr.f32.mxu0 %v8239
        %8419 = vmatmul.mubr.f32.gmra.mxu0 %v8141
        %v8420 = vpop.f32.mrf.mxu0
        %v8421 = vadd.f32 %v8207, %v8420
        %v8422 = vpop.f32.mrf.mxu0
        %8423 = vmatprep.mubr.f32.mxu0 %v8242
        %8424 = vmatmul.mubr.f32.gmra.mxu0 %v8143
        %v8425 = vpop.f32.mrf.mxu0
        %v8426 = vadd.f32 %v8207, %v8425
        %v8427 = vpop.f32.mrf.mxu0
        %8428 = vmatprep.mubr.f32.mxu0 %v8245
        %8429 = vmatmul.mubr.f32.gmra.mxu0 %v8145
        %v8430 = vpop.f32.mrf.mxu0
        %v8431 = vadd.f32 %v8207, %v8430
        %v8432 = vpop.f32.mrf.mxu0
        %8433 = vmatprep.mubr.f32.mxu0 %v8248
        %8434 = vmatmul.mubr.f32.gmra.mxu0 %v8147
        %v8435 = vpop.f32.mrf.mxu0
        %v8436 = vadd.f32 %v8207, %v8435
        %v8437 = vpop.f32.mrf.mxu0
        %8438 = vmatprep.mubr.f32.mxu0 %v8251
        %8439 = vmatmul.mubr.f32.gmra.mxu0 %v8149
        %v8440 = vpop.f32.mrf.mxu0
        %v8441 = vadd.f32 %v8207, %v8440
        %v8442 = vpop.f32.mrf.mxu0
        %8443 = vmatprep.mubr.f32.mxu0 %v8254
        %8444 = vmatmul.mubr.f32.gmra.mxu0 %v8151
        %v8445 = vpop.f32.mrf.mxu0
        %v8446 = vadd.f32 %v8207, %v8445
        %v8447 = vpop.f32.mrf.mxu0
        %8448 = vmatprep.mubr.f32.mxu0 %v8257
        %8449 = vmatmul.mubr.f32.gmra.mxu0 %v8153
        %v8450 = vpop.f32.mrf.mxu0
        %v8451 = vadd.f32 %v8207, %v8450
        %v8452 = vpop.f32.mrf.mxu0
        %8453 = vmatprep.mubr.f32.mxu0 %v8260
        %8454 = vmatmul.mubr.f32.gmra.mxu0 %v8155
        %v8455 = vpop.f32.mrf.mxu0
        %v8456 = vadd.f32 %v8207, %v8455
        %v8457 = vpop.f32.mrf.mxu0
        %8458 = vmatprep.mubr.f32.mxu0 %v8263
        %8459 = vmatmul.mubr.f32.gmra.mxu0 %v8157
        %v8460 = vpop.f32.mrf.mxu0
        %v8461 = vadd.f32 %v8207, %v8460
        %v8462 = vpop.f32.mrf.mxu0
        %8463 = vmatprep.mubr.f32.mxu0 %v8266
        %8464 = vmatmul.mubr.f32.gmra.mxu0 %v8159
        %v8465 = vpop.f32.mrf.mxu0
        %v8466 = vadd.f32 %v8207, %v8465
        %v8467 = vpop.f32.mrf.mxu0
        %8468 = vmatprep.mubr.f32.mxu0 %v8269
        %8469 = vmatmul.mubr.f32.gmra.mxu0 %v8161
        %v8470 = vpop.f32.mrf.mxu0
        %v8471 = vadd.f32 %v8207, %v8470
        %v8472 = vpop.f32.mrf.mxu0
        %8473 = vmatprep.mubr.f32.mxu0 %v8272
        %8474 = vmatmul.mubr.f32.gmra.mxu0 %v8163
        %v8475 = vpop.f32.mrf.mxu0
        %v8476 = vadd.f32 %v8207, %v8475
        %v8477 = vpop.f32.mrf.mxu0
        %8478 = vmatprep.mubr.f32.mxu0 %v8275
        %8479 = vmatmul.mubr.f32.gmra.mxu0 %v8165
        %v8480 = vpop.f32.mrf.mxu0
        %v8481 = vadd.f32 %v8207, %v8480
        %v8482 = vpop.f32.mrf.mxu0
        %8483 = vmatprep.mubr.f32.mxu0 %v8278
        %8484 = vmatmul.mubr.f32.gmra.mxu0 %v8167
        %v8485 = vpop.f32.mrf.mxu0
        %v8486 = vadd.f32 %v8207, %v8485
        %v8487 = vpop.f32.mrf.mxu0
        %8488 = vmatprep.mubr.f32.mxu0 %v8281
        %8489 = vmatmul.mubr.f32.gmra.mxu0 %v8169
        %v8490 = vpop.f32.mrf.mxu0
        %v8491 = vadd.f32 %v8207, %v8490
        %v8492 = vpop.f32.mrf.mxu0
        %8493 = vmatprep.mubr.f32.mxu0 %v8284
        %8494 = vmatmul.mubr.f32.gmra.mxu0 %v8171
        %v8495 = vpop.f32.mrf.mxu0
        %v8496 = vadd.f32 %v8207, %v8495
        %v8497 = vpop.f32.mrf.mxu0
        %8498 = vmatprep.mubr.f32.mxu0 %v8287
        %8499 = vmatmul.mubr.f32.gmra.mxu0 %v8173
        %v8500 = vpop.f32.mrf.mxu0
        %v8501 = vadd.f32 %v8207, %v8500
        %v8502 = vpop.f32.mrf.mxu0
        %8503 = vmatprep.mubr.f32.mxu0 %v8290
        %8504 = vmatmul.mubr.f32.gmra.mxu0 %v8175
        %v8505 = vpop.f32.mrf.mxu0
        %v8506 = vadd.f32 %v8207, %v8505
        %v8507 = vpop.f32.mrf.mxu0
        %8508 = vmatprep.mubr.f32.mxu0 %v8293
        %8509 = vmatmul.mubr.f32.gmra.mxu0 %v8177
        %v8510 = vpop.f32.mrf.mxu0
        %v8511 = vadd.f32 %v8207, %v8510
        %v8512 = vpop.f32.mrf.mxu0
        %8513 = vmatprep.mubr.f32.mxu0 %v8296
        %8514 = vmatmul.mubr.f32.gmra.mxu0 %v8179
        %v8515 = vpop.f32.mrf.mxu0
        %v8516 = vadd.f32 %v8207, %v8515
        %v8517 = vpop.f32.mrf.mxu0
        %8518 = vmatprep.mubr.f32.mxu0 %v8299
        %8519 = vmatmul.mubr.f32.gmra.mxu0 %v8181
        %v8520 = vpop.f32.mrf.mxu0
        %v8521 = vadd.f32 %v8207, %v8520
        %v8522 = vpop.f32.mrf.mxu0
        %8523 = vmatprep.mubr.f32.mxu0 %v8302
        %8524 = vmatmul.mubr.f32.gmra.mxu0 %v8183
        %v8525 = vpop.f32.mrf.mxu0
        %v8526 = vadd.f32 %v8207, %v8525
        %v8527 = vpop.f32.mrf.mxu0
        %8528 = vdwg.mxu0
        %v8529 = vxor.u32 %v8371, 2147483648
        %v8530 = vxor.u32 %v8376, 2147483648
        %v8531 = vxor.u32 %v8381, 2147483648
        %v8532 = vxor.u32 %v8386, 2147483648
        %v8533 = vxor.u32 %v8391, 2147483648
        %v8534 = vxor.u32 %v8396, 2147483648
        %v8535 = vxor.u32 %v8401, 2147483648
        %v8536 = vxor.u32 %v8406, 2147483648
        %v8537 = vxor.u32 %v8411, 2147483648
        %v8538 = vxor.u32 %v8416, 2147483648
        %v8539 = vxor.u32 %v8421, 2147483648
        %v8540 = vxor.u32 %v8426, 2147483648
        %v8541 = vxor.u32 %v8431, 2147483648
        %v8542 = vxor.u32 %v8436, 2147483648
        %v8543 = vxor.u32 %v8441, 2147483648
        %v8544 = vxor.u32 %v8446, 2147483648
        %v8545 = vxor.u32 %v8451, 2147483648
        %v8546 = vxor.u32 %v8456, 2147483648
        %v8547 = vxor.u32 %v8461, 2147483648
        %v8548 = vxor.u32 %v8466, 2147483648
        %v8549 = vxor.u32 %v8471, 2147483648
        %v8550 = vxor.u32 %v8476, 2147483648
        %v8551 = vxor.u32 %v8481, 2147483648
        %v8552 = vxor.u32 %v8486, 2147483648
        %v8553 = vxor.u32 %v8491, 2147483648
        %v8554 = vxor.u32 %v8496, 2147483648
        %v8555 = vxor.u32 %v8501, 2147483648
        %v8556 = vxor.u32 %v8506, 2147483648
        %v8557 = vxor.u32 %v8511, 2147483648
        %v8558 = vxor.u32 %v8516, 2147483648
        %v8559 = vxor.u32 %v8521, 2147483648
        %v8560 = vxor.u32 %v8526, 2147483648
        %v8561 = vmul.f32 %v8529, 1.442695
        %v8562 = vpow.pop %v8561
        %v8563 = vmul.f32 %v8530, 1.442695
        %v8564 = vpow.pop %v8563
        %v8565 = vmul.f32 %v8531, 1.442695
        %v8566 = vpow.pop %v8565
        %v8567 = vmul.f32 %v8532, 1.442695
        %v8568 = vpow.pop %v8567
        %v8569 = vmul.f32 %v8533, 1.442695
        %v8570 = vpow.pop %v8569
        %v8571 = vmul.f32 %v8534, 1.442695
        %v8572 = vpow.pop %v8571
        %v8573 = vmul.f32 %v8535, 1.442695
        %v8574 = vpow.pop %v8573
        %v8575 = vmul.f32 %v8536, 1.442695
        %v8576 = vpow.pop %v8575
        %v8577 = vmul.f32 %v8537, 1.442695
        %v8578 = vpow.pop %v8577
        %v8579 = vmul.f32 %v8538, 1.442695
        %v8580 = vpow.pop %v8579
        %v8581 = vmul.f32 %v8539, 1.442695
        %v8582 = vpow.pop %v8581
        %v8583 = vmul.f32 %v8540, 1.442695
        %v8584 = vpow.pop %v8583
        %v8585 = vmul.f32 %v8541, 1.442695
        %v8586 = vpow.pop %v8585
        %v8587 = vmul.f32 %v8542, 1.442695
        %v8588 = vpow.pop %v8587
        %v8589 = vmul.f32 %v8543, 1.442695
        %v8590 = vpow.pop %v8589
        %v8591 = vmul.f32 %v8544, 1.442695
        %v8592 = vpow.pop %v8591
        %v8593 = vmul.f32 %v8545, 1.442695
        %v8594 = vpow.pop %v8593
        %v8595 = vmul.f32 %v8546, 1.442695
        %v8596 = vpow.pop %v8595
        %v8597 = vmul.f32 %v8547, 1.442695
        %v8598 = vpow.pop %v8597
        %v8599 = vmul.f32 %v8548, 1.442695
        %v8600 = vpow.pop %v8599
        %v8601 = vmul.f32 %v8549, 1.442695
        %v8602 = vpow.pop %v8601
        %v8603 = vmul.f32 %v8550, 1.442695
        %v8604 = vpow.pop %v8603
        %v8605 = vmul.f32 %v8551, 1.442695
        %v8606 = vpow.pop %v8605
        %v8607 = vmul.f32 %v8552, 1.442695
        %v8608 = vpow.pop %v8607
        %v8609 = vmul.f32 %v8553, 1.442695
        %v8610 = vpow.pop %v8609
        %v8611 = vmul.f32 %v8554, 1.442695
        %v8612 = vpow.pop %v8611
        %v8613 = vmul.f32 %v8555, 1.442695
        %v8614 = vpow.pop %v8613
        %v8615 = vmul.f32 %v8556, 1.442695
        %v8616 = vpow.pop %v8615
        %v8617 = vmul.f32 %v8557, 1.442695
        %v8618 = vpow.pop %v8617
        %v8619 = vmul.f32 %v8558, 1.442695
        %v8620 = vpow.pop %v8619
        %v8621 = vmul.f32 %v8559, 1.442695
        %v8622 = vpow.pop %v8621
        %v8623 = vmul.f32 %v8560, 1.442695
        %v8624 = vpow.pop %v8623
        %v8625 = vadd.f32 %v8562, 1.0
        %v8626 = vadd.f32 %v8564, 1.0
        %v8627 = vadd.f32 %v8566, 1.0
        %v8628 = vadd.f32 %v8568, 1.0
        %v8629 = vadd.f32 %v8570, 1.0
        %v8630 = vadd.f32 %v8572, 1.0
        %v8631 = vadd.f32 %v8574, 1.0
        %v8632 = vadd.f32 %v8576, 1.0
        %v8633 = vadd.f32 %v8578, 1.0
        %v8634 = vadd.f32 %v8580, 1.0
        %v8635 = vadd.f32 %v8582, 1.0
        %v8636 = vadd.f32 %v8584, 1.0
        %v8637 = vadd.f32 %v8586, 1.0
        %v8638 = vadd.f32 %v8588, 1.0
        %v8639 = vadd.f32 %v8590, 1.0
        %v8640 = vadd.f32 %v8592, 1.0
        %v8641 = vadd.f32 %v8594, 1.0
        %v8642 = vadd.f32 %v8596, 1.0
        %v8643 = vadd.f32 %v8598, 1.0
        %v8644 = vadd.f32 %v8600, 1.0
        %v8645 = vadd.f32 %v8602, 1.0
        %v8646 = vadd.f32 %v8604, 1.0
        %v8647 = vadd.f32 %v8606, 1.0
        %v8648 = vadd.f32 %v8608, 1.0
        %v8649 = vadd.f32 %v8610, 1.0
        %v8650 = vadd.f32 %v8612, 1.0
        %v8651 = vadd.f32 %v8614, 1.0
        %v8652 = vadd.f32 %v8616, 1.0
        %v8653 = vadd.f32 %v8618, 1.0
        %v8654 = vadd.f32 %v8620, 1.0
        %v8655 = vadd.f32 %v8622, 1.0
        %v8656 = vadd.f32 %v8624, 1.0
        %v8657 = vrcp.pop %v8625
        %v8658 = vmul.f32 1.0, %v8657
        %v8659 = vrcp.pop %v8626
        %v8660 = vmul.f32 1.0, %v8659
        %v8661 = vrcp.pop %v8627
        %v8662 = vmul.f32 1.0, %v8661
        %v8663 = vrcp.pop %v8628
        %v8664 = vmul.f32 1.0, %v8663
        %v8665 = vrcp.pop %v8629
        %v8666 = vmul.f32 1.0, %v8665
        %v8667 = vrcp.pop %v8630
        %v8668 = vmul.f32 1.0, %v8667
        %v8669 = vrcp.pop %v8631
        %v8670 = vmul.f32 1.0, %v8669
        %v8671 = vrcp.pop %v8632
        %v8672 = vmul.f32 1.0, %v8671
        %v8673 = vrcp.pop %v8633
        %v8674 = vmul.f32 1.0, %v8673
        %v8675 = vrcp.pop %v8634
        %v8676 = vmul.f32 1.0, %v8675
        %v8677 = vrcp.pop %v8635
        %v8678 = vmul.f32 1.0, %v8677
        %v8679 = vrcp.pop %v8636
        %v8680 = vmul.f32 1.0, %v8679
        %v8681 = vrcp.pop %v8637
        %v8682 = vmul.f32 1.0, %v8681
        %v8683 = vrcp.pop %v8638
        %v8684 = vmul.f32 1.0, %v8683
        %v8685 = vrcp.pop %v8639
        %v8686 = vmul.f32 1.0, %v8685
        %v8687 = vrcp.pop %v8640
        %v8688 = vmul.f32 1.0, %v8687
        %v8689 = vrcp.pop %v8641
        %v8690 = vmul.f32 1.0, %v8689
        %v8691 = vrcp.pop %v8642
        %v8692 = vmul.f32 1.0, %v8691
        %v8693 = vrcp.pop %v8643
        %v8694 = vmul.f32 1.0, %v8693
        %v8695 = vrcp.pop %v8644
        %v8696 = vmul.f32 1.0, %v8695
        %v8697 = vrcp.pop %v8645
        %v8698 = vmul.f32 1.0, %v8697
        %v8699 = vrcp.pop %v8646
        %v8700 = vmul.f32 1.0, %v8699
        %v8701 = vrcp.pop %v8647
        %v8702 = vmul.f32 1.0, %v8701
        %v8703 = vrcp.pop %v8648
        %v8704 = vmul.f32 1.0, %v8703
        %v8705 = vrcp.pop %v8649
        %v8706 = vmul.f32 1.0, %v8705
        %v8707 = vrcp.pop %v8650
        %v8708 = vmul.f32 1.0, %v8707
        %v8709 = vrcp.pop %v8651
        %v8710 = vmul.f32 1.0, %v8709
        %v8711 = vrcp.pop %v8652
        %v8712 = vmul.f32 1.0, %v8711
        %v8713 = vrcp.pop %v8653
        %v8714 = vmul.f32 1.0, %v8713
        %v8715 = vrcp.pop %v8654
        %v8716 = vmul.f32 1.0, %v8715
        %v8717 = vrcp.pop %v8655
        %v8718 = vmul.f32 1.0, %v8717
        %v8719 = vrcp.pop %v8656
        %v8720 = vmul.f32 1.0, %v8719
        %v8721 = vmul.f32 %v8371, %v8658
        %v8722 = vmul.f32 %v8376, %v8660
        %v8723 = vmul.f32 %v8381, %v8662
        %v8724 = vmul.f32 %v8386, %v8664
        %v8725 = vmul.f32 %v8391, %v8666
        %v8726 = vmul.f32 %v8396, %v8668
        %v8727 = vmul.f32 %v8401, %v8670
        %v8728 = vmul.f32 %v8406, %v8672
        %v8729 = vmul.f32 %v8411, %v8674
        %v8730 = vmul.f32 %v8416, %v8676
        %v8731 = vmul.f32 %v8421, %v8678
        %v8732 = vmul.f32 %v8426, %v8680
        %v8733 = vmul.f32 %v8431, %v8682
        %v8734 = vmul.f32 %v8436, %v8684
        %v8735 = vmul.f32 %v8441, %v8686
        %v8736 = vmul.f32 %v8446, %v8688
        %v8737 = vmul.f32 %v8451, %v8690
        %v8738 = vmul.f32 %v8456, %v8692
        %v8739 = vmul.f32 %v8461, %v8694
        %v8740 = vmul.f32 %v8466, %v8696
        %v8741 = vmul.f32 %v8471, %v8698
        %v8742 = vmul.f32 %v8476, %v8700
        %v8743 = vmul.f32 %v8481, %v8702
        %v8744 = vmul.f32 %v8486, %v8704
        %v8745 = vmul.f32 %v8491, %v8706
        %v8746 = vmul.f32 %v8496, %v8708
        %v8747 = vmul.f32 %v8501, %v8710
        %v8748 = vmul.f32 %v8506, %v8712
        %v8749 = vmul.f32 %v8511, %v8714
        %v8750 = vmul.f32 %v8516, %v8716
        %v8751 = vmul.f32 %v8521, %v8718
        %v8752 = vmul.f32 %v8526, %v8720
        %8785 = vrot.lane.b32.xlu0 %v8721, 16
        %v8786 = vpop.permute.xlu0 %8785
        %8787 = vrot.lane.b32.xlu0 %v8722, 16
        %v8788 = vpop.permute.xlu0 %8787
        %8789 = vrot.lane.b32.xlu0 %v8723, 16
        %v8790 = vpop.permute.xlu0 %8789
        %8791 = vrot.lane.b32.xlu0 %v8724, 16
        %v8792 = vpop.permute.xlu0 %8791
        %8793 = vrot.lane.b32.xlu0 %v8725, 16
        %v8794 = vpop.permute.xlu0 %8793
        %8795 = vrot.lane.b32.xlu0 %v8726, 16
        %v8796 = vpop.permute.xlu0 %8795
        %8797 = vrot.lane.b32.xlu0 %v8727, 16
        %v8798 = vpop.permute.xlu0 %8797
        %8799 = vrot.lane.b32.xlu0 %v8728, 16
        %v8800 = vpop.permute.xlu0 %8799
        %8801 = vrot.lane.b32.xlu0 %v8729, 16
        %v8802 = vpop.permute.xlu0 %8801
        %8803 = vrot.lane.b32.xlu0 %v8730, 16
        %v8804 = vpop.permute.xlu0 %8803
        %8805 = vrot.lane.b32.xlu0 %v8731, 16
        %v8806 = vpop.permute.xlu0 %8805
        %8807 = vrot.lane.b32.xlu0 %v8732, 16
        %v8808 = vpop.permute.xlu0 %8807
        %8809 = vrot.lane.b32.xlu0 %v8733, 16
        %v8810 = vpop.permute.xlu0 %8809
        %8811 = vrot.lane.b32.xlu0 %v8734, 16
        %v8812 = vpop.permute.xlu0 %8811
        %8813 = vrot.lane.b32.xlu0 %v8735, 16
        %v8814 = vpop.permute.xlu0 %8813
        %8815 = vrot.lane.b32.xlu0 %v8736, 16
        %v8816 = vpop.permute.xlu0 %8815
        %8817 = vrot.lane.b32.xlu0 %v8737, 16
        %v8818 = vpop.permute.xlu0 %8817
        %8819 = vrot.lane.b32.xlu0 %v8738, 16
        %v8820 = vpop.permute.xlu0 %8819
        %8821 = vrot.lane.b32.xlu0 %v8739, 16
        %v8822 = vpop.permute.xlu0 %8821
        %8823 = vrot.lane.b32.xlu0 %v8740, 16
        %v8824 = vpop.permute.xlu0 %8823
        %8825 = vrot.lane.b32.xlu0 %v8741, 16
        %v8826 = vpop.permute.xlu0 %8825
        %8827 = vrot.lane.b32.xlu0 %v8742, 16
        %v8828 = vpop.permute.xlu0 %8827
        %8829 = vrot.lane.b32.xlu0 %v8743, 16
        %v8830 = vpop.permute.xlu0 %8829
        %8831 = vrot.lane.b32.xlu0 %v8744, 16
        %v8832 = vpop.permute.xlu0 %8831
        %8833 = vrot.lane.b32.xlu0 %v8745, 16
        %v8834 = vpop.permute.xlu0 %8833
        %8835 = vrot.lane.b32.xlu0 %v8746, 16
        %v8836 = vpop.permute.xlu0 %8835
        %8837 = vrot.lane.b32.xlu0 %v8747, 16
        %v8838 = vpop.permute.xlu0 %8837
        %8839 = vrot.lane.b32.xlu0 %v8748, 16
        %v8840 = vpop.permute.xlu0 %8839
        %8841 = vrot.lane.b32.xlu0 %v8749, 16
        %v8842 = vpop.permute.xlu0 %8841
        %8843 = vrot.lane.b32.xlu0 %v8750, 16
        %v8844 = vpop.permute.xlu0 %8843
        %8845 = vrot.lane.b32.xlu0 %v8751, 16
        %v8846 = vpop.permute.xlu0 %8845
        %8847 = vrot.lane.b32.xlu0 %v8752, 16
        %v8848 = vpop.permute.xlu0 %8847
        %8881 = vst.msk [vmem:[#allocation6] sm:$0xff] %vm1513, %v8786
        %8882 = vst.msk [vmem:[#allocation6 + $0x8] sm:$0xff] %vm1513, %v8788
        %8883 = vst.msk [vmem:[#allocation6 + $0x10] sm:$0xff] %vm1513, %v8790
        %8884 = vst.msk [vmem:[#allocation6 + $0x18] sm:$0xff] %vm1513, %v8792
        %8885 = vst.msk [vmem:[#allocation6 + $0x20] sm:$0xff] %vm1513, %v8794
        %8886 = vst.msk [vmem:[#allocation6 + $0x28] sm:$0xff] %vm1513, %v8796
        %8887 = vst.msk [vmem:[#allocation6 + $0x30] sm:$0xff] %vm1513, %v8798
        %8888 = vst.msk [vmem:[#allocation6 + $0x38] sm:$0xff] %vm1513, %v8800
        %8889 = vst.msk [vmem:[#allocation6 + $0x40] sm:$0xff] %vm1513, %v8802
        %8890 = vst.msk [vmem:[#allocation6 + $0x48] sm:$0xff] %vm1513, %v8804
        %8891 = vst.msk [vmem:[#allocation6 + $0x50] sm:$0xff] %vm1513, %v8806
        %8892 = vst.msk [vmem:[#allocation6 + $0x58] sm:$0xff] %vm1513, %v8808
        %8893 = vst.msk [vmem:[#allocation6 + $0x60] sm:$0xff] %vm1513, %v8810
        %8894 = vst.msk [vmem:[#allocation6 + $0x68] sm:$0xff] %vm1513, %v8812
        %8895 = vst.msk [vmem:[#allocation6 + $0x70] sm:$0xff] %vm1513, %v8814
        %8896 = vst.msk [vmem:[#allocation6 + $0x78] sm:$0xff] %vm1513, %v8816
        %8897 = vst.msk [vmem:[#allocation6 + $0x80] sm:$0xff] %vm1513, %v8818
        %8898 = vst.msk [vmem:[#allocation6 + $0x88] sm:$0xff] %vm1513, %v8820
        %8899 = vst.msk [vmem:[#allocation6 + $0x90] sm:$0xff] %vm1513, %v8822
        %8900 = vst.msk [vmem:[#allocation6 + $0x98] sm:$0xff] %vm1513, %v8824
        %8901 = vst.msk [vmem:[#allocation6 + $0xa0] sm:$0xff] %vm1513, %v8826
        %8902 = vst.msk [vmem:[#allocation6 + $0xa8] sm:$0xff] %vm1513, %v8828
        %8903 = vst.msk [vmem:[#allocation6 + $0xb0] sm:$0xff] %vm1513, %v8830
        %8904 = vst.msk [vmem:[#allocation6 + $0xb8] sm:$0xff] %vm1513, %v8832
        %8905 = vst.msk [vmem:[#allocation6 + $0xc0] sm:$0xff] %vm1513, %v8834
        %8906 = vst.msk [vmem:[#allocation6 + $0xc8] sm:$0xff] %vm1513, %v8836
        %8907 = vst.msk [vmem:[#allocation6 + $0xd0] sm:$0xff] %vm1513, %v8838
        %8908 = vst.msk [vmem:[#allocation6 + $0xd8] sm:$0xff] %vm1513, %v8840
        %8909 = vst.msk [vmem:[#allocation6 + $0xe0] sm:$0xff] %vm1513, %v8842
        %8910 = vst.msk [vmem:[#allocation6 + $0xe8] sm:$0xff] %vm1513, %v8844
        %8911 = vst.msk [vmem:[#allocation6 + $0xf0] sm:$0xff] %vm1513, %v8846
        %8912 = vst.msk [vmem:[#allocation6 + $0xf8] sm:$0xff] %vm1513, %v8848
        %v8913 = vld [vmem:[#allocation6] sm:$0xff]
        %v8914 = vld [vmem:[#allocation6 + $0x8] sm:$0xff]
        %v8915 = vld [vmem:[#allocation6 + $0x10] sm:$0xff]
        %v8916 = vld [vmem:[#allocation6 + $0x18] sm:$0xff]
        %v8917 = vld [vmem:[#allocation6 + $0x20] sm:$0xff]
        %v8918 = vld [vmem:[#allocation6 + $0x28] sm:$0xff]
        %v8919 = vld [vmem:[#allocation6 + $0x30] sm:$0xff]
        %v8920 = vld [vmem:[#allocation6 + $0x38] sm:$0xff]
        %v8921 = vld [vmem:[#allocation6 + $0x40] sm:$0xff]
        %v8922 = vld [vmem:[#allocation6 + $0x48] sm:$0xff]
        %v8923 = vld [vmem:[#allocation6 + $0x50] sm:$0xff]
        %v8924 = vld [vmem:[#allocation6 + $0x58] sm:$0xff]
        %v8925 = vld [vmem:[#allocation6 + $0x60] sm:$0xff]
        %v8926 = vld [vmem:[#allocation6 + $0x68] sm:$0xff]
        %v8927 = vld [vmem:[#allocation6 + $0x70] sm:$0xff]
        %v8928 = vld [vmem:[#allocation6 + $0x78] sm:$0xff]
        %v8929 = vld [vmem:[#allocation6 + $0x80] sm:$0xff]
        %v8930 = vld [vmem:[#allocation6 + $0x88] sm:$0xff]
        %v8931 = vld [vmem:[#allocation6 + $0x90] sm:$0xff]
        %v8932 = vld [vmem:[#allocation6 + $0x98] sm:$0xff]
        %v8933 = vld [vmem:[#allocation6 + $0xa0] sm:$0xff]
        %v8934 = vld [vmem:[#allocation6 + $0xa8] sm:$0xff]
        %v8935 = vld [vmem:[#allocation6 + $0xb0] sm:$0xff]
        %v8936 = vld [vmem:[#allocation6 + $0xb8] sm:$0xff]
        %v8937 = vld [vmem:[#allocation6 + $0xc0] sm:$0xff]
        %v8938 = vld [vmem:[#allocation6 + $0xc8] sm:$0xff]
        %v8939 = vld [vmem:[#allocation6 + $0xd0] sm:$0xff]
        %v8940 = vld [vmem:[#allocation6 + $0xd8] sm:$0xff]
        %v8941 = vld [vmem:[#allocation6 + $0xe0] sm:$0xff]
        %v8942 = vld [vmem:[#allocation6 + $0xe8] sm:$0xff]
        %v8943 = vld [vmem:[#allocation6 + $0xf0] sm:$0xff]
        %v8944 = vld [vmem:[#allocation6 + $0xf8] sm:$0xff]
        %v8945 = vld [vmem:[%s7] sm:$0xff]
        %v8946 = vld [vmem:[%s7 + $0x8] sm:$0xff]
        %v8947 = vld [vmem:[%s7 + $0x10] sm:$0xff]
        %v8948 = vld [vmem:[%s7 + $0x18] sm:$0xff]
        %v8949 = vld [vmem:[%s9] sm:$0x1]
        %v8951 = vlaneseq
        %v8952 = vshrl.u32 %v8951, 7
        %v8953 = vsub.s32 0, %v8952
        %v8954 = vrot.slane %v8949, %v8953
        %v8957 = vsel %vm518, %v8913, 0
        %v8960 = vsel %vm518, %v8914, 0
        %v8963 = vsel %vm518, %v8915, 0
        %v8966 = vsel %vm518, %v8916, 0
        %v8969 = vsel %vm518, %v8917, 0
        %v8972 = vsel %vm518, %v8918, 0
        %v8975 = vsel %vm518, %v8919, 0
        %v8978 = vsel %vm518, %v8920, 0
        %v8981 = vsel %vm518, %v8921, 0
        %v8984 = vsel %vm518, %v8922, 0
        %v8987 = vsel %vm518, %v8923, 0
        %v8990 = vsel %vm518, %v8924, 0
        %v8993 = vsel %vm518, %v8925, 0
        %v8996 = vsel %vm518, %v8926, 0
        %v8999 = vsel %vm518, %v8927, 0
        %v9002 = vsel %vm518, %v8928, 0
        %v9005 = vsel %vm518, %v8929, 0
        %v9008 = vsel %vm518, %v8930, 0
        %v9011 = vsel %vm518, %v8931, 0
        %v9014 = vsel %vm518, %v8932, 0
        %v9017 = vsel %vm518, %v8933, 0
        %v9020 = vsel %vm518, %v8934, 0
        %v9023 = vsel %vm518, %v8935, 0
        %v9026 = vsel %vm518, %v8936, 0
        %v9029 = vsel %vm518, %v8937, 0
        %v9032 = vsel %vm518, %v8938, 0
        %v9035 = vsel %vm518, %v8939, 0
        %v9038 = vsel %vm518, %v8940, 0
        %v9041 = vsel %vm518, %v8941, 0
        %v9044 = vsel %vm518, %v8942, 0
        %v9047 = vsel %vm518, %v8943, 0
        %v9050 = vsel %vm518, %v8944, 0
        %9052 = vmatprep.subr.mxu0 0.0
        %9053 = vmatpush1.msra.mxu0 0.0
        %9054 = vmatprep.subr.mxu0 0.0
        %9055 = vmatpush1.msra.mxu0 0.0
        %9056 = vmatprep.subr.mxu0 0.0
        %9057 = vmatpush1.msra.mxu0 0.0
        %9058 = vmatprep.subr.mxu0 0.0
        %9059 = vmatpush1.msra.mxu0 0.0
        %9060 = vmatprep.subr.mxu0 0.0
        %9061 = vmatpush1.msra.mxu0 0.0
        %9062 = vmatprep.subr.mxu0 0.0
        %9063 = vmatpush1.msra.mxu0 0.0
        %9064 = vmatprep.subr.mxu0 0.0
        %9065 = vmatpush1.msra.mxu0 0.0
        %9066 = vmatprep.subr.mxu0 0.0
        %9067 = vmatpush1.msra.mxu0 0.0
        %9068 = vmatprep.subr.mxu0 0.0
        %9069 = vmatpush1.msra.mxu0 0.0
        %9070 = vmatprep.subr.mxu0 0.0
        %9071 = vmatpush1.msra.mxu0 0.0
        %9072 = vmatprep.subr.mxu0 0.0
        %9073 = vmatpush1.msra.mxu0 0.0
        %9074 = vmatprep.subr.mxu0 0.0
        %9075 = vmatpush1.msra.mxu0 0.0
        %9076 = vmatprep.subr.mxu0 0.0
        %9077 = vmatpush1.msra.mxu0 %v8948
        %9078 = vmatprep.subr.mxu0 0.0
        %9079 = vmatpush1.msra.mxu0 %v8947
        %9080 = vmatprep.subr.mxu0 0.0
        %9081 = vmatpush1.msra.mxu0 %v8946
        %9082 = vmatprep.subr.mxu0 0.0
        %9083 = vmatpush1.msra.mxu0 %v8945
        %9084 = vmatprep.subr.mxu0 0.0
        %9085 = vmatpush2.msra.mxu0 0.0
        %9086 = vmatprep.subr.mxu0 0.0
        %9087 = vmatpush2.msra.mxu0 0.0
        %9088 = vmatprep.subr.mxu0 0.0
        %9089 = vmatpush2.msra.mxu0 0.0
        %9090 = vmatprep.subr.mxu0 0.0
        %9091 = vmatpush2.msra.mxu0 0.0
        %9092 = vmatprep.subr.mxu0 0.0
        %9093 = vmatpush2.msra.mxu0 0.0
        %9094 = vmatprep.subr.mxu0 0.0
        %9095 = vmatpush2.msra.mxu0 0.0
        %9096 = vmatprep.subr.mxu0 0.0
        %9097 = vmatpush2.msra.mxu0 0.0
        %9098 = vmatprep.subr.mxu0 0.0
        %9099 = vmatpush2.msra.mxu0 0.0
        %9100 = vmatprep.subr.mxu0 0.0
        %9101 = vmatpush2.msra.mxu0 0.0
        %9102 = vmatprep.subr.mxu0 0.0
        %9103 = vmatpush2.msra.mxu0 0.0
        %9104 = vmatprep.subr.mxu0 0.0
        %9105 = vmatpush2.msra.mxu0 0.0
        %9106 = vmatprep.subr.mxu0 0.0
        %9107 = vmatpush2.msra.mxu0 0.0
        %9108 = vmatprep.subr.mxu0 0.0
        %9109 = vmatpush2.msra.mxu0 0.0
        %9110 = vmatprep.subr.mxu0 0.0
        %9111 = vmatpush2.msra.mxu0 0.0
        %9112 = vmatprep.subr.mxu0 0.0
        %9113 = vmatpush2.msra.mxu0 0.0
        %9114 = vmatprep.subr.mxu0 0.0
        %9115 = vmatpush2.msra.mxu0 0.0
        %9116 = vmatprep.mubr.f32.mxu0 0.0
        %9117 = vmatmul.mubr.f32.gmra.mxu0 %v8957
        %v9118 = vpop.f32.mrf.mxu0
        %v9119 = vadd.f32 %v8954, %v9118
        %v9120 = vpop.f32.mrf.mxu0
        %9121 = vmatprep.mubr.f32.mxu0 0.0
        %9122 = vmatmul.mubr.f32.gmra.mxu0 %v8960
        %v9123 = vpop.f32.mrf.mxu0
        %v9124 = vadd.f32 %v8954, %v9123
        %v9125 = vpop.f32.mrf.mxu0
        %9126 = vmatprep.mubr.f32.mxu0 0.0
        %9127 = vmatmul.mubr.f32.gmra.mxu0 %v8963
        %v9128 = vpop.f32.mrf.mxu0
        %v9129 = vadd.f32 %v8954, %v9128
        %v9130 = vpop.f32.mrf.mxu0
        %9131 = vmatprep.mubr.f32.mxu0 0.0
        %9132 = vmatmul.mubr.f32.gmra.mxu0 %v8966
        %v9133 = vpop.f32.mrf.mxu0
        %v9134 = vadd.f32 %v8954, %v9133
        %v9135 = vpop.f32.mrf.mxu0
        %9136 = vmatprep.mubr.f32.mxu0 0.0
        %9137 = vmatmul.mubr.f32.gmra.mxu0 %v8969
        %v9138 = vpop.f32.mrf.mxu0
        %v9139 = vadd.f32 %v8954, %v9138
        %v9140 = vpop.f32.mrf.mxu0
        %9141 = vmatprep.mubr.f32.mxu0 0.0
        %9142 = vmatmul.mubr.f32.gmra.mxu0 %v8972
        %v9143 = vpop.f32.mrf.mxu0
        %v9144 = vadd.f32 %v8954, %v9143
        %v9145 = vpop.f32.mrf.mxu0
        %9146 = vmatprep.mubr.f32.mxu0 0.0
        %9147 = vmatmul.mubr.f32.gmra.mxu0 %v8975
        %v9148 = vpop.f32.mrf.mxu0
        %v9149 = vadd.f32 %v8954, %v9148
        %v9150 = vpop.f32.mrf.mxu0
        %9151 = vmatprep.mubr.f32.mxu0 0.0
        %9152 = vmatmul.mubr.f32.gmra.mxu0 %v8978
        %v9153 = vpop.f32.mrf.mxu0
        %v9154 = vadd.f32 %v8954, %v9153
        %v9155 = vpop.f32.mrf.mxu0
        %9156 = vmatprep.mubr.f32.mxu0 0.0
        %9157 = vmatmul.mubr.f32.gmra.mxu0 %v8981
        %v9158 = vpop.f32.mrf.mxu0
        %v9159 = vadd.f32 %v8954, %v9158
        %v9160 = vpop.f32.mrf.mxu0
        %9161 = vmatprep.mubr.f32.mxu0 0.0
        %9162 = vmatmul.mubr.f32.gmra.mxu0 %v8984
        %v9163 = vpop.f32.mrf.mxu0
        %v9164 = vadd.f32 %v8954, %v9163
        %v9165 = vpop.f32.mrf.mxu0
        %9166 = vmatprep.mubr.f32.mxu0 0.0
        %9167 = vmatmul.mubr.f32.gmra.mxu0 %v8987
        %v9168 = vpop.f32.mrf.mxu0
        %v9169 = vadd.f32 %v8954, %v9168
        %v9170 = vpop.f32.mrf.mxu0
        %9171 = vmatprep.mubr.f32.mxu0 0.0
        %9172 = vmatmul.mubr.f32.gmra.mxu0 %v8990
        %v9173 = vpop.f32.mrf.mxu0
        %v9174 = vadd.f32 %v8954, %v9173
        %v9175 = vpop.f32.mrf.mxu0
        %9176 = vmatprep.mubr.f32.mxu0 0.0
        %9177 = vmatmul.mubr.f32.gmra.mxu0 %v8993
        %v9178 = vpop.f32.mrf.mxu0
        %v9179 = vadd.f32 %v8954, %v9178
        %v9180 = vpop.f32.mrf.mxu0
        %9181 = vmatprep.mubr.f32.mxu0 0.0
        %9182 = vmatmul.mubr.f32.gmra.mxu0 %v8996
        %v9183 = vpop.f32.mrf.mxu0
        %v9184 = vadd.f32 %v8954, %v9183
        %v9185 = vpop.f32.mrf.mxu0
        %9186 = vmatprep.mubr.f32.mxu0 0.0
        %9187 = vmatmul.mubr.f32.gmra.mxu0 %v8999
        %v9188 = vpop.f32.mrf.mxu0
        %v9189 = vadd.f32 %v8954, %v9188
        %v9190 = vpop.f32.mrf.mxu0
        %9191 = vmatprep.mubr.f32.mxu0 0.0
        %9192 = vmatmul.mubr.f32.gmra.mxu0 %v9002
        %v9193 = vpop.f32.mrf.mxu0
        %v9194 = vadd.f32 %v8954, %v9193
        %v9195 = vpop.f32.mrf.mxu0
        %9196 = vmatprep.mubr.f32.mxu0 0.0
        %9197 = vmatmul.mubr.f32.gmra.mxu0 %v9005
        %v9198 = vpop.f32.mrf.mxu0
        %v9199 = vadd.f32 %v8954, %v9198
        %v9200 = vpop.f32.mrf.mxu0
        %9201 = vmatprep.mubr.f32.mxu0 0.0
        %9202 = vmatmul.mubr.f32.gmra.mxu0 %v9008
        %v9203 = vpop.f32.mrf.mxu0
        %v9204 = vadd.f32 %v8954, %v9203
        %v9205 = vpop.f32.mrf.mxu0
        %9206 = vmatprep.mubr.f32.mxu0 0.0
        %9207 = vmatmul.mubr.f32.gmra.mxu0 %v9011
        %v9208 = vpop.f32.mrf.mxu0
        %v9209 = vadd.f32 %v8954, %v9208
        %v9210 = vpop.f32.mrf.mxu0
        %9211 = vmatprep.mubr.f32.mxu0 0.0
        %9212 = vmatmul.mubr.f32.gmra.mxu0 %v9014
        %v9213 = vpop.f32.mrf.mxu0
        %v9214 = vadd.f32 %v8954, %v9213
        %v9215 = vpop.f32.mrf.mxu0
        %9216 = vmatprep.mubr.f32.mxu0 0.0
        %9217 = vmatmul.mubr.f32.gmra.mxu0 %v9017
        %v9218 = vpop.f32.mrf.mxu0
        %v9219 = vadd.f32 %v8954, %v9218
        %v9220 = vpop.f32.mrf.mxu0
        %9221 = vmatprep.mubr.f32.mxu0 0.0
        %9222 = vmatmul.mubr.f32.gmra.mxu0 %v9020
        %v9223 = vpop.f32.mrf.mxu0
        %v9224 = vadd.f32 %v8954, %v9223
        %v9225 = vpop.f32.mrf.mxu0
        %9226 = vmatprep.mubr.f32.mxu0 0.0
        %9227 = vmatmul.mubr.f32.gmra.mxu0 %v9023
        %v9228 = vpop.f32.mrf.mxu0
        %v9229 = vadd.f32 %v8954, %v9228
        %v9230 = vpop.f32.mrf.mxu0
        %9231 = vmatprep.mubr.f32.mxu0 0.0
        %9232 = vmatmul.mubr.f32.gmra.mxu0 %v9026
        %v9233 = vpop.f32.mrf.mxu0
        %v9234 = vadd.f32 %v8954, %v9233
        %v9235 = vpop.f32.mrf.mxu0
        %9236 = vmatprep.mubr.f32.mxu0 0.0
        %9237 = vmatmul.mubr.f32.gmra.mxu0 %v9029
        %v9238 = vpop.f32.mrf.mxu0
        %v9239 = vadd.f32 %v8954, %v9238
        %v9240 = vpop.f32.mrf.mxu0
        %9241 = vmatprep.mubr.f32.mxu0 0.0
        %9242 = vmatmul.mubr.f32.gmra.mxu0 %v9032
        %v9243 = vpop.f32.mrf.mxu0
        %v9244 = vadd.f32 %v8954, %v9243
        %v9245 = vpop.f32.mrf.mxu0
        %9246 = vmatprep.mubr.f32.mxu0 0.0
        %9247 = vmatmul.mubr.f32.gmra.mxu0 %v9035
        %v9248 = vpop.f32.mrf.mxu0
        %v9249 = vadd.f32 %v8954, %v9248
        %v9250 = vpop.f32.mrf.mxu0
        %9251 = vmatprep.mubr.f32.mxu0 0.0
        %9252 = vmatmul.mubr.f32.gmra.mxu0 %v9038
        %v9253 = vpop.f32.mrf.mxu0
        %v9254 = vadd.f32 %v8954, %v9253
        %v9255 = vpop.f32.mrf.mxu0
        %9256 = vmatprep.mubr.f32.mxu0 0.0
        %9257 = vmatmul.mubr.f32.gmra.mxu0 %v9041
        %v9258 = vpop.f32.mrf.mxu0
        %v9259 = vadd.f32 %v8954, %v9258
        %v9260 = vpop.f32.mrf.mxu0
        %9261 = vmatprep.mubr.f32.mxu0 0.0
        %9262 = vmatmul.mubr.f32.gmra.mxu0 %v9044
        %v9263 = vpop.f32.mrf.mxu0
        %v9264 = vadd.f32 %v8954, %v9263
        %v9265 = vpop.f32.mrf.mxu0
        %9266 = vmatprep.mubr.f32.mxu0 0.0
        %9267 = vmatmul.mubr.f32.gmra.mxu0 %v9047
        %v9268 = vpop.f32.mrf.mxu0
        %v9269 = vadd.f32 %v8954, %v9268
        %v9270 = vpop.f32.mrf.mxu0
        %9271 = vmatprep.mubr.f32.mxu0 0.0
        %9272 = vmatmul.mubr.f32.gmra.mxu0 %v9050
        %v9273 = vpop.f32.mrf.mxu0
        %v9274 = vadd.f32 %v8954, %v9273
        %v9275 = vpop.f32.mrf.mxu0
        %9276 = vdwg.mxu0
        %v9277 = vxor.u32 %v9119, 2147483648
        %v9278 = vxor.u32 %v9124, 2147483648
        %v9279 = vxor.u32 %v9129, 2147483648
        %v9280 = vxor.u32 %v9134, 2147483648
        %v9281 = vxor.u32 %v9139, 2147483648
        %v9282 = vxor.u32 %v9144, 2147483648
        %v9283 = vxor.u32 %v9149, 2147483648
        %v9284 = vxor.u32 %v9154, 2147483648
        %v9285 = vxor.u32 %v9159, 2147483648
        %v9286 = vxor.u32 %v9164, 2147483648
        %v9287 = vxor.u32 %v9169, 2147483648
        %v9288 = vxor.u32 %v9174, 2147483648
        %v9289 = vxor.u32 %v9179, 2147483648
        %v9290 = vxor.u32 %v9184, 2147483648
        %v9291 = vxor.u32 %v9189, 2147483648
        %v9292 = vxor.u32 %v9194, 2147483648
        %v9293 = vxor.u32 %v9199, 2147483648
        %v9294 = vxor.u32 %v9204, 2147483648
        %v9295 = vxor.u32 %v9209, 2147483648
        %v9296 = vxor.u32 %v9214, 2147483648
        %v9297 = vxor.u32 %v9219, 2147483648
        %v9298 = vxor.u32 %v9224, 2147483648
        %v9299 = vxor.u32 %v9229, 2147483648
        %v9300 = vxor.u32 %v9234, 2147483648
        %v9301 = vxor.u32 %v9239, 2147483648
        %v9302 = vxor.u32 %v9244, 2147483648
        %v9303 = vxor.u32 %v9249, 2147483648
        %v9304 = vxor.u32 %v9254, 2147483648
        %v9305 = vxor.u32 %v9259, 2147483648
        %v9306 = vxor.u32 %v9264, 2147483648
        %v9307 = vxor.u32 %v9269, 2147483648
        %v9308 = vxor.u32 %v9274, 2147483648
        %v9309 = vmul.f32 %v9277, 1.442695
        %v9310 = vpow.pop %v9309
        %v9311 = vmul.f32 %v9278, 1.442695
        %v9312 = vpow.pop %v9311
        %v9313 = vmul.f32 %v9279, 1.442695
        %v9314 = vpow.pop %v9313
        %v9315 = vmul.f32 %v9280, 1.442695
        %v9316 = vpow.pop %v9315
        %v9317 = vmul.f32 %v9281, 1.442695
        %v9318 = vpow.pop %v9317
        %v9319 = vmul.f32 %v9282, 1.442695
        %v9320 = vpow.pop %v9319
        %v9321 = vmul.f32 %v9283, 1.442695
        %v9322 = vpow.pop %v9321
        %v9323 = vmul.f32 %v9284, 1.442695
        %v9324 = vpow.pop %v9323
        %v9325 = vmul.f32 %v9285, 1.442695
        %v9326 = vpow.pop %v9325
        %v9327 = vmul.f32 %v9286, 1.442695
        %v9328 = vpow.pop %v9327
        %v9329 = vmul.f32 %v9287, 1.442695
        %v9330 = vpow.pop %v9329
        %v9331 = vmul.f32 %v9288, 1.442695
        %v9332 = vpow.pop %v9331
        %v9333 = vmul.f32 %v9289, 1.442695
        %v9334 = vpow.pop %v9333
        %v9335 = vmul.f32 %v9290, 1.442695
        %v9336 = vpow.pop %v9335
        %v9337 = vmul.f32 %v9291, 1.442695
        %v9338 = vpow.pop %v9337
        %v9339 = vmul.f32 %v9292, 1.442695
        %v9340 = vpow.pop %v9339
        %v9341 = vmul.f32 %v9293, 1.442695
        %v9342 = vpow.pop %v9341
        %v9343 = vmul.f32 %v9294, 1.442695
        %v9344 = vpow.pop %v9343
        %v9345 = vmul.f32 %v9295, 1.442695
        %v9346 = vpow.pop %v9345
        %v9347 = vmul.f32 %v9296, 1.442695
        %v9348 = vpow.pop %v9347
        %v9349 = vmul.f32 %v9297, 1.442695
        %v9350 = vpow.pop %v9349
        %v9351 = vmul.f32 %v9298, 1.442695
        %v9352 = vpow.pop %v9351
        %v9353 = vmul.f32 %v9299, 1.442695
        %v9354 = vpow.pop %v9353
        %v9355 = vmul.f32 %v9300, 1.442695
        %v9356 = vpow.pop %v9355
        %v9357 = vmul.f32 %v9301, 1.442695
        %v9358 = vpow.pop %v9357
        %v9359 = vmul.f32 %v9302, 1.442695
        %v9360 = vpow.pop %v9359
        %v9361 = vmul.f32 %v9303, 1.442695
        %v9362 = vpow.pop %v9361
        %v9363 = vmul.f32 %v9304, 1.442695
        %v9364 = vpow.pop %v9363
        %v9365 = vmul.f32 %v9305, 1.442695
        %v9366 = vpow.pop %v9365
        %v9367 = vmul.f32 %v9306, 1.442695
        %v9368 = vpow.pop %v9367
        %v9369 = vmul.f32 %v9307, 1.442695
        %v9370 = vpow.pop %v9369
        %v9371 = vmul.f32 %v9308, 1.442695
        %v9372 = vpow.pop %v9371
        %v9373 = vadd.f32 %v9310, 1.0
        %v9374 = vadd.f32 %v9312, 1.0
        %v9375 = vadd.f32 %v9314, 1.0
        %v9376 = vadd.f32 %v9316, 1.0
        %v9377 = vadd.f32 %v9318, 1.0
        %v9378 = vadd.f32 %v9320, 1.0
        %v9379 = vadd.f32 %v9322, 1.0
        %v9380 = vadd.f32 %v9324, 1.0
        %v9381 = vadd.f32 %v9326, 1.0
        %v9382 = vadd.f32 %v9328, 1.0
        %v9383 = vadd.f32 %v9330, 1.0
        %v9384 = vadd.f32 %v9332, 1.0
        %v9385 = vadd.f32 %v9334, 1.0
        %v9386 = vadd.f32 %v9336, 1.0
        %v9387 = vadd.f32 %v9338, 1.0
        %v9388 = vadd.f32 %v9340, 1.0
        %v9389 = vadd.f32 %v9342, 1.0
        %v9390 = vadd.f32 %v9344, 1.0
        %v9391 = vadd.f32 %v9346, 1.0
        %v9392 = vadd.f32 %v9348, 1.0
        %v9393 = vadd.f32 %v9350, 1.0
        %v9394 = vadd.f32 %v9352, 1.0
        %v9395 = vadd.f32 %v9354, 1.0
        %v9396 = vadd.f32 %v9356, 1.0
        %v9397 = vadd.f32 %v9358, 1.0
        %v9398 = vadd.f32 %v9360, 1.0
        %v9399 = vadd.f32 %v9362, 1.0
        %v9400 = vadd.f32 %v9364, 1.0
        %v9401 = vadd.f32 %v9366, 1.0
        %v9402 = vadd.f32 %v9368, 1.0
        %v9403 = vadd.f32 %v9370, 1.0
        %v9404 = vadd.f32 %v9372, 1.0
        %v9405 = vrcp.pop %v9373
        %v9406 = vmul.f32 1.0, %v9405
        %v9407 = vrcp.pop %v9374
        %v9408 = vmul.f32 1.0, %v9407
        %v9409 = vrcp.pop %v9375
        %v9410 = vmul.f32 1.0, %v9409
        %v9411 = vrcp.pop %v9376
        %v9412 = vmul.f32 1.0, %v9411
        %v9413 = vrcp.pop %v9377
        %v9414 = vmul.f32 1.0, %v9413
        %v9415 = vrcp.pop %v9378
        %v9416 = vmul.f32 1.0, %v9415
        %v9417 = vrcp.pop %v9379
        %v9418 = vmul.f32 1.0, %v9417
        %v9419 = vrcp.pop %v9380
        %v9420 = vmul.f32 1.0, %v9419
        %v9421 = vrcp.pop %v9381
        %v9422 = vmul.f32 1.0, %v9421
        %v9423 = vrcp.pop %v9382
        %v9424 = vmul.f32 1.0, %v9423
        %v9425 = vrcp.pop %v9383
        %v9426 = vmul.f32 1.0, %v9425
        %v9427 = vrcp.pop %v9384
        %v9428 = vmul.f32 1.0, %v9427
        %v9429 = vrcp.pop %v9385
        %v9430 = vmul.f32 1.0, %v9429
        %v9431 = vrcp.pop %v9386
        %v9432 = vmul.f32 1.0, %v9431
        %v9433 = vrcp.pop %v9387
        %v9434 = vmul.f32 1.0, %v9433
        %v9435 = vrcp.pop %v9388
        %v9436 = vmul.f32 1.0, %v9435
        %v9437 = vrcp.pop %v9389
        %v9438 = vmul.f32 1.0, %v9437
        %v9439 = vrcp.pop %v9390
        %v9440 = vmul.f32 1.0, %v9439
        %v9441 = vrcp.pop %v9391
        %v9442 = vmul.f32 1.0, %v9441
        %v9443 = vrcp.pop %v9392
        %v9444 = vmul.f32 1.0, %v9443
        %v9445 = vrcp.pop %v9393
        %v9446 = vmul.f32 1.0, %v9445
        %v9447 = vrcp.pop %v9394
        %v9448 = vmul.f32 1.0, %v9447
        %v9449 = vrcp.pop %v9395
        %v9450 = vmul.f32 1.0, %v9449
        %v9451 = vrcp.pop %v9396
        %v9452 = vmul.f32 1.0, %v9451
        %v9453 = vrcp.pop %v9397
        %v9454 = vmul.f32 1.0, %v9453
        %v9455 = vrcp.pop %v9398
        %v9456 = vmul.f32 1.0, %v9455
        %v9457 = vrcp.pop %v9399
        %v9458 = vmul.f32 1.0, %v9457
        %v9459 = vrcp.pop %v9400
        %v9460 = vmul.f32 1.0, %v9459
        %v9461 = vrcp.pop %v9401
        %v9462 = vmul.f32 1.0, %v9461
        %v9463 = vrcp.pop %v9402
        %v9464 = vmul.f32 1.0, %v9463
        %v9465 = vrcp.pop %v9403
        %v9466 = vmul.f32 1.0, %v9465
        %v9467 = vrcp.pop %v9404
        %v9468 = vmul.f32 1.0, %v9467
        %v9469 = vmul.f32 %v9119, %v9406
        %v9470 = vmul.f32 %v9124, %v9408
        %v9471 = vmul.f32 %v9129, %v9410
        %v9472 = vmul.f32 %v9134, %v9412
        %v9473 = vmul.f32 %v9139, %v9414
        %v9474 = vmul.f32 %v9144, %v9416
        %v9475 = vmul.f32 %v9149, %v9418
        %v9476 = vmul.f32 %v9154, %v9420
        %v9477 = vmul.f32 %v9159, %v9422
        %v9478 = vmul.f32 %v9164, %v9424
        %v9479 = vmul.f32 %v9169, %v9426
        %v9480 = vmul.f32 %v9174, %v9428
        %v9481 = vmul.f32 %v9179, %v9430
        %v9482 = vmul.f32 %v9184, %v9432
        %v9483 = vmul.f32 %v9189, %v9434
        %v9484 = vmul.f32 %v9194, %v9436
        %v9485 = vmul.f32 %v9199, %v9438
        %v9486 = vmul.f32 %v9204, %v9440
        %v9487 = vmul.f32 %v9209, %v9442
        %v9488 = vmul.f32 %v9214, %v9444
        %v9489 = vmul.f32 %v9219, %v9446
        %v9490 = vmul.f32 %v9224, %v9448
        %v9491 = vmul.f32 %v9229, %v9450
        %v9492 = vmul.f32 %v9234, %v9452
        %v9493 = vmul.f32 %v9239, %v9454
        %v9494 = vmul.f32 %v9244, %v9456
        %v9495 = vmul.f32 %v9249, %v9458
        %v9496 = vmul.f32 %v9254, %v9460
        %v9497 = vmul.f32 %v9259, %v9462
        %v9498 = vmul.f32 %v9264, %v9464
        %v9499 = vmul.f32 %v9269, %v9466
        %v9500 = vmul.f32 %v9274, %v9468
        %9501 = vst.msk [vmem:[%s352] sm:$0xff] %vm518, %v9469
        %9502 = vst.msk [vmem:[%s352 + $0x8] sm:$0xff] %vm518, %v9470
        %9503 = vst.msk [vmem:[%s352 + $0x10] sm:$0xff] %vm518, %v9471
        %9504 = vst.msk [vmem:[%s352 + $0x18] sm:$0xff] %vm518, %v9472
        %9505 = vst.msk [vmem:[%s352 + $0x20] sm:$0xff] %vm518, %v9473
        %9506 = vst.msk [vmem:[%s352 + $0x28] sm:$0xff] %vm518, %v9474
        %9507 = vst.msk [vmem:[%s352 + $0x30] sm:$0xff] %vm518, %v9475
        %9508 = vst.msk [vmem:[%s352 + $0x38] sm:$0xff] %vm518, %v9476
        %9509 = vst.msk [vmem:[%s352 + $0x40] sm:$0xff] %vm518, %v9477
        %9510 = vst.msk [vmem:[%s352 + $0x48] sm:$0xff] %vm518, %v9478
        %9511 = vst.msk [vmem:[%s352 + $0x50] sm:$0xff] %vm518, %v9479
        %9512 = vst.msk [vmem:[%s352 + $0x58] sm:$0xff] %vm518, %v9480
        %9513 = vst.msk [vmem:[%s352 + $0x60] sm:$0xff] %vm518, %v9481
        %9514 = vst.msk [vmem:[%s352 + $0x68] sm:$0xff] %vm518, %v9482
        %9515 = vst.msk [vmem:[%s352 + $0x70] sm:$0xff] %vm518, %v9483
        %9516 = vst.msk [vmem:[%s352 + $0x78] sm:$0xff] %vm518, %v9484
        %9517 = vst.msk [vmem:[%s352 + $0x80] sm:$0xff] %vm518, %v9485
        %9518 = vst.msk [vmem:[%s352 + $0x88] sm:$0xff] %vm518, %v9486
        %9519 = vst.msk [vmem:[%s352 + $0x90] sm:$0xff] %vm518, %v9487
        %9520 = vst.msk [vmem:[%s352 + $0x98] sm:$0xff] %vm518, %v9488
        %9521 = vst.msk [vmem:[%s352 + $0xa0] sm:$0xff] %vm518, %v9489
        %9522 = vst.msk [vmem:[%s352 + $0xa8] sm:$0xff] %vm518, %v9490
        %9523 = vst.msk [vmem:[%s352 + $0xb0] sm:$0xff] %vm518, %v9491
        %9524 = vst.msk [vmem:[%s352 + $0xb8] sm:$0xff] %vm518, %v9492
        %9525 = vst.msk [vmem:[%s352 + $0xc0] sm:$0xff] %vm518, %v9493
        %9526 = vst.msk [vmem:[%s352 + $0xc8] sm:$0xff] %vm518, %v9494
        %9527 = vst.msk [vmem:[%s352 + $0xd0] sm:$0xff] %vm518, %v9495
        %9528 = vst.msk [vmem:[%s352 + $0xd8] sm:$0xff] %vm518, %v9496
        %9529 = vst.msk [vmem:[%s352 + $0xe0] sm:$0xff] %vm518, %v9497
        %9530 = vst.msk [vmem:[%s352 + $0xe8] sm:$0xff] %vm518, %v9498
        %9531 = vst.msk [vmem:[%s352 + $0xf0] sm:$0xff] %vm518, %v9499
        %9532 = vst.msk [vmem:[%s352 + $0xf8] sm:$0xff] %vm518, %v9500
        %s9533 = sand.u32 %s247, 1
        %s9534 = scalar_lea.sflag [#allocation8], %s9533
        %s9535 = sand.u32 %s247, 1
        %s9536 = smul.addr %s9535, 256
        %s9537 = scalar_lea.vmem [#allocation7], %s9536
        // Predicated region
        $region61: #{sppcspc_pallas.1} parent=59 // pred_check
          %p9538 = pneg %p257
        $region62: #{sppcspc_pallas.1} parent=59 // pred_check_branch
          %9540 = sbr.rel (%p9538) target = $region64
        $region63: #{sppcspc_pallas.1} parent=59 // pred_region
          %s9542 = ssub.s32 4096, 4096
          %9543 = vsyncadd %s9534, %s9542
          %s9544 = smul.addr %s24, 32
          %s9545 = smul.addr %s9544, 128
          %s9546 = scalar_lea.hbm %s10, %s9545
          %s9547 = sshll.u32 %s9537, 4
          %s9548 = int_to_ptr.vmem [resolvable:$true] %s9547
          %9553 = dma.vmem_to_hbm [thread:$0]  %s9548, 4096, %s9546, %s9534, 128, 128, 8
        $region64: #{sppcspc_pallas.1} parent=59 // pred_fallthru
          _
      $region60: #{sppcspc_pallas.1} parent=5 // pred_fallthru
        _
      %p9554 = scmp.le.s32.totalorder 2, %s19
      // Predicated region
      $region65: #{sppcspc_pallas.1} parent=5 // pred_check
        %p9555 = pneg %p9554
      $region66: #{sppcspc_pallas.1} parent=5 // pred_check_branch
        %9557 = sbr.rel (%p9555) target = $region68
      $region67: #{sppcspc_pallas.1} parent=5 // pred_region
        %s9558 = ssub.s32 %s19, 2
        // Predicated region
        $region69: #{sppcspc_pallas.1} parent=67 // pred_check
          %p9559 = pneg %p263
        $region70: #{sppcspc_pallas.1} parent=67 // pred_check_branch
          %9561 = sbr.rel (%p9559) target = $region72
        $region71: #{sppcspc_pallas.1} parent=67 // pred_region
          %s9562 = sand.u32 %s248, 1
          %s9563 = scalar_lea.sflag [#allocation8], %s9562
          %s9564 = sand.u32 %s248, 1
          %s9565 = smul.addr %s9564, 256
          %s9566 = scalar_lea.vmem [#allocation7], %s9565
          %9567 = dma.done %s9563, 4096
        $region72: #{sppcspc_pallas.1} parent=67 // pred_fallthru
          _
      $region68: #{sppcspc_pallas.1} parent=5 // pred_fallthru
        _
    $region6: #{sppcspc_pallas.1} parent=1 // loop_footer
      %s23 = sadd.s32 1, %s19
    $region7: #{sppcspc_pallas.1} parent=1 // loop_footer_branch
      %18 = sbr.rel target = $region3
    $region8: #{sppcspc_pallas.1} parent=1 // loop_exit
      _
    %9568 = vsyncpa [#allocation8], 1
    %s9569 = scalar_lea.sflag [#allocation8], 1
    %9570 = vsyncpa %s9569, 1

</llo_original>
